<compile_context>
chip_gen: v7x
topology: tpu7x:2x2x1
jax: 0.10.0
libtpu: 0.0.40
codegen_flags: <defaults>
</compile_context>

<pallas_src>
import functools
import math

import numpy as np
import jax
import jax.numpy as jnp
from jax.experimental import pallas as pl
from jax.experimental.pallas import tpu as pltpu

# Matmul tile caps (bf16 inputs, f32 accumulate).  512x1024 + 1024x512 bf16 double-buffered
# plus a 512x512 f32 accumulator is ~7 MiB, comfortably inside every generation's budget.
TM, TN, TK = 512, 512, 1024
NORM_ROWS = 512


def _compute_vmem_limit():
    """Generation-aware scoped-VMEM limit (v7x has 64 MiB physical per TC, v5e/v6e 128 MiB)."""
    try:
        cap = int(pltpu.get_tpu_info().vmem_capacity_bytes)
    except Exception:
        cap = 64 * 1024 * 1024
    if cap <= 64 * 1024 * 1024:
        return 38 * 1024 * 1024
    return 64 * 1024 * 1024


VMEM_LIMIT = _compute_vmem_limit()


def _round_up(x, m):
    return (x + m - 1) // m * m


def _tile_and_pad(dim, cap):
    """Full-dim block (no padding) when the dim fits the cap, else cap-sized tiles."""
    if dim <= cap:
        return dim, dim
    return cap, _round_up(dim, cap)


def _cparams(*sem):
    return pltpu.CompilerParams(dimension_semantics=tuple(sem),
                                vmem_limit_bytes=VMEM_LIMIT)


def _to_bf16(x):
    return x if x.dtype == jnp.bfloat16 else x.astype(jnp.bfloat16)


# ----------------------------- Pallas kernels -----------------------------

def _linear_kernel(*refs, relu, has_residual, nk):
    """Tiled matmul: y = x @ w + b [+ residual] [relu].  bf16 inputs, f32 accumulate."""
    if has_residual:
        x_ref, w_ref, b_ref, r_ref, o_ref, acc_ref = refs
    else:
        x_ref, w_ref, b_ref, o_ref, acc_ref = refs
        r_ref = None
    k = pl.program_id(2)

    @pl.when(k == 0)
    def _():
        acc_ref[...] = jnp.zeros_like(acc_ref)

    acc_ref[...] += jnp.dot(x_ref[...], w_ref[...],
                            preferred_element_type=jnp.float32)

    @pl.when(k == nk - 1)
    def _():
        y = acc_ref[...] + b_ref[...]
        if relu:
            y = jnp.maximum(y, 0.0)
        if has_residual:
            y = y + r_ref[...]
        o_ref[...] = y.astype(o_ref.dtype)


def linear(x2d, w, b, *, relu=False, residual=None, out_dtype=jnp.float32):
    """x2d: (M, K), w: (K, N) bf16, b: (N,) -> (M, N).  Matches torch nn.Linear with the
    weight stored already transposed as (in, out).  Optional fused residual add."""
    M, K = x2d.shape
    _, N = w.shape
    tm, Mp = _tile_and_pad(M, TM)
    tn, Np = _tile_and_pad(N, TN)
    tk, Kp = _tile_and_pad(K, TK)

    xb = _to_bf16(x2d)
    wb = _to_bf16(w)                         # weights are bf16 at init: no-op
    if (Mp, Kp) != (M, K):
        xb = jnp.pad(xb, ((0, Mp - M), (0, Kp - K)))
    if (Kp, Np) != (K, N):
        wb = jnp.pad(wb, ((0, Kp - K), (0, Np - N)))
    bp = (b if Np == N else jnp.pad(b, (0, Np - N))).reshape(1, Np).astype(jnp.float32)

    args = [xb, wb, bp]
    in_specs = [
        pl.BlockSpec((tm, tk), lambda i, j, k: (i, k)),
        pl.BlockSpec((tk, tn), lambda i, j, k: (k, j)),
        pl.BlockSpec((1, tn), lambda i, j, k: (0, j)),
    ]
    has_res = residual is not None
    if has_res:
        r = residual.astype(jnp.float32)
        if (Mp, Np) != (M, N):
            r = jnp.pad(r, ((0, Mp - M), (0, Np - N)))
        args.append(r)
        in_specs.append(pl.BlockSpec((tm, tn), lambda i, j, k: (i, j)))

    nk = Kp // tk
    out = pl.pallas_call(
        functools.partial(_linear_kernel, relu=relu, has_residual=has_res, nk=nk),
        out_shape=jax.ShapeDtypeStruct((Mp, Np), out_dtype),
        grid=(Mp // tm, Np // tn, nk),
        in_specs=in_specs,
        out_specs=pl.BlockSpec((tm, tn), lambda i, j, k: (i, j)),
        scratch_shapes=[pltpu.VMEM((tm, tn), jnp.float32)],
        compiler_params=_cparams("parallel", "parallel", "arbitrary"),
    )(*args)
    if (Mp, Np) != (M, N):
        out = out[:M, :N]
    return out


def _norm_linear_kernel(x_ref, a_ref, g_ref, w_ref, b_ref, o_ref, xn_ref,
                        *, relu, eps, d):
    """Fused (torch-style) LayerNorm -> matmul: y = norm(x) @ w + b [relu].

    The normalization + bf16 cast run once per row tile (at j == 0) into the VMEM scratch
    `xn_ref` and are reused for every N-tile (the j grid axis is 'arbitrary', i.e. sequential)."""
    j = pl.program_id(1)

    @pl.when(j == 0)
    def _():
        x = x_ref[...]                                              # (tm, K) f32
        mean = jnp.mean(x, axis=-1, keepdims=True)
        c = x - mean
        var = jnp.sum(c * c, axis=-1, keepdims=True) * (1.0 / (d - 1))  # unbiased (torch.std)
        xn = a_ref[...] * c / (jnp.sqrt(var) + eps) + g_ref[...]
        xn_ref[...] = xn.astype(jnp.bfloat16)

    y = jnp.dot(xn_ref[...], w_ref[...],
                preferred_element_type=jnp.float32) + b_ref[...]
    if relu:
        y = jnp.maximum(y, 0.0)
    o_ref[...] = y.astype(o_ref.dtype)


def norm_linear(x2d, norm_p, w, b, *, relu=False, out_dtype=jnp.float32, eps=1e-6):
    """LayerNorm fused into the following linear.  Falls back to separate kernels if the
    normalized dim is too large to keep as a single K block."""
    M, K = x2d.shape
    _, N = w.shape
    if K > 4096:
        x2 = layer_norm_2d(x2d, norm_p['alpha'], norm_p['bias'], eps=eps)
        return linear(x2, w, b, relu=relu, out_dtype=out_dtype)

    tm, Mp = _tile_and_pad(M, TM)
    tn, Np = _tile_and_pad(N, TN)

    xp = x2d.astype(jnp.float32)
    if Mp != M:
        xp = jnp.pad(xp, ((0, Mp - M), (0, 0)))
    wb = _to_bf16(w)
    if Np != N:
        wb = jnp.pad(wb, ((0, 0), (0, Np - N)))
    bp = (b if Np == N else jnp.pad(b, (0, Np - N))).reshape(1, Np).astype(jnp.float32)
    alpha = norm_p['alpha'].reshape(1, K).astype(jnp.float32)
    beta = norm_p['bias'].reshape(1, K).astype(jnp.float32)

    out = pl.pallas_call(
        functools.partial(_norm_linear_kernel, relu=relu, eps=eps, d=K),
        out_shape=jax.ShapeDtypeStruct((Mp, Np), out_dtype),
        grid=(Mp // tm, Np // tn),
        in_specs=[
            pl.BlockSpec((tm, K), lambda i, j: (i, 0)),
            pl.BlockSpec((1, K), lambda i, j: (0, 0)),
            pl.BlockSpec((1, K), lambda i, j: (0, 0)),
            pl.BlockSpec((K, tn), lambda i, j: (0, j)),
            pl.BlockSpec((1, tn), lambda i, j: (0, j)),
        ],
        out_specs=pl.BlockSpec((tm, tn), lambda i, j: (i, j)),
        scratch_shapes=[pltpu.VMEM((tm, K), jnp.bfloat16)],
        compiler_params=_cparams("parallel", "arbitrary"),
    )(xp, alpha, beta, wb, bp)
    if (Mp, Np) != (M, N):
        out = out[:M, :N]
    return out


def _norm_kernel(x_ref, a_ref, b_ref, o_ref, *, eps, d):
    x = x_ref[...]
    mean = jnp.mean(x, axis=-1, keepdims=True)
    c = x - mean
    var = jnp.sum(c * c, axis=-1, keepdims=True) * (1.0 / (d - 1))
    o_ref[...] = a_ref[...] * c / (jnp.sqrt(var) + eps) + b_ref[...]


def layer_norm_2d(x2d, alpha, bias, eps=1e-6):
    """Standalone row-tiled LayerNorm (torch-style: unbiased std, /(std+eps))."""
    M, D = x2d.shape
    tr, Mp = _tile_and_pad(M, NORM_ROWS)
    xp = x2d.astype(jnp.float32)
    if Mp != M:
        xp = jnp.pad(xp, ((0, Mp - M), (0, 0)))
    out = pl.pallas_call(
        functools.partial(_norm_kernel, eps=eps, d=D),
        out_shape=jax.ShapeDtypeStruct((Mp, D), jnp.float32),
        grid=(Mp // tr,),
        in_specs=[pl.BlockSpec((tr, D), lambda i: (i, 0)),
                  pl.BlockSpec((1, D), lambda i: (0, 0)),
                  pl.BlockSpec((1, D), lambda i: (0, 0))],
        out_specs=pl.BlockSpec((tr, D), lambda i: (i, 0)),
        compiler_params=_cparams("parallel"),
    )(xp, alpha.reshape(1, D), bias.reshape(1, D))
    return out if Mp == M else out[:M]


def _self_attn_kernel(qkv_ref, m_ref, o_ref, *, heads, d_k, d_model, scale):
    """All heads of one batch, reading the fused (S, 3D) QKV block; lane-dense (S, D) store."""
    m = m_ref[...]                                                  # (1|Sq, Sk) f32
    outs = []
    for h in range(heads):                                          # static, unrolled
        q = qkv_ref[:, h * d_k:(h + 1) * d_k]                       # (Sq, dk) bf16
        k = qkv_ref[:, d_model + h * d_k:d_model + (h + 1) * d_k]   # (Sk, dk) bf16
        v = qkv_ref[:, 2 * d_model + h * d_k:2 * d_model + (h + 1) * d_k]
        s = jax.lax.dot_general(q, k, (((1,), (1,)), ((), ())),
                                preferred_element_type=jnp.float32) * scale
        s = jnp.where(m == 0.0, -1e9, s)                            # masked_fill(mask == 0, -1e9)
        s = s - jnp.max(s, axis=-1, keepdims=True)
        e = jnp.exp(s)
        p = e * pl.reciprocal(jnp.sum(e, axis=-1, keepdims=True), approx=True)
        outs.append(jnp.dot(p.astype(jnp.bfloat16), v,
                            preferred_element_type=jnp.float32))
    o_ref[...] = jnp.concatenate(outs, axis=-1).astype(o_ref.dtype)


def self_attention(qkv, mask, B, S, heads, d_model):
    """qkv: (B*S, 3D) bf16, mask: (B, 1|S, S) f32 -> (B*S, D) bf16.  One program per batch."""
    d_k = d_model // heads
    Sq_m = mask.shape[1]
    return pl.pallas_call(
        functools.partial(_self_attn_kernel, heads=heads, d_k=d_k,
                          d_model=d_model, scale=1.0 / math.sqrt(d_k)),
        out_shape=jax.ShapeDtypeStruct((B * S, d_model), jnp.bfloat16),
        grid=(B,),
        in_specs=[
            pl.BlockSpec((S, 3 * d_model), lambda b: (b, 0)),
            pl.BlockSpec((None, Sq_m, S), lambda b: (b, 0, 0)),
        ],
        out_specs=pl.BlockSpec((S, d_model), lambda b: (b, 0)),
        compiler_params=_cparams("parallel"),
    )(qkv, mask)


def _cross_attn_kernel(q_ref, kv_ref, m_ref, o_ref, *, heads, d_k, d_model, scale):
    m = m_ref[...]                                                  # (1|Sq, Sk) f32
    outs = []
    for h in range(heads):
        q = q_ref[:, h * d_k:(h + 1) * d_k]                         # (Sq, dk) bf16
        k = kv_ref[:, h * d_k:(h + 1) * d_k]                        # (Sk, dk) bf16
        v = kv_ref[:, d_model + h * d_k:d_model + (h + 1) * d_k]
        s = jax.lax.dot_general(q, k, (((1,), (1,)), ((), ())),
                                preferred_element_type=jnp.float32) * scale
        s = jnp.where(m == 0.0, -1e9, s)
        s = s - jnp.max(s, axis=-1, keepdims=True)
        e = jnp.exp(s)
        p = e * pl.reciprocal(jnp.sum(e, axis=-1, keepdims=True), approx=True)
        outs.append(jnp.dot(p.astype(jnp.bfloat16), v,
                            preferred_element_type=jnp.float32))
    o_ref[...] = jnp.concatenate(outs, axis=-1).astype(o_ref.dtype)


def cross_attention(q, kv, mask, B, Sq, Sk, heads, d_model):
    """q: (B*Sq, D) bf16, kv: (B*Sk, 2D) bf16, mask: (B, 1|Sq, Sk) f32 -> (B*Sq, D) bf16."""
    d_k = d_model // heads
    Sq_m = mask.shape[1]
    return pl.pallas_call(
        functools.partial(_cross_attn_kernel, heads=heads, d_k=d_k,
                          d_model=d_model, scale=1.0 / math.sqrt(d_k)),
        out_shape=jax.ShapeDtypeStruct((B * Sq, d_model), jnp.bfloat16),
        grid=(B,),
        in_specs=[
            pl.BlockSpec((Sq, d_model), lambda b: (b, 0)),
            pl.BlockSpec((Sk, 2 * d_model), lambda b: (b, 0)),
            pl.BlockSpec((None, Sq_m, Sk), lambda b: (b, 0, 0)),
        ],
        out_specs=pl.BlockSpec((Sq, d_model), lambda b: (b, 0)),
        compiler_params=_cparams("parallel"),
    )(q, kv, mask)


# ----------------------------- parameter init -----------------------------

def init_linear_params(key, d_in, d_out):
    kw, kb = jax.random.split(key)
    # Store weights pre-cast to bf16 (MXU input dtype) so no per-call cast/pad traffic.
    w = (jax.random.normal(kw, (d_in, d_out), jnp.float32) / math.sqrt(d_in)).astype(jnp.bfloat16)
    b = jax.random.normal(kb, (d_out,), jnp.float32) * 0.02
    return {'w': w, 'b': b}


def init_norm_params(d_model):
    return {'alpha': jnp.ones((d_model,), jnp.float32),
            'bias': jnp.zeros((d_model,), jnp.float32)}


def init_mha_params(key, d_model):
    ks = jax.random.split(key, 4)
    q = init_linear_params(ks[0], d_model, d_model)
    k = init_linear_params(ks[1], d_model, d_model)
    v = init_linear_params(ks[2], d_model, d_model)
    out = init_linear_params(ks[3], d_model, d_model)
    return {
        # fused forms (derived from the same q/k/v weights), stored bf16
        'wqkv': jnp.concatenate([q['w'], k['w'], v['w']], axis=1),   # (D, 3D)
        'bqkv': jnp.concatenate([q['b'], k['b'], v['b']]),           # (3D,)
        'wq': q['w'], 'bq': q['b'],
        'wkv': jnp.concatenate([k['w'], v['w']], axis=1),            # (D, 2D)
        'bkv': jnp.concatenate([k['b'], v['b']]),                    # (2D,)
        'out': out,
    }


def init_ff_params(key, d_model, d_ff=2048):
    k1, k2 = jax.random.split(key)
    return {'l1': init_linear_params(k1, d_model, d_ff),
            'l2': init_linear_params(k2, d_ff, d_model)}


def init_encoder_layer(key, d_model):
    k1, k2 = jax.random.split(key)
    return {'norm1': init_norm_params(d_model),
            'norm2': init_norm_params(d_model),
            'attn': init_mha_params(k1, d_model),
            'ff': init_ff_params(k2, d_model)}


def init_decoder_layer(key, d_model):
    k1, k2, k3 = jax.random.split(key, 3)
    return {'norm1': init_norm_params(d_model),
            'norm2': init_norm_params(d_model),
            'norm3': init_norm_params(d_model),
            'attn1': init_mha_params(k1, d_model),
            'attn2': init_mha_params(k2, d_model),
            'ff': init_ff_params(k3, d_model)}


def make_positional_encoding(d_model, max_seq_len=80):
    # Reproduces the (slightly unconventional) PE formula of the reference module exactly.
    pe = np.zeros((max_seq_len, d_model), dtype=np.float32)
    for pos in range(max_seq_len):
        for i in range(0, d_model, 2):
            pe[pos, i] = math.sin(pos / 10000 ** (2 * i / d_model))
            pe[pos, i + 1] = math.cos(pos / 10000 ** (2 * (i + 1) / d_model))
    return jnp.asarray(pe)


def init_transformer(key, src_vocab, trg_vocab, d_model, n_layers):
    keys = jax.random.split(key, 2 * n_layers + 3)
    enc_layers = [init_encoder_layer(keys[i], d_model) for i in range(n_layers)]
    dec_layers = [init_decoder_layer(keys[n_layers + i], d_model) for i in range(n_layers)]
    return {
        'encoder': {
            'embed': jax.random.normal(keys[-3], (src_vocab, d_model), jnp.float32),
            'pe': make_positional_encoding(d_model),
            'layers': enc_layers,
            'norm': init_norm_params(d_model),
        },
        'decoder': {
            'embed': jax.random.normal(keys[-2], (trg_vocab, d_model), jnp.float32),
            'pe': make_positional_encoding(d_model),
            'layers': dec_layers,
            'norm': init_norm_params(d_model),
        },
        'out': init_linear_params(keys[-1], d_model, trg_vocab),
    }


# ----------------------------- module forward (JAX glue around kernels) -----------------------------

def self_attention_block(norm_p, mha_p, x, mask, heads):
    """x = x + MHA(norm(x), norm(x), norm(x), mask).  Norm fused into the QKV projection,
    residual fused into the out-projection kernel; no head-split/merge transposes."""
    B, S, D = x.shape
    x2d = x.reshape(B * S, D)
    qkv = norm_linear(x2d, norm_p, mha_p['wqkv'], mha_p['bqkv'],
                      out_dtype=jnp.bfloat16)                        # (B*S, 3D)
    attn = self_attention(qkv, mask, B, S, heads, D)                 # (B*S, D) bf16
    out = linear(attn, mha_p['out']['w'], mha_p['out']['b'], residual=x2d)
    return out.reshape(B, S, D)


def cross_attention_block(norm_p, mha_p, x, e_outputs, src_mask, heads):
    """x = x + MHA(norm(x), e_outputs, e_outputs, src_mask).  Norm fused into the Q projection;
    K/V projections fused into one matmul; residual fused into the out-projection."""
    B, Sq, D = x.shape
    Sk = e_outputs.shape[1]
    x2d = x.reshape(B * Sq, D)
    q = norm_linear(x2d, norm_p, mha_p['wq'], mha_p['bq'], out_dtype=jnp.bfloat16)
    kv = linear(e_outputs.reshape(B * Sk, D), mha_p['wkv'], mha_p['bkv'],
                out_dtype=jnp.bfloat16)                              # (B*Sk, 2D)
    attn = cross_attention(q, kv, src_mask, B, Sq, Sk, heads, D)     # (B*Sq, D) bf16
    out = linear(attn, mha_p['out']['w'], mha_p['out']['b'], residual=x2d)
    return out.reshape(B, Sq, D)


def ff_block(norm_p, ff_p, x):
    """x = x + FF(norm(x)).  Norm fused into l1 (+ReLU epilogue), residual fused into l2."""
    B, S, D = x.shape
    x2d = x.reshape(B * S, D)
    h = norm_linear(x2d, norm_p, ff_p['l1']['w'], ff_p['l1']['b'],
                    relu=True, out_dtype=jnp.bfloat16)
    out = linear(h, ff_p['l2']['w'], ff_p['l2']['b'], residual=x2d)
    return out.reshape(B, S, D)


def encoder_forward(p, src, src_mask, d_model, heads):
    x = jnp.take(p['embed'], src, axis=0)                    # (B, S, D)  embedding gather: XLA glue
    x = x * math.sqrt(d_model) + p['pe'][None, :x.shape[1], :]
    for lp in p['layers']:
        x = self_attention_block(lp['norm1'], lp['attn'], x, src_mask, heads)
        x = ff_block(lp['norm2'], lp['ff'], x)
    B, S, D = x.shape
    return layer_norm_2d(x.reshape(B * S, D), p['norm']['alpha'],
                         p['norm']['bias']).reshape(B, S, D)


def decoder_forward(p, trg, e_outputs, src_mask, trg_mask, d_model, heads):
    x = jnp.take(p['embed'], trg, axis=0)
    x = x * math.sqrt(d_model) + p['pe'][None, :x.shape[1], :]
    for lp in p['layers']:
        x = self_attention_block(lp['norm1'], lp['attn1'], x, trg_mask, heads)
        x = cross_attention_block(lp['norm2'], lp['attn2'], x, e_outputs, src_mask, heads)
        x = ff_block(lp['norm3'], lp['ff'], x)
    return x  # final decoder norm is fused into the output projection


@functools.partial(jax.jit, static_argnames=('d_model', 'heads'))
def transformer_forward(params, src, trg, src_mask, trg_mask, *, d_model, heads):
    e_outputs = encoder_forward(params['encoder'], src, src_mask, d_model, heads)
    d_output = decoder_forward(params['decoder'], trg, e_outputs, src_mask, trg_mask,
                               d_model, heads)
    B, S_t, D = d_output.shape
    # decoder final Norm fused into the output projection (same math as norm -> linear)
    logits = norm_linear(d_output.reshape(B * S_t, D), params['decoder']['norm'],
                         params['out']['w'], params['out']['b'])
    return logits.reshape(B, S_t, -1)


# ----------------------------- main -----------------------------

if __name__ == "__main__":
    key = jax.random.PRNGKey(0)
    k_param, k_src, k_trg = jax.random.split(key, 3)

    # Small, self-consistent synthetic config.
    src_vocab, trg_vocab = 50, 60
    d_model, n_layers, heads = 32, 2, 4
    B, S_src, S_trg = 2, 8, 8

    params = init_transformer(k_param, src_vocab, trg_vocab, d_model, n_layers)

    src = jax.random.randint(k_src, (B, S_src), 0, src_vocab, dtype=jnp.int32)
    trg = jax.random.randint(k_trg, (B, S_trg), 0, trg_vocab, dtype=jnp.int32)

    # src_mask: (B, 1, S_src) all-ones; trg_mask: (B, S_trg, S_trg) causal.
    src_mask = jnp.ones((B, 1, S_src), jnp.float32)
    trg_mask = jnp.broadcast_to(jnp.tril(jnp.ones((S_trg, S_trg), jnp.float32)),
                                (B, S_trg, S_trg))

    out = transformer_forward(params, src, trg, src_mask, trg_mask,
                              d_model=d_model, heads=heads)
    jax.block_until_ready(out)
    assert out.shape == (B, S_trg, trg_vocab)
    assert bool(jnp.all(jnp.isfinite(out)))
    print("KERNEL_OK")
</pallas_src>

<mosaic_0001>
module attributes {stable_mosaic.version = 11 : i64} {
  func.func @_norm_linear_kernel(%arg0: i32, %arg1: i32, %arg2: memref<16x32xf32, #tpu.memory_space<vmem>>, %arg3: memref<1x32xf32, #tpu.memory_space<vmem>>, %arg4: memref<1x32xf32, #tpu.memory_space<vmem>>, %arg5: memref<32x96xbf16, #tpu.memory_space<vmem>>, %arg6: memref<1x96xf32, #tpu.memory_space<vmem>>, %arg7: memref<16x96xbf16, #tpu.memory_space<vmem>>, %arg8: memref<16x32xbf16, #tpu.memory_space<vmem>>) attributes {dimension_semantics = [#tpu.dimension_semantics<parallel>, #tpu.dimension_semantics<arbitrary>], iteration_bounds = array<i64: 1, 1>, scalar_prefetch = 0 : i64, scratch_operands = 1 : i64, tpu.core_type = #tpu.core_type<tc>, window_params = [{transform_indices = @transform_0, window_bounds = array<i64: 16, 32>}, {pipeline_mode = #tpu.pipeline_mode<synchronous>, transform_indices = @transform_1, window_bounds = array<i64: 1, 32>}, {pipeline_mode = #tpu.pipeline_mode<synchronous>, transform_indices = @transform_2, window_bounds = array<i64: 1, 32>}, {transform_indices = @transform_3, window_bounds = array<i64: 32, 96>}, {transform_indices = @transform_4, window_bounds = array<i64: 1, 96>}, {transform_indices = @transform_5, window_bounds = array<i64: 16, 96>}]} {
    %c0_i32 = arith.constant 0 : i32
    %0 = arith.cmpi eq, %arg1, %c0_i32 : i32
    %1 = arith.extui %0 : i1 to i32
    %c0_i32_0 = arith.constant 0 : i32
    %2 = arith.cmpi ne, %1, %c0_i32_0 : i32
    scf.if %2 {
      %c0_8 = arith.constant 0 : index
      %c0_9 = arith.constant 0 : index
      %11 = vector.load %arg2[%c0_8, %c0_9] : memref<16x32xf32, #tpu.memory_space<vmem>>, vector<16x32xf32>
      %cst_10 = arith.constant dense<0.000000e+00> : vector<16xf32>
      %12 = vector.multi_reduction <add>, %11, %cst_10 [1] : vector<16x32xf32> to vector<16xf32>
      %13 = vector.shape_cast %12 : vector<16xf32> to vector<16x1xf32>
      %cst_11 = arith.constant 3.200000e+01 : f32
      %14 = vector.broadcast %cst_11 : f32 to vector<16x1xf32>
      %15 = arith.divf %13, %14 : vector<16x1xf32>
      %16 = vector.broadcast %15 : vector<16x1xf32> to vector<16x32xf32>
      %17 = arith.subf %11, %16 : vector<16x32xf32>
      %18 = arith.mulf %17, %17 : vector<16x32xf32>
      %cst_12 = arith.constant dense<0.000000e+00> : vector<16xf32>
      %19 = vector.multi_reduction <add>, %18, %cst_12 [1] : vector<16x32xf32> to vector<16xf32>
      %20 = vector.shape_cast %19 : vector<16xf32> to vector<16x1xf32>
      %cst_13 = arith.constant 0.0322580636 : f32
      %21 = vector.broadcast %cst_13 : f32 to vector<16x1xf32>
      %22 = arith.mulf %20, %21 : vector<16x1xf32>
      %c0_14 = arith.constant 0 : index
      %c0_15 = arith.constant 0 : index
      %23 = vector.load %arg3[%c0_14, %c0_15] : memref<1x32xf32, #tpu.memory_space<vmem>>, vector<1x32xf32>
      %24 = vector.broadcast %23 : vector<1x32xf32> to vector<16x32xf32>
      %25 = arith.mulf %24, %17 : vector<16x32xf32>
      %26 = math.sqrt %22 : vector<16x1xf32>
      %cst_16 = arith.constant 9.99999997E-7 : f32
      %27 = vector.broadcast %cst_16 : f32 to vector<16x1xf32>
      %28 = arith.addf %26, %27 : vector<16x1xf32>
      %29 = vector.broadcast %28 : vector<16x1xf32> to vector<16x32xf32>
      %30 = arith.divf %25, %29 : vector<16x32xf32>
      %c0_17 = arith.constant 0 : index
      %c0_18 = arith.constant 0 : index
      %31 = vector.load %arg4[%c0_17, %c0_18] : memref<1x32xf32, #tpu.memory_space<vmem>>, vector<1x32xf32>
      %32 = vector.broadcast %31 : vector<1x32xf32> to vector<16x32xf32>
      %33 = arith.addf %30, %32 : vector<16x32xf32>
      %34 = arith.truncf %33 : vector<16x32xf32> to vector<16x32xbf16>
      %c0_19 = arith.constant 0 : index
      %c0_20 = arith.constant 0 : index
      %35 = vector.load %arg8[%c0_19, %c0_20] : memref<16x32xbf16, #tpu.memory_space<vmem>>, vector<16x32xbf16>
      tpu.vector_store %arg8[%c0_19, %c0_20], %34 {strides = array<i32>} : memref<16x32xbf16, #tpu.memory_space<vmem>>, vector<16x32xbf16>,
    } else {
    }
    %c0 = arith.constant 0 : index
    %c0_1 = arith.constant 0 : index
    %3 = vector.load %arg8[%c0, %c0_1] : memref<16x32xbf16, #tpu.memory_space<vmem>>, vector<16x32xbf16>
    %c0_2 = arith.constant 0 : index
    %c0_3 = arith.constant 0 : index
    %4 = vector.load %arg5[%c0_2, %c0_3] : memref<32x96xbf16, #tpu.memory_space<vmem>>, vector<32x96xbf16>
    %cst = arith.constant dense<0.000000e+00> : vector<16x96xf32>
    %5 = tpu.matmul %3, %4, %cst {dimension_numbers = #tpu.dot_dimension_numbers<[1], [0], [0], [1], [0, 0, 1, 1], [], []>} : vector<16x32xbf16>, vector<32x96xbf16>, vector<16x96xf32> -> vector<16x96xf32>
    %c0_4 = arith.constant 0 : index
    %c0_5 = arith.constant 0 : index
    %6 = vector.load %arg6[%c0_4, %c0_5] : memref<1x96xf32, #tpu.memory_space<vmem>>, vector<1x96xf32>
    %7 = vector.broadcast %6 : vector<1x96xf32> to vector<16x96xf32>
    %8 = arith.addf %5, %7 : vector<16x96xf32>
    %9 = arith.truncf %8 : vector<16x96xf32> to vector<16x96xbf16>
    %c0_6 = arith.constant 0 : index
    %c0_7 = arith.constant 0 : index
    %10 = vector.load %arg7[%c0_6, %c0_7] : memref<16x96xbf16, #tpu.memory_space<vmem>>, vector<16x96xbf16>
    tpu.vector_store %arg7[%c0_6, %c0_7], %9 {strides = array<i32>} : memref<16x96xbf16, #tpu.memory_space<vmem>>, vector<16x96xbf16>,
    return
  }
  func.func @transform_0(%arg0: i32, %arg1: i32) -> (i32, i32) {
    %c0_i32 = arith.constant 0 : i32
    %c0_i32_0 = arith.constant 0 : i32
    return %arg0, %c0_i32 : i32, i32
  }
  func.func @transform_1(%arg0: i32, %arg1: i32) -> (i32, i32) {
    %c0_i32 = arith.constant 0 : i32
    %c0_i32_0 = arith.constant 0 : i32
    %c0_i32_1 = arith.constant 0 : i32
    return %c0_i32, %c0_i32_0 : i32, i32
  }
  func.func @transform_2(%arg0: i32, %arg1: i32) -> (i32, i32) {
    %c0_i32 = arith.constant 0 : i32
    %c0_i32_0 = arith.constant 0 : i32
    %c0_i32_1 = arith.constant 0 : i32
    return %c0_i32, %c0_i32_0 : i32, i32
  }
  func.func @transform_3(%arg0: i32, %arg1: i32) -> (i32, i32) {
    %c0_i32 = arith.constant 0 : i32
    %c0_i32_0 = arith.constant 0 : i32
    return %c0_i32, %arg1 : i32, i32
  }
  func.func @transform_4(%arg0: i32, %arg1: i32) -> (i32, i32) {
    %c0_i32 = arith.constant 0 : i32
    %c0_i32_0 = arith.constant 0 : i32
    return %c0_i32, %arg1 : i32, i32
  }
  func.func @transform_5(%arg0: i32, %arg1: i32) -> (i32, i32) {
    %c0_i32 = arith.constant 0 : i32
    return %arg0, %arg1 : i32, i32
  }
}

module attributes {stable_mosaic.version = 11 : i64} {
  func.func @_linear_kernel(%arg0: i32, %arg1: i32, %arg2: i32, %arg3: memref<16x32xbf16, #tpu.memory_space<vmem>>, %arg4: memref<32x32xbf16, #tpu.memory_space<vmem>>, %arg5: memref<1x32xf32, #tpu.memory_space<vmem>>, %arg6: memref<16x32xf32, #tpu.memory_space<vmem>>, %arg7: memref<16x32xf32, #tpu.memory_space<vmem>>, %arg8: memref<16x32xf32, #tpu.memory_space<vmem>>) attributes {dimension_semantics = [#tpu.dimension_semantics<parallel>, #tpu.dimension_semantics<parallel>, #tpu.dimension_semantics<arbitrary>], iteration_bounds = array<i64: 1, 1, 1>, scalar_prefetch = 0 : i64, scratch_operands = 1 : i64, tpu.core_type = #tpu.core_type<tc>, window_params = [{transform_indices = @transform_0, window_bounds = array<i64: 16, 32>}, {transform_indices = @transform_1, window_bounds = array<i64: 32, 32>}, {transform_indices = @transform_2, window_bounds = array<i64: 1, 32>}, {transform_indices = @transform_3, window_bounds = array<i64: 16, 32>}, {transform_indices = @transform_4, window_bounds = array<i64: 16, 32>}]} {
    %c0_i32 = arith.constant 0 : i32
    %0 = arith.cmpi eq, %arg2, %c0_i32 : i32
    %1 = arith.extui %0 : i1 to i32
    %c0_i32_0 = arith.constant 0 : i32
    %2 = arith.cmpi ne, %1, %c0_i32_0 : i32
    scf.if %2 {
      %cst_10 = arith.constant 0.000000e+00 : f32
      %12 = vector.broadcast %cst_10 : f32 to vector<16x32xf32>
      %c0_11 = arith.constant 0 : index
      %c0_12 = arith.constant 0 : index
      %13 = vector.load %arg8[%c0_11, %c0_12] : memref<16x32xf32, #tpu.memory_space<vmem>>, vector<16x32xf32>
      tpu.vector_store %arg8[%c0_11, %c0_12], %12 {strides = array<i32>} : memref<16x32xf32, #tpu.memory_space<vmem>>, vector<16x32xf32>,
    } else {
    }
    %c0 = arith.constant 0 : index
    %c0_1 = arith.constant 0 : index
    %3 = vector.load %arg8[%c0, %c0_1] : memref<16x32xf32, #tpu.memory_space<vmem>>, vector<16x32xf32>
    %c0_2 = arith.constant 0 : index
    %c0_3 = arith.constant 0 : index
    %4 = vector.load %arg3[%c0_2, %c0_3] : memref<16x32xbf16, #tpu.memory_space<vmem>>, vector<16x32xbf16>
    %c0_4 = arith.constant 0 : index
    %c0_5 = arith.constant 0 : index
    %5 = vector.load %arg4[%c0_4, %c0_5] : memref<32x32xbf16, #tpu.memory_space<vmem>>, vector<32x32xbf16>
    %cst = arith.constant dense<0.000000e+00> : vector<16x32xf32>
    %6 = tpu.matmul %4, %5, %cst {dimension_numbers = #tpu.dot_dimension_numbers<[1], [0], [0], [1], [0, 0, 1, 1], [], []>} : vector<16x32xbf16>, vector<32x32xbf16>, vector<16x32xf32> -> vector<16x32xf32>
    %7 = arith.addf %3, %6 : vector<16x32xf32>
    %c0_6 = arith.constant 0 : index
    %c0_7 = arith.constant 0 : index
    %8 = vector.load %arg8[%c0_6, %c0_7] : memref<16x32xf32, #tpu.memory_space<vmem>>, vector<16x32xf32>
    tpu.vector_store %arg8[%c0_6, %c0_7], %7 {strides = array<i32>} : memref<16x32xf32, #tpu.memory_space<vmem>>, vector<16x32xf32>,
    %c0_i32_8 = arith.constant 0 : i32
    %9 = arith.cmpi eq, %arg2, %c0_i32_8 : i32
    %10 = arith.extui %9 : i1 to i32
    %c0_i32_9 = arith.constant 0 : i32
    %11 = arith.cmpi ne, %10, %c0_i32_9 : i32
    scf.if %11 {
      %c0_10 = arith.constant 0 : index
      %c0_11 = arith.constant 0 : index
      %12 = vector.load %arg8[%c0_10, %c0_11] : memref<16x32xf32, #tpu.memory_space<vmem>>, vector<16x32xf32>
      %c0_12 = arith.constant 0 : index
      %c0_13 = arith.constant 0 : index
      %13 = vector.load %arg5[%c0_12, %c0_13] : memref<1x32xf32, #tpu.memory_space<vmem>>, vector<1x32xf32>
      %14 = vector.broadcast %13 : vector<1x32xf32> to vector<16x32xf32>
      %15 = arith.addf %12, %14 : vector<16x32xf32>
      %c0_14 = arith.constant 0 : index
      %c0_15 = arith.constant 0 : index
      %16 = vector.load %arg6[%c0_14, %c0_15] : memref<16x32xf32, #tpu.memory_space<vmem>>, vector<16x32xf32>
      %17 = arith.addf %15, %16 : vector<16x32xf32>
      %c0_16 = arith.constant 0 : index
      %c0_17 = arith.constant 0 : index
      %18 = vector.load %arg7[%c0_16, %c0_17] : memref<16x32xf32, #tpu.memory_space<vmem>>, vector<16x32xf32>
      tpu.vector_store %arg7[%c0_16, %c0_17], %17 {strides = array<i32>} : memref<16x32xf32, #tpu.memory_space<vmem>>, vector<16x32xf32>,
    } else {
    }
    return
  }
  func.func @transform_0(%arg0: i32, %arg1: i32, %arg2: i32) -> (i32, i32) {
    %c0_i32 = arith.constant 0 : i32
    return %arg0, %arg2 : i32, i32
  }
  func.func @transform_1(%arg0: i32, %arg1: i32, %arg2: i32) -> (i32, i32) {
    %c0_i32 = arith.constant 0 : i32
    return %arg2, %arg1 : i32, i32
  }
  func.func @transform_2(%arg0: i32, %arg1: i32, %arg2: i32) -> (i32, i32) {
    %c0_i32 = arith.constant 0 : i32
    %c0_i32_0 = arith.constant 0 : i32
    return %c0_i32, %arg1 : i32, i32
  }
  func.func @transform_3(%arg0: i32, %arg1: i32, %arg2: i32) -> (i32, i32) {
    %c0_i32 = arith.constant 0 : i32
    return %arg0, %arg1 : i32, i32
  }
  func.func @transform_4(%arg0: i32, %arg1: i32, %arg2: i32) -> (i32, i32) {
    %c0_i32 = arith.constant 0 : i32
    return %arg0, %arg1 : i32, i32
  }
}

module attributes {stable_mosaic.version = 11 : i64} {
  func.func @_self_attn_kernel(%arg0: i32, %arg1: memref<8x96xbf16, #tpu.memory_space<vmem>>, %arg2: memref<1x1x8xf32, #tpu.memory_space<vmem>>, %arg3: memref<8x32xbf16, #tpu.memory_space<vmem>>) attributes {dimension_semantics = [#tpu.dimension_semantics<parallel>], iteration_bounds = array<i64: 2>, scalar_prefetch = 0 : i64, scratch_operands = 0 : i64, tpu.core_type = #tpu.core_type<tc>, window_params = [{transform_indices = @transform_0, window_bounds = array<i64: 8, 96>}, {transform_indices = @transform_1, window_bounds = array<i64: 1, 1, 8>}, {transform_indices = @transform_2, window_bounds = array<i64: 8, 32>}]} {
    %c0 = arith.constant 0 : index
    %c0_0 = arith.constant 0 : index
    %c0_1 = arith.constant 0 : index
    %0 = vector.load %arg2[%c0, %c0_0, %c0_1] : memref<1x1x8xf32, #tpu.memory_space<vmem>>, vector<1x1x8xf32>
    %1 = vector.shape_cast %0 : vector<1x1x8xf32> to vector<1x8xf32>
    %c0_2 = arith.constant 0 : index
    %c0_3 = arith.constant 0 : index
    %2 = vector.load %arg1[%c0_2, %c0_3] : memref<8x96xbf16, #tpu.memory_space<vmem>>, vector<8x8xbf16>
    %c0_4 = arith.constant 0 : index
    %c32 = arith.constant 32 : index
    %3 = vector.load %arg1[%c0_4, %c32] : memref<8x96xbf16, #tpu.memory_space<vmem>>, vector<8x8xbf16>
    %c0_5 = arith.constant 0 : index
    %c64 = arith.constant 64 : index
    %4 = vector.load %arg1[%c0_5, %c64] : memref<8x96xbf16, #tpu.memory_space<vmem>>, vector<8x8xbf16>
    %cst = arith.constant dense<0.000000e+00> : vector<8x8xf32>
    %5 = tpu.matmul %2, %3, %cst {dimension_numbers = #tpu.dot_dimension_numbers<[1], [1], [0], [0], [0, 0, 1, 0], [], []>} : vector<8x8xbf16>, vector<8x8xbf16>, vector<8x8xf32> -> vector<8x8xf32>
    %cst_6 = arith.constant 0.353553385 : f32
    %6 = vector.broadcast %cst_6 : f32 to vector<8x8xf32>
    %7 = arith.mulf %5, %6 : vector<8x8xf32>
    %cst_7 = arith.constant 0.000000e+00 : f32
    %8 = vector.broadcast %cst_7 : f32 to vector<1x8xf32>
    %9 = arith.cmpf oeq, %1, %8 : vector<1x8xf32>
    %cst_8 = arith.constant -1.000000e+09 : f32
    %10 = vector.shape_cast %9 : vector<1x8xi1> to vector<1x8xi1>
    %11 = vector.broadcast %10 : vector<1x8xi1> to vector<8x8xi1>
    %12 = vector.broadcast %cst_8 : f32 to vector<8x8xf32>
    %13 = arith.select %11, %12, %7 : vector<8x8xi1>, vector<8x8xf32>
    %cst_9 = arith.constant dense<0xFF800000> : vector<8xf32>
    %14 = vector.multi_reduction <maximumf>, %13, %cst_9 [1] : vector<8x8xf32> to vector<8xf32>
    %15 = vector.shape_cast %14 : vector<8xf32> to vector<8x1xf32>
    %16 = vector.broadcast %15 : vector<8x1xf32> to vector<8x8xf32>
    %17 = arith.subf %13, %16 : vector<8x8xf32>
    %18 = math.exp %17 : vector<8x8xf32>
    %cst_10 = arith.constant dense<0.000000e+00> : vector<8xf32>
    %19 = vector.multi_reduction <add>, %18, %cst_10 [1] : vector<8x8xf32> to vector<8xf32>
    %20 = vector.shape_cast %19 : vector<8xf32> to vector<8x1xf32>
    %21 = tpu.reciprocal %20 {approx = true} : vector<8x1xf32> -> vector<8x1xf32>
    %22 = vector.broadcast %21 : vector<8x1xf32> to vector<8x8xf32>
    %23 = arith.mulf %18, %22 : vector<8x8xf32>
    %24 = arith.truncf %23 : vector<8x8xf32> to vector<8x8xbf16>
    %cst_11 = arith.constant dense<0.000000e+00> : vector<8x8xf32>
    %25 = tpu.matmul %24, %4, %cst_11 {dimension_numbers = #tpu.dot_dimension_numbers<[1], [0], [0], [1], [0, 0, 1, 1], [], []>} : vector<8x8xbf16>, vector<8x8xbf16>, vector<8x8xf32> -> vector<8x8xf32>
    %c0_12 = arith.constant 0 : index
    %c8 = arith.constant 8 : index
    %26 = vector.load %arg1[%c0_12, %c8] : memref<8x96xbf16, #tpu.memory_space<vmem>>, vector<8x8xbf16>
    %c0_13 = arith.constant 0 : index
    %c40 = arith.constant 40 : index
    %27 = vector.load %arg1[%c0_13, %c40] : memref<8x96xbf16, #tpu.memory_space<vmem>>, vector<8x8xbf16>
    %c0_14 = arith.constant 0 : index
    %c72 = arith.constant 72 : index
    %28 = vector.load %arg1[%c0_14, %c72] : memref<8x96xbf16, #tpu.memory_space<vmem>>, vector<8x8xbf16>
    %cst_15 = arith.constant dense<0.000000e+00> : vector<8x8xf32>
    %29 = tpu.matmul %26, %27, %cst_15 {dimension_numbers = #tpu.dot_dimension_numbers<[1], [1], [0], [0], [0, 0, 1, 0], [], []>} : vector<8x8xbf16>, vector<8x8xbf16>, vector<8x8xf32> -> vector<8x8xf32>
    %cst_16 = arith.constant 0.353553385 : f32
    %30 = vector.broadcast %cst_16 : f32 to vector<8x8xf32>
    %31 = arith.mulf %29, %30 : vector<8x8xf32>
    %cst_17 = arith.constant 0.000000e+00 : f32
    %32 = vector.broadcast %cst_17 : f32 to vector<1x8xf32>
    %33 = arith.cmpf oeq, %1, %32 : vector<1x8xf32>
    %cst_18 = arith.constant -1.000000e+09 : f32
    %34 = vector.shape_cast %33 : vector<1x8xi1> to vector<1x8xi1>
    %35 = vector.broadcast %34 : vector<1x8xi1> to vector<8x8xi1>
    %36 = vector.broadcast %cst_18 : f32 to vector<8x8xf32>
    %37 = arith.select %35, %36, %31 : vector<8x8xi1>, vector<8x8xf32>
    %cst_19 = arith.constant dense<0xFF800000> : vector<8xf32>
    %38 = vector.multi_reduction <maximumf>, %37, %cst_19 [1] : vector<8x8xf32> to vector<8xf32>
    %39 = vector.shape_cast %38 : vector<8xf32> to vector<8x1xf32>
    %40 = vector.broadcast %39 : vector<8x1xf32> to vector<8x8xf32>
    %41 = arith.subf %37, %40 : vector<8x8xf32>
    %42 = math.exp %41 : vector<8x8xf32>
    %cst_20 = arith.constant dense<0.000000e+00> : vector<8xf32>
    %43 = vector.multi_reduction <add>, %42, %cst_20 [1] : vector<8x8xf32> to vector<8xf32>
    %44 = vector.shape_cast %43 : vector<8xf32> to vector<8x1xf32>
    %45 = tpu.reciprocal %44 {approx = true} : vector<8x1xf32> -> vector<8x1xf32>
    %46 = vector.broadcast %45 : vector<8x1xf32> to vector<8x8xf32>
    %47 = arith.mulf %42, %46 : vector<8x8xf32>
    %48 = arith.truncf %47 : vector<8x8xf32> to vector<8x8xbf16>
    %cst_21 = arith.constant dense<0.000000e+00> : vector<8x8xf32>
    %49 = tpu.matmul %48, %28, %cst_21 {dimension_numbers = #tpu.dot_dimension_numbers<[1], [0], [0], [1], [0, 0, 1, 1], [], []>} : vector<8x8xbf16>, vector<8x8xbf16>, vector<8x8xf32> -> vector<8x8xf32>
    %c0_22 = arith.constant 0 : index
    %c16 = arith.constant 16 : index
    %50 = vector.load %arg1[%c0_22, %c16] : memref<8x96xbf16, #tpu.memory_space<vmem>>, vector<8x8xbf16>
    %c0_23 = arith.constant 0 : index
    %c48 = arith.constant 48 : index
    %51 = vector.load %arg1[%c0_23, %c48] : memref<8x96xbf16, #tpu.memory_space<vmem>>, vector<8x8xbf16>
    %c0_24 = arith.constant 0 : index
    %c80 = arith.constant 80 : index
    %52 = vector.load %arg1[%c0_24, %c80] : memref<8x96xbf16, #tpu.memory_space<vmem>>, vector<8x8xbf16>
    %cst_25 = arith.constant dense<0.000000e+00> : vector<8x8xf32>
    %53 = tpu.matmul %50, %51, %cst_25 {dimension_numbers = #tpu.dot_dimension_numbers<[1], [1], [0], [0], [0, 0, 1, 0], [], []>} : vector<8x8xbf16>, vector<8x8xbf16>, vector<8x8xf32> -> vector<8x8xf32>
    %cst_26 = arith.constant 0.353553385 : f32
    %54 = vector.broadcast %cst_26 : f32 to vector<8x8xf32>
    %55 = arith.mulf %53, %54 : vector<8x8xf32>
    %cst_27 = arith.constant 0.000000e+00 : f32
    %56 = vector.broadcast %cst_27 : f32 to vector<1x8xf32>
    %57 = arith.cmpf oeq, %1, %56 : vector<1x8xf32>
    %cst_28 = arith.constant -1.000000e+09 : f32
    %58 = vector.shape_cast %57 : vector<1x8xi1> to vector<1x8xi1>
    %59 = vector.broadcast %58 : vector<1x8xi1> to vector<8x8xi1>
    %60 = vector.broadcast %cst_28 : f32 to vector<8x8xf32>
    %61 = arith.select %59, %60, %55 : vector<8x8xi1>, vector<8x8xf32>
    %cst_29 = arith.constant dense<0xFF800000> : vector<8xf32>
    %62 = vector.multi_reduction <maximumf>, %61, %cst_29 [1] : vector<8x8xf32> to vector<8xf32>
    %63 = vector.shape_cast %62 : vector<8xf32> to vector<8x1xf32>
    %64 = vector.broadcast %63 : vector<8x1xf32> to vector<8x8xf32>
    %65 = arith.subf %61, %64 : vector<8x8xf32>
    %66 = math.exp %65 : vector<8x8xf32>
    %cst_30 = arith.constant dense<0.000000e+00> : vector<8xf32>
    %67 = vector.multi_reduction <add>, %66, %cst_30 [1] : vector<8x8xf32> to vector<8xf32>
    %68 = vector.shape_cast %67 : vector<8xf32> to vector<8x1xf32>
    %69 = tpu.reciprocal %68 {approx = true} : vector<8x1xf32> -> vector<8x1xf32>
    %70 = vector.broadcast %69 : vector<8x1xf32> to vector<8x8xf32>
    %71 = arith.mulf %66, %70 : vector<8x8xf32>
    %72 = arith.truncf %71 : vector<8x8xf32> to vector<8x8xbf16>
    %cst_31 = arith.constant dense<0.000000e+00> : vector<8x8xf32>
    %73 = tpu.matmul %72, %52, %cst_31 {dimension_numbers = #tpu.dot_dimension_numbers<[1], [0], [0], [1], [0, 0, 1, 1], [], []>} : vector<8x8xbf16>, vector<8x8xbf16>, vector<8x8xf32> -> vector<8x8xf32>
    %c0_32 = arith.constant 0 : index
    %c24 = arith.constant 24 : index
    %74 = vector.load %arg1[%c0_32, %c24] : memref<8x96xbf16, #tpu.memory_space<vmem>>, vector<8x8xbf16>
    %c0_33 = arith.constant 0 : index
    %c56 = arith.constant 56 : index
    %75 = vector.load %arg1[%c0_33, %c56] : memref<8x96xbf16, #tpu.memory_space<vmem>>, vector<8x8xbf16>
    %c0_34 = arith.constant 0 : index
    %c88 = arith.constant 88 : index
    %76 = vector.load %arg1[%c0_34, %c88] : memref<8x96xbf16, #tpu.memory_space<vmem>>, vector<8x8xbf16>
    %cst_35 = arith.constant dense<0.000000e+00> : vector<8x8xf32>
    %77 = tpu.matmul %74, %75, %cst_35 {dimension_numbers = #tpu.dot_dimension_numbers<[1], [1], [0], [0], [0, 0, 1, 0], [], []>} : vector<8x8xbf16>, vector<8x8xbf16>, vector<8x8xf32> -> vector<8x8xf32>
    %cst_36 = arith.constant 0.353553385 : f32
    %78 = vector.broadcast %cst_36 : f32 to vector<8x8xf32>
    %79 = arith.mulf %77, %78 : vector<8x8xf32>
    %cst_37 = arith.constant 0.000000e+00 : f32
    %80 = vector.broadcast %cst_37 : f32 to vector<1x8xf32>
    %81 = arith.cmpf oeq, %1, %80 : vector<1x8xf32>
    %cst_38 = arith.constant -1.000000e+09 : f32
    %82 = vector.shape_cast %81 : vector<1x8xi1> to vector<1x8xi1>
    %83 = vector.broadcast %82 : vector<1x8xi1> to vector<8x8xi1>
    %84 = vector.broadcast %cst_38 : f32 to vector<8x8xf32>
    %85 = arith.select %83, %84, %79 : vector<8x8xi1>, vector<8x8xf32>
    %cst_39 = arith.constant dense<0xFF800000> : vector<8xf32>
    %86 = vector.multi_reduction <maximumf>, %85, %cst_39 [1] : vector<8x8xf32> to vector<8xf32>
    %87 = vector.shape_cast %86 : vector<8xf32> to vector<8x1xf32>
    %88 = vector.broadcast %87 : vector<8x1xf32> to vector<8x8xf32>
    %89 = arith.subf %85, %88 : vector<8x8xf32>
    %90 = math.exp %89 : vector<8x8xf32>
    %cst_40 = arith.constant dense<0.000000e+00> : vector<8xf32>
    %91 = vector.multi_reduction <add>, %90, %cst_40 [1] : vector<8x8xf32> to vector<8xf32>
    %92 = vector.shape_cast %91 : vector<8xf32> to vector<8x1xf32>
    %93 = tpu.reciprocal %92 {approx = true} : vector<8x1xf32> -> vector<8x1xf32>
    %94 = vector.broadcast %93 : vector<8x1xf32> to vector<8x8xf32>
    %95 = arith.mulf %90, %94 : vector<8x8xf32>
    %96 = arith.truncf %95 : vector<8x8xf32> to vector<8x8xbf16>
    %cst_41 = arith.constant dense<0.000000e+00> : vector<8x8xf32>
    %97 = tpu.matmul %96, %76, %cst_41 {dimension_numbers = #tpu.dot_dimension_numbers<[1], [0], [0], [1], [0, 0, 1, 1], [], []>} : vector<8x8xbf16>, vector<8x8xbf16>, vector<8x8xf32> -> vector<8x8xf32>
    %98 = tpu.concatenate %25, %49, %73, %97 in 1 : vector<8x8xf32>, vector<8x8xf32>, vector<8x8xf32>, vector<8x8xf32> -> vector<8x32xf32>
    %99 = arith.truncf %98 : vector<8x32xf32> to vector<8x32xbf16>
    %c0_42 = arith.constant 0 : index
    %c0_43 = arith.constant 0 : index
    %100 = vector.load %arg3[%c0_42, %c0_43] : memref<8x32xbf16, #tpu.memory_space<vmem>>, vector<8x32xbf16>
    tpu.vector_store %arg3[%c0_42, %c0_43], %99 {strides = array<i32>} : memref<8x32xbf16, #tpu.memory_space<vmem>>, vector<8x32xbf16>,
    return
  }
  func.func @transform_0(%arg0: i32) -> (i32, i32) {
    %c0_i32 = arith.constant 0 : i32
    %c0_i32_0 = arith.constant 0 : i32
    return %arg0, %c0_i32 : i32, i32
  }
  func.func @transform_1(%arg0: i32) -> (i32, i32, i32) {
    %c0_i32 = arith.constant 0 : i32
    %c0_i32_0 = arith.constant 0 : i32
    %c0_i32_1 = arith.constant 0 : i32
    return %arg0, %c0_i32, %c0_i32_0 : i32, i32, i32
  }
  func.func @transform_2(%arg0: i32) -> (i32, i32) {
    %c0_i32 = arith.constant 0 : i32
    %c0_i32_0 = arith.constant 0 : i32
    return %arg0, %c0_i32 : i32, i32
  }
}

module attributes {stable_mosaic.version = 11 : i64} {
  func.func @_norm_linear_kernel(%arg0: i32, %arg1: i32, %arg2: memref<16x32xf32, #tpu.memory_space<vmem>>, %arg3: memref<1x32xf32, #tpu.memory_space<vmem>>, %arg4: memref<1x32xf32, #tpu.memory_space<vmem>>, %arg5: memref<32x512xbf16, #tpu.memory_space<vmem>>, %arg6: memref<1x512xf32, #tpu.memory_space<vmem>>, %arg7: memref<16x512xbf16, #tpu.memory_space<vmem>>, %arg8: memref<16x32xbf16, #tpu.memory_space<vmem>>) attributes {dimension_semantics = [#tpu.dimension_semantics<parallel>, #tpu.dimension_semantics<arbitrary>], iteration_bounds = array<i64: 1, 4>, scalar_prefetch = 0 : i64, scratch_operands = 1 : i64, tpu.core_type = #tpu.core_type<tc>, window_params = [{transform_indices = @transform_0, window_bounds = array<i64: 16, 32>}, {pipeline_mode = #tpu.pipeline_mode<synchronous>, transform_indices = @transform_1, window_bounds = array<i64: 1, 32>}, {pipeline_mode = #tpu.pipeline_mode<synchronous>, transform_indices = @transform_2, window_bounds = array<i64: 1, 32>}, {transform_indices = @transform_3, window_bounds = array<i64: 32, 512>}, {transform_indices = @transform_4, window_bounds = array<i64: 1, 512>}, {transform_indices = @transform_5, window_bounds = array<i64: 16, 512>}]} {
    %c0_i32 = arith.constant 0 : i32
    %0 = arith.cmpi eq, %arg1, %c0_i32 : i32
    %1 = arith.extui %0 : i1 to i32
    %c0_i32_0 = arith.constant 0 : i32
    %2 = arith.cmpi ne, %1, %c0_i32_0 : i32
    scf.if %2 {
      %c0_9 = arith.constant 0 : index
      %c0_10 = arith.constant 0 : index
      %13 = vector.load %arg2[%c0_9, %c0_10] : memref<16x32xf32, #tpu.memory_space<vmem>>, vector<16x32xf32>
      %cst_11 = arith.constant dense<0.000000e+00> : vector<16xf32>
      %14 = vector.multi_reduction <add>, %13, %cst_11 [1] : vector<16x32xf32> to vector<16xf32>
      %15 = vector.shape_cast %14 : vector<16xf32> to vector<16x1xf32>
      %cst_12 = arith.constant 3.200000e+01 : f32
      %16 = vector.broadcast %cst_12 : f32 to vector<16x1xf32>
      %17 = arith.divf %15, %16 : vector<16x1xf32>
      %18 = vector.broadcast %17 : vector<16x1xf32> to vector<16x32xf32>
      %19 = arith.subf %13, %18 : vector<16x32xf32>
      %20 = arith.mulf %19, %19 : vector<16x32xf32>
      %cst_13 = arith.constant dense<0.000000e+00> : vector<16xf32>
      %21 = vector.multi_reduction <add>, %20, %cst_13 [1] : vector<16x32xf32> to vector<16xf32>
      %22 = vector.shape_cast %21 : vector<16xf32> to vector<16x1xf32>
      %cst_14 = arith.constant 0.0322580636 : f32
      %23 = vector.broadcast %cst_14 : f32 to vector<16x1xf32>
      %24 = arith.mulf %22, %23 : vector<16x1xf32>
      %c0_15 = arith.constant 0 : index
      %c0_16 = arith.constant 0 : index
      %25 = vector.load %arg3[%c0_15, %c0_16] : memref<1x32xf32, #tpu.memory_space<vmem>>, vector<1x32xf32>
      %26 = vector.broadcast %25 : vector<1x32xf32> to vector<16x32xf32>
      %27 = arith.mulf %26, %19 : vector<16x32xf32>
      %28 = math.sqrt %24 : vector<16x1xf32>
      %cst_17 = arith.constant 9.99999997E-7 : f32
      %29 = vector.broadcast %cst_17 : f32 to vector<16x1xf32>
      %30 = arith.addf %28, %29 : vector<16x1xf32>
      %31 = vector.broadcast %30 : vector<16x1xf32> to vector<16x32xf32>
      %32 = arith.divf %27, %31 : vector<16x32xf32>
      %c0_18 = arith.constant 0 : index
      %c0_19 = arith.constant 0 : index
      %33 = vector.load %arg4[%c0_18, %c0_19] : memref<1x32xf32, #tpu.memory_space<vmem>>, vector<1x32xf32>
      %34 = vector.broadcast %33 : vector<1x32xf32> to vector<16x32xf32>
      %35 = arith.addf %32, %34 : vector<16x32xf32>
      %36 = arith.truncf %35 : vector<16x32xf32> to vector<16x32xbf16>
      %c0_20 = arith.constant 0 : index
      %c0_21 = arith.constant 0 : index
      %37 = vector.load %arg8[%c0_20, %c0_21] : memref<16x32xbf16, #tpu.memory_space<vmem>>, vector<16x32xbf16>
      tpu.vector_store %arg8[%c0_20, %c0_21], %36 {strides = array<i32>} : memref<16x32xbf16, #tpu.memory_space<vmem>>, vector<16x32xbf16>,
    } else {
    }
    %c0 = arith.constant 0 : index
    %c0_1 = arith.constant 0 : index
    %3 = vector.load %arg8[%c0, %c0_1] : memref<16x32xbf16, #tpu.memory_space<vmem>>, vector<16x32xbf16>
    %c0_2 = arith.constant 0 : index
    %c0_3 = arith.constant 0 : index
    %4 = vector.load %arg5[%c0_2, %c0_3] : memref<32x512xbf16, #tpu.memory_space<vmem>>, vector<32x512xbf16>
    %cst = arith.constant dense<0.000000e+00> : vector<16x512xf32>
    %5 = tpu.matmul %3, %4, %cst {dimension_numbers = #tpu.dot_dimension_numbers<[1], [0], [0], [1], [0, 0, 1, 1], [], []>} : vector<16x32xbf16>, vector<32x512xbf16>, vector<16x512xf32> -> vector<16x512xf32>
    %c0_4 = arith.constant 0 : index
    %c0_5 = arith.constant 0 : index
    %6 = vector.load %arg6[%c0_4, %c0_5] : memref<1x512xf32, #tpu.memory_space<vmem>>, vector<1x512xf32>
    %7 = vector.broadcast %6 : vector<1x512xf32> to vector<16x512xf32>
    %8 = arith.addf %5, %7 : vector<16x512xf32>
    %cst_6 = arith.constant 0.000000e+00 : f32
    %9 = vector.broadcast %cst_6 : f32 to vector<16x512xf32>
    %10 = arith.maximumf %8, %9 : vector<16x512xf32>
    %11 = arith.truncf %10 : vector<16x512xf32> to vector<16x512xbf16>
    %c0_7 = arith.constant 0 : index
    %c0_8 = arith.constant 0 : index
    %12 = vector.load %arg7[%c0_7, %c0_8] : memref<16x512xbf16, #tpu.memory_space<vmem>>, vector<16x512xbf16>
    tpu.vector_store %arg7[%c0_7, %c0_8], %11 {strides = array<i32>} : memref<16x512xbf16, #tpu.memory_space<vmem>>, vector<16x512xbf16>,
    return
  }
  func.func @transform_0(%arg0: i32, %arg1: i32) -> (i32, i32) {
    %c0_i32 = arith.constant 0 : i32
    %c0_i32_0 = arith.constant 0 : i32
    return %arg0, %c0_i32 : i32, i32
  }
  func.func @transform_1(%arg0: i32, %arg1: i32) -> (i32, i32) {
    %c0_i32 = arith.constant 0 : i32
    %c0_i32_0 = arith.constant 0 : i32
    %c0_i32_1 = arith.constant 0 : i32
    return %c0_i32, %c0_i32_0 : i32, i32
  }
  func.func @transform_2(%arg0: i32, %arg1: i32) -> (i32, i32) {
    %c0_i32 = arith.constant 0 : i32
    %c0_i32_0 = arith.constant 0 : i32
    %c0_i32_1 = arith.constant 0 : i32
    return %c0_i32, %c0_i32_0 : i32, i32
  }
  func.func @transform_3(%arg0: i32, %arg1: i32) -> (i32, i32) {
    %c0_i32 = arith.constant 0 : i32
    %c0_i32_0 = arith.constant 0 : i32
    return %c0_i32, %arg1 : i32, i32
  }
  func.func @transform_4(%arg0: i32, %arg1: i32) -> (i32, i32) {
    %c0_i32 = arith.constant 0 : i32
    %c0_i32_0 = arith.constant 0 : i32
    return %c0_i32, %arg1 : i32, i32
  }
  func.func @transform_5(%arg0: i32, %arg1: i32) -> (i32, i32) {
    %c0_i32 = arith.constant 0 : i32
    return %arg0, %arg1 : i32, i32
  }
}

module attributes {stable_mosaic.version = 11 : i64} {
  func.func @_linear_kernel(%arg0: i32, %arg1: i32, %arg2: i32, %arg3: memref<16x1024xbf16, #tpu.memory_space<vmem>>, %arg4: memref<1024x32xbf16, #tpu.memory_space<vmem>>, %arg5: memref<1x32xf32, #tpu.memory_space<vmem>>, %arg6: memref<16x32xf32, #tpu.memory_space<vmem>>, %arg7: memref<16x32xf32, #tpu.memory_space<vmem>>, %arg8: memref<16x32xf32, #tpu.memory_space<vmem>>) attributes {dimension_semantics = [#tpu.dimension_semantics<parallel>, #tpu.dimension_semantics<parallel>, #tpu.dimension_semantics<arbitrary>], iteration_bounds = array<i64: 1, 1, 2>, scalar_prefetch = 0 : i64, scratch_operands = 1 : i64, tpu.core_type = #tpu.core_type<tc>, window_params = [{transform_indices = @transform_0, window_bounds = array<i64: 16, 1024>}, {transform_indices = @transform_1, window_bounds = array<i64: 1024, 32>}, {transform_indices = @transform_2, window_bounds = array<i64: 1, 32>}, {transform_indices = @transform_3, window_bounds = array<i64: 16, 32>}, {transform_indices = @transform_4, window_bounds = array<i64: 16, 32>}]} {
    %c0_i32 = arith.constant 0 : i32
    %0 = arith.cmpi eq, %arg2, %c0_i32 : i32
    %1 = arith.extui %0 : i1 to i32
    %c0_i32_0 = arith.constant 0 : i32
    %2 = arith.cmpi ne, %1, %c0_i32_0 : i32
    scf.if %2 {
      %cst_9 = arith.constant 0.000000e+00 : f32
      %12 = vector.broadcast %cst_9 : f32 to vector<16x32xf32>
      %c0_10 = arith.constant 0 : index
      %c0_11 = arith.constant 0 : index
      %13 = vector.load %arg8[%c0_10, %c0_11] : memref<16x32xf32, #tpu.memory_space<vmem>>, vector<16x32xf32>
      tpu.vector_store %arg8[%c0_10, %c0_11], %12 {strides = array<i32>} : memref<16x32xf32, #tpu.memory_space<vmem>>, vector<16x32xf32>,
    } else {
    }
    %c0 = arith.constant 0 : index
    %c0_1 = arith.constant 0 : index
    %3 = vector.load %arg8[%c0, %c0_1] : memref<16x32xf32, #tpu.memory_space<vmem>>, vector<16x32xf32>
    %c0_2 = arith.constant 0 : index
    %c0_3 = arith.constant 0 : index
    %4 = vector.load %arg3[%c0_2, %c0_3] : memref<16x1024xbf16, #tpu.memory_space<vmem>>, vector<16x1024xbf16>
    %c0_4 = arith.constant 0 : index
    %c0_5 = arith.constant 0 : index
    %5 = vector.load %arg4[%c0_4, %c0_5] : memref<1024x32xbf16, #tpu.memory_space<vmem>>, vector<1024x32xbf16>
    %cst = arith.constant dense<0.000000e+00> : vector<16x32xf32>
    %6 = tpu.matmul %4, %5, %cst {dimension_numbers = #tpu.dot_dimension_numbers<[1], [0], [0], [1], [0, 0, 1, 1], [], []>} : vector<16x1024xbf16>, vector<1024x32xbf16>, vector<16x32xf32> -> vector<16x32xf32>
    %7 = arith.addf %3, %6 : vector<16x32xf32>
    %c0_6 = arith.constant 0 : index
    %c0_7 = arith.constant 0 : index
    %8 = vector.load %arg8[%c0_6, %c0_7] : memref<16x32xf32, #tpu.memory_space<vmem>>, vector<16x32xf32>
    tpu.vector_store %arg8[%c0_6, %c0_7], %7 {strides = array<i32>} : memref<16x32xf32, #tpu.memory_space<vmem>>, vector<16x32xf32>,
    %c1_i32 = arith.constant 1 : i32
    %9 = arith.cmpi eq, %arg2, %c1_i32 : i32
    %10 = arith.extui %9 : i1 to i32
    %c0_i32_8 = arith.constant 0 : i32
    %11 = arith.cmpi ne, %10, %c0_i32_8 : i32
    scf.if %11 {
      %c0_9 = arith.constant 0 : index
      %c0_10 = arith.constant 0 : index
      %12 = vector.load %arg8[%c0_9, %c0_10] : memref<16x32xf32, #tpu.memory_space<vmem>>, vector<16x32xf32>
      %c0_11 = arith.constant 0 : index
      %c0_12 = arith.constant 0 : index
      %13 = vector.load %arg5[%c0_11, %c0_12] : memref<1x32xf32, #tpu.memory_space<vmem>>, vector<1x32xf32>
      %14 = vector.broadcast %13 : vector<1x32xf32> to vector<16x32xf32>
      %15 = arith.addf %12, %14 : vector<16x32xf32>
      %c0_13 = arith.constant 0 : index
      %c0_14 = arith.constant 0 : index
      %16 = vector.load %arg6[%c0_13, %c0_14] : memref<16x32xf32, #tpu.memory_space<vmem>>, vector<16x32xf32>
      %17 = arith.addf %15, %16 : vector<16x32xf32>
      %c0_15 = arith.constant 0 : index
      %c0_16 = arith.constant 0 : index
      %18 = vector.load %arg7[%c0_15, %c0_16] : memref<16x32xf32, #tpu.memory_space<vmem>>, vector<16x32xf32>
      tpu.vector_store %arg7[%c0_15, %c0_16], %17 {strides = array<i32>} : memref<16x32xf32, #tpu.memory_space<vmem>>, vector<16x32xf32>,
    } else {
    }
    return
  }
  func.func @transform_0(%arg0: i32, %arg1: i32, %arg2: i32) -> (i32, i32) {
    %c0_i32 = arith.constant 0 : i32
    return %arg0, %arg2 : i32, i32
  }
  func.func @transform_1(%arg0: i32, %arg1: i32, %arg2: i32) -> (i32, i32) {
    %c0_i32 = arith.constant 0 : i32
    return %arg2, %arg1 : i32, i32
  }
  func.func @transform_2(%arg0: i32, %arg1: i32, %arg2: i32) -> (i32, i32) {
    %c0_i32 = arith.constant 0 : i32
    %c0_i32_0 = arith.constant 0 : i32
    return %c0_i32, %arg1 : i32, i32
  }
  func.func @transform_3(%arg0: i32, %arg1: i32, %arg2: i32) -> (i32, i32) {
    %c0_i32 = arith.constant 0 : i32
    return %arg0, %arg1 : i32, i32
  }
  func.func @transform_4(%arg0: i32, %arg1: i32, %arg2: i32) -> (i32, i32) {
    %c0_i32 = arith.constant 0 : i32
    return %arg0, %arg1 : i32, i32
  }
}

module attributes {stable_mosaic.version = 11 : i64} {
  func.func @_linear_kernel(%arg0: i32, %arg1: i32, %arg2: i32, %arg3: memref<16x32xbf16, #tpu.memory_space<vmem>>, %arg4: memref<32x64xbf16, #tpu.memory_space<vmem>>, %arg5: memref<1x64xf32, #tpu.memory_space<vmem>>, %arg6: memref<16x64xbf16, #tpu.memory_space<vmem>>, %arg7: memref<16x64xf32, #tpu.memory_space<vmem>>) attributes {dimension_semantics = [#tpu.dimension_semantics<parallel>, #tpu.dimension_semantics<parallel>, #tpu.dimension_semantics<arbitrary>], iteration_bounds = array<i64: 1, 1, 1>, scalar_prefetch = 0 : i64, scratch_operands = 1 : i64, tpu.core_type = #tpu.core_type<tc>, window_params = [{transform_indices = @transform_0, window_bounds = array<i64: 16, 32>}, {transform_indices = @transform_1, window_bounds = array<i64: 32, 64>}, {transform_indices = @transform_2, window_bounds = array<i64: 1, 64>}, {transform_indices = @transform_3, window_bounds = array<i64: 16, 64>}]} {
    %c0_i32 = arith.constant 0 : i32
    %0 = arith.cmpi eq, %arg2, %c0_i32 : i32
    %1 = arith.extui %0 : i1 to i32
    %c0_i32_0 = arith.constant 0 : i32
    %2 = arith.cmpi ne, %1, %c0_i32_0 : i32
    scf.if %2 {
      %cst_10 = arith.constant 0.000000e+00 : f32
      %12 = vector.broadcast %cst_10 : f32 to vector<16x64xf32>
      %c0_11 = arith.constant 0 : index
      %c0_12 = arith.constant 0 : index
      %13 = vector.load %arg7[%c0_11, %c0_12] : memref<16x64xf32, #tpu.memory_space<vmem>>, vector<16x64xf32>
      tpu.vector_store %arg7[%c0_11, %c0_12], %12 {strides = array<i32>} : memref<16x64xf32, #tpu.memory_space<vmem>>, vector<16x64xf32>,
    } else {
    }
    %c0 = arith.constant 0 : index
    %c0_1 = arith.constant 0 : index
    %3 = vector.load %arg7[%c0, %c0_1] : memref<16x64xf32, #tpu.memory_space<vmem>>, vector<16x64xf32>
    %c0_2 = arith.constant 0 : index
    %c0_3 = arith.constant 0 : index
    %4 = vector.load %arg3[%c0_2, %c0_3] : memref<16x32xbf16, #tpu.memory_space<vmem>>, vector<16x32xbf16>
    %c0_4 = arith.constant 0 : index
    %c0_5 = arith.constant 0 : index
    %5 = vector.load %arg4[%c0_4, %c0_5] : memref<32x64xbf16, #tpu.memory_space<vmem>>, vector<32x64xbf16>
    %cst = arith.constant dense<0.000000e+00> : vector<16x64xf32>
    %6 = tpu.matmul %4, %5, %cst {dimension_numbers = #tpu.dot_dimension_numbers<[1], [0], [0], [1], [0, 0, 1, 1], [], []>} : vector<16x32xbf16>, vector<32x64xbf16>, vector<16x64xf32> -> vector<16x64xf32>
    %7 = arith.addf %3, %6 : vector<16x64xf32>
    %c0_6 = arith.constant 0 : index
    %c0_7 = arith.constant 0 : index
    %8 = vector.load %arg7[%c0_6, %c0_7] : memref<16x64xf32, #tpu.memory_space<vmem>>, vector<16x64xf32>
    tpu.vector_store %arg7[%c0_6, %c0_7], %7 {strides = array<i32>} : memref<16x64xf32, #tpu.memory_space<vmem>>, vector<16x64xf32>,
    %c0_i32_8 = arith.constant 0 : i32
    %9 = arith.cmpi eq, %arg2, %c0_i32_8 : i32
    %10 = arith.extui %9 : i1 to i32
    %c0_i32_9 = arith.constant 0 : i32
    %11 = arith.cmpi ne, %10, %c0_i32_9 : i32
    scf.if %11 {
      %c0_10 = arith.constant 0 : index
      %c0_11 = arith.constant 0 : index
      %12 = vector.load %arg7[%c0_10, %c0_11] : memref<16x64xf32, #tpu.memory_space<vmem>>, vector<16x64xf32>
      %c0_12 = arith.constant 0 : index
      %c0_13 = arith.constant 0 : index
      %13 = vector.load %arg5[%c0_12, %c0_13] : memref<1x64xf32, #tpu.memory_space<vmem>>, vector<1x64xf32>
      %14 = vector.broadcast %13 : vector<1x64xf32> to vector<16x64xf32>
      %15 = arith.addf %12, %14 : vector<16x64xf32>
      %16 = arith.truncf %15 : vector<16x64xf32> to vector<16x64xbf16>
      %c0_14 = arith.constant 0 : index
      %c0_15 = arith.constant 0 : index
      %17 = vector.load %arg6[%c0_14, %c0_15] : memref<16x64xbf16, #tpu.memory_space<vmem>>, vector<16x64xbf16>
      tpu.vector_store %arg6[%c0_14, %c0_15], %16 {strides = array<i32>} : memref<16x64xbf16, #tpu.memory_space<vmem>>, vector<16x64xbf16>,
    } else {
    }
    return
  }
  func.func @transform_0(%arg0: i32, %arg1: i32, %arg2: i32) -> (i32, i32) {
    %c0_i32 = arith.constant 0 : i32
    return %arg0, %arg2 : i32, i32
  }
  func.func @transform_1(%arg0: i32, %arg1: i32, %arg2: i32) -> (i32, i32) {
    %c0_i32 = arith.constant 0 : i32
    return %arg2, %arg1 : i32, i32
  }
  func.func @transform_2(%arg0: i32, %arg1: i32, %arg2: i32) -> (i32, i32) {
    %c0_i32 = arith.constant 0 : i32
    %c0_i32_0 = arith.constant 0 : i32
    return %c0_i32, %arg1 : i32, i32
  }
  func.func @transform_3(%arg0: i32, %arg1: i32, %arg2: i32) -> (i32, i32) {
    %c0_i32 = arith.constant 0 : i32
    return %arg0, %arg1 : i32, i32
  }
}

module attributes {stable_mosaic.version = 11 : i64} {
  func.func @_norm_kernel(%arg0: i32, %arg1: memref<16x32xf32, #tpu.memory_space<vmem>>, %arg2: memref<1x32xf32, #tpu.memory_space<vmem>>, %arg3: memref<1x32xf32, #tpu.memory_space<vmem>>, %arg4: memref<16x32xf32, #tpu.memory_space<vmem>>) attributes {dimension_semantics = [#tpu.dimension_semantics<parallel>], iteration_bounds = array<i64: 1>, scalar_prefetch = 0 : i64, scratch_operands = 0 : i64, tpu.core_type = #tpu.core_type<tc>, window_params = [{transform_indices = @transform_0, window_bounds = array<i64: 16, 32>}, {pipeline_mode = #tpu.pipeline_mode<synchronous>, transform_indices = @transform_1, window_bounds = array<i64: 1, 32>}, {pipeline_mode = #tpu.pipeline_mode<synchronous>, transform_indices = @transform_2, window_bounds = array<i64: 1, 32>}, {transform_indices = @transform_3, window_bounds = array<i64: 16, 32>}]} {
    %c0 = arith.constant 0 : index
    %c0_0 = arith.constant 0 : index
    %0 = vector.load %arg1[%c0, %c0_0] : memref<16x32xf32, #tpu.memory_space<vmem>>, vector<16x32xf32>
    %cst = arith.constant dense<0.000000e+00> : vector<16xf32>
    %1 = vector.multi_reduction <add>, %0, %cst [1] : vector<16x32xf32> to vector<16xf32>
    %2 = vector.shape_cast %1 : vector<16xf32> to vector<16x1xf32>
    %cst_1 = arith.constant 3.200000e+01 : f32
    %3 = vector.broadcast %cst_1 : f32 to vector<16x1xf32>
    %4 = arith.divf %2, %3 : vector<16x1xf32>
    %5 = vector.broadcast %4 : vector<16x1xf32> to vector<16x32xf32>
    %6 = arith.subf %0, %5 : vector<16x32xf32>
    %7 = arith.mulf %6, %6 : vector<16x32xf32>
    %cst_2 = arith.constant dense<0.000000e+00> : vector<16xf32>
    %8 = vector.multi_reduction <add>, %7, %cst_2 [1] : vector<16x32xf32> to vector<16xf32>
    %9 = vector.shape_cast %8 : vector<16xf32> to vector<16x1xf32>
    %cst_3 = arith.constant 0.0322580636 : f32
    %10 = vector.broadcast %cst_3 : f32 to vector<16x1xf32>
    %11 = arith.mulf %9, %10 : vector<16x1xf32>
    %c0_4 = arith.constant 0 : index
    %c0_5 = arith.constant 0 : index
    %12 = vector.load %arg2[%c0_4, %c0_5] : memref<1x32xf32, #tpu.memory_space<vmem>>, vector<1x32xf32>
    %13 = vector.broadcast %12 : vector<1x32xf32> to vector<16x32xf32>
    %14 = arith.mulf %13, %6 : vector<16x32xf32>
    %15 = math.sqrt %11 : vector<16x1xf32>
    %cst_6 = arith.constant 9.99999997E-7 : f32
    %16 = vector.broadcast %cst_6 : f32 to vector<16x1xf32>
    %17 = arith.addf %15, %16 : vector<16x1xf32>
    %18 = vector.broadcast %17 : vector<16x1xf32> to vector<16x32xf32>
    %19 = arith.divf %14, %18 : vector<16x32xf32>
    %c0_7 = arith.constant 0 : index
    %c0_8 = arith.constant 0 : index
    %20 = vector.load %arg3[%c0_7, %c0_8] : memref<1x32xf32, #tpu.memory_space<vmem>>, vector<1x32xf32>
    %21 = vector.broadcast %20 : vector<1x32xf32> to vector<16x32xf32>
    %22 = arith.addf %19, %21 : vector<16x32xf32>
    %c0_9 = arith.constant 0 : index
    %c0_10 = arith.constant 0 : index
    %23 = vector.load %arg4[%c0_9, %c0_10] : memref<16x32xf32, #tpu.memory_space<vmem>>, vector<16x32xf32>
    tpu.vector_store %arg4[%c0_9, %c0_10], %22 {strides = array<i32>} : memref<16x32xf32, #tpu.memory_space<vmem>>, vector<16x32xf32>,
    return
  }
  func.func @transform_0(%arg0: i32) -> (i32, i32) {
    %c0_i32 = arith.constant 0 : i32
    %c0_i32_0 = arith.constant 0 : i32
    return %arg0, %c0_i32 : i32, i32
  }
  func.func @transform_1(%arg0: i32) -> (i32, i32) {
    %c0_i32 = arith.constant 0 : i32
    %c0_i32_0 = arith.constant 0 : i32
    %c0_i32_1 = arith.constant 0 : i32
    return %c0_i32, %c0_i32_0 : i32, i32
  }
  func.func @transform_2(%arg0: i32) -> (i32, i32) {
    %c0_i32 = arith.constant 0 : i32
    %c0_i32_0 = arith.constant 0 : i32
    %c0_i32_1 = arith.constant 0 : i32
    return %c0_i32, %c0_i32_0 : i32, i32
  }
  func.func @transform_3(%arg0: i32) -> (i32, i32) {
    %c0_i32 = arith.constant 0 : i32
    %c0_i32_0 = arith.constant 0 : i32
    return %arg0, %c0_i32 : i32, i32
  }
}

module attributes {stable_mosaic.version = 11 : i64} {
  func.func @_norm_linear_kernel(%arg0: i32, %arg1: i32, %arg2: memref<16x32xf32, #tpu.memory_space<vmem>>, %arg3: memref<1x32xf32, #tpu.memory_space<vmem>>, %arg4: memref<1x32xf32, #tpu.memory_space<vmem>>, %arg5: memref<32x32xbf16, #tpu.memory_space<vmem>>, %arg6: memref<1x32xf32, #tpu.memory_space<vmem>>, %arg7: memref<16x32xbf16, #tpu.memory_space<vmem>>, %arg8: memref<16x32xbf16, #tpu.memory_space<vmem>>) attributes {dimension_semantics = [#tpu.dimension_semantics<parallel>, #tpu.dimension_semantics<arbitrary>], iteration_bounds = array<i64: 1, 1>, scalar_prefetch = 0 : i64, scratch_operands = 1 : i64, tpu.core_type = #tpu.core_type<tc>, window_params = [{transform_indices = @transform_0, window_bounds = array<i64: 16, 32>}, {pipeline_mode = #tpu.pipeline_mode<synchronous>, transform_indices = @transform_1, window_bounds = array<i64: 1, 32>}, {pipeline_mode = #tpu.pipeline_mode<synchronous>, transform_indices = @transform_2, window_bounds = array<i64: 1, 32>}, {transform_indices = @transform_3, window_bounds = array<i64: 32, 32>}, {transform_indices = @transform_4, window_bounds = array<i64: 1, 32>}, {transform_indices = @transform_5, window_bounds = array<i64: 16, 32>}]} {
    %c0_i32 = arith.constant 0 : i32
    %0 = arith.cmpi eq, %arg1, %c0_i32 : i32
    %1 = arith.extui %0 : i1 to i32
    %c0_i32_0 = arith.constant 0 : i32
    %2 = arith.cmpi ne, %1, %c0_i32_0 : i32
    scf.if %2 {
      %c0_8 = arith.constant 0 : index
      %c0_9 = arith.constant 0 : index
      %11 = vector.load %arg2[%c0_8, %c0_9] : memref<16x32xf32, #tpu.memory_space<vmem>>, vector<16x32xf32>
      %cst_10 = arith.constant dense<0.000000e+00> : vector<16xf32>
      %12 = vector.multi_reduction <add>, %11, %cst_10 [1] : vector<16x32xf32> to vector<16xf32>
      %13 = vector.shape_cast %12 : vector<16xf32> to vector<16x1xf32>
      %cst_11 = arith.constant 3.200000e+01 : f32
      %14 = vector.broadcast %cst_11 : f32 to vector<16x1xf32>
      %15 = arith.divf %13, %14 : vector<16x1xf32>
      %16 = vector.broadcast %15 : vector<16x1xf32> to vector<16x32xf32>
      %17 = arith.subf %11, %16 : vector<16x32xf32>
      %18 = arith.mulf %17, %17 : vector<16x32xf32>
      %cst_12 = arith.constant dense<0.000000e+00> : vector<16xf32>
      %19 = vector.multi_reduction <add>, %18, %cst_12 [1] : vector<16x32xf32> to vector<16xf32>
      %20 = vector.shape_cast %19 : vector<16xf32> to vector<16x1xf32>
      %cst_13 = arith.constant 0.0322580636 : f32
      %21 = vector.broadcast %cst_13 : f32 to vector<16x1xf32>
      %22 = arith.mulf %20, %21 : vector<16x1xf32>
      %c0_14 = arith.constant 0 : index
      %c0_15 = arith.constant 0 : index
      %23 = vector.load %arg3[%c0_14, %c0_15] : memref<1x32xf32, #tpu.memory_space<vmem>>, vector<1x32xf32>
      %24 = vector.broadcast %23 : vector<1x32xf32> to vector<16x32xf32>
      %25 = arith.mulf %24, %17 : vector<16x32xf32>
      %26 = math.sqrt %22 : vector<16x1xf32>
      %cst_16 = arith.constant 9.99999997E-7 : f32
      %27 = vector.broadcast %cst_16 : f32 to vector<16x1xf32>
      %28 = arith.addf %26, %27 : vector<16x1xf32>
      %29 = vector.broadcast %28 : vector<16x1xf32> to vector<16x32xf32>
      %30 = arith.divf %25, %29 : vector<16x32xf32>
      %c0_17 = arith.constant 0 : index
      %c0_18 = arith.constant 0 : index
      %31 = vector.load %arg4[%c0_17, %c0_18] : memref<1x32xf32, #tpu.memory_space<vmem>>, vector<1x32xf32>
      %32 = vector.broadcast %31 : vector<1x32xf32> to vector<16x32xf32>
      %33 = arith.addf %30, %32 : vector<16x32xf32>
      %34 = arith.truncf %33 : vector<16x32xf32> to vector<16x32xbf16>
      %c0_19 = arith.constant 0 : index
      %c0_20 = arith.constant 0 : index
      %35 = vector.load %arg8[%c0_19, %c0_20] : memref<16x32xbf16, #tpu.memory_space<vmem>>, vector<16x32xbf16>
      tpu.vector_store %arg8[%c0_19, %c0_20], %34 {strides = array<i32>} : memref<16x32xbf16, #tpu.memory_space<vmem>>, vector<16x32xbf16>,
    } else {
    }
    %c0 = arith.constant 0 : index
    %c0_1 = arith.constant 0 : index
    %3 = vector.load %arg8[%c0, %c0_1] : memref<16x32xbf16, #tpu.memory_space<vmem>>, vector<16x32xbf16>
    %c0_2 = arith.constant 0 : index
    %c0_3 = arith.constant 0 : index
    %4 = vector.load %arg5[%c0_2, %c0_3] : memref<32x32xbf16, #tpu.memory_space<vmem>>, vector<32x32xbf16>
    %cst = arith.constant dense<0.000000e+00> : vector<16x32xf32>
    %5 = tpu.matmul %3, %4, %cst {dimension_numbers = #tpu.dot_dimension_numbers<[1], [0], [0], [1], [0, 0, 1, 1], [], []>} : vector<16x32xbf16>, vector<32x32xbf16>, vector<16x32xf32> -> vector<16x32xf32>
    %c0_4 = arith.constant 0 : index
    %c0_5 = arith.constant 0 : index
    %6 = vector.load %arg6[%c0_4, %c0_5] : memref<1x32xf32, #tpu.memory_space<vmem>>, vector<1x32xf32>
    %7 = vector.broadcast %6 : vector<1x32xf32> to vector<16x32xf32>
    %8 = arith.addf %5, %7 : vector<16x32xf32>
    %9 = arith.truncf %8 : vector<16x32xf32> to vector<16x32xbf16>
    %c0_6 = arith.constant 0 : index
    %c0_7 = arith.constant 0 : index
    %10 = vector.load %arg7[%c0_6, %c0_7] : memref<16x32xbf16, #tpu.memory_space<vmem>>, vector<16x32xbf16>
    tpu.vector_store %arg7[%c0_6, %c0_7], %9 {strides = array<i32>} : memref<16x32xbf16, #tpu.memory_space<vmem>>, vector<16x32xbf16>,
    return
  }
  func.func @transform_0(%arg0: i32, %arg1: i32) -> (i32, i32) {
    %c0_i32 = arith.constant 0 : i32
    %c0_i32_0 = arith.constant 0 : i32
    return %arg0, %c0_i32 : i32, i32
  }
  func.func @transform_1(%arg0: i32, %arg1: i32) -> (i32, i32) {
    %c0_i32 = arith.constant 0 : i32
    %c0_i32_0 = arith.constant 0 : i32
    %c0_i32_1 = arith.constant 0 : i32
    return %c0_i32, %c0_i32_0 : i32, i32
  }
  func.func @transform_2(%arg0: i32, %arg1: i32) -> (i32, i32) {
    %c0_i32 = arith.constant 0 : i32
    %c0_i32_0 = arith.constant 0 : i32
    %c0_i32_1 = arith.constant 0 : i32
    return %c0_i32, %c0_i32_0 : i32, i32
  }
  func.func @transform_3(%arg0: i32, %arg1: i32) -> (i32, i32) {
    %c0_i32 = arith.constant 0 : i32
    %c0_i32_0 = arith.constant 0 : i32
    return %c0_i32, %arg1 : i32, i32
  }
  func.func @transform_4(%arg0: i32, %arg1: i32) -> (i32, i32) {
    %c0_i32 = arith.constant 0 : i32
    %c0_i32_0 = arith.constant 0 : i32
    return %c0_i32, %arg1 : i32, i32
  }
  func.func @transform_5(%arg0: i32, %arg1: i32) -> (i32, i32) {
    %c0_i32 = arith.constant 0 : i32
    return %arg0, %arg1 : i32, i32
  }
}

module attributes {stable_mosaic.version = 11 : i64} {
  func.func @_self_attn_kernel(%arg0: i32, %arg1: memref<8x96xbf16, #tpu.memory_space<vmem>>, %arg2: memref<1x8x8xf32, #tpu.memory_space<vmem>>, %arg3: memref<8x32xbf16, #tpu.memory_space<vmem>>) attributes {dimension_semantics = [#tpu.dimension_semantics<parallel>], iteration_bounds = array<i64: 2>, scalar_prefetch = 0 : i64, scratch_operands = 0 : i64, tpu.core_type = #tpu.core_type<tc>, window_params = [{transform_indices = @transform_0, window_bounds = array<i64: 8, 96>}, {transform_indices = @transform_1, window_bounds = array<i64: 1, 8, 8>}, {transform_indices = @transform_2, window_bounds = array<i64: 8, 32>}]} {
    %c0 = arith.constant 0 : index
    %c0_0 = arith.constant 0 : index
    %c0_1 = arith.constant 0 : index
    %0 = vector.load %arg2[%c0, %c0_0, %c0_1] : memref<1x8x8xf32, #tpu.memory_space<vmem>>, vector<1x8x8xf32>
    %1 = vector.shape_cast %0 : vector<1x8x8xf32> to vector<8x8xf32>
    %c0_2 = arith.constant 0 : index
    %c0_3 = arith.constant 0 : index
    %2 = vector.load %arg1[%c0_2, %c0_3] : memref<8x96xbf16, #tpu.memory_space<vmem>>, vector<8x8xbf16>
    %c0_4 = arith.constant 0 : index
    %c32 = arith.constant 32 : index
    %3 = vector.load %arg1[%c0_4, %c32] : memref<8x96xbf16, #tpu.memory_space<vmem>>, vector<8x8xbf16>
    %c0_5 = arith.constant 0 : index
    %c64 = arith.constant 64 : index
    %4 = vector.load %arg1[%c0_5, %c64] : memref<8x96xbf16, #tpu.memory_space<vmem>>, vector<8x8xbf16>
    %cst = arith.constant dense<0.000000e+00> : vector<8x8xf32>
    %5 = tpu.matmul %2, %3, %cst {dimension_numbers = #tpu.dot_dimension_numbers<[1], [1], [0], [0], [0, 0, 1, 0], [], []>} : vector<8x8xbf16>, vector<8x8xbf16>, vector<8x8xf32> -> vector<8x8xf32>
    %cst_6 = arith.constant 0.353553385 : f32
    %6 = vector.broadcast %cst_6 : f32 to vector<8x8xf32>
    %7 = arith.mulf %5, %6 : vector<8x8xf32>
    %cst_7 = arith.constant 0.000000e+00 : f32
    %8 = vector.broadcast %cst_7 : f32 to vector<8x8xf32>
    %9 = arith.cmpf oeq, %1, %8 : vector<8x8xf32>
    %cst_8 = arith.constant -1.000000e+09 : f32
    %10 = vector.broadcast %cst_8 : f32 to vector<8x8xf32>
    %11 = arith.select %9, %10, %7 : vector<8x8xi1>, vector<8x8xf32>
    %cst_9 = arith.constant dense<0xFF800000> : vector<8xf32>
    %12 = vector.multi_reduction <maximumf>, %11, %cst_9 [1] : vector<8x8xf32> to vector<8xf32>
    %13 = vector.shape_cast %12 : vector<8xf32> to vector<8x1xf32>
    %14 = vector.broadcast %13 : vector<8x1xf32> to vector<8x8xf32>
    %15 = arith.subf %11, %14 : vector<8x8xf32>
    %16 = math.exp %15 : vector<8x8xf32>
    %cst_10 = arith.constant dense<0.000000e+00> : vector<8xf32>
    %17 = vector.multi_reduction <add>, %16, %cst_10 [1] : vector<8x8xf32> to vector<8xf32>
    %18 = vector.shape_cast %17 : vector<8xf32> to vector<8x1xf32>
    %19 = tpu.reciprocal %18 {approx = true} : vector<8x1xf32> -> vector<8x1xf32>
    %20 = vector.broadcast %19 : vector<8x1xf32> to vector<8x8xf32>
    %21 = arith.mulf %16, %20 : vector<8x8xf32>
    %22 = arith.truncf %21 : vector<8x8xf32> to vector<8x8xbf16>
    %cst_11 = arith.constant dense<0.000000e+00> : vector<8x8xf32>
    %23 = tpu.matmul %22, %4, %cst_11 {dimension_numbers = #tpu.dot_dimension_numbers<[1], [0], [0], [1], [0, 0, 1, 1], [], []>} : vector<8x8xbf16>, vector<8x8xbf16>, vector<8x8xf32> -> vector<8x8xf32>
    %c0_12 = arith.constant 0 : index
    %c8 = arith.constant 8 : index
    %24 = vector.load %arg1[%c0_12, %c8] : memref<8x96xbf16, #tpu.memory_space<vmem>>, vector<8x8xbf16>
    %c0_13 = arith.constant 0 : index
    %c40 = arith.constant 40 : index
    %25 = vector.load %arg1[%c0_13, %c40] : memref<8x96xbf16, #tpu.memory_space<vmem>>, vector<8x8xbf16>
    %c0_14 = arith.constant 0 : index
    %c72 = arith.constant 72 : index
    %26 = vector.load %arg1[%c0_14, %c72] : memref<8x96xbf16, #tpu.memory_space<vmem>>, vector<8x8xbf16>
    %cst_15 = arith.constant dense<0.000000e+00> : vector<8x8xf32>
    %27 = tpu.matmul %24, %25, %cst_15 {dimension_numbers = #tpu.dot_dimension_numbers<[1], [1], [0], [0], [0, 0, 1, 0], [], []>} : vector<8x8xbf16>, vector<8x8xbf16>, vector<8x8xf32> -> vector<8x8xf32>
    %cst_16 = arith.constant 0.353553385 : f32
    %28 = vector.broadcast %cst_16 : f32 to vector<8x8xf32>
    %29 = arith.mulf %27, %28 : vector<8x8xf32>
    %cst_17 = arith.constant 0.000000e+00 : f32
    %30 = vector.broadcast %cst_17 : f32 to vector<8x8xf32>
    %31 = arith.cmpf oeq, %1, %30 : vector<8x8xf32>
    %cst_18 = arith.constant -1.000000e+09 : f32
    %32 = vector.broadcast %cst_18 : f32 to vector<8x8xf32>
    %33 = arith.select %31, %32, %29 : vector<8x8xi1>, vector<8x8xf32>
    %cst_19 = arith.constant dense<0xFF800000> : vector<8xf32>
    %34 = vector.multi_reduction <maximumf>, %33, %cst_19 [1] : vector<8x8xf32> to vector<8xf32>
    %35 = vector.shape_cast %34 : vector<8xf32> to vector<8x1xf32>
    %36 = vector.broadcast %35 : vector<8x1xf32> to vector<8x8xf32>
    %37 = arith.subf %33, %36 : vector<8x8xf32>
    %38 = math.exp %37 : vector<8x8xf32>
    %cst_20 = arith.constant dense<0.000000e+00> : vector<8xf32>
    %39 = vector.multi_reduction <add>, %38, %cst_20 [1] : vector<8x8xf32> to vector<8xf32>
    %40 = vector.shape_cast %39 : vector<8xf32> to vector<8x1xf32>
    %41 = tpu.reciprocal %40 {approx = true} : vector<8x1xf32> -> vector<8x1xf32>
    %42 = vector.broadcast %41 : vector<8x1xf32> to vector<8x8xf32>
    %43 = arith.mulf %38, %42 : vector<8x8xf32>
    %44 = arith.truncf %43 : vector<8x8xf32> to vector<8x8xbf16>
    %cst_21 = arith.constant dense<0.000000e+00> : vector<8x8xf32>
    %45 = tpu.matmul %44, %26, %cst_21 {dimension_numbers = #tpu.dot_dimension_numbers<[1], [0], [0], [1], [0, 0, 1, 1], [], []>} : vector<8x8xbf16>, vector<8x8xbf16>, vector<8x8xf32> -> vector<8x8xf32>
    %c0_22 = arith.constant 0 : index
    %c16 = arith.constant 16 : index
    %46 = vector.load %arg1[%c0_22, %c16] : memref<8x96xbf16, #tpu.memory_space<vmem>>, vector<8x8xbf16>
    %c0_23 = arith.constant 0 : index
    %c48 = arith.constant 48 : index
    %47 = vector.load %arg1[%c0_23, %c48] : memref<8x96xbf16, #tpu.memory_space<vmem>>, vector<8x8xbf16>
    %c0_24 = arith.constant 0 : index
    %c80 = arith.constant 80 : index
    %48 = vector.load %arg1[%c0_24, %c80] : memref<8x96xbf16, #tpu.memory_space<vmem>>, vector<8x8xbf16>
    %cst_25 = arith.constant dense<0.000000e+00> : vector<8x8xf32>
    %49 = tpu.matmul %46, %47, %cst_25 {dimension_numbers = #tpu.dot_dimension_numbers<[1], [1], [0], [0], [0, 0, 1, 0], [], []>} : vector<8x8xbf16>, vector<8x8xbf16>, vector<8x8xf32> -> vector<8x8xf32>
    %cst_26 = arith.constant 0.353553385 : f32
    %50 = vector.broadcast %cst_26 : f32 to vector<8x8xf32>
    %51 = arith.mulf %49, %50 : vector<8x8xf32>
    %cst_27 = arith.constant 0.000000e+00 : f32
    %52 = vector.broadcast %cst_27 : f32 to vector<8x8xf32>
    %53 = arith.cmpf oeq, %1, %52 : vector<8x8xf32>
    %cst_28 = arith.constant -1.000000e+09 : f32
    %54 = vector.broadcast %cst_28 : f32 to vector<8x8xf32>
    %55 = arith.select %53, %54, %51 : vector<8x8xi1>, vector<8x8xf32>
    %cst_29 = arith.constant dense<0xFF800000> : vector<8xf32>
    %56 = vector.multi_reduction <maximumf>, %55, %cst_29 [1] : vector<8x8xf32> to vector<8xf32>
    %57 = vector.shape_cast %56 : vector<8xf32> to vector<8x1xf32>
    %58 = vector.broadcast %57 : vector<8x1xf32> to vector<8x8xf32>
    %59 = arith.subf %55, %58 : vector<8x8xf32>
    %60 = math.exp %59 : vector<8x8xf32>
    %cst_30 = arith.constant dense<0.000000e+00> : vector<8xf32>
    %61 = vector.multi_reduction <add>, %60, %cst_30 [1] : vector<8x8xf32> to vector<8xf32>
    %62 = vector.shape_cast %61 : vector<8xf32> to vector<8x1xf32>
    %63 = tpu.reciprocal %62 {approx = true} : vector<8x1xf32> -> vector<8x1xf32>
    %64 = vector.broadcast %63 : vector<8x1xf32> to vector<8x8xf32>
    %65 = arith.mulf %60, %64 : vector<8x8xf32>
    %66 = arith.truncf %65 : vector<8x8xf32> to vector<8x8xbf16>
    %cst_31 = arith.constant dense<0.000000e+00> : vector<8x8xf32>
    %67 = tpu.matmul %66, %48, %cst_31 {dimension_numbers = #tpu.dot_dimension_numbers<[1], [0], [0], [1], [0, 0, 1, 1], [], []>} : vector<8x8xbf16>, vector<8x8xbf16>, vector<8x8xf32> -> vector<8x8xf32>
    %c0_32 = arith.constant 0 : index
    %c24 = arith.constant 24 : index
    %68 = vector.load %arg1[%c0_32, %c24] : memref<8x96xbf16, #tpu.memory_space<vmem>>, vector<8x8xbf16>
    %c0_33 = arith.constant 0 : index
    %c56 = arith.constant 56 : index
    %69 = vector.load %arg1[%c0_33, %c56] : memref<8x96xbf16, #tpu.memory_space<vmem>>, vector<8x8xbf16>
    %c0_34 = arith.constant 0 : index
    %c88 = arith.constant 88 : index
    %70 = vector.load %arg1[%c0_34, %c88] : memref<8x96xbf16, #tpu.memory_space<vmem>>, vector<8x8xbf16>
    %cst_35 = arith.constant dense<0.000000e+00> : vector<8x8xf32>
    %71 = tpu.matmul %68, %69, %cst_35 {dimension_numbers = #tpu.dot_dimension_numbers<[1], [1], [0], [0], [0, 0, 1, 0], [], []>} : vector<8x8xbf16>, vector<8x8xbf16>, vector<8x8xf32> -> vector<8x8xf32>
    %cst_36 = arith.constant 0.353553385 : f32
    %72 = vector.broadcast %cst_36 : f32 to vector<8x8xf32>
    %73 = arith.mulf %71, %72 : vector<8x8xf32>
    %cst_37 = arith.constant 0.000000e+00 : f32
    %74 = vector.broadcast %cst_37 : f32 to vector<8x8xf32>
    %75 = arith.cmpf oeq, %1, %74 : vector<8x8xf32>
    %cst_38 = arith.constant -1.000000e+09 : f32
    %76 = vector.broadcast %cst_38 : f32 to vector<8x8xf32>
    %77 = arith.select %75, %76, %73 : vector<8x8xi1>, vector<8x8xf32>
    %cst_39 = arith.constant dense<0xFF800000> : vector<8xf32>
    %78 = vector.multi_reduction <maximumf>, %77, %cst_39 [1] : vector<8x8xf32> to vector<8xf32>
    %79 = vector.shape_cast %78 : vector<8xf32> to vector<8x1xf32>
    %80 = vector.broadcast %79 : vector<8x1xf32> to vector<8x8xf32>
    %81 = arith.subf %77, %80 : vector<8x8xf32>
    %82 = math.exp %81 : vector<8x8xf32>
    %cst_40 = arith.constant dense<0.000000e+00> : vector<8xf32>
    %83 = vector.multi_reduction <add>, %82, %cst_40 [1] : vector<8x8xf32> to vector<8xf32>
    %84 = vector.shape_cast %83 : vector<8xf32> to vector<8x1xf32>
    %85 = tpu.reciprocal %84 {approx = true} : vector<8x1xf32> -> vector<8x1xf32>
    %86 = vector.broadcast %85 : vector<8x1xf32> to vector<8x8xf32>
    %87 = arith.mulf %82, %86 : vector<8x8xf32>
    %88 = arith.truncf %87 : vector<8x8xf32> to vector<8x8xbf16>
    %cst_41 = arith.constant dense<0.000000e+00> : vector<8x8xf32>
    %89 = tpu.matmul %88, %70, %cst_41 {dimension_numbers = #tpu.dot_dimension_numbers<[1], [0], [0], [1], [0, 0, 1, 1], [], []>} : vector<8x8xbf16>, vector<8x8xbf16>, vector<8x8xf32> -> vector<8x8xf32>
    %90 = tpu.concatenate %23, %45, %67, %89 in 1 : vector<8x8xf32>, vector<8x8xf32>, vector<8x8xf32>, vector<8x8xf32> -> vector<8x32xf32>
    %91 = arith.truncf %90 : vector<8x32xf32> to vector<8x32xbf16>
    %c0_42 = arith.constant 0 : index
    %c0_43 = arith.constant 0 : index
    %92 = vector.load %arg3[%c0_42, %c0_43] : memref<8x32xbf16, #tpu.memory_space<vmem>>, vector<8x32xbf16>
    tpu.vector_store %arg3[%c0_42, %c0_43], %91 {strides = array<i32>} : memref<8x32xbf16, #tpu.memory_space<vmem>>, vector<8x32xbf16>,
    return
  }
  func.func @transform_0(%arg0: i32) -> (i32, i32) {
    %c0_i32 = arith.constant 0 : i32
    %c0_i32_0 = arith.constant 0 : i32
    return %arg0, %c0_i32 : i32, i32
  }
  func.func @transform_1(%arg0: i32) -> (i32, i32, i32) {
    %c0_i32 = arith.constant 0 : i32
    %c0_i32_0 = arith.constant 0 : i32
    %c0_i32_1 = arith.constant 0 : i32
    return %arg0, %c0_i32, %c0_i32_0 : i32, i32, i32
  }
  func.func @transform_2(%arg0: i32) -> (i32, i32) {
    %c0_i32 = arith.constant 0 : i32
    %c0_i32_0 = arith.constant 0 : i32
    return %arg0, %c0_i32 : i32, i32
  }
}

module attributes {stable_mosaic.version = 11 : i64} {
  func.func @_norm_linear_kernel(%arg0: i32, %arg1: i32, %arg2: memref<16x32xf32, #tpu.memory_space<vmem>>, %arg3: memref<1x32xf32, #tpu.memory_space<vmem>>, %arg4: memref<1x32xf32, #tpu.memory_space<vmem>>, %arg5: memref<32x60xbf16, #tpu.memory_space<vmem>>, %arg6: memref<1x60xf32, #tpu.memory_space<vmem>>, %arg7: memref<16x60xf32, #tpu.memory_space<vmem>>, %arg8: memref<16x32xbf16, #tpu.memory_space<vmem>>) attributes {dimension_semantics = [#tpu.dimension_semantics<parallel>, #tpu.dimension_semantics<arbitrary>], iteration_bounds = array<i64: 1, 1>, scalar_prefetch = 0 : i64, scratch_operands = 1 : i64, tpu.core_type = #tpu.core_type<tc>, window_params = [{transform_indices = @transform_0, window_bounds = array<i64: 16, 32>}, {pipeline_mode = #tpu.pipeline_mode<synchronous>, transform_indices = @transform_1, window_bounds = array<i64: 1, 32>}, {pipeline_mode = #tpu.pipeline_mode<synchronous>, transform_indices = @transform_2, window_bounds = array<i64: 1, 32>}, {transform_indices = @transform_3, window_bounds = array<i64: 32, 60>}, {transform_indices = @transform_4, window_bounds = array<i64: 1, 60>}, {transform_indices = @transform_5, window_bounds = array<i64: 16, 60>}]} {
    %c0_i32 = arith.constant 0 : i32
    %0 = arith.cmpi eq, %arg1, %c0_i32 : i32
    %1 = arith.extui %0 : i1 to i32
    %c0_i32_0 = arith.constant 0 : i32
    %2 = arith.cmpi ne, %1, %c0_i32_0 : i32
    scf.if %2 {
      %c0_8 = arith.constant 0 : index
      %c0_9 = arith.constant 0 : index
      %10 = vector.load %arg2[%c0_8, %c0_9] : memref<16x32xf32, #tpu.memory_space<vmem>>, vector<16x32xf32>
      %cst_10 = arith.constant dense<0.000000e+00> : vector<16xf32>
      %11 = vector.multi_reduction <add>, %10, %cst_10 [1] : vector<16x32xf32> to vector<16xf32>
      %12 = vector.shape_cast %11 : vector<16xf32> to vector<16x1xf32>
      %cst_11 = arith.constant 3.200000e+01 : f32
      %13 = vector.broadcast %cst_11 : f32 to vector<16x1xf32>
      %14 = arith.divf %12, %13 : vector<16x1xf32>
      %15 = vector.broadcast %14 : vector<16x1xf32> to vector<16x32xf32>
      %16 = arith.subf %10, %15 : vector<16x32xf32>
      %17 = arith.mulf %16, %16 : vector<16x32xf32>
      %cst_12 = arith.constant dense<0.000000e+00> : vector<16xf32>
      %18 = vector.multi_reduction <add>, %17, %cst_12 [1] : vector<16x32xf32> to vector<16xf32>
      %19 = vector.shape_cast %18 : vector<16xf32> to vector<16x1xf32>
      %cst_13 = arith.constant 0.0322580636 : f32
      %20 = vector.broadcast %cst_13 : f32 to vector<16x1xf32>
      %21 = arith.mulf %19, %20 : vector<16x1xf32>
      %c0_14 = arith.constant 0 : index
      %c0_15 = arith.constant 0 : index
      %22 = vector.load %arg3[%c0_14, %c0_15] : memref<1x32xf32, #tpu.memory_space<vmem>>, vector<1x32xf32>
      %23 = vector.broadcast %22 : vector<1x32xf32> to vector<16x32xf32>
      %24 = arith.mulf %23, %16 : vector<16x32xf32>
      %25 = math.sqrt %21 : vector<16x1xf32>
      %cst_16 = arith.constant 9.99999997E-7 : f32
      %26 = vector.broadcast %cst_16 : f32 to vector<16x1xf32>
      %27 = arith.addf %25, %26 : vector<16x1xf32>
      %28 = vector.broadcast %27 : vector<16x1xf32> to vector<16x32xf32>
      %29 = arith.divf %24, %28 : vector<16x32xf32>
      %c0_17 = arith.constant 0 : index
      %c0_18 = arith.constant 0 : index
      %30 = vector.load %arg4[%c0_17, %c0_18] : memref<1x32xf32, #tpu.memory_space<vmem>>, vector<1x32xf32>
      %31 = vector.broadcast %30 : vector<1x32xf32> to vector<16x32xf32>
      %32 = arith.addf %29, %31 : vector<16x32xf32>
      %33 = arith.truncf %32 : vector<16x32xf32> to vector<16x32xbf16>
      %c0_19 = arith.constant 0 : index
      %c0_20 = arith.constant 0 : index
      %34 = vector.load %arg8[%c0_19, %c0_20] : memref<16x32xbf16, #tpu.memory_space<vmem>>, vector<16x32xbf16>
      tpu.vector_store %arg8[%c0_19, %c0_20], %33 {strides = array<i32>} : memref<16x32xbf16, #tpu.memory_space<vmem>>, vector<16x32xbf16>,
    } else {
    }
    %c0 = arith.constant 0 : index
    %c0_1 = arith.constant 0 : index
    %3 = vector.load %arg8[%c0, %c0_1] : memref<16x32xbf16, #tpu.memory_space<vmem>>, vector<16x32xbf16>
    %c0_2 = arith.constant 0 : index
    %c0_3 = arith.constant 0 : index
    %4 = vector.load %arg5[%c0_2, %c0_3] : memref<32x60xbf16, #tpu.memory_space<vmem>>, vector<32x60xbf16>
    %cst = arith.constant dense<0.000000e+00> : vector<16x60xf32>
    %5 = tpu.matmul %3, %4, %cst {dimension_numbers = #tpu.dot_dimension_numbers<[1], [0], [0], [1], [0, 0, 1, 1], [], []>} : vector<16x32xbf16>, vector<32x60xbf16>, vector<16x60xf32> -> vector<16x60xf32>
    %c0_4 = arith.constant 0 : index
    %c0_5 = arith.constant 0 : index
    %6 = vector.load %arg6[%c0_4, %c0_5] : memref<1x60xf32, #tpu.memory_space<vmem>>, vector<1x60xf32>
    %7 = vector.broadcast %6 : vector<1x60xf32> to vector<16x60xf32>
    %8 = arith.addf %5, %7 : vector<16x60xf32>
    %c0_6 = arith.constant 0 : index
    %c0_7 = arith.constant 0 : index
    %9 = vector.load %arg7[%c0_6, %c0_7] : memref<16x60xf32, #tpu.memory_space<vmem>>, vector<16x60xf32>
    tpu.vector_store %arg7[%c0_6, %c0_7], %8 {strides = array<i32>} : memref<16x60xf32, #tpu.memory_space<vmem>>, vector<16x60xf32>,
    return
  }
  func.func @transform_0(%arg0: i32, %arg1: i32) -> (i32, i32) {
    %c0_i32 = arith.constant 0 : i32
    %c0_i32_0 = arith.constant 0 : i32
    return %arg0, %c0_i32 : i32, i32
  }
  func.func @transform_1(%arg0: i32, %arg1: i32) -> (i32, i32) {
    %c0_i32 = arith.constant 0 : i32
    %c0_i32_0 = arith.constant 0 : i32
    %c0_i32_1 = arith.constant 0 : i32
    return %c0_i32, %c0_i32_0 : i32, i32
  }
  func.func @transform_2(%arg0: i32, %arg1: i32) -> (i32, i32) {
    %c0_i32 = arith.constant 0 : i32
    %c0_i32_0 = arith.constant 0 : i32
    %c0_i32_1 = arith.constant 0 : i32
    return %c0_i32, %c0_i32_0 : i32, i32
  }
  func.func @transform_3(%arg0: i32, %arg1: i32) -> (i32, i32) {
    %c0_i32 = arith.constant 0 : i32
    %c0_i32_0 = arith.constant 0 : i32
    return %c0_i32, %arg1 : i32, i32
  }
  func.func @transform_4(%arg0: i32, %arg1: i32) -> (i32, i32) {
    %c0_i32 = arith.constant 0 : i32
    %c0_i32_0 = arith.constant 0 : i32
    return %c0_i32, %arg1 : i32, i32
  }
  func.func @transform_5(%arg0: i32, %arg1: i32) -> (i32, i32) {
    %c0_i32 = arith.constant 0 : i32
    return %arg0, %arg1 : i32, i32
  }
}

module attributes {stable_mosaic.version = 11 : i64} {
  func.func @_cross_attn_kernel(%arg0: i32, %arg1: memref<8x32xbf16, #tpu.memory_space<vmem>>, %arg2: memref<8x64xbf16, #tpu.memory_space<vmem>>, %arg3: memref<1x1x8xf32, #tpu.memory_space<vmem>>, %arg4: memref<8x32xbf16, #tpu.memory_space<vmem>>) attributes {dimension_semantics = [#tpu.dimension_semantics<parallel>], iteration_bounds = array<i64: 2>, scalar_prefetch = 0 : i64, scratch_operands = 0 : i64, tpu.core_type = #tpu.core_type<tc>, window_params = [{transform_indices = @transform_0, window_bounds = array<i64: 8, 32>}, {transform_indices = @transform_1, window_bounds = array<i64: 8, 64>}, {transform_indices = @transform_2, window_bounds = array<i64: 1, 1, 8>}, {transform_indices = @transform_3, window_bounds = array<i64: 8, 32>}]} {
    %c0 = arith.constant 0 : index
    %c0_0 = arith.constant 0 : index
    %c0_1 = arith.constant 0 : index
    %0 = vector.load %arg3[%c0, %c0_0, %c0_1] : memref<1x1x8xf32, #tpu.memory_space<vmem>>, vector<1x1x8xf32>
    %1 = vector.shape_cast %0 : vector<1x1x8xf32> to vector<1x8xf32>
    %c0_2 = arith.constant 0 : index
    %c0_3 = arith.constant 0 : index
    %2 = vector.load %arg1[%c0_2, %c0_3] : memref<8x32xbf16, #tpu.memory_space<vmem>>, vector<8x8xbf16>
    %c0_4 = arith.constant 0 : index
    %c0_5 = arith.constant 0 : index
    %3 = vector.load %arg2[%c0_4, %c0_5] : memref<8x64xbf16, #tpu.memory_space<vmem>>, vector<8x8xbf16>
    %c0_6 = arith.constant 0 : index
    %c32 = arith.constant 32 : index
    %4 = vector.load %arg2[%c0_6, %c32] : memref<8x64xbf16, #tpu.memory_space<vmem>>, vector<8x8xbf16>
    %cst = arith.constant dense<0.000000e+00> : vector<8x8xf32>
    %5 = tpu.matmul %2, %3, %cst {dimension_numbers = #tpu.dot_dimension_numbers<[1], [1], [0], [0], [0, 0, 1, 0], [], []>} : vector<8x8xbf16>, vector<8x8xbf16>, vector<8x8xf32> -> vector<8x8xf32>
    %cst_7 = arith.constant 0.353553385 : f32
    %6 = vector.broadcast %cst_7 : f32 to vector<8x8xf32>
    %7 = arith.mulf %5, %6 : vector<8x8xf32>
    %cst_8 = arith.constant 0.000000e+00 : f32
    %8 = vector.broadcast %cst_8 : f32 to vector<1x8xf32>
    %9 = arith.cmpf oeq, %1, %8 : vector<1x8xf32>
    %cst_9 = arith.constant -1.000000e+09 : f32
    %10 = vector.shape_cast %9 : vector<1x8xi1> to vector<1x8xi1>
    %11 = vector.broadcast %10 : vector<1x8xi1> to vector<8x8xi1>
    %12 = vector.broadcast %cst_9 : f32 to vector<8x8xf32>
    %13 = arith.select %11, %12, %7 : vector<8x8xi1>, vector<8x8xf32>
    %cst_10 = arith.constant dense<0xFF800000> : vector<8xf32>
    %14 = vector.multi_reduction <maximumf>, %13, %cst_10 [1] : vector<8x8xf32> to vector<8xf32>
    %15 = vector.shape_cast %14 : vector<8xf32> to vector<8x1xf32>
    %16 = vector.broadcast %15 : vector<8x1xf32> to vector<8x8xf32>
    %17 = arith.subf %13, %16 : vector<8x8xf32>
    %18 = math.exp %17 : vector<8x8xf32>
    %cst_11 = arith.constant dense<0.000000e+00> : vector<8xf32>
    %19 = vector.multi_reduction <add>, %18, %cst_11 [1] : vector<8x8xf32> to vector<8xf32>
    %20 = vector.shape_cast %19 : vector<8xf32> to vector<8x1xf32>
    %21 = tpu.reciprocal %20 {approx = true} : vector<8x1xf32> -> vector<8x1xf32>
    %22 = vector.broadcast %21 : vector<8x1xf32> to vector<8x8xf32>
    %23 = arith.mulf %18, %22 : vector<8x8xf32>
    %24 = arith.truncf %23 : vector<8x8xf32> to vector<8x8xbf16>
    %cst_12 = arith.constant dense<0.000000e+00> : vector<8x8xf32>
    %25 = tpu.matmul %24, %4, %cst_12 {dimension_numbers = #tpu.dot_dimension_numbers<[1], [0], [0], [1], [0, 0, 1, 1], [], []>} : vector<8x8xbf16>, vector<8x8xbf16>, vector<8x8xf32> -> vector<8x8xf32>
    %c0_13 = arith.constant 0 : index
    %c8 = arith.constant 8 : index
    %26 = vector.load %arg1[%c0_13, %c8] : memref<8x32xbf16, #tpu.memory_space<vmem>>, vector<8x8xbf16>
    %c0_14 = arith.constant 0 : index
    %c8_15 = arith.constant 8 : index
    %27 = vector.load %arg2[%c0_14, %c8_15] : memref<8x64xbf16, #tpu.memory_space<vmem>>, vector<8x8xbf16>
    %c0_16 = arith.constant 0 : index
    %c40 = arith.constant 40 : index
    %28 = vector.load %arg2[%c0_16, %c40] : memref<8x64xbf16, #tpu.memory_space<vmem>>, vector<8x8xbf16>
    %cst_17 = arith.constant dense<0.000000e+00> : vector<8x8xf32>
    %29 = tpu.matmul %26, %27, %cst_17 {dimension_numbers = #tpu.dot_dimension_numbers<[1], [1], [0], [0], [0, 0, 1, 0], [], []>} : vector<8x8xbf16>, vector<8x8xbf16>, vector<8x8xf32> -> vector<8x8xf32>
    %cst_18 = arith.constant 0.353553385 : f32
    %30 = vector.broadcast %cst_18 : f32 to vector<8x8xf32>
    %31 = arith.mulf %29, %30 : vector<8x8xf32>
    %cst_19 = arith.constant 0.000000e+00 : f32
    %32 = vector.broadcast %cst_19 : f32 to vector<1x8xf32>
    %33 = arith.cmpf oeq, %1, %32 : vector<1x8xf32>
    %cst_20 = arith.constant -1.000000e+09 : f32
    %34 = vector.shape_cast %33 : vector<1x8xi1> to vector<1x8xi1>
    %35 = vector.broadcast %34 : vector<1x8xi1> to vector<8x8xi1>
    %36 = vector.broadcast %cst_20 : f32 to vector<8x8xf32>
    %37 = arith.select %35, %36, %31 : vector<8x8xi1>, vector<8x8xf32>
    %cst_21 = arith.constant dense<0xFF800000> : vector<8xf32>
    %38 = vector.multi_reduction <maximumf>, %37, %cst_21 [1] : vector<8x8xf32> to vector<8xf32>
    %39 = vector.shape_cast %38 : vector<8xf32> to vector<8x1xf32>
    %40 = vector.broadcast %39 : vector<8x1xf32> to vector<8x8xf32>
    %41 = arith.subf %37, %40 : vector<8x8xf32>
    %42 = math.exp %41 : vector<8x8xf32>
    %cst_22 = arith.constant dense<0.000000e+00> : vector<8xf32>
    %43 = vector.multi_reduction <add>, %42, %cst_22 [1] : vector<8x8xf32> to vector<8xf32>
    %44 = vector.shape_cast %43 : vector<8xf32> to vector<8x1xf32>
    %45 = tpu.reciprocal %44 {approx = true} : vector<8x1xf32> -> vector<8x1xf32>
    %46 = vector.broadcast %45 : vector<8x1xf32> to vector<8x8xf32>
    %47 = arith.mulf %42, %46 : vector<8x8xf32>
    %48 = arith.truncf %47 : vector<8x8xf32> to vector<8x8xbf16>
    %cst_23 = arith.constant dense<0.000000e+00> : vector<8x8xf32>
    %49 = tpu.matmul %48, %28, %cst_23 {dimension_numbers = #tpu.dot_dimension_numbers<[1], [0], [0], [1], [0, 0, 1, 1], [], []>} : vector<8x8xbf16>, vector<8x8xbf16>, vector<8x8xf32> -> vector<8x8xf32>
    %c0_24 = arith.constant 0 : index
    %c16 = arith.constant 16 : index
    %50 = vector.load %arg1[%c0_24, %c16] : memref<8x32xbf16, #tpu.memory_space<vmem>>, vector<8x8xbf16>
    %c0_25 = arith.constant 0 : index
    %c16_26 = arith.constant 16 : index
    %51 = vector.load %arg2[%c0_25, %c16_26] : memref<8x64xbf16, #tpu.memory_space<vmem>>, vector<8x8xbf16>
    %c0_27 = arith.constant 0 : index
    %c48 = arith.constant 48 : index
    %52 = vector.load %arg2[%c0_27, %c48] : memref<8x64xbf16, #tpu.memory_space<vmem>>, vector<8x8xbf16>
    %cst_28 = arith.constant dense<0.000000e+00> : vector<8x8xf32>
    %53 = tpu.matmul %50, %51, %cst_28 {dimension_numbers = #tpu.dot_dimension_numbers<[1], [1], [0], [0], [0, 0, 1, 0], [], []>} : vector<8x8xbf16>, vector<8x8xbf16>, vector<8x8xf32> -> vector<8x8xf32>
    %cst_29 = arith.constant 0.353553385 : f32
    %54 = vector.broadcast %cst_29 : f32 to vector<8x8xf32>
    %55 = arith.mulf %53, %54 : vector<8x8xf32>
    %cst_30 = arith.constant 0.000000e+00 : f32
    %56 = vector.broadcast %cst_30 : f32 to vector<1x8xf32>
    %57 = arith.cmpf oeq, %1, %56 : vector<1x8xf32>
    %cst_31 = arith.constant -1.000000e+09 : f32
    %58 = vector.shape_cast %57 : vector<1x8xi1> to vector<1x8xi1>
    %59 = vector.broadcast %58 : vector<1x8xi1> to vector<8x8xi1>
    %60 = vector.broadcast %cst_31 : f32 to vector<8x8xf32>
    %61 = arith.select %59, %60, %55 : vector<8x8xi1>, vector<8x8xf32>
    %cst_32 = arith.constant dense<0xFF800000> : vector<8xf32>
    %62 = vector.multi_reduction <maximumf>, %61, %cst_32 [1] : vector<8x8xf32> to vector<8xf32>
    %63 = vector.shape_cast %62 : vector<8xf32> to vector<8x1xf32>
    %64 = vector.broadcast %63 : vector<8x1xf32> to vector<8x8xf32>
    %65 = arith.subf %61, %64 : vector<8x8xf32>
    %66 = math.exp %65 : vector<8x8xf32>
    %cst_33 = arith.constant dense<0.000000e+00> : vector<8xf32>
    %67 = vector.multi_reduction <add>, %66, %cst_33 [1] : vector<8x8xf32> to vector<8xf32>
    %68 = vector.shape_cast %67 : vector<8xf32> to vector<8x1xf32>
    %69 = tpu.reciprocal %68 {approx = true} : vector<8x1xf32> -> vector<8x1xf32>
    %70 = vector.broadcast %69 : vector<8x1xf32> to vector<8x8xf32>
    %71 = arith.mulf %66, %70 : vector<8x8xf32>
    %72 = arith.truncf %71 : vector<8x8xf32> to vector<8x8xbf16>
    %cst_34 = arith.constant dense<0.000000e+00> : vector<8x8xf32>
    %73 = tpu.matmul %72, %52, %cst_34 {dimension_numbers = #tpu.dot_dimension_numbers<[1], [0], [0], [1], [0, 0, 1, 1], [], []>} : vector<8x8xbf16>, vector<8x8xbf16>, vector<8x8xf32> -> vector<8x8xf32>
    %c0_35 = arith.constant 0 : index
    %c24 = arith.constant 24 : index
    %74 = vector.load %arg1[%c0_35, %c24] : memref<8x32xbf16, #tpu.memory_space<vmem>>, vector<8x8xbf16>
    %c0_36 = arith.constant 0 : index
    %c24_37 = arith.constant 24 : index
    %75 = vector.load %arg2[%c0_36, %c24_37] : memref<8x64xbf16, #tpu.memory_space<vmem>>, vector<8x8xbf16>
    %c0_38 = arith.constant 0 : index
    %c56 = arith.constant 56 : index
    %76 = vector.load %arg2[%c0_38, %c56] : memref<8x64xbf16, #tpu.memory_space<vmem>>, vector<8x8xbf16>
    %cst_39 = arith.constant dense<0.000000e+00> : vector<8x8xf32>
    %77 = tpu.matmul %74, %75, %cst_39 {dimension_numbers = #tpu.dot_dimension_numbers<[1], [1], [0], [0], [0, 0, 1, 0], [], []>} : vector<8x8xbf16>, vector<8x8xbf16>, vector<8x8xf32> -> vector<8x8xf32>
    %cst_40 = arith.constant 0.353553385 : f32
    %78 = vector.broadcast %cst_40 : f32 to vector<8x8xf32>
    %79 = arith.mulf %77, %78 : vector<8x8xf32>
    %cst_41 = arith.constant 0.000000e+00 : f32
    %80 = vector.broadcast %cst_41 : f32 to vector<1x8xf32>
    %81 = arith.cmpf oeq, %1, %80 : vector<1x8xf32>
    %cst_42 = arith.constant -1.000000e+09 : f32
    %82 = vector.shape_cast %81 : vector<1x8xi1> to vector<1x8xi1>
    %83 = vector.broadcast %82 : vector<1x8xi1> to vector<8x8xi1>
    %84 = vector.broadcast %cst_42 : f32 to vector<8x8xf32>
    %85 = arith.select %83, %84, %79 : vector<8x8xi1>, vector<8x8xf32>
    %cst_43 = arith.constant dense<0xFF800000> : vector<8xf32>
    %86 = vector.multi_reduction <maximumf>, %85, %cst_43 [1] : vector<8x8xf32> to vector<8xf32>
    %87 = vector.shape_cast %86 : vector<8xf32> to vector<8x1xf32>
    %88 = vector.broadcast %87 : vector<8x1xf32> to vector<8x8xf32>
    %89 = arith.subf %85, %88 : vector<8x8xf32>
    %90 = math.exp %89 : vector<8x8xf32>
    %cst_44 = arith.constant dense<0.000000e+00> : vector<8xf32>
    %91 = vector.multi_reduction <add>, %90, %cst_44 [1] : vector<8x8xf32> to vector<8xf32>
    %92 = vector.shape_cast %91 : vector<8xf32> to vector<8x1xf32>
    %93 = tpu.reciprocal %92 {approx = true} : vector<8x1xf32> -> vector<8x1xf32>
    %94 = vector.broadcast %93 : vector<8x1xf32> to vector<8x8xf32>
    %95 = arith.mulf %90, %94 : vector<8x8xf32>
    %96 = arith.truncf %95 : vector<8x8xf32> to vector<8x8xbf16>
    %cst_45 = arith.constant dense<0.000000e+00> : vector<8x8xf32>
    %97 = tpu.matmul %96, %76, %cst_45 {dimension_numbers = #tpu.dot_dimension_numbers<[1], [0], [0], [1], [0, 0, 1, 1], [], []>} : vector<8x8xbf16>, vector<8x8xbf16>, vector<8x8xf32> -> vector<8x8xf32>
    %98 = tpu.concatenate %25, %49, %73, %97 in 1 : vector<8x8xf32>, vector<8x8xf32>, vector<8x8xf32>, vector<8x8xf32> -> vector<8x32xf32>
    %99 = arith.truncf %98 : vector<8x32xf32> to vector<8x32xbf16>
    %c0_46 = arith.constant 0 : index
    %c0_47 = arith.constant 0 : index
    %100 = vector.load %arg4[%c0_46, %c0_47] : memref<8x32xbf16, #tpu.memory_space<vmem>>, vector<8x32xbf16>
    tpu.vector_store %arg4[%c0_46, %c0_47], %99 {strides = array<i32>} : memref<8x32xbf16, #tpu.memory_space<vmem>>, vector<8x32xbf16>,
    return
  }
  func.func @transform_0(%arg0: i32) -> (i32, i32) {
    %c0_i32 = arith.constant 0 : i32
    %c0_i32_0 = arith.constant 0 : i32
    return %arg0, %c0_i32 : i32, i32
  }
  func.func @transform_1(%arg0: i32) -> (i32, i32) {
    %c0_i32 = arith.constant 0 : i32
    %c0_i32_0 = arith.constant 0 : i32
    return %arg0, %c0_i32 : i32, i32
  }
  func.func @transform_2(%arg0: i32) -> (i32, i32, i32) {
    %c0_i32 = arith.constant 0 : i32
    %c0_i32_0 = arith.constant 0 : i32
    %c0_i32_1 = arith.constant 0 : i32
    return %arg0, %c0_i32, %c0_i32_0 : i32, i32, i32
  }
  func.func @transform_3(%arg0: i32) -> (i32, i32) {
    %c0_i32 = arith.constant 0 : i32
    %c0_i32_0 = arith.constant 0 : i32
    return %arg0, %c0_i32 : i32, i32
  }
}

</mosaic_0001>

<llo_original>
// kernel: transformer_forward.32
$region0: #{transformer_forward.32}
  #allocation0 [shape = 'u32[]', space=smem, size = 0x4, offset = 0x4, fixed_abs, tag = 'smem constant byte address 0x4 - core index']
  #allocation1 [shape = 'u32[144,128]{1,0:T(1,128)}', space=vmem, size = 0x12000, scoped, tag = 'internal scratch']
  #allocation2 [shape = 'f32[16,32]{1,0:T(8,128)}', space=vmem, size = 0x2000, scoped, tag = 'scratch operand']
  %s0 = inlined_call_operand.vmem [shape: bf16[16,32], index: 0, kind: input, shape index: {}]
  %s1 = inlined_call_operand.vmem [shape: bf16[32,32], index: 1, kind: input, shape index: {}]
  %s2 = inlined_call_operand.vmem [shape: f32[1,32], index: 2, kind: input, shape index: {}]
  %s3 = inlined_call_operand.vmem [shape: f32[16,32], index: 3, kind: input, shape index: {}]
  %s4 = inlined_call_operand.vmem [shape: f32[16,32], index: 4, kind: output, shape index: {}]
  %s5 = sld [smem:[#allocation0]]
  $region34: #{transformer_forward.32} parent=0
    _
  %s7 = ssub.s32 1, %s5
  %s8 = scalar_select 0, %s7, %s5
  // Predicated region
  $region2: #{transformer_forward.32} parent=0 // pred_check
    _
  $region3: #{transformer_forward.32} parent=0 // pred_check_branch
    %10 = sbr.rel (0) target = $region5
  $region4: #{transformer_forward.32} parent=0 // pred_region
    _
  $region5: #{transformer_forward.32} parent=0 // pred_fallthru
    _
  // Predicated region
  $region6: #{transformer_forward.32} parent=0 // pred_check
    _
  $region7: #{transformer_forward.32} parent=0 // pred_check_branch
    %12 = sbr.rel (0) target = $region9
  $region8: #{transformer_forward.32} parent=0 // pred_region
    _
  $region9: #{transformer_forward.32} parent=0 // pred_fallthru
    _
  // Predicated region
  $region10: #{transformer_forward.32} parent=0 // pred_check
    _
  $region11: #{transformer_forward.32} parent=0 // pred_check_branch
    %14 = sbr.rel (0) target = $region13
  $region12: #{transformer_forward.32} parent=0 // pred_region
    _
  $region13: #{transformer_forward.32} parent=0 // pred_fallthru
    _
  // Predicated region
  $region14: #{transformer_forward.32} parent=0 // pred_check
    _
  $region15: #{transformer_forward.32} parent=0 // pred_check_branch
    %16 = sbr.rel (0) target = $region17
  $region16: #{transformer_forward.32} parent=0 // pred_region
    _
  $region17: #{transformer_forward.32} parent=0 // pred_fallthru
    _
  %p18 = scmp.eq.s32.totalorder 0, 0
  // Predicated region
  $region18: #{transformer_forward.32} parent=0 // pred_check
    %p19 = pneg %p18
  $region19: #{transformer_forward.32} parent=0 // pred_check_branch
    %21 = sbr.rel (%p19) target = $region21
  $region20: #{transformer_forward.32} parent=0 // pred_region
    %vm22 = vcmask 261120
    %23 = vst.msk [vmem:[#allocation2] sm:$0xff] %vm22, 0.0
    %24 = vst.msk [vmem:[#allocation2 + $0x8] sm:$0xff] %vm22, 0.0
  $region21: #{transformer_forward.32} parent=0 // pred_fallthru
    _
  %v25 = vld [vmem:[#allocation2] sm:$0xff]
  %v26 = vld [vmem:[#allocation2 + $0x8] sm:$0xff]
  %v27 = vld [vmem:[%s0] sm:$0xf]
  %v28 = vld [vmem:[%s0 + $0x4] sm:$0xf]
  %v29 = vld [vmem:[%s1] sm:$0xf]
  %v30 = vld [vmem:[%s1 + $0x4] sm:$0xf]
  %v31 = vld [vmem:[%s1 + $0x8] sm:$0xf]
  %v32 = vld [vmem:[%s1 + $0xc] sm:$0xf]
  %v35 = vunpack.c.l.b16 %v27
  %v36 = vunpack.c.l.b16 %v28
  %v37 = vpack.c.b16 %v36, %v35
  %v42 = vunpack.c.l.b16 %v29
  %v43 = vunpack.c.l.b16 %v30
  %v44 = vunpack.c.l.b16 %v31
  %v45 = vunpack.c.l.b16 %v32
  %v46 = vpack.c.b16 %v43, %v42
  %v47 = vpack.c.b16 %v45, %v44
  %vm50 = vcmask 261120
  %v52 = vsel %vm50, %v37, 0
  %54 = vmatprep.subr.bf16.mxu0 0
  %55 = vmatpush1.bf16.msra.mxu0 %v46
  %56 = vmatprep.subr.bf16.mxu0 0
  %57 = vmatpush1.bf16.msra.mxu0 %v47
  %58 = vmatprep.subr.bf16.mxu0 0
  %59 = vmatpush1.bf16.msra.mxu0 0
  %60 = vmatprep.subr.bf16.mxu0 0
  %61 = vmatpush1.bf16.msra.mxu0 0
  %62 = vmatprep.subr.bf16.mxu0 0
  %63 = vmatpush1.bf16.msra.mxu0 0
  %64 = vmatprep.subr.bf16.mxu0 0
  %65 = vmatpush1.bf16.msra.mxu0 0
  %66 = vmatprep.subr.bf16.mxu0 0
  %67 = vmatpush1.bf16.msra.mxu0 0
  %68 = vmatprep.subr.bf16.mxu0 0
  %69 = vmatpush1.bf16.msra.mxu0 0
  %70 = vmatprep.subr.bf16.mxu0 0
  %71 = vmatpush1.bf16.msra.mxu0 0
  %72 = vmatprep.subr.bf16.mxu0 0
  %73 = vmatpush1.bf16.msra.mxu0 0
  %74 = vmatprep.subr.bf16.mxu0 0
  %75 = vmatpush1.bf16.msra.mxu0 0
  %76 = vmatprep.subr.bf16.mxu0 0
  %77 = vmatpush1.bf16.msra.mxu0 0
  %78 = vmatprep.subr.bf16.mxu0 0
  %79 = vmatpush1.bf16.msra.mxu0 0
  %80 = vmatprep.subr.bf16.mxu0 0
  %81 = vmatpush1.bf16.msra.mxu0 0
  %82 = vmatprep.subr.bf16.mxu0 0
  %83 = vmatpush1.bf16.msra.mxu0 0
  %84 = vmatprep.subr.bf16.mxu0 0
  %85 = vmatpush1.bf16.msra.mxu0 0
  %86 = vmatprep.mubr.bf16.mxu0 0
  %87 = vmatmul.mubr.bf16.gmra.mrb[0].mxu0 %v52
  %v88 = vpop.f32.mrb[0].mxu0
  %v89 = vadd.f32 0.0, %v88
  %v90 = vpop.f32.mrb[0].mxu0
  %v91 = vpop.f32.mrb[0].mxu0
  %v92 = vadd.f32 0.0, %v91
  %v93 = vpop.f32.mrb[0].mxu0
  %94 = vdwg.mxu0
  %v95 = vadd.f32 %v25, %v89
  %v96 = vadd.f32 %v26, %v92
  %97 = vst.msk [vmem:[#allocation2] sm:$0xff] %vm50, %v95
  %98 = vst.msk [vmem:[#allocation2 + $0x8] sm:$0xff] %vm50, %v96
  // Predicated region
  $region22: #{transformer_forward.32} parent=0 // pred_check
    %p99 = pneg %p18
  $region23: #{transformer_forward.32} parent=0 // pred_check_branch
    %101 = sbr.rel (%p99) target = $region25
  $region24: #{transformer_forward.32} parent=0 // pred_region
    %v102 = vld [vmem:[#allocation2] sm:$0xff]
    %v103 = vld [vmem:[#allocation2 + $0x8] sm:$0xff]
    %v104 = vld [vmem:[%s2] sm:$0x1]
    %v106 = vlaneseq
    %v107 = vshrl.u32 %v106, 7
    %v108 = vsub.s32 0, %v107
    %v109 = vrot.slane %v104, %v108
    %v111 = vadd.f32 %v102, %v109
    %v112 = vadd.f32 %v103, %v109
    %v113 = vld [vmem:[%s3] sm:$0xff]
    %v114 = vld [vmem:[%s3 + $0x8] sm:$0xff]
    %v115 = vadd.f32 %v111, %v113
    %v116 = vadd.f32 %v112, %v114
    %117 = vst.msk [vmem:[%s4] sm:$0xff] %vm50, %v115
    %118 = vst.msk [vmem:[%s4 + $0x8] sm:$0xff] %vm50, %v116
  $region25: #{transformer_forward.32} parent=0 // pred_fallthru
    _
  // Predicated region
  $region26: #{transformer_forward.32} parent=0 // pred_check
    _
  $region27: #{transformer_forward.32} parent=0 // pred_check_branch
    %120 = sbr.rel (0) target = $region29
  $region28: #{transformer_forward.32} parent=0 // pred_region
    _
  $region29: #{transformer_forward.32} parent=0 // pred_fallthru
    _
  // Predicated region
  $region30: #{transformer_forward.32} parent=0 // pred_check
    _
  $region31: #{transformer_forward.32} parent=0 // pred_check_branch
    %122 = sbr.rel (0) target = $region33
  $region32: #{transformer_forward.32} parent=0 // pred_region
    _
  $region33: #{transformer_forward.32} parent=0 // pred_fallthru
    _

// kernel: transformer_forward.30
$region0: #{transformer_forward.30}
  #allocation0 [shape = 'u32[]', space=smem, size = 0x4, offset = 0x4, fixed_abs, tag = 'smem constant byte address 0x4 - core index']
  #allocation1 [shape = 'u32[144,128]{1,0:T(1,128)}', space=vmem, size = 0x12000, scoped, tag = 'internal scratch']
  #allocation2 [shape = 'bf16[16,32]{1,0:T(16,128)(2,1)}', space=vmem, size = 0x1000, scoped, tag = 'scratch operand']
  %s0 = inlined_call_operand.vmem [shape: f32[16,32], index: 0, kind: input, shape index: {}]
  %s1 = inlined_call_operand.vmem [shape: f32[1,32], index: 1, kind: input, shape index: {}]
  %s2 = inlined_call_operand.vmem [shape: f32[1,32], index: 2, kind: input, shape index: {}]
  %s3 = inlined_call_operand.vmem [shape: bf16[32,96], index: 3, kind: input, shape index: {}]
  %s4 = inlined_call_operand.vmem [shape: f32[1,96], index: 4, kind: input, shape index: {}]
  %s5 = inlined_call_operand.vmem [shape: bf16[16,96], index: 5, kind: output, shape index: {}]
  %s6 = sld [smem:[#allocation0]]
  $region34: #{transformer_forward.30} parent=0
    _
  %s8 = ssub.s32 1, %s6
  %s9 = scalar_select 0, %s8, %s6
  // Predicated region
  $region2: #{transformer_forward.30} parent=0 // pred_check
    _
  $region3: #{transformer_forward.30} parent=0 // pred_check_branch
    %11 = sbr.rel (0) target = $region5
  $region4: #{transformer_forward.30} parent=0 // pred_region
    _
  $region5: #{transformer_forward.30} parent=0 // pred_fallthru
    _
  // Predicated region
  $region6: #{transformer_forward.30} parent=0 // pred_check
    _
  $region7: #{transformer_forward.30} parent=0 // pred_check_branch
    %13 = sbr.rel (0) target = $region9
  $region8: #{transformer_forward.30} parent=0 // pred_region
    _
  $region9: #{transformer_forward.30} parent=0 // pred_fallthru
    _
  // Predicated region
  $region10: #{transformer_forward.30} parent=0 // pred_check
    _
  $region11: #{transformer_forward.30} parent=0 // pred_check_branch
    %15 = sbr.rel (0) target = $region13
  $region12: #{transformer_forward.30} parent=0 // pred_region
    _
  $region13: #{transformer_forward.30} parent=0 // pred_fallthru
    _
  // Predicated region
  $region14: #{transformer_forward.30} parent=0 // pred_check
    _
  $region15: #{transformer_forward.30} parent=0 // pred_check_branch
    %17 = sbr.rel (0) target = $region17
  $region16: #{transformer_forward.30} parent=0 // pred_region
    _
  $region17: #{transformer_forward.30} parent=0 // pred_fallthru
    _
  // Predicated region
  $region18: #{transformer_forward.30} parent=0 // pred_check
    _
  $region19: #{transformer_forward.30} parent=0 // pred_check_branch
    %19 = sbr.rel (0) target = $region21
  $region20: #{transformer_forward.30} parent=0 // pred_region
    _
  $region21: #{transformer_forward.30} parent=0 // pred_fallthru
    _
  %p21 = scmp.eq.s32.totalorder 0, 0
  // Predicated region
  $region22: #{transformer_forward.30} parent=0 // pred_check
    %p22 = pneg %p21
  $region23: #{transformer_forward.30} parent=0 // pred_check_branch
    %24 = sbr.rel (%p22) target = $region25
  $region24: #{transformer_forward.30} parent=0 // pred_region
    %v25 = vld [vmem:[%s0] sm:$0xff]
    %v26 = vld [vmem:[%s0 + $0x8] sm:$0xff]
    %vm27 = vcmask 261120
    %v28 = vsel %vm27, %v25, 0.0
    %29 = vadd.xlane.f32.xlu0 %v28
    %v30 = vpop.xlane.xlu0 %29
    %v31 = vsel %vm27, %v26, 0.0
    %32 = vadd.xlane.f32.xlu0 %v31
    %v33 = vpop.xlane.xlu0 %32
    %v34 = vrcp.pop 32.0
    %v35 = vmul.f32 %v30, %v34
    %v36 = vmul.f32 %v33, %v34
    %v37 = vsub.f32 %v25, %v35
    %v38 = vsub.f32 %v26, %v36
    %v39 = vmul.f32 %v37, %v37
    %v40 = vmul.f32 %v38, %v38
    %v41 = vsel %vm27, %v39, 0.0
    %42 = vadd.xlane.f32.xlu0 %v41
    %v43 = vpop.xlane.xlu0 %42
    %v44 = vsel %vm27, %v40, 0.0
    %45 = vadd.xlane.f32.xlu0 %v44
    %v46 = vpop.xlane.xlu0 %45
    %v47 = vmul.f32 %v43, 0.032258064
    %v48 = vmul.f32 %v46, 0.032258064
    %v49 = vld [vmem:[%s1] sm:$0x1]
    %v51 = vlaneseq
    %v52 = vshrl.u32 %v51, 7
    %v53 = vsub.s32 0, %v52
    %v54 = vrot.slane %v49, %v53
    %v56 = vmul.f32 %v54, %v37
    %v57 = vmul.f32 %v54, %v38
    %v58 = vrsqrt.pop %v47
    %v59 = vmul.f32 %v47, %v58
    %vm60 = vcmp.eq.f32.partialorder %v47, inf
    %v61 = vsel %vm60, %v47, %v59
    %vm62 = vcmp.eq.f32.partialorder %v47, 0.0
    %v63 = vand.u32 %v47, 2147483648
    %v64 = vsel %vm62, %v63, %v61
    %v65 = vrsqrt.pop %v48
    %v66 = vmul.f32 %v48, %v65
    %vm67 = vcmp.eq.f32.partialorder %v48, inf
    %v68 = vsel %vm67, %v48, %v66
    %vm69 = vcmp.eq.f32.partialorder %v48, 0.0
    %v70 = vand.u32 %v48, 2147483648
    %v71 = vsel %vm69, %v70, %v68
    %v72 = vadd.f32 %v64, 1e-06
    %v73 = vadd.f32 %v71, 1e-06
    %v74 = vrcp.pop %v72
    %v75 = vmul.f32 %v56, %v74
    %v76 = vrcp.pop %v73
    %v77 = vmul.f32 %v57, %v76
    %v78 = vld [vmem:[%s2] sm:$0x1]
    %v80 = vlaneseq
    %v81 = vshrl.u32 %v80, 7
    %v82 = vsub.s32 0, %v81
    %v83 = vrot.slane %v78, %v82
    %v85 = vadd.f32 %v75, %v83
    %v86 = vadd.f32 %v77, %v83
    %v87 = vpack.c.bf16 %v86, %v85
    %88 = vst.msk [vmem:[#allocation2] sm:$0xff] %vm27, %v87
  $region25: #{transformer_forward.30} parent=0 // pred_fallthru
    _
  %v89 = vld [vmem:[#allocation2] sm:$0xff]
  %v90 = vld [vmem:[%s3] sm:$0xf]
  %v91 = vld [vmem:[%s3 + $0x4] sm:$0xf]
  %v92 = vld [vmem:[%s3 + $0x8] sm:$0xf]
  %v93 = vld [vmem:[%s3 + $0xc] sm:$0xf]
  %v94 = vld [vmem:[%s4] sm:$0x1]
  %v96 = vlaneseq
  %v97 = vshrl.u32 %v96, 7
  %v98 = vsub.s32 0, %v97
  %v99 = vrot.slane %v94, %v98
  %v105 = vunpack.c.l.b16 %v90
  %v106 = vunpack.c.l.b16 %v91
  %v107 = vunpack.c.l.b16 %v92
  %v108 = vunpack.c.l.b16 %v93
  %v109 = vpack.c.b16 %v106, %v105
  %v110 = vpack.c.b16 %v108, %v107
  %vm113 = vcmask 261120
  %v115 = vsel %vm113, %v89, 0
  %117 = vmatprep.subr.bf16.mxu0 0
  %118 = vmatpush1.bf16.msra.mxu0 %v109
  %119 = vmatprep.subr.bf16.mxu0 0
  %120 = vmatpush1.bf16.msra.mxu0 %v110
  %121 = vmatprep.subr.bf16.mxu0 0
  %122 = vmatpush1.bf16.msra.mxu0 0
  %123 = vmatprep.subr.bf16.mxu0 0
  %124 = vmatpush1.bf16.msra.mxu0 0
  %125 = vmatprep.subr.bf16.mxu0 0
  %126 = vmatpush1.bf16.msra.mxu0 0
  %127 = vmatprep.subr.bf16.mxu0 0
  %128 = vmatpush1.bf16.msra.mxu0 0
  %129 = vmatprep.subr.bf16.mxu0 0
  %130 = vmatpush1.bf16.msra.mxu0 0
  %131 = vmatprep.subr.bf16.mxu0 0
  %132 = vmatpush1.bf16.msra.mxu0 0
  %133 = vmatprep.subr.bf16.mxu0 0
  %134 = vmatpush1.bf16.msra.mxu0 0
  %135 = vmatprep.subr.bf16.mxu0 0
  %136 = vmatpush1.bf16.msra.mxu0 0
  %137 = vmatprep.subr.bf16.mxu0 0
  %138 = vmatpush1.bf16.msra.mxu0 0
  %139 = vmatprep.subr.bf16.mxu0 0
  %140 = vmatpush1.bf16.msra.mxu0 0
  %141 = vmatprep.subr.bf16.mxu0 0
  %142 = vmatpush1.bf16.msra.mxu0 0
  %143 = vmatprep.subr.bf16.mxu0 0
  %144 = vmatpush1.bf16.msra.mxu0 0
  %145 = vmatprep.subr.bf16.mxu0 0
  %146 = vmatpush1.bf16.msra.mxu0 0
  %147 = vmatprep.subr.bf16.mxu0 0
  %148 = vmatpush1.bf16.msra.mxu0 0
  %149 = vmatprep.mubr.bf16.mxu0 0
  %150 = vmatmul.mubr.bf16.gmra.mrb[0].mxu0 %v115
  %v151 = vpop.f32.mrb[0].mxu0
  %v152 = vadd.f32 %v99, %v151
  %v153 = vpop.f32.mrb[0].mxu0
  %v154 = vpop.f32.mrb[0].mxu0
  %v155 = vadd.f32 %v99, %v154
  %v156 = vpop.f32.mrb[0].mxu0
  %157 = vdwg.mxu0
  %v158 = vpack.c.bf16 %v155, %v152
  %v160 = vunpack.c.l.b16 %v158
  %v161 = vunpack.c.h.b16 %v158
  %v162 = vpack.c.b16 %v160, %v160
  %v163 = vpack.c.b16 %v161, %v161
  %vm166 = vcmask 781312
  %167 = vst.msk [vmem:[%s5] sm:$0xf] %vm166, %v162
  %168 = vst.msk [vmem:[%s5 + $0x4] sm:$0xf] %vm166, %v163
  // Predicated region
  $region26: #{transformer_forward.30} parent=0 // pred_check
    _
  $region27: #{transformer_forward.30} parent=0 // pred_check_branch
    %170 = sbr.rel (0) target = $region29
  $region28: #{transformer_forward.30} parent=0 // pred_region
    _
  $region29: #{transformer_forward.30} parent=0 // pred_fallthru
    _
  // Predicated region
  $region30: #{transformer_forward.30} parent=0 // pred_check
    _
  $region31: #{transformer_forward.30} parent=0 // pred_check_branch
    %172 = sbr.rel (0) target = $region33
  $region32: #{transformer_forward.30} parent=0 // pred_region
    _
  $region33: #{transformer_forward.30} parent=0 // pred_fallthru
    _

// kernel: transformer_forward.33
$region0: #{transformer_forward.33}
  #allocation0 [shape = 'u32[]', space=smem, size = 0x4, offset = 0x4, fixed_abs, tag = 'smem constant byte address 0x4 - core index']
  #allocation1 [shape = 'u32[144,128]{1,0:T(1,128)}', space=vmem, size = 0x12000, scoped, tag = 'internal scratch']
  #allocation2 [shape = 'bf16[16,32]{1,0:T(16,128)(2,1)}', space=vmem, size = 0x1000, scoped, tag = 'scratch operand']
  %s0 = inlined_call_operand.vmem [shape: f32[16,32], index: 0, kind: input, shape index: {}]
  %s1 = inlined_call_operand.vmem [shape: f32[1,32], index: 1, kind: input, shape index: {}]
  %s2 = inlined_call_operand.vmem [shape: f32[1,32], index: 2, kind: input, shape index: {}]
  %s3 = inlined_call_operand.vmem [shape: bf16[32,2048], index: 3, kind: input, shape index: {}]
  %s4 = inlined_call_operand.vmem [shape: f32[1,2048], index: 4, kind: input, shape index: {}]
  %s5 = inlined_call_operand.vmem [shape: bf16[16,2048], index: 5, kind: output, shape index: {}]
  %s6 = sld [smem:[#allocation0]]
  $region99: #{transformer_forward.33} parent=0
    _
  %s8 = ssub.s32 1, %s6
  %s9 = scalar_select 0, %s8, %s6
  $region1: #{transformer_forward.33} parent=0
    #allocation3 [shape = 'u8[65536]{0}', space=vmem, size = 0x10000, scoped, tag = 'input window, operand 3']
    #allocation4 [shape = 'u8[32768]{0}', space=vmem, size = 0x8000, scoped, tag = 'output window, operand 0']
    loop: start=0, step=1, limit=6
    $region2: #{transformer_forward.33} parent=1 // loop_pre_header
      _
    $region3: #{transformer_forward.33} parent=1 // loop_header
      %s11 = sphi 0, %s15
      %p12 = scmp.ge.s32.totalorder %s11, 6
      %s18 = sphi 0, %s30
      %s19 = sphi 0, %s26
      %s20 = sphi 0, %s18
      %s21 = sphi 0, %s19
      %s22 = sphi 0, %s20
      %s23 = sphi 0, %s21
      %s33 = sphi 0, %s35
      %s36 = sphi 0, %s33
      %s37 = sphi 0, %s36
      %s53 = sphi 0, %s37
      %s57 = sphi 0, %s57
      %s59 = sphi 0, %s57
      %s60 = sphi 0, %s59
      %s74 = sphi 0, %s60
      %s78 = sphi 0, %s78
      %s80 = sphi 0, %s78
      %s81 = sphi 0, %s80
      %s95 = sphi 0, %s81
      %s101 = sphi 0, %s103
      %s104 = sphi 0, %s101
      %s105 = sphi 0, %s104
      %s121 = sphi 0, %s105
      %s127 = sphi 0, %s129
      %s130 = sphi 0, %s127
      %s131 = sphi 0, %s130
      %s147 = sphi 0, %s131
      %s155 = sphi 0, %s157
      %s158 = sphi 0, %s155
      %s159 = sphi 0, %s158
      %s175 = sphi 0, %s159
    $region4: #{transformer_forward.33} parent=1 // loop_header_branch
      %14 = sbr.rel (%p12) target = $region8
    $region5: #{transformer_forward.33} parent=1 // loop_body
      %s16 = ssub.s32 %s11, 1
      %s17 = ssub.s32 %s11, 2
      %s24 = sadd.s32 1, %s19
      %p25 = scmp.ge.s32.totalorder %s24, 4
      %s26 = scalar_select %p25, 0, %s24
      %s27 = sadd.s32 1, %s18
      %s28 = scalar_select %p25, %s27, %s18
      %p29 = scmp.ge.s32.totalorder %s28, 1
      %s30 = scalar_select %p29, 0, %s28
      %s31 = ssub.s32 %s18, %s30
      %p32 = scmp.eq.s32.totalorder %s31, 0
      %s34 = sadd.s32 %s33, 1
      %s35 = scalar_select %p32, %s33, %s34
      %p38 = pneg %p32
      %p39 = scmp.eq.s32.totalorder %s11, 3
      %p40 = por %p38, %p39
      %p41 = scmp.ne.s32.totalorder %s33, %s36
      %p42 = scmp.eq.s32.totalorder %s11, 0
      %p43 = por %p41, %p42
      %p44 = scmp.ne.s32.totalorder %s33, %s36
      %p45 = scmp.eq.s32.totalorder %s16, 3
      %p46 = por %p44, %p45
      %p47 = scmp.ne.s32.totalorder %s36, %s37
      %p48 = scmp.eq.s32.totalorder %s16, 0
      %p49 = por %p47, %p48
      %p50 = scmp.ne.s32.totalorder %s36, %s37
      %p51 = scmp.eq.s32.totalorder %s17, 3
      %p52 = por %p50, %p51
      %p54 = scmp.ne.s32.totalorder %s37, %s53
      %p55 = scmp.eq.s32.totalorder %s17, 0
      %p56 = por %p54, %p55
      %s58 = sadd.s32 %s57, 1
      %p61 = scmp.eq.s32.totalorder %s11, 3
      %p62 = scmp.ne.s32.totalorder %s57, %s59
      %p63 = scmp.eq.s32.totalorder %s11, 0
      %p64 = por %p62, %p63
      %p65 = scmp.ne.s32.totalorder %s57, %s59
      %p66 = scmp.eq.s32.totalorder %s16, 3
      %p67 = por %p65, %p66
      %p68 = scmp.ne.s32.totalorder %s59, %s60
      %p69 = scmp.eq.s32.totalorder %s16, 0
      %p70 = por %p68, %p69
      %p71 = scmp.ne.s32.totalorder %s59, %s60
      %p72 = scmp.eq.s32.totalorder %s17, 3
      %p73 = por %p71, %p72
      %p75 = scmp.ne.s32.totalorder %s60, %s74
      %p76 = scmp.eq.s32.totalorder %s17, 0
      %p77 = por %p75, %p76
      %s79 = sadd.s32 %s78, 1
      %p82 = scmp.eq.s32.totalorder %s11, 3
      %p83 = scmp.ne.s32.totalorder %s78, %s80
      %p84 = scmp.eq.s32.totalorder %s11, 0
      %p85 = por %p83, %p84
      %p86 = scmp.ne.s32.totalorder %s78, %s80
      %p87 = scmp.eq.s32.totalorder %s16, 3
      %p88 = por %p86, %p87
      %p89 = scmp.ne.s32.totalorder %s80, %s81
      %p90 = scmp.eq.s32.totalorder %s16, 0
      %p91 = por %p89, %p90
      %p92 = scmp.ne.s32.totalorder %s80, %s81
      %p93 = scmp.eq.s32.totalorder %s17, 3
      %p94 = por %p92, %p93
      %p96 = scmp.ne.s32.totalorder %s81, %s95
      %p97 = scmp.eq.s32.totalorder %s17, 0
      %p98 = por %p96, %p97
      %s99 = ssub.s32 %s19, %s26
      %p100 = scmp.eq.s32.totalorder %s99, 0
      %s102 = sadd.s32 %s101, 1
      %s103 = scalar_select %p100, %s101, %s102
      %p106 = pneg %p100
      %p107 = scmp.eq.s32.totalorder %s11, 3
      %p108 = por %p106, %p107
      %p109 = scmp.ne.s32.totalorder %s101, %s104
      %p110 = scmp.eq.s32.totalorder %s11, 0
      %p111 = por %p109, %p110
      %p112 = scmp.ne.s32.totalorder %s101, %s104
      %p113 = scmp.eq.s32.totalorder %s16, 3
      %p114 = por %p112, %p113
      %p115 = scmp.ne.s32.totalorder %s104, %s105
      %p116 = scmp.eq.s32.totalorder %s16, 0
      %p117 = por %p115, %p116
      %p118 = scmp.ne.s32.totalorder %s104, %s105
      %p119 = scmp.eq.s32.totalorder %s17, 3
      %p120 = por %p118, %p119
      %p122 = scmp.ne.s32.totalorder %s105, %s121
      %p123 = scmp.eq.s32.totalorder %s17, 0
      %p124 = por %p122, %p123
      %s125 = ssub.s32 %s19, %s26
      %p126 = scmp.eq.s32.totalorder %s125, 0
      %s128 = sadd.s32 %s127, 1
      %s129 = scalar_select %p126, %s127, %s128
      %p132 = pneg %p126
      %p133 = scmp.eq.s32.totalorder %s11, 3
      %p134 = por %p132, %p133
      %p135 = scmp.ne.s32.totalorder %s127, %s130
      %p136 = scmp.eq.s32.totalorder %s11, 0
      %p137 = por %p135, %p136
      %p138 = scmp.ne.s32.totalorder %s127, %s130
      %p139 = scmp.eq.s32.totalorder %s16, 3
      %p140 = por %p138, %p139
      %p141 = scmp.ne.s32.totalorder %s130, %s131
      %p142 = scmp.eq.s32.totalorder %s16, 0
      %p143 = por %p141, %p142
      %p144 = scmp.ne.s32.totalorder %s130, %s131
      %p145 = scmp.eq.s32.totalorder %s17, 3
      %p146 = por %p144, %p145
      %p148 = scmp.ne.s32.totalorder %s131, %s147
      %p149 = scmp.eq.s32.totalorder %s17, 0
      %p150 = por %p148, %p149
      %s151 = ssub.s32 %s18, %s30
      %s152 = ssub.s32 %s19, %s26
      %s153 = sor.u32 %s151, %s152
      %p154 = scmp.eq.s32.totalorder %s153, 0
      %s156 = sadd.s32 %s155, 1
      %s157 = scalar_select %p154, %s155, %s156
      %p160 = pneg %p154
      %p161 = scmp.eq.s32.totalorder %s11, 3
      %p162 = por %p160, %p161
      %p163 = scmp.ne.s32.totalorder %s155, %s158
      %p164 = scmp.eq.s32.totalorder %s11, 0
      %p165 = por %p163, %p164
      %p166 = scmp.ne.s32.totalorder %s155, %s158
      %p167 = scmp.eq.s32.totalorder %s16, 3
      %p168 = por %p166, %p167
      %p169 = scmp.ne.s32.totalorder %s158, %s159
      %p170 = scmp.eq.s32.totalorder %s16, 0
      %p171 = por %p169, %p170
      %p172 = scmp.ne.s32.totalorder %s158, %s159
      %p173 = scmp.eq.s32.totalorder %s17, 3
      %p174 = por %p172, %p173
      %p176 = scmp.ne.s32.totalorder %s159, %s175
      %p177 = scmp.eq.s32.totalorder %s17, 0
      %p178 = por %p176, %p177
      %p179 = scmp.le.s32.totalorder 1, %s11
      %p180 = scmp.lt.s32.totalorder %s11, 5
      %p181 = pnand %p179, %p180
      %p182 = pneg %p181
      // Predicated region
      $region9: #{transformer_forward.33} parent=5 // pred_check
        _
      $region10: #{transformer_forward.33} parent=5 // pred_check_branch
        %184 = sbr.rel (%p181) target = $region12
      $region11: #{transformer_forward.33} parent=5 // pred_region
        %s185 = ssub.s32 %s11, 1
        // Predicated region
        $region13: #{transformer_forward.33} parent=11 // pred_check
          %p186 = pneg %p49
        $region14: #{transformer_forward.33} parent=11 // pred_check_branch
          %188 = sbr.rel (%p186) target = $region16
        $region15: #{transformer_forward.33} parent=11 // pred_region
          %s189 = smul.u32 2, %s20
          %p190 = scmp.lt.s32.totalorder %s189, 1
          %s191 = scalar_select %p190, %s189, 1
          %s192 = smul.addr %s191, 8
          %s193 = scalar_lea.vmem %s0, %s192
          %s194 = smul.u32 2, %s20
        $region16: #{transformer_forward.33} parent=11 // pred_fallthru
          _
        // Predicated region
        $region17: #{transformer_forward.33} parent=11 // pred_check
          %p195 = pneg %p70
        $region18: #{transformer_forward.33} parent=11 // pred_check_branch
          %197 = sbr.rel (%p195) target = $region20
        $region19: #{transformer_forward.33} parent=11 // pred_region
          _
        $region20: #{transformer_forward.33} parent=11 // pred_fallthru
          _
        // Predicated region
        $region21: #{transformer_forward.33} parent=11 // pred_check
          %p198 = pneg %p91
        $region22: #{transformer_forward.33} parent=11 // pred_check_branch
          %200 = sbr.rel (%p198) target = $region24
        $region23: #{transformer_forward.33} parent=11 // pred_region
          _
        $region24: #{transformer_forward.33} parent=11 // pred_fallthru
          _
      $region12: #{transformer_forward.33} parent=5 // pred_fallthru
        _
      %p201 = scmp.lt.s32.totalorder %s11, 4
      // Predicated region
      $region25: #{transformer_forward.33} parent=5 // pred_check
        %p202 = pneg %p201
      $region26: #{transformer_forward.33} parent=5 // pred_check_branch
        %204 = sbr.rel (%p202) target = $region28
      $region27: #{transformer_forward.33} parent=5 // pred_region
        // Predicated region
        $region29: #{transformer_forward.33} parent=27 // pred_check
          %p205 = pneg %p111
        $region30: #{transformer_forward.33} parent=27 // pred_check_branch
          %207 = sbr.rel (%p205) target = $region32
        $region31: #{transformer_forward.33} parent=27 // pred_region
          %s208 = sand.u32 %s101, 1
          %s209 = sand.u32 %s101, 1
          %s210 = smul.addr %s209, 64
          %s211 = scalar_lea.vmem [#allocation3], %s210
          %s212 = smul.u32 4, %s19
          %s213 = smul.addr %s212, 4
          %s214 = scalar_lea.vmem %s3, %s213
          // Predicated region
          $region33: #{transformer_forward.33} parent=31 // pred_check
            _
          $region34: #{transformer_forward.33} parent=31 // pred_check_branch
            %216 = sbr.rel (0) target = $region36
          $region35: #{transformer_forward.33} parent=31 // pred_region
            // Predicated region
            $region37: #{transformer_forward.33} parent=35 // pred_check
              _
            $region38: #{transformer_forward.33} parent=35 // pred_check_branch
              %218 = sbr.rel (0) target = $region40
            $region39: #{transformer_forward.33} parent=35 // pred_region
              loop: start=0, step=1, limit=1
              $region41: #{transformer_forward.33} parent=39 // loop_pre_header
                _
              $region42: #{transformer_forward.33} parent=39 // loop_header
                %s220 = sphi 0, %s224
                %p221 = scmp.ge.s32.totalorder %s220, 1
                %s225 = sphi %s214, %s214
                %s226 = sphi %s211, %s211
              $region43: #{transformer_forward.33} parent=39 // loop_header_branch
                %223 = sbr.rel (%p221) target = $region47
              $region44: #{transformer_forward.33} parent=39 // loop_body
                %v227 = vld [vmem:[%s225] sm:$0xff]
                %228 = vst [vmem:[%s226] sm:$0xff] %v227
                %v229 = vld [vmem:[%s225 + $0x8] sm:$0xff]
                %230 = vst [vmem:[%s226 + $0x8] sm:$0xff] %v229
                %v231 = vld [vmem:[%s225 + $0x40] sm:$0xff]
                %232 = vst [vmem:[%s226 + $0x10] sm:$0xff] %v231
                %v233 = vld [vmem:[%s225 + $0x48] sm:$0xff]
                %234 = vst [vmem:[%s226 + $0x18] sm:$0xff] %v233
                %v235 = vld [vmem:[%s225 + $0x80] sm:$0xff]
                %236 = vst [vmem:[%s226 + $0x20] sm:$0xff] %v235
                %v237 = vld [vmem:[%s225 + $0x88] sm:$0xff]
                %238 = vst [vmem:[%s226 + $0x28] sm:$0xff] %v237
                %v239 = vld [vmem:[%s225 + $0xc0] sm:$0xff]
                %240 = vst [vmem:[%s226 + $0x30] sm:$0xff] %v239
                %v241 = vld [vmem:[%s225 + $0xc8] sm:$0xff]
                %242 = vst [vmem:[%s226 + $0x38] sm:$0xff] %v241
              $region45: #{transformer_forward.33} parent=39 // loop_footer
                %s224 = sadd.s32 1, %s220
              $region46: #{transformer_forward.33} parent=39 // loop_footer_branch
                %219 = sbr.rel target = $region42
              $region47: #{transformer_forward.33} parent=39 // loop_exit
                _
            $region40: #{transformer_forward.33} parent=35 // pred_fallthru
              _
            // Predicated region
            $region48: #{transformer_forward.33} parent=35 // pred_check
              _
            $region49: #{transformer_forward.33} parent=35 // pred_check_branch
              %244 = sbr.rel target = $region51
            $region50: #{transformer_forward.33} parent=35 // pred_region
              _
            $region51: #{transformer_forward.33} parent=35 // pred_fallthru
              _
          $region36: #{transformer_forward.33} parent=31 // pred_fallthru
            _
          %245 = vnop
        $region32: #{transformer_forward.33} parent=27 // pred_fallthru
          _
        // Predicated region
        $region52: #{transformer_forward.33} parent=27 // pred_check
          %p246 = pneg %p137
        $region53: #{transformer_forward.33} parent=27 // pred_check_branch
          %248 = sbr.rel (%p246) target = $region55
        $region54: #{transformer_forward.33} parent=27 // pred_region
          %s249 = smul.u32 4, %s19
          %p250 = scmp.lt.s32.totalorder %s249, 15
          %s251 = scalar_select %p250, %s249, 15
          %s252 = scalar_lea.vmem %s4, %s251
          %s253 = smul.u32 4, %s19
        $region55: #{transformer_forward.33} parent=27 // pred_fallthru
          _
      $region28: #{transformer_forward.33} parent=5 // pred_fallthru
        _
      %p254 = scmp.le.s32.totalorder 1, %s11
      %p255 = scmp.lt.s32.totalorder %s11, 5
      %p256 = pnand %p254, %p255
      %p257 = pneg %p256
      // Predicated region
      $region56: #{transformer_forward.33} parent=5 // pred_check
        _
      $region57: #{transformer_forward.33} parent=5 // pred_check_branch
        %259 = sbr.rel (%p256) target = $region59
      $region58: #{transformer_forward.33} parent=5 // pred_region
        %s260 = ssub.s32 %s11, 1
        %s261 = sand.u32 %s104, 1
        %s262 = sand.u32 %s104, 1
        %s263 = smul.addr %s262, 64
        %s264 = scalar_lea.vmem [#allocation3], %s263
        // Predicated region
        $region60: #{transformer_forward.33} parent=58 // pred_check
          %p265 = pneg %p117
        $region61: #{transformer_forward.33} parent=58 // pred_check_branch
          %267 = sbr.rel (%p265) target = $region63
        $region62: #{transformer_forward.33} parent=58 // pred_region
          _
        $region63: #{transformer_forward.33} parent=58 // pred_fallthru
          _
        %s268 = smul.u32 2, %s20
        %p269 = scmp.lt.s32.totalorder %s268, 1
        %s270 = scalar_select %p269, %s268, 1
        %s271 = smul.addr %s270, 8
        %s272 = scalar_lea.vmem %s0, %s271
        %p273 = pneg %p49
        %p274 = pneg %p46
        %p275 = pneg %p70
        %p276 = pneg %p67
        %p277 = pneg %p91
        %p278 = pneg %p88
        %s279 = sand.u32 %s104, 1
        %s280 = sand.u32 %s104, 1
        %s281 = smul.addr %s280, 64
        %s282 = scalar_lea.vmem [#allocation3], %s281
        %p283 = pneg %p117
        %p284 = pneg %p114
        %s285 = smul.u32 4, %s21
        %p286 = scmp.lt.s32.totalorder %s285, 15
        %s287 = scalar_select %p286, %s285, 15
        %s288 = scalar_lea.vmem %s4, %s287
        %p289 = pneg %p143
        %p290 = pneg %p140
        %p291 = pneg %p171
        %p292 = pneg %p168
        %s293 = sand.u32 %s158, 1
        %s294 = sand.u32 %s158, 1
        %s295 = smul.addr %s294, 32
        %s296 = scalar_lea.vmem [#allocation4], %s295
        %s297 = smul.u32 2, %s20
        %p298 = scmp.lt.s32.totalorder %s297, 1
        %s299 = scalar_select %p298, %s297, 1
        %s300 = smul.addr %s299, 8
        %s301 = scalar_lea.vmem %s0, %s300
        %s302 = smul.u32 2, %s20
        %s303 = smul.u32 4, %s21
        %s304 = smul.u32 4, %s21
        %p305 = scmp.lt.s32.totalorder %s304, 15
        %s306 = scalar_select %p305, %s304, 15
        %s307 = scalar_lea.vmem %s4, %s306
        %s308 = smul.u32 4, %s21
        %s309 = smul.u32 2, %s20
        %s310 = smul.u32 4, %s21
        %p312 = scmp.eq.s32.totalorder %s21, 0
        // Predicated region
        $region64: #{transformer_forward.33} parent=58 // pred_check
          %p313 = pneg %p312
        $region65: #{transformer_forward.33} parent=58 // pred_check_branch
          %315 = sbr.rel (%p313) target = $region67
        $region66: #{transformer_forward.33} parent=58 // pred_region
          %v316 = vld [vmem:[%s301] sm:$0xff]
          %v317 = vld [vmem:[%s301 + $0x8] sm:$0xff]
          %vm318 = vcmask 261120
          %v319 = vsel %vm318, %v316, 0.0
          %320 = vadd.xlane.f32.xlu0 %v319
          %v321 = vpop.xlane.xlu0 %320
          %v322 = vsel %vm318, %v317, 0.0
          %323 = vadd.xlane.f32.xlu0 %v322
          %v324 = vpop.xlane.xlu0 %323
          %v325 = vrcp.pop 32.0
          %v326 = vmul.f32 %v321, %v325
          %v327 = vmul.f32 %v324, %v325
          %v328 = vsub.f32 %v316, %v326
          %v329 = vsub.f32 %v317, %v327
          %v330 = vmul.f32 %v328, %v328
          %v331 = vmul.f32 %v329, %v329
          %v332 = vsel %vm318, %v330, 0.0
          %333 = vadd.xlane.f32.xlu0 %v332
          %v334 = vpop.xlane.xlu0 %333
          %v335 = vsel %vm318, %v331, 0.0
          %336 = vadd.xlane.f32.xlu0 %v335
          %v337 = vpop.xlane.xlu0 %336
          %v338 = vmul.f32 %v334, 0.032258064
          %v339 = vmul.f32 %v337, 0.032258064
          %v340 = vld [vmem:[%s1] sm:$0x1]
          %v342 = vlaneseq
          %v343 = vshrl.u32 %v342, 7
          %v344 = vsub.s32 0, %v343
          %v345 = vrot.slane %v340, %v344
          %v347 = vmul.f32 %v345, %v328
          %v348 = vmul.f32 %v345, %v329
          %v349 = vrsqrt.pop %v338
          %v350 = vmul.f32 %v338, %v349
          %vm351 = vcmp.eq.f32.partialorder %v338, inf
          %v352 = vsel %vm351, %v338, %v350
          %vm353 = vcmp.eq.f32.partialorder %v338, 0.0
          %v354 = vand.u32 %v338, 2147483648
          %v355 = vsel %vm353, %v354, %v352
          %v356 = vrsqrt.pop %v339
          %v357 = vmul.f32 %v339, %v356
          %vm358 = vcmp.eq.f32.partialorder %v339, inf
          %v359 = vsel %vm358, %v339, %v357
          %vm360 = vcmp.eq.f32.partialorder %v339, 0.0
          %v361 = vand.u32 %v339, 2147483648
          %v362 = vsel %vm360, %v361, %v359
          %v363 = vadd.f32 %v355, 1e-06
          %v364 = vadd.f32 %v362, 1e-06
          %v365 = vrcp.pop %v363
          %v366 = vmul.f32 %v347, %v365
          %v367 = vrcp.pop %v364
          %v368 = vmul.f32 %v348, %v367
          %v369 = vld [vmem:[%s2] sm:$0x1]
          %v371 = vlaneseq
          %v372 = vshrl.u32 %v371, 7
          %v373 = vsub.s32 0, %v372
          %v374 = vrot.slane %v369, %v373
          %v376 = vadd.f32 %v366, %v374
          %v377 = vadd.f32 %v368, %v374
          %v378 = vpack.c.bf16 %v377, %v376
          %379 = vst.msk [vmem:[#allocation2] sm:$0xff] %vm318, %v378
        $region67: #{transformer_forward.33} parent=58 // pred_fallthru
          _
        %v380 = vld [vmem:[#allocation2] sm:$0xff]
        %v381 = vld [vmem:[%s264] sm:$0xff]
        %v382 = vld [vmem:[%s264 + $0x8] sm:$0xff]
        %v383 = vld [vmem:[%s264 + $0x10] sm:$0xff]
        %v384 = vld [vmem:[%s264 + $0x18] sm:$0xff]
        %v385 = vld [vmem:[%s264 + $0x20] sm:$0xff]
        %v386 = vld [vmem:[%s264 + $0x28] sm:$0xff]
        %v387 = vld [vmem:[%s264 + $0x30] sm:$0xff]
        %v388 = vld [vmem:[%s264 + $0x38] sm:$0xff]
        %v389 = vld [vmem:[%s307] sm:$0xf]
        %v391 = vlaneseq
        %v392 = vshrl.u32 %v391, 7
        %v393 = vsub.s32 0, %v392
        %v394 = vrot.slane %v389, %v393
        %v395 = vlaneseq
        %v396 = vshrl.u32 %v395, 7
        %v397 = vsub.s32 1, %v396
        %v398 = vrot.slane %v389, %v397
        %v399 = vlaneseq
        %v400 = vshrl.u32 %v399, 7
        %v401 = vsub.s32 2, %v400
        %v402 = vrot.slane %v389, %v401
        %v403 = vlaneseq
        %v404 = vshrl.u32 %v403, 7
        %v405 = vsub.s32 3, %v404
        %v406 = vrot.slane %v389, %v405
        %v419 = vunpack.c.l.b16 %v381
        %v420 = vunpack.c.h.b16 %v381
        %v421 = vunpack.c.l.b16 %v382
        %v422 = vunpack.c.h.b16 %v382
        %v423 = vunpack.c.l.b16 %v383
        %v424 = vunpack.c.h.b16 %v383
        %v425 = vunpack.c.l.b16 %v384
        %v426 = vunpack.c.h.b16 %v384
        %v427 = vunpack.c.l.b16 %v385
        %v428 = vunpack.c.h.b16 %v385
        %v429 = vunpack.c.l.b16 %v386
        %v430 = vunpack.c.h.b16 %v386
        %v431 = vunpack.c.l.b16 %v387
        %v432 = vunpack.c.h.b16 %v387
        %v433 = vunpack.c.l.b16 %v388
        %v434 = vunpack.c.h.b16 %v388
        %v435 = vpack.c.b16 %v423, %v419
        %v436 = vpack.c.b16 %v424, %v420
        %v437 = vpack.c.b16 %v425, %v421
        %v438 = vpack.c.b16 %v426, %v422
        %v439 = vpack.c.b16 %v431, %v427
        %v440 = vpack.c.b16 %v432, %v428
        %v441 = vpack.c.b16 %v433, %v429
        %v442 = vpack.c.b16 %v434, %v430
        %vm451 = vcmask 261120
        %v453 = vsel %vm451, %v380, 0
        %455 = vmatprep.subr.bf16.mxu0 %v436
        %456 = vmatpush1.bf16.msra.mxu0 %v435
        %457 = vmatprep.subr.bf16.mxu0 %v440
        %458 = vmatpush1.bf16.msra.mxu0 %v439
        %459 = vmatprep.subr.bf16.mxu0 0
        %460 = vmatpush1.bf16.msra.mxu0 0
        %461 = vmatprep.subr.bf16.mxu0 0
        %462 = vmatpush1.bf16.msra.mxu0 0
        %463 = vmatprep.subr.bf16.mxu0 0
        %464 = vmatpush1.bf16.msra.mxu0 0
        %465 = vmatprep.subr.bf16.mxu0 0
        %466 = vmatpush1.bf16.msra.mxu0 0
        %467 = vmatprep.subr.bf16.mxu0 0
        %468 = vmatpush1.bf16.msra.mxu0 0
        %469 = vmatprep.subr.bf16.mxu0 0
        %470 = vmatpush1.bf16.msra.mxu0 0
        %471 = vmatprep.subr.bf16.mxu0 0
        %472 = vmatpush1.bf16.msra.mxu0 0
        %473 = vmatprep.subr.bf16.mxu0 0
        %474 = vmatpush1.bf16.msra.mxu0 0
        %475 = vmatprep.subr.bf16.mxu0 0
        %476 = vmatpush1.bf16.msra.mxu0 0
        %477 = vmatprep.subr.bf16.mxu0 0
        %478 = vmatpush1.bf16.msra.mxu0 0
        %479 = vmatprep.subr.bf16.mxu0 0
        %480 = vmatpush1.bf16.msra.mxu0 0
        %481 = vmatprep.subr.bf16.mxu0 0
        %482 = vmatpush1.bf16.msra.mxu0 0
        %483 = vmatprep.subr.bf16.mxu0 0
        %484 = vmatpush1.bf16.msra.mxu0 0
        %485 = vmatprep.subr.bf16.mxu0 0
        %486 = vmatpush1.bf16.msra.mxu0 0
        %487 = vmatprep.mubr.bf16.mxu0 0
        %488 = vmatmul.mubr.bf16.gmra.mrb[0].mxu0 %v453
        %v489 = vpop.f32.mrb[0].mxu0
        %v490 = vadd.f32 %v394, %v489
        %v491 = vpop.f32.mrb[0].mxu0
        %v492 = vadd.f32 %v398, %v491
        %v493 = vpop.f32.mrb[0].mxu0
        %v494 = vadd.f32 %v394, %v493
        %v495 = vpop.f32.mrb[0].mxu0
        %v496 = vadd.f32 %v398, %v495
        %497 = vdwg.mxu0
        %498 = vmatprep.subr.bf16.mxu0 %v438
        %499 = vmatpush1.bf16.msra.mxu0 %v437
        %500 = vmatprep.subr.bf16.mxu0 %v442
        %501 = vmatpush1.bf16.msra.mxu0 %v441
        %502 = vmatprep.subr.bf16.mxu0 0
        %503 = vmatpush1.bf16.msra.mxu0 0
        %504 = vmatprep.subr.bf16.mxu0 0
        %505 = vmatpush1.bf16.msra.mxu0 0
        %506 = vmatprep.subr.bf16.mxu0 0
        %507 = vmatpush1.bf16.msra.mxu0 0
        %508 = vmatprep.subr.bf16.mxu0 0
        %509 = vmatpush1.bf16.msra.mxu0 0
        %510 = vmatprep.subr.bf16.mxu0 0
        %511 = vmatpush1.bf16.msra.mxu0 0
        %512 = vmatprep.subr.bf16.mxu0 0
        %513 = vmatpush1.bf16.msra.mxu0 0
        %514 = vmatprep.subr.bf16.mxu0 0
        %515 = vmatpush1.bf16.msra.mxu0 0
        %516 = vmatprep.subr.bf16.mxu0 0
        %517 = vmatpush1.bf16.msra.mxu0 0
        %518 = vmatprep.subr.bf16.mxu0 0
        %519 = vmatpush1.bf16.msra.mxu0 0
        %520 = vmatprep.subr.bf16.mxu0 0
        %521 = vmatpush1.bf16.msra.mxu0 0
        %522 = vmatprep.subr.bf16.mxu0 0
        %523 = vmatpush1.bf16.msra.mxu0 0
        %524 = vmatprep.subr.bf16.mxu0 0
        %525 = vmatpush1.bf16.msra.mxu0 0
        %526 = vmatprep.subr.bf16.mxu0 0
        %527 = vmatpush1.bf16.msra.mxu0 0
        %528 = vmatprep.subr.bf16.mxu0 0
        %529 = vmatpush1.bf16.msra.mxu0 0
        %530 = vmatprep.mubr.bf16.mxu0 0
        %531 = vmatmul.mubr.bf16.gmra.mrb[0].mxu0 %v453
        %v532 = vpop.f32.mrb[0].mxu0
        %v533 = vadd.f32 %v402, %v532
        %v534 = vpop.f32.mrb[0].mxu0
        %v535 = vadd.f32 %v406, %v534
        %v536 = vpop.f32.mrb[0].mxu0
        %v537 = vadd.f32 %v402, %v536
        %v538 = vpop.f32.mrb[0].mxu0
        %v539 = vadd.f32 %v406, %v538
        %540 = vdwg.mxu0
        %v541 = vmax.f32 %v490, 0.0
        %v542 = vmax.f32 %v492, 0.0
        %v543 = vmax.f32 %v533, 0.0
        %v544 = vmax.f32 %v535, 0.0
        %v545 = vmax.f32 %v494, 0.0
        %v546 = vmax.f32 %v496, 0.0
        %v547 = vmax.f32 %v537, 0.0
        %v548 = vmax.f32 %v539, 0.0
        %v549 = vpack.c.bf16 %v545, %v541
        %v550 = vpack.c.bf16 %v546, %v542
        %v551 = vpack.c.bf16 %v547, %v543
        %v552 = vpack.c.bf16 %v548, %v544
        %v557 = vunpack.c.l.b16 %v549
        %v558 = vunpack.c.l.b16 %v550
        %v559 = vunpack.c.l.b16 %v551
        %v560 = vunpack.c.l.b16 %v552
        %v561 = vunpack.c.h.b16 %v549
        %v562 = vunpack.c.h.b16 %v550
        %v563 = vunpack.c.h.b16 %v551
        %v564 = vunpack.c.h.b16 %v552
        %v565 = vpack.c.b16 %v558, %v557
        %v566 = vpack.c.b16 %v560, %v559
        %v567 = vpack.c.b16 %v562, %v561
        %v568 = vpack.c.b16 %v564, %v563
        %573 = vst [vmem:[%s296] sm:$0xff] %v565
        %574 = vst [vmem:[%s296 + $0x8] sm:$0xff] %v566
        %575 = vst [vmem:[%s296 + $0x10] sm:$0xff] %v567
        %576 = vst [vmem:[%s296 + $0x18] sm:$0xff] %v568
        %s577 = sand.u32 %s158, 1
        %s578 = sand.u32 %s158, 1
        %s579 = smul.addr %s578, 32
        %s580 = scalar_lea.vmem [#allocation4], %s579
        // Predicated region
        $region68: #{transformer_forward.33} parent=58 // pred_check
          %p581 = pneg %p168
        $region69: #{transformer_forward.33} parent=58 // pred_check_branch
          %583 = sbr.rel (%p581) target = $region71
        $region70: #{transformer_forward.33} parent=58 // pred_region
          %s584 = smul.u32 2, %s20
          %s585 = smul.u32 4, %s21
          %s586 = smul.addr %s584, 16
          %s587 = sadd.s32 %s585, %s586
          %s588 = smul.addr %s587, 4
          %s589 = scalar_lea.vmem %s5, %s588
          // Predicated region
          $region72: #{transformer_forward.33} parent=70 // pred_check
            _
          $region73: #{transformer_forward.33} parent=70 // pred_check_branch
            %591 = sbr.rel (0) target = $region75
          $region74: #{transformer_forward.33} parent=70 // pred_region
            // Predicated region
            $region76: #{transformer_forward.33} parent=74 // pred_check
              _
            $region77: #{transformer_forward.33} parent=74 // pred_check_branch
              %593 = sbr.rel (0) target = $region79
            $region78: #{transformer_forward.33} parent=74 // pred_region
              loop: start=0, step=1, limit=1
              $region80: #{transformer_forward.33} parent=78 // loop_pre_header
                _
              $region81: #{transformer_forward.33} parent=78 // loop_header
                %s595 = sphi 0, %s599
                %p596 = scmp.ge.s32.totalorder %s595, 1
                %s600 = sphi %s580, %s580
                %s601 = sphi %s589, %s589
              $region82: #{transformer_forward.33} parent=78 // loop_header_branch
                %598 = sbr.rel (%p596) target = $region86
              $region83: #{transformer_forward.33} parent=78 // loop_body
                %v602 = vld [vmem:[%s600] sm:$0xff]
                %603 = vst [vmem:[%s601] sm:$0xff] %v602
                %v604 = vld [vmem:[%s600 + $0x8] sm:$0xff]
                %605 = vst [vmem:[%s601 + $0x8] sm:$0xff] %v604
                %v606 = vld [vmem:[%s600 + $0x10] sm:$0xff]
                %607 = vst [vmem:[%s601 + $0x40] sm:$0xff] %v606
                %v608 = vld [vmem:[%s600 + $0x18] sm:$0xff]
                %609 = vst [vmem:[%s601 + $0x48] sm:$0xff] %v608
              $region84: #{transformer_forward.33} parent=78 // loop_footer
                %s599 = sadd.s32 1, %s595
              $region85: #{transformer_forward.33} parent=78 // loop_footer_branch
                %594 = sbr.rel target = $region81
              $region86: #{transformer_forward.33} parent=78 // loop_exit
                _
            $region79: #{transformer_forward.33} parent=74 // pred_fallthru
              _
            // Predicated region
            $region87: #{transformer_forward.33} parent=74 // pred_check
              _
            $region88: #{transformer_forward.33} parent=74 // pred_check_branch
              %611 = sbr.rel target = $region90
            $region89: #{transformer_forward.33} parent=74 // pred_region
              _
            $region90: #{transformer_forward.33} parent=74 // pred_fallthru
              _
          $region75: #{transformer_forward.33} parent=70 // pred_fallthru
            _
          %612 = vnop
        $region71: #{transformer_forward.33} parent=58 // pred_fallthru
          _
      $region59: #{transformer_forward.33} parent=5 // pred_fallthru
        _
      %p613 = scmp.le.s32.totalorder 2, %s11
      // Predicated region
      $region91: #{transformer_forward.33} parent=5 // pred_check
        %p614 = pneg %p613
      $region92: #{transformer_forward.33} parent=5 // pred_check_branch
        %616 = sbr.rel (%p614) target = $region94
      $region93: #{transformer_forward.33} parent=5 // pred_region
        %s617 = ssub.s32 %s11, 2
        // Predicated region
        $region95: #{transformer_forward.33} parent=93 // pred_check
          %p618 = pneg %p174
        $region96: #{transformer_forward.33} parent=93 // pred_check_branch
          %620 = sbr.rel (%p618) target = $region98
        $region97: #{transformer_forward.33} parent=93 // pred_region
          %s621 = sand.u32 %s159, 1
          %s622 = sand.u32 %s159, 1
          %s623 = smul.addr %s622, 32
          %s624 = scalar_lea.vmem [#allocation4], %s623
        $region98: #{transformer_forward.33} parent=93 // pred_fallthru
          _
      $region94: #{transformer_forward.33} parent=5 // pred_fallthru
        _
    $region6: #{transformer_forward.33} parent=1 // loop_footer
      %s15 = sadd.s32 1, %s11
    $region7: #{transformer_forward.33} parent=1 // loop_footer_branch
      %10 = sbr.rel target = $region3
    $region8: #{transformer_forward.33} parent=1 // loop_exit
      _

// kernel: transformer_forward.31
$region0: #{transformer_forward.31}
  #allocation0 [shape = 'u32[]', space=smem, size = 0x4, offset = 0x4, fixed_abs, tag = 'smem constant byte address 0x4 - core index']
  #allocation1 [shape = 'u32[144,128]{1,0:T(1,128)}', space=vmem, size = 0x12000, scoped, tag = 'internal scratch']
  %s0 = inlined_call_operand.vmem [shape: bf16[16,96], index: 0, kind: input, shape index: {}]
  %s1 = inlined_call_operand.vmem [shape: f32[2,1,8], index: 1, kind: input, shape index: {}]
  %s2 = inlined_call_operand.vmem [shape: bf16[16,32], index: 2, kind: output, shape index: {}]
  %s3 = sld [smem:[#allocation0]]
  $region41: #{transformer_forward.31} parent=0
    _
  %s5 = ssub.s32 1, %s3
  %s6 = scalar_select 0, %s5, %s3
  loop: start=0, step=1, limit=4
  $region2: #{transformer_forward.31} parent=0 // loop_pre_header
    _
  $region3: #{transformer_forward.31} parent=0 // loop_header
    %s8 = sphi 0, %s12
    %p9 = scmp.ge.s32.totalorder %s8, 4
    %s18 = sphi 0, %s20
    %s21 = sphi 0, %s18
    %s22 = sphi 0, %s21
    %s38 = sphi 0, %s22
    %s44 = sphi 0, %s46
    %s47 = sphi 0, %s44
    %s48 = sphi 0, %s47
    %s64 = sphi 0, %s48
    %s70 = sphi 0, %s72
    %s73 = sphi 0, %s70
    %s74 = sphi 0, %s73
    %s90 = sphi 0, %s74
  $region4: #{transformer_forward.31} parent=0 // loop_header_branch
    %11 = sbr.rel (%p9) target = $region8
  $region5: #{transformer_forward.31} parent=0 // loop_body
    %s13 = ssub.s32 %s8, 1
    %s14 = ssub.s32 %s8, 2
    %s15 = sadd.s32 %s8, 1
    %s16 = ssub.s32 %s8, %s15
    %p17 = scmp.eq.s32.totalorder %s16, 0
    %s19 = sadd.s32 %s18, 1
    %s20 = scalar_select %p17, %s18, %s19
    %p23 = pneg %p17
    %p24 = scmp.eq.s32.totalorder %s8, 1
    %p25 = por %p23, %p24
    %p26 = scmp.ne.s32.totalorder %s18, %s21
    %p27 = scmp.eq.s32.totalorder %s8, 0
    %p28 = por %p26, %p27
    %p29 = scmp.ne.s32.totalorder %s18, %s21
    %p30 = scmp.eq.s32.totalorder %s13, 1
    %p31 = por %p29, %p30
    %p32 = scmp.ne.s32.totalorder %s21, %s22
    %p33 = scmp.eq.s32.totalorder %s13, 0
    %p34 = por %p32, %p33
    %p35 = scmp.ne.s32.totalorder %s21, %s22
    %p36 = scmp.eq.s32.totalorder %s14, 1
    %p37 = por %p35, %p36
    %p39 = scmp.ne.s32.totalorder %s22, %s38
    %p40 = scmp.eq.s32.totalorder %s14, 0
    %p41 = por %p39, %p40
    %s42 = ssub.s32 %s8, %s15
    %p43 = scmp.eq.s32.totalorder %s42, 0
    %s45 = sadd.s32 %s44, 1
    %s46 = scalar_select %p43, %s44, %s45
    %p49 = pneg %p43
    %p50 = scmp.eq.s32.totalorder %s8, 1
    %p51 = por %p49, %p50
    %p52 = scmp.ne.s32.totalorder %s44, %s47
    %p53 = scmp.eq.s32.totalorder %s8, 0
    %p54 = por %p52, %p53
    %p55 = scmp.ne.s32.totalorder %s44, %s47
    %p56 = scmp.eq.s32.totalorder %s13, 1
    %p57 = por %p55, %p56
    %p58 = scmp.ne.s32.totalorder %s47, %s48
    %p59 = scmp.eq.s32.totalorder %s13, 0
    %p60 = por %p58, %p59
    %p61 = scmp.ne.s32.totalorder %s47, %s48
    %p62 = scmp.eq.s32.totalorder %s14, 1
    %p63 = por %p61, %p62
    %p65 = scmp.ne.s32.totalorder %s48, %s64
    %p66 = scmp.eq.s32.totalorder %s14, 0
    %p67 = por %p65, %p66
    %s68 = ssub.s32 %s8, %s15
    %p69 = scmp.eq.s32.totalorder %s68, 0
    %s71 = sadd.s32 %s70, 1
    %s72 = scalar_select %p69, %s70, %s71
    %p75 = pneg %p69
    %p76 = scmp.eq.s32.totalorder %s8, 1
    %p77 = por %p75, %p76
    %p78 = scmp.ne.s32.totalorder %s70, %s73
    %p79 = scmp.eq.s32.totalorder %s8, 0
    %p80 = por %p78, %p79
    %p81 = scmp.ne.s32.totalorder %s70, %s73
    %p82 = scmp.eq.s32.totalorder %s13, 1
    %p83 = por %p81, %p82
    %p84 = scmp.ne.s32.totalorder %s73, %s74
    %p85 = scmp.eq.s32.totalorder %s13, 0
    %p86 = por %p84, %p85
    %p87 = scmp.ne.s32.totalorder %s73, %s74
    %p88 = scmp.eq.s32.totalorder %s14, 1
    %p89 = por %p87, %p88
    %p91 = scmp.ne.s32.totalorder %s74, %s90
    %p92 = scmp.eq.s32.totalorder %s14, 0
    %p93 = por %p91, %p92
    %p94 = scmp.le.s32.totalorder 1, %s8
    %p95 = scmp.lt.s32.totalorder %s8, 3
    %p96 = pnand %p94, %p95
    %p97 = pneg %p96
    // Predicated region
    $region9: #{transformer_forward.31} parent=5 // pred_check
      _
    $region10: #{transformer_forward.31} parent=5 // pred_check_branch
      %99 = sbr.rel (%p96) target = $region12
    $region11: #{transformer_forward.31} parent=5 // pred_region
      %s100 = ssub.s32 %s8, 1
    $region12: #{transformer_forward.31} parent=5 // pred_fallthru
      _
    %p101 = scmp.lt.s32.totalorder %s8, 2
    // Predicated region
    $region13: #{transformer_forward.31} parent=5 // pred_check
      %p102 = pneg %p101
    $region14: #{transformer_forward.31} parent=5 // pred_check_branch
      %104 = sbr.rel (%p102) target = $region16
    $region15: #{transformer_forward.31} parent=5 // pred_region
      // Predicated region
      $region17: #{transformer_forward.31} parent=15 // pred_check
        %p105 = pneg %p28
      $region18: #{transformer_forward.31} parent=15 // pred_check_branch
        %107 = sbr.rel (%p105) target = $region20
      $region19: #{transformer_forward.31} parent=15 // pred_region
        %p108 = scmp.lt.s32.totalorder %s8, 1
        %s109 = scalar_select %p108, %s8, 1
        %s110 = smul.addr %s109, 4
        %s111 = scalar_lea.vmem %s0, %s110
      $region20: #{transformer_forward.31} parent=15 // pred_fallthru
        _
      // Predicated region
      $region21: #{transformer_forward.31} parent=15 // pred_check
        %p112 = pneg %p54
      $region22: #{transformer_forward.31} parent=15 // pred_check_branch
        %114 = sbr.rel (%p112) target = $region24
      $region23: #{transformer_forward.31} parent=15 // pred_region
        %p115 = scmp.lt.s32.totalorder %s8, 1
        %s116 = scalar_select %p115, %s8, 1
        %s117 = scalar_lea.vmem %s1, %s116
      $region24: #{transformer_forward.31} parent=15 // pred_fallthru
        _
    $region16: #{transformer_forward.31} parent=5 // pred_fallthru
      _
    %p118 = scmp.le.s32.totalorder 1, %s8
    %p119 = scmp.lt.s32.totalorder %s8, 3
    %p120 = pnand %p118, %p119
    %p121 = pneg %p120
    // Predicated region
    $region25: #{transformer_forward.31} parent=5 // pred_check
      _
    $region26: #{transformer_forward.31} parent=5 // pred_check_branch
      %123 = sbr.rel (%p120) target = $region28
    $region27: #{transformer_forward.31} parent=5 // pred_region
      %s124 = ssub.s32 %s8, 1
      %p125 = scmp.lt.s32.totalorder %s13, 1
      %s126 = scalar_select %p125, %s13, 1
      %s127 = smul.addr %s126, 4
      %s128 = scalar_lea.vmem %s0, %s127
      %p129 = pneg %p34
      %p130 = pneg %p31
      %p131 = scmp.lt.s32.totalorder %s13, 1
      %s132 = scalar_select %p131, %s13, 1
      %s133 = scalar_lea.vmem %s1, %s132
      %p134 = pneg %p60
      %p135 = pneg %p57
      %p136 = pneg %p86
      %p137 = pneg %p83
      %p138 = scmp.lt.s32.totalorder %s13, 1
      %s139 = scalar_select %p138, %s13, 1
      %s140 = smul.addr %s139, 4
      %s141 = scalar_lea.vmem %s2, %s140
      %p142 = scmp.lt.s32.totalorder %s13, 1
      %s143 = scalar_select %p142, %s13, 1
      %s144 = smul.addr %s143, 4
      %s145 = scalar_lea.vmem %s0, %s144
      %p146 = scmp.lt.s32.totalorder %s13, 1
      %s147 = scalar_select %p146, %s13, 1
      %s148 = scalar_lea.vmem %s1, %s147
      %p149 = scmp.lt.s32.totalorder %s13, 1
      %s150 = scalar_select %p149, %s13, 1
      %s151 = smul.addr %s150, 4
      %s152 = scalar_lea.vmem %s2, %s151
      %v154 = vld [vmem:[%s148] sm:$0x1]
      %v155 = vld [vmem:[%s145] sm:$0xf]
      %v157 = vunpack.c.l.b16 %v155
      %v158 = vpack.c.b16 %v157, %v157
      %159 = vrot.lane.b32.xlu0 %v158, 96
      %v160 = vpop.permute.xlu0 %159
      %vm161 = vcmask 64512
      %v163 = vsel %vm161, %v155, 0
      %v166 = vsel %vm161, %v160, 0
      %168 = vmatprep.subr.bf16.mxu0 0
      %169 = vmatpush1.bf16.xpose.msra.mxu0 %v166
      %170 = vmatprep.subr.bf16.mxu0 0
      %171 = vmatpush1.bf16.xpose.msra.mxu0 0
      %172 = vmatprep.subr.bf16.mxu0 0
      %173 = vmatpush1.bf16.xpose.msra.mxu0 0
      %174 = vmatprep.subr.bf16.mxu0 0
      %175 = vmatpush1.bf16.xpose.msra.mxu0 0
      %176 = vmatprep.subr.bf16.mxu0 0
      %177 = vmatpush1.bf16.xpose.msra.mxu0 0
      %178 = vmatprep.subr.bf16.mxu0 0
      %179 = vmatpush1.bf16.xpose.msra.mxu0 0
      %180 = vmatprep.subr.bf16.mxu0 0
      %181 = vmatpush1.bf16.xpose.msra.mxu0 0
      %182 = vmatprep.subr.bf16.mxu0 0
      %183 = vmatpush1.bf16.xpose.msra.mxu0 0
      %184 = vmatprep.subr.bf16.mxu0 0
      %185 = vmatpush1.bf16.xpose.msra.mxu0 0
      %186 = vmatprep.subr.bf16.mxu0 0
      %187 = vmatpush1.bf16.xpose.msra.mxu0 0
      %188 = vmatprep.subr.bf16.mxu0 0
      %189 = vmatpush1.bf16.xpose.msra.mxu0 0
      %190 = vmatprep.subr.bf16.mxu0 0
      %191 = vmatpush1.bf16.xpose.msra.mxu0 0
      %192 = vmatprep.subr.bf16.mxu0 0
      %193 = vmatpush1.bf16.xpose.msra.mxu0 0
      %194 = vmatprep.subr.bf16.mxu0 0
      %195 = vmatpush1.bf16.xpose.msra.mxu0 0
      %196 = vmatprep.subr.bf16.mxu0 0
      %197 = vmatpush1.bf16.xpose.msra.mxu0 0
      %198 = vmatprep.subr.bf16.mxu0 0
      %199 = vmatpush1.bf16.xpose.msra.mxu0 0
      %200 = vmatprep.mubr.bf16.mxu0 0
      %201 = vmatmul.mubr.bf16.gmra.mrb[0].mxu0 %v163
      %v202 = vpop.f32.mrb[0].mxu0
      %v203 = vadd.f32 0.0, %v202
      %v204 = vpop.f32.mrb[0].mxu0
      %v205 = vpop.f32.mrb[0].mxu0
      %v206 = vpop.f32.mrb[0].mxu0
      %207 = vdwg.mxu0
      %v208 = vmul.f32 %v203, 0.35355338
      %vm209 = vcmp.eq.f32.partialorder %v154, 0.0
      %v210 = vsel %vm209, 1, 0
      %v211 = vlaneseq
      %v212 = vshrl.u32 %v211, 7
      %v213 = vsub.s32 0, %v212
      %v214 = vrot.slane %v210, %v213
      %vm215 = vcmp.eq.s32.totalorder %v214, 1
      %v216 = vsel %vm215, -1e+09, %v208
      %v217 = vsel %vm161, %v216, -inf
      %218 = vmax.xlane.f32.xlu0 %v217
      %v219 = vpop.xlane.xlu0 %218
      %v220 = vsub.f32 %v216, %v219
      %v221 = vmul.f32 %v220, 1.442695
      %v222 = vpow.pop %v221
      %v223 = vsel %vm161, %v222, 0.0
      %224 = vadd.xlane.f32.xlu0 %v223
      %v225 = vpop.xlane.xlu0 %224
      %v226 = vrcp.pop %v225
      %v227 = vmul.f32 %v222, %v226
      %v228 = vpack.c.bf16 %v227, %v227
      %229 = vrot.lane.b32.xlu0 %v158, 64
      %v230 = vpop.permute.xlu0 %229
      %v232 = vsel %vm161, %v228, 0
      %vm234 = vcmask 1043456
      %v236 = vsel %vm234, %v230, 0
      %238 = vmatprep.subr.bf16.mxu0 0
      %239 = vmatpush1.bf16.msra.mxu0 %v236
      %240 = vmatprep.subr.bf16.mxu0 0
      %241 = vmatpush1.bf16.msra.mxu0 0
      %242 = vmatprep.subr.bf16.mxu0 0
      %243 = vmatpush1.bf16.msra.mxu0 0
      %244 = vmatprep.subr.bf16.mxu0 0
      %245 = vmatpush1.bf16.msra.mxu0 0
      %246 = vmatprep.subr.bf16.mxu0 0
      %247 = vmatpush1.bf16.msra.mxu0 0
      %248 = vmatprep.subr.bf16.mxu0 0
      %249 = vmatpush1.bf16.msra.mxu0 0
      %250 = vmatprep.subr.bf16.mxu0 0
      %251 = vmatpush1.bf16.msra.mxu0 0
      %252 = vmatprep.subr.bf16.mxu0 0
      %253 = vmatpush1.bf16.msra.mxu0 0
      %254 = vmatprep.subr.bf16.mxu0 0
      %255 = vmatpush1.bf16.msra.mxu0 0
      %256 = vmatprep.subr.bf16.mxu0 0
      %257 = vmatpush1.bf16.msra.mxu0 0
      %258 = vmatprep.subr.bf16.mxu0 0
      %259 = vmatpush1.bf16.msra.mxu0 0
      %260 = vmatprep.subr.bf16.mxu0 0
      %261 = vmatpush1.bf16.msra.mxu0 0
      %262 = vmatprep.subr.bf16.mxu0 0
      %263 = vmatpush1.bf16.msra.mxu0 0
      %264 = vmatprep.subr.bf16.mxu0 0
      %265 = vmatpush1.bf16.msra.mxu0 0
      %266 = vmatprep.subr.bf16.mxu0 0
      %267 = vmatpush1.bf16.msra.mxu0 0
      %268 = vmatprep.subr.bf16.mxu0 0
      %269 = vmatpush1.bf16.msra.mxu0 0
      %270 = vmatprep.mubr.bf16.mxu0 0
      %271 = vmatmul.mubr.bf16.gmra.mrb[0].mxu0 %v232
      %v272 = vpop.f32.mrb[0].mxu0
      %v273 = vadd.f32 0.0, %v272
      %v274 = vpop.f32.mrb[0].mxu0
      %v275 = vpop.f32.mrb[0].mxu0
      %v276 = vpop.f32.mrb[0].mxu0
      %277 = vdwg.mxu0
      %278 = vrot.lane.b32.xlu0 %v158, 120
      %v279 = vpop.permute.xlu0 %278
      %280 = vrot.lane.b32.xlu0 %v158, 88
      %v281 = vpop.permute.xlu0 %280
      %v283 = vsel %vm161, %v279, 0
      %v286 = vsel %vm161, %v281, 0
      %288 = vmatprep.subr.bf16.mxu0 0
      %289 = vmatpush1.bf16.xpose.msra.mxu0 %v286
      %290 = vmatprep.subr.bf16.mxu0 0
      %291 = vmatpush1.bf16.xpose.msra.mxu0 0
      %292 = vmatprep.subr.bf16.mxu0 0
      %293 = vmatpush1.bf16.xpose.msra.mxu0 0
      %294 = vmatprep.subr.bf16.mxu0 0
      %295 = vmatpush1.bf16.xpose.msra.mxu0 0
      %296 = vmatprep.subr.bf16.mxu0 0
      %297 = vmatpush1.bf16.xpose.msra.mxu0 0
      %298 = vmatprep.subr.bf16.mxu0 0
      %299 = vmatpush1.bf16.xpose.msra.mxu0 0
      %300 = vmatprep.subr.bf16.mxu0 0
      %301 = vmatpush1.bf16.xpose.msra.mxu0 0
      %302 = vmatprep.subr.bf16.mxu0 0
      %303 = vmatpush1.bf16.xpose.msra.mxu0 0
      %304 = vmatprep.subr.bf16.mxu0 0
      %305 = vmatpush1.bf16.xpose.msra.mxu0 0
      %306 = vmatprep.subr.bf16.mxu0 0
      %307 = vmatpush1.bf16.xpose.msra.mxu0 0
      %308 = vmatprep.subr.bf16.mxu0 0
      %309 = vmatpush1.bf16.xpose.msra.mxu0 0
      %310 = vmatprep.subr.bf16.mxu0 0
      %311 = vmatpush1.bf16.xpose.msra.mxu0 0
      %312 = vmatprep.subr.bf16.mxu0 0
      %313 = vmatpush1.bf16.xpose.msra.mxu0 0
      %314 = vmatprep.subr.bf16.mxu0 0
      %315 = vmatpush1.bf16.xpose.msra.mxu0 0
      %316 = vmatprep.subr.bf16.mxu0 0
      %317 = vmatpush1.bf16.xpose.msra.mxu0 0
      %318 = vmatprep.subr.bf16.mxu0 0
      %319 = vmatpush1.bf16.xpose.msra.mxu0 0
      %320 = vmatprep.mubr.bf16.mxu0 0
      %321 = vmatmul.mubr.bf16.gmra.mrb[0].mxu0 %v283
      %v322 = vpop.f32.mrb[0].mxu0
      %v323 = vadd.f32 0.0, %v322
      %v324 = vpop.f32.mrb[0].mxu0
      %v325 = vpop.f32.mrb[0].mxu0
      %v326 = vpop.f32.mrb[0].mxu0
      %327 = vdwg.mxu0
      %v328 = vmul.f32 %v323, 0.35355338
      %v329 = vsel %vm215, -1e+09, %v328
      %v330 = vsel %vm161, %v329, -inf
      %331 = vmax.xlane.f32.xlu0 %v330
      %v332 = vpop.xlane.xlu0 %331
      %v333 = vsub.f32 %v329, %v332
      %v334 = vmul.f32 %v333, 1.442695
      %v335 = vpow.pop %v334
      %v336 = vsel %vm161, %v335, 0.0
      %337 = vadd.xlane.f32.xlu0 %v336
      %v338 = vpop.xlane.xlu0 %337
      %v339 = vrcp.pop %v338
      %v340 = vmul.f32 %v335, %v339
      %v341 = vpack.c.bf16 %v340, %v340
      %342 = vrot.lane.b32.xlu0 %v158, 56
      %v343 = vpop.permute.xlu0 %342
      %v345 = vsel %vm161, %v341, 0
      %v348 = vsel %vm234, %v343, 0
      %350 = vmatprep.subr.bf16.mxu0 0
      %351 = vmatpush1.bf16.msra.mxu0 %v348
      %352 = vmatprep.subr.bf16.mxu0 0
      %353 = vmatpush1.bf16.msra.mxu0 0
      %354 = vmatprep.subr.bf16.mxu0 0
      %355 = vmatpush1.bf16.msra.mxu0 0
      %356 = vmatprep.subr.bf16.mxu0 0
      %357 = vmatpush1.bf16.msra.mxu0 0
      %358 = vmatprep.subr.bf16.mxu0 0
      %359 = vmatpush1.bf16.msra.mxu0 0
      %360 = vmatprep.subr.bf16.mxu0 0
      %361 = vmatpush1.bf16.msra.mxu0 0
      %362 = vmatprep.subr.bf16.mxu0 0
      %363 = vmatpush1.bf16.msra.mxu0 0
      %364 = vmatprep.subr.bf16.mxu0 0
      %365 = vmatpush1.bf16.msra.mxu0 0
      %366 = vmatprep.subr.bf16.mxu0 0
      %367 = vmatpush1.bf16.msra.mxu0 0
      %368 = vmatprep.subr.bf16.mxu0 0
      %369 = vmatpush1.bf16.msra.mxu0 0
      %370 = vmatprep.subr.bf16.mxu0 0
      %371 = vmatpush1.bf16.msra.mxu0 0
      %372 = vmatprep.subr.bf16.mxu0 0
      %373 = vmatpush1.bf16.msra.mxu0 0
      %374 = vmatprep.subr.bf16.mxu0 0
      %375 = vmatpush1.bf16.msra.mxu0 0
      %376 = vmatprep.subr.bf16.mxu0 0
      %377 = vmatpush1.bf16.msra.mxu0 0
      %378 = vmatprep.subr.bf16.mxu0 0
      %379 = vmatpush1.bf16.msra.mxu0 0
      %380 = vmatprep.subr.bf16.mxu0 0
      %381 = vmatpush1.bf16.msra.mxu0 0
      %382 = vmatprep.mubr.bf16.mxu0 0
      %383 = vmatmul.mubr.bf16.gmra.mrb[0].mxu0 %v345
      %v384 = vpop.f32.mrb[0].mxu0
      %v385 = vadd.f32 0.0, %v384
      %v386 = vpop.f32.mrb[0].mxu0
      %v387 = vpop.f32.mrb[0].mxu0
      %v388 = vpop.f32.mrb[0].mxu0
      %389 = vdwg.mxu0
      %390 = vrot.lane.b32.xlu0 %v158, 112
      %v391 = vpop.permute.xlu0 %390
      %392 = vrot.lane.b32.xlu0 %v158, 80
      %v393 = vpop.permute.xlu0 %392
      %v395 = vsel %vm161, %v391, 0
      %v398 = vsel %vm161, %v393, 0
      %400 = vmatprep.subr.bf16.mxu0 0
      %401 = vmatpush1.bf16.xpose.msra.mxu0 %v398
      %402 = vmatprep.subr.bf16.mxu0 0
      %403 = vmatpush1.bf16.xpose.msra.mxu0 0
      %404 = vmatprep.subr.bf16.mxu0 0
      %405 = vmatpush1.bf16.xpose.msra.mxu0 0
      %406 = vmatprep.subr.bf16.mxu0 0
      %407 = vmatpush1.bf16.xpose.msra.mxu0 0
      %408 = vmatprep.subr.bf16.mxu0 0
      %409 = vmatpush1.bf16.xpose.msra.mxu0 0
      %410 = vmatprep.subr.bf16.mxu0 0
      %411 = vmatpush1.bf16.xpose.msra.mxu0 0
      %412 = vmatprep.subr.bf16.mxu0 0
      %413 = vmatpush1.bf16.xpose.msra.mxu0 0
      %414 = vmatprep.subr.bf16.mxu0 0
      %415 = vmatpush1.bf16.xpose.msra.mxu0 0
      %416 = vmatprep.subr.bf16.mxu0 0
      %417 = vmatpush1.bf16.xpose.msra.mxu0 0
      %418 = vmatprep.subr.bf16.mxu0 0
      %419 = vmatpush1.bf16.xpose.msra.mxu0 0
      %420 = vmatprep.subr.bf16.mxu0 0
      %421 = vmatpush1.bf16.xpose.msra.mxu0 0
      %422 = vmatprep.subr.bf16.mxu0 0
      %423 = vmatpush1.bf16.xpose.msra.mxu0 0
      %424 = vmatprep.subr.bf16.mxu0 0
      %425 = vmatpush1.bf16.xpose.msra.mxu0 0
      %426 = vmatprep.subr.bf16.mxu0 0
      %427 = vmatpush1.bf16.xpose.msra.mxu0 0
      %428 = vmatprep.subr.bf16.mxu0 0
      %429 = vmatpush1.bf16.xpose.msra.mxu0 0
      %430 = vmatprep.subr.bf16.mxu0 0
      %431 = vmatpush1.bf16.xpose.msra.mxu0 0
      %432 = vmatprep.mubr.bf16.mxu0 0
      %433 = vmatmul.mubr.bf16.gmra.mrb[0].mxu0 %v395
      %v434 = vpop.f32.mrb[0].mxu0
      %v435 = vadd.f32 0.0, %v434
      %v436 = vpop.f32.mrb[0].mxu0
      %v437 = vpop.f32.mrb[0].mxu0
      %v438 = vpop.f32.mrb[0].mxu0
      %439 = vdwg.mxu0
      %v440 = vmul.f32 %v435, 0.35355338
      %v441 = vsel %vm215, -1e+09, %v440
      %v442 = vsel %vm161, %v441, -inf
      %443 = vmax.xlane.f32.xlu0 %v442
      %v444 = vpop.xlane.xlu0 %443
      %v445 = vsub.f32 %v441, %v444
      %v446 = vmul.f32 %v445, 1.442695
      %v447 = vpow.pop %v446
      %v448 = vsel %vm161, %v447, 0.0
      %449 = vadd.xlane.f32.xlu0 %v448
      %v450 = vpop.xlane.xlu0 %449
      %v451 = vrcp.pop %v450
      %v452 = vmul.f32 %v447, %v451
      %v453 = vpack.c.bf16 %v452, %v452
      %454 = vrot.lane.b32.xlu0 %v158, 48
      %v455 = vpop.permute.xlu0 %454
      %v457 = vsel %vm161, %v453, 0
      %v460 = vsel %vm234, %v455, 0
      %462 = vmatprep.subr.bf16.mxu0 0
      %463 = vmatpush1.bf16.msra.mxu0 %v460
      %464 = vmatprep.subr.bf16.mxu0 0
      %465 = vmatpush1.bf16.msra.mxu0 0
      %466 = vmatprep.subr.bf16.mxu0 0
      %467 = vmatpush1.bf16.msra.mxu0 0
      %468 = vmatprep.subr.bf16.mxu0 0
      %469 = vmatpush1.bf16.msra.mxu0 0
      %470 = vmatprep.subr.bf16.mxu0 0
      %471 = vmatpush1.bf16.msra.mxu0 0
      %472 = vmatprep.subr.bf16.mxu0 0
      %473 = vmatpush1.bf16.msra.mxu0 0
      %474 = vmatprep.subr.bf16.mxu0 0
      %475 = vmatpush1.bf16.msra.mxu0 0
      %476 = vmatprep.subr.bf16.mxu0 0
      %477 = vmatpush1.bf16.msra.mxu0 0
      %478 = vmatprep.subr.bf16.mxu0 0
      %479 = vmatpush1.bf16.msra.mxu0 0
      %480 = vmatprep.subr.bf16.mxu0 0
      %481 = vmatpush1.bf16.msra.mxu0 0
      %482 = vmatprep.subr.bf16.mxu0 0
      %483 = vmatpush1.bf16.msra.mxu0 0
      %484 = vmatprep.subr.bf16.mxu0 0
      %485 = vmatpush1.bf16.msra.mxu0 0
      %486 = vmatprep.subr.bf16.mxu0 0
      %487 = vmatpush1.bf16.msra.mxu0 0
      %488 = vmatprep.subr.bf16.mxu0 0
      %489 = vmatpush1.bf16.msra.mxu0 0
      %490 = vmatprep.subr.bf16.mxu0 0
      %491 = vmatpush1.bf16.msra.mxu0 0
      %492 = vmatprep.subr.bf16.mxu0 0
      %493 = vmatpush1.bf16.msra.mxu0 0
      %494 = vmatprep.mubr.bf16.mxu0 0
      %495 = vmatmul.mubr.bf16.gmra.mrb[0].mxu0 %v457
      %v496 = vpop.f32.mrb[0].mxu0
      %v497 = vadd.f32 0.0, %v496
      %v498 = vpop.f32.mrb[0].mxu0
      %v499 = vpop.f32.mrb[0].mxu0
      %v500 = vpop.f32.mrb[0].mxu0
      %501 = vdwg.mxu0
      %502 = vrot.lane.b32.xlu0 %v158, 104
      %v503 = vpop.permute.xlu0 %502
      %504 = vrot.lane.b32.xlu0 %v158, 72
      %v505 = vpop.permute.xlu0 %504
      %v507 = vsel %vm161, %v503, 0
      %v510 = vsel %vm161, %v505, 0
      %512 = vmatprep.subr.bf16.mxu0 0
      %513 = vmatpush1.bf16.xpose.msra.mxu0 %v510
      %514 = vmatprep.subr.bf16.mxu0 0
      %515 = vmatpush1.bf16.xpose.msra.mxu0 0
      %516 = vmatprep.subr.bf16.mxu0 0
      %517 = vmatpush1.bf16.xpose.msra.mxu0 0
      %518 = vmatprep.subr.bf16.mxu0 0
      %519 = vmatpush1.bf16.xpose.msra.mxu0 0
      %520 = vmatprep.subr.bf16.mxu0 0
      %521 = vmatpush1.bf16.xpose.msra.mxu0 0
      %522 = vmatprep.subr.bf16.mxu0 0
      %523 = vmatpush1.bf16.xpose.msra.mxu0 0
      %524 = vmatprep.subr.bf16.mxu0 0
      %525 = vmatpush1.bf16.xpose.msra.mxu0 0
      %526 = vmatprep.subr.bf16.mxu0 0
      %527 = vmatpush1.bf16.xpose.msra.mxu0 0
      %528 = vmatprep.subr.bf16.mxu0 0
      %529 = vmatpush1.bf16.xpose.msra.mxu0 0
      %530 = vmatprep.subr.bf16.mxu0 0
      %531 = vmatpush1.bf16.xpose.msra.mxu0 0
      %532 = vmatprep.subr.bf16.mxu0 0
      %533 = vmatpush1.bf16.xpose.msra.mxu0 0
      %534 = vmatprep.subr.bf16.mxu0 0
      %535 = vmatpush1.bf16.xpose.msra.mxu0 0
      %536 = vmatprep.subr.bf16.mxu0 0
      %537 = vmatpush1.bf16.xpose.msra.mxu0 0
      %538 = vmatprep.subr.bf16.mxu0 0
      %539 = vmatpush1.bf16.xpose.msra.mxu0 0
      %540 = vmatprep.subr.bf16.mxu0 0
      %541 = vmatpush1.bf16.xpose.msra.mxu0 0
      %542 = vmatprep.subr.bf16.mxu0 0
      %543 = vmatpush1.bf16.xpose.msra.mxu0 0
      %544 = vmatprep.mubr.bf16.mxu0 0
      %545 = vmatmul.mubr.bf16.gmra.mrb[0].mxu0 %v507
      %v546 = vpop.f32.mrb[0].mxu0
      %v547 = vadd.f32 0.0, %v546
      %v548 = vpop.f32.mrb[0].mxu0
      %v549 = vpop.f32.mrb[0].mxu0
      %v550 = vpop.f32.mrb[0].mxu0
      %551 = vdwg.mxu0
      %v552 = vmul.f32 %v547, 0.35355338
      %v553 = vsel %vm215, -1e+09, %v552
      %v554 = vsel %vm161, %v553, -inf
      %555 = vmax.xlane.f32.xlu0 %v554
      %v556 = vpop.xlane.xlu0 %555
      %v557 = vsub.f32 %v553, %v556
      %v558 = vmul.f32 %v557, 1.442695
      %v559 = vpow.pop %v558
      %v560 = vsel %vm161, %v559, 0.0
      %561 = vadd.xlane.f32.xlu0 %v560
      %v562 = vpop.xlane.xlu0 %561
      %v563 = vrcp.pop %v562
      %v564 = vmul.f32 %v559, %v563
      %v565 = vpack.c.bf16 %v564, %v564
      %566 = vrot.lane.b32.xlu0 %v158, 40
      %v567 = vpop.permute.xlu0 %566
      %v569 = vsel %vm161, %v565, 0
      %v572 = vsel %vm234, %v567, 0
      %574 = vmatprep.subr.bf16.mxu0 0
      %575 = vmatpush1.bf16.msra.mxu0 %v572
      %576 = vmatprep.subr.bf16.mxu0 0
      %577 = vmatpush1.bf16.msra.mxu0 0
      %578 = vmatprep.subr.bf16.mxu0 0
      %579 = vmatpush1.bf16.msra.mxu0 0
      %580 = vmatprep.subr.bf16.mxu0 0
      %581 = vmatpush1.bf16.msra.mxu0 0
      %582 = vmatprep.subr.bf16.mxu0 0
      %583 = vmatpush1.bf16.msra.mxu0 0
      %584 = vmatprep.subr.bf16.mxu0 0
      %585 = vmatpush1.bf16.msra.mxu0 0
      %586 = vmatprep.subr.bf16.mxu0 0
      %587 = vmatpush1.bf16.msra.mxu0 0
      %588 = vmatprep.subr.bf16.mxu0 0
      %589 = vmatpush1.bf16.msra.mxu0 0
      %590 = vmatprep.subr.bf16.mxu0 0
      %591 = vmatpush1.bf16.msra.mxu0 0
      %592 = vmatprep.subr.bf16.mxu0 0
      %593 = vmatpush1.bf16.msra.mxu0 0
      %594 = vmatprep.subr.bf16.mxu0 0
      %595 = vmatpush1.bf16.msra.mxu0 0
      %596 = vmatprep.subr.bf16.mxu0 0
      %597 = vmatpush1.bf16.msra.mxu0 0
      %598 = vmatprep.subr.bf16.mxu0 0
      %599 = vmatpush1.bf16.msra.mxu0 0
      %600 = vmatprep.subr.bf16.mxu0 0
      %601 = vmatpush1.bf16.msra.mxu0 0
      %602 = vmatprep.subr.bf16.mxu0 0
      %603 = vmatpush1.bf16.msra.mxu0 0
      %604 = vmatprep.subr.bf16.mxu0 0
      %605 = vmatpush1.bf16.msra.mxu0 0
      %606 = vmatprep.mubr.bf16.mxu0 0
      %607 = vmatmul.mubr.bf16.gmra.mrb[0].mxu0 %v569
      %v608 = vpop.f32.mrb[0].mxu0
      %v609 = vadd.f32 0.0, %v608
      %v610 = vpop.f32.mrb[0].mxu0
      %v611 = vpop.f32.mrb[0].mxu0
      %v612 = vpop.f32.mrb[0].mxu0
      %613 = vdwg.mxu0
      %615 = vrot.lane.b32.xlu0 %v385, 8
      %v616 = vpop.permute.xlu0 %615
      %619 = vrot.lane.b32.xlu0 %v497, 16
      %v620 = vpop.permute.xlu0 %619
      %623 = vrot.lane.b32.xlu0 %v609, 24
      %v624 = vpop.permute.xlu0 %623
      %v626 = vsel %vm161, %v273, %v616
      %vm627 = vcmask 130048
      %v628 = vsel %vm627, %v626, %v620
      %vm629 = vcmask 195584
      %v630 = vsel %vm629, %v628, %v624
      %v631 = vpack.c.bf16 %v630, %v630
      %vm632 = vcmask 257024
      %633 = vst.msk [vmem:[%s152] sm:$0xf] %vm632, %v631
      %p634 = scmp.lt.s32.totalorder %s13, 1
      %s635 = scalar_select %p634, %s13, 1
      %s636 = smul.addr %s635, 4
      %s637 = scalar_lea.vmem %s2, %s636
      // Predicated region
      $region29: #{transformer_forward.31} parent=27 // pred_check
        %p638 = pneg %p83
      $region30: #{transformer_forward.31} parent=27 // pred_check_branch
        %640 = sbr.rel (%p638) target = $region32
      $region31: #{transformer_forward.31} parent=27 // pred_region
        _
      $region32: #{transformer_forward.31} parent=27 // pred_fallthru
        _
    $region28: #{transformer_forward.31} parent=5 // pred_fallthru
      _
    %p641 = scmp.le.s32.totalorder 2, %s8
    // Predicated region
    $region33: #{transformer_forward.31} parent=5 // pred_check
      %p642 = pneg %p641
    $region34: #{transformer_forward.31} parent=5 // pred_check_branch
      %644 = sbr.rel (%p642) target = $region36
    $region35: #{transformer_forward.31} parent=5 // pred_region
      %s645 = ssub.s32 %s8, 2
      // Predicated region
      $region37: #{transformer_forward.31} parent=35 // pred_check
        %p646 = pneg %p89
      $region38: #{transformer_forward.31} parent=35 // pred_check_branch
        %648 = sbr.rel (%p646) target = $region40
      $region39: #{transformer_forward.31} parent=35 // pred_region
        %p649 = scmp.lt.s32.totalorder %s14, 1
        %s650 = scalar_select %p649, %s14, 1
        %s651 = smul.addr %s650, 4
        %s652 = scalar_lea.vmem %s2, %s651
      $region40: #{transformer_forward.31} parent=35 // pred_fallthru
        _
    $region36: #{transformer_forward.31} parent=5 // pred_fallthru
      _
  $region6: #{transformer_forward.31} parent=0 // loop_footer
    %s12 = sadd.s32 1, %s8
  $region7: #{transformer_forward.31} parent=0 // loop_footer_branch
    %7 = sbr.rel target = $region3
  $region8: #{transformer_forward.31} parent=0 // loop_exit
    _

// kernel: transformer_forward.34
$region0: #{transformer_forward.34}
  #allocation0 [shape = 'u32[]', space=smem, size = 0x4, offset = 0x4, fixed_abs, tag = 'smem constant byte address 0x4 - core index']
  #allocation1 [shape = 'u32[144,128]{1,0:T(1,128)}', space=vmem, size = 0x12000, scoped, tag = 'internal scratch']
  #allocation2 [shape = 'f32[16,32]{1,0:T(8,128)}', space=vmem, size = 0x2000, scoped, tag = 'scratch operand']
  %s0 = inlined_call_operand.vmem [shape: bf16[16,2048], index: 0, kind: input, shape index: {}]
  %s1 = inlined_call_operand.vmem [shape: bf16[2048,32], index: 1, kind: input, shape index: {}]
  %s2 = inlined_call_operand.vmem [shape: f32[1,32], index: 2, kind: input, shape index: {}]
  %s3 = inlined_call_operand.vmem [shape: f32[16,32], index: 3, kind: input, shape index: {}]
  %s4 = inlined_call_operand.vmem [shape: f32[16,32], index: 4, kind: output, shape index: {}]
  %s5 = sld [smem:[#allocation0]]
  $region80: #{transformer_forward.34} parent=0
    _
  %s7 = ssub.s32 1, %s5
  %s8 = scalar_select 0, %s7, %s5
  $region1: #{transformer_forward.34} parent=0
    #allocation3 [shape = 'u8[65536]{0}', space=vmem, size = 0x10000, scoped, tag = 'input window, operand 0']
    loop: start=0, step=1, limit=4
    $region2: #{transformer_forward.34} parent=1 // loop_pre_header
      _
    $region3: #{transformer_forward.34} parent=1 // loop_header
      %s10 = sphi 0, %s14
      %p11 = scmp.ge.s32.totalorder %s10, 4
      %s17 = sphi 0, %s36
      %s18 = sphi 0, %s32
      %s19 = sphi 0, %s28
      %s20 = sphi 0, %s17
      %s21 = sphi 0, %s18
      %s22 = sphi 0, %s19
      %s23 = sphi 0, %s20
      %s24 = sphi 0, %s21
      %s25 = sphi 0, %s22
      %s41 = sphi 0, %s43
      %s44 = sphi 0, %s41
      %s45 = sphi 0, %s44
      %s61 = sphi 0, %s45
      %s69 = sphi 0, %s71
      %s72 = sphi 0, %s69
      %s73 = sphi 0, %s72
      %s89 = sphi 0, %s73
      %s95 = sphi 0, %s97
      %s98 = sphi 0, %s95
      %s99 = sphi 0, %s98
      %s115 = sphi 0, %s99
      %s123 = sphi 0, %s125
      %s126 = sphi 0, %s123
      %s127 = sphi 0, %s126
      %s143 = sphi 0, %s127
      %s151 = sphi 0, %s153
      %s154 = sphi 0, %s151
      %s155 = sphi 0, %s154
      %s171 = sphi 0, %s155
    $region4: #{transformer_forward.34} parent=1 // loop_header_branch
      %13 = sbr.rel (%p11) target = $region8
    $region5: #{transformer_forward.34} parent=1 // loop_body
      %s15 = ssub.s32 %s10, 1
      %s16 = ssub.s32 %s10, 2
      %s26 = sadd.s32 1, %s19
      %p27 = scmp.ge.s32.totalorder %s26, 2
      %s28 = scalar_select %p27, 0, %s26
      %s29 = sadd.s32 1, %s18
      %s30 = scalar_select %p27, %s29, %s18
      %p31 = scmp.ge.s32.totalorder %s30, 1
      %s32 = scalar_select %p31, 0, %s30
      %s33 = sadd.s32 1, %s17
      %s34 = scalar_select %p31, %s33, %s17
      %p35 = scmp.ge.s32.totalorder %s34, 1
      %s36 = scalar_select %p35, 0, %s34
      %s37 = ssub.s32 %s17, %s36
      %s38 = ssub.s32 %s19, %s28
      %s39 = sor.u32 %s37, %s38
      %p40 = scmp.eq.s32.totalorder %s39, 0
      %s42 = sadd.s32 %s41, 1
      %s43 = scalar_select %p40, %s41, %s42
      %p46 = pneg %p40
      %p47 = scmp.eq.s32.totalorder %s10, 1
      %p48 = por %p46, %p47
      %p49 = scmp.ne.s32.totalorder %s41, %s44
      %p50 = scmp.eq.s32.totalorder %s10, 0
      %p51 = por %p49, %p50
      %p52 = scmp.ne.s32.totalorder %s41, %s44
      %p53 = scmp.eq.s32.totalorder %s15, 1
      %p54 = por %p52, %p53
      %p55 = scmp.ne.s32.totalorder %s44, %s45
      %p56 = scmp.eq.s32.totalorder %s15, 0
      %p57 = por %p55, %p56
      %p58 = scmp.ne.s32.totalorder %s44, %s45
      %p59 = scmp.eq.s32.totalorder %s16, 1
      %p60 = por %p58, %p59
      %p62 = scmp.ne.s32.totalorder %s45, %s61
      %p63 = scmp.eq.s32.totalorder %s16, 0
      %p64 = por %p62, %p63
      %s65 = ssub.s32 %s19, %s28
      %s66 = ssub.s32 %s18, %s32
      %s67 = sor.u32 %s65, %s66
      %p68 = scmp.eq.s32.totalorder %s67, 0
      %s70 = sadd.s32 %s69, 1
      %s71 = scalar_select %p68, %s69, %s70
      %p74 = pneg %p68
      %p75 = scmp.eq.s32.totalorder %s10, 1
      %p76 = por %p74, %p75
      %p77 = scmp.ne.s32.totalorder %s69, %s72
      %p78 = scmp.eq.s32.totalorder %s10, 0
      %p79 = por %p77, %p78
      %p80 = scmp.ne.s32.totalorder %s69, %s72
      %p81 = scmp.eq.s32.totalorder %s15, 1
      %p82 = por %p80, %p81
      %p83 = scmp.ne.s32.totalorder %s72, %s73
      %p84 = scmp.eq.s32.totalorder %s15, 0
      %p85 = por %p83, %p84
      %p86 = scmp.ne.s32.totalorder %s72, %s73
      %p87 = scmp.eq.s32.totalorder %s16, 1
      %p88 = por %p86, %p87
      %p90 = scmp.ne.s32.totalorder %s73, %s89
      %p91 = scmp.eq.s32.totalorder %s16, 0
      %p92 = por %p90, %p91
      %s93 = ssub.s32 %s18, %s32
      %p94 = scmp.eq.s32.totalorder %s93, 0
      %s96 = sadd.s32 %s95, 1
      %s97 = scalar_select %p94, %s95, %s96
      %p100 = pneg %p94
      %p101 = scmp.eq.s32.totalorder %s10, 1
      %p102 = por %p100, %p101
      %p103 = scmp.ne.s32.totalorder %s95, %s98
      %p104 = scmp.eq.s32.totalorder %s10, 0
      %p105 = por %p103, %p104
      %p106 = scmp.ne.s32.totalorder %s95, %s98
      %p107 = scmp.eq.s32.totalorder %s15, 1
      %p108 = por %p106, %p107
      %p109 = scmp.ne.s32.totalorder %s98, %s99
      %p110 = scmp.eq.s32.totalorder %s15, 0
      %p111 = por %p109, %p110
      %p112 = scmp.ne.s32.totalorder %s98, %s99
      %p113 = scmp.eq.s32.totalorder %s16, 1
      %p114 = por %p112, %p113
      %p116 = scmp.ne.s32.totalorder %s99, %s115
      %p117 = scmp.eq.s32.totalorder %s16, 0
      %p118 = por %p116, %p117
      %s119 = ssub.s32 %s17, %s36
      %s120 = ssub.s32 %s18, %s32
      %s121 = sor.u32 %s119, %s120
      %p122 = scmp.eq.s32.totalorder %s121, 0
      %s124 = sadd.s32 %s123, 1
      %s125 = scalar_select %p122, %s123, %s124
      %p128 = pneg %p122
      %p129 = scmp.eq.s32.totalorder %s10, 1
      %p130 = por %p128, %p129
      %p131 = scmp.ne.s32.totalorder %s123, %s126
      %p132 = scmp.eq.s32.totalorder %s10, 0
      %p133 = por %p131, %p132
      %p134 = scmp.ne.s32.totalorder %s123, %s126
      %p135 = scmp.eq.s32.totalorder %s15, 1
      %p136 = por %p134, %p135
      %p137 = scmp.ne.s32.totalorder %s126, %s127
      %p138 = scmp.eq.s32.totalorder %s15, 0
      %p139 = por %p137, %p138
      %p140 = scmp.ne.s32.totalorder %s126, %s127
      %p141 = scmp.eq.s32.totalorder %s16, 1
      %p142 = por %p140, %p141
      %p144 = scmp.ne.s32.totalorder %s127, %s143
      %p145 = scmp.eq.s32.totalorder %s16, 0
      %p146 = por %p144, %p145
      %s147 = ssub.s32 %s17, %s36
      %s148 = ssub.s32 %s18, %s32
      %s149 = sor.u32 %s147, %s148
      %p150 = scmp.eq.s32.totalorder %s149, 0
      %s152 = sadd.s32 %s151, 1
      %s153 = scalar_select %p150, %s151, %s152
      %p156 = pneg %p150
      %p157 = scmp.eq.s32.totalorder %s10, 1
      %p158 = por %p156, %p157
      %p159 = scmp.ne.s32.totalorder %s151, %s154
      %p160 = scmp.eq.s32.totalorder %s10, 0
      %p161 = por %p159, %p160
      %p162 = scmp.ne.s32.totalorder %s151, %s154
      %p163 = scmp.eq.s32.totalorder %s15, 1
      %p164 = por %p162, %p163
      %p165 = scmp.ne.s32.totalorder %s154, %s155
      %p166 = scmp.eq.s32.totalorder %s15, 0
      %p167 = por %p165, %p166
      %p168 = scmp.ne.s32.totalorder %s154, %s155
      %p169 = scmp.eq.s32.totalorder %s16, 1
      %p170 = por %p168, %p169
      %p172 = scmp.ne.s32.totalorder %s155, %s171
      %p173 = scmp.eq.s32.totalorder %s16, 0
      %p174 = por %p172, %p173
      %p175 = scmp.le.s32.totalorder 1, %s10
      %p176 = scmp.lt.s32.totalorder %s10, 3
      %p177 = pnand %p175, %p176
      %p178 = pneg %p177
      // Predicated region
      $region9: #{transformer_forward.34} parent=5 // pred_check
        _
      $region10: #{transformer_forward.34} parent=5 // pred_check_branch
        %180 = sbr.rel (%p177) target = $region12
      $region11: #{transformer_forward.34} parent=5 // pred_region
        %s181 = ssub.s32 %s10, 1
        // Predicated region
        $region13: #{transformer_forward.34} parent=11 // pred_check
          %p182 = pneg %p111
        $region14: #{transformer_forward.34} parent=11 // pred_check_branch
          %184 = sbr.rel (%p182) target = $region16
        $region15: #{transformer_forward.34} parent=11 // pred_region
          %p185 = scmp.lt.s32.totalorder %s21, 0
          %s186 = scalar_select %p185, %s21, 0
          %s187 = scalar_lea.vmem %s2, %s186
        $region16: #{transformer_forward.34} parent=11 // pred_fallthru
          _
        // Predicated region
        $region17: #{transformer_forward.34} parent=11 // pred_check
          %p188 = pneg %p139
        $region18: #{transformer_forward.34} parent=11 // pred_check_branch
          %190 = sbr.rel (%p188) target = $region20
        $region19: #{transformer_forward.34} parent=11 // pred_region
          %s191 = smul.u32 2, %s20
          %p192 = scmp.lt.s32.totalorder %s191, 1
          %s193 = scalar_select %p192, %s191, 1
          %p194 = scmp.lt.s32.totalorder %s21, 0
          %s195 = scalar_select %p194, %s21, 0
          %s196 = sadd.s32 %s195, %s193
          %s197 = smul.addr %s196, 8
          %s198 = scalar_lea.vmem %s3, %s197
          %s199 = smul.u32 2, %s20
        $region20: #{transformer_forward.34} parent=11 // pred_fallthru
          _
      $region12: #{transformer_forward.34} parent=5 // pred_fallthru
        _
      %p200 = scmp.lt.s32.totalorder %s10, 2
      // Predicated region
      $region21: #{transformer_forward.34} parent=5 // pred_check
        %p201 = pneg %p200
      $region22: #{transformer_forward.34} parent=5 // pred_check_branch
        %203 = sbr.rel (%p201) target = $region24
      $region23: #{transformer_forward.34} parent=5 // pred_region
        // Predicated region
        $region25: #{transformer_forward.34} parent=23 // pred_check
          %p204 = pneg %p51
        $region26: #{transformer_forward.34} parent=23 // pred_check_branch
          %206 = sbr.rel (%p204) target = $region28
        $region27: #{transformer_forward.34} parent=23 // pred_region
          %s207 = sand.u32 %s41, 1
          %s208 = sand.u32 %s41, 1
          %s209 = smul.addr %s208, 64
          %s210 = scalar_lea.vmem [#allocation3], %s209
          %s211 = smul.u32 2, %s17
          %s212 = smul.u32 8, %s19
          %s213 = smul.addr %s211, 16
          %s214 = sadd.s32 %s212, %s213
          %s215 = smul.addr %s214, 4
          %s216 = scalar_lea.vmem %s0, %s215
          // Predicated region
          $region29: #{transformer_forward.34} parent=27 // pred_check
            _
          $region30: #{transformer_forward.34} parent=27 // pred_check_branch
            %218 = sbr.rel (0) target = $region32
          $region31: #{transformer_forward.34} parent=27 // pred_region
            // Predicated region
            $region33: #{transformer_forward.34} parent=31 // pred_check
              _
            $region34: #{transformer_forward.34} parent=31 // pred_check_branch
              %220 = sbr.rel (0) target = $region36
            $region35: #{transformer_forward.34} parent=31 // pred_region
              loop: start=0, step=1, limit=1
              $region37: #{transformer_forward.34} parent=35 // loop_pre_header
                _
              $region38: #{transformer_forward.34} parent=35 // loop_header
                %s222 = sphi 0, %s226
                %p223 = scmp.ge.s32.totalorder %s222, 1
                %s227 = sphi %s216, %s216
                %s228 = sphi %s210, %s210
              $region39: #{transformer_forward.34} parent=35 // loop_header_branch
                %225 = sbr.rel (%p223) target = $region43
              $region40: #{transformer_forward.34} parent=35 // loop_body
                %v229 = vld [vmem:[%s227] sm:$0xff]
                %230 = vst [vmem:[%s228] sm:$0xff] %v229
                %v231 = vld [vmem:[%s227 + $0x8] sm:$0xff]
                %232 = vst [vmem:[%s228 + $0x8] sm:$0xff] %v231
                %v233 = vld [vmem:[%s227 + $0x10] sm:$0xff]
                %234 = vst [vmem:[%s228 + $0x10] sm:$0xff] %v233
                %v235 = vld [vmem:[%s227 + $0x18] sm:$0xff]
                %236 = vst [vmem:[%s228 + $0x18] sm:$0xff] %v235
                %v237 = vld [vmem:[%s227 + $0x40] sm:$0xff]
                %238 = vst [vmem:[%s228 + $0x20] sm:$0xff] %v237
                %v239 = vld [vmem:[%s227 + $0x48] sm:$0xff]
                %240 = vst [vmem:[%s228 + $0x28] sm:$0xff] %v239
                %v241 = vld [vmem:[%s227 + $0x50] sm:$0xff]
                %242 = vst [vmem:[%s228 + $0x30] sm:$0xff] %v241
                %v243 = vld [vmem:[%s227 + $0x58] sm:$0xff]
                %244 = vst [vmem:[%s228 + $0x38] sm:$0xff] %v243
              $region41: #{transformer_forward.34} parent=35 // loop_footer
                %s226 = sadd.s32 1, %s222
              $region42: #{transformer_forward.34} parent=35 // loop_footer_branch
                %221 = sbr.rel target = $region38
              $region43: #{transformer_forward.34} parent=35 // loop_exit
                _
            $region36: #{transformer_forward.34} parent=31 // pred_fallthru
              _
            // Predicated region
            $region44: #{transformer_forward.34} parent=31 // pred_check
              _
            $region45: #{transformer_forward.34} parent=31 // pred_check_branch
              %246 = sbr.rel target = $region47
            $region46: #{transformer_forward.34} parent=31 // pred_region
              _
            $region47: #{transformer_forward.34} parent=31 // pred_fallthru
              _
          $region32: #{transformer_forward.34} parent=27 // pred_fallthru
            _
          %247 = vnop
        $region28: #{transformer_forward.34} parent=23 // pred_fallthru
          _
        // Predicated region
        $region48: #{transformer_forward.34} parent=23 // pred_check
          %p248 = pneg %p79
        $region49: #{transformer_forward.34} parent=23 // pred_check_branch
          %250 = sbr.rel (%p248) target = $region51
        $region50: #{transformer_forward.34} parent=23 // pred_region
          %s251 = smul.u32 128, %s19
          %p252 = scmp.lt.s32.totalorder %s251, 255
          %s253 = scalar_select %p252, %s251, 255
          %p254 = scmp.lt.s32.totalorder %s18, 0
          %s255 = scalar_select %p254, %s18, 0
          %s256 = sadd.s32 %s255, %s253
          %s257 = smul.addr %s256, 4
          %s258 = scalar_lea.vmem %s1, %s257
          %s259 = smul.u32 128, %s19
        $region51: #{transformer_forward.34} parent=23 // pred_fallthru
          _
      $region24: #{transformer_forward.34} parent=5 // pred_fallthru
        _
      %p260 = scmp.le.s32.totalorder 1, %s10
      %p261 = scmp.lt.s32.totalorder %s10, 3
      %p262 = pnand %p260, %p261
      %p263 = pneg %p262
      // Predicated region
      $region52: #{transformer_forward.34} parent=5 // pred_check
        _
      $region53: #{transformer_forward.34} parent=5 // pred_check_branch
        %265 = sbr.rel (%p262) target = $region55
      $region54: #{transformer_forward.34} parent=5 // pred_region
        %s266 = ssub.s32 %s10, 1
        %s267 = sand.u32 %s44, 1
        %s268 = sand.u32 %s44, 1
        %s269 = smul.addr %s268, 64
        %s270 = scalar_lea.vmem [#allocation3], %s269
        // Predicated region
        $region56: #{transformer_forward.34} parent=54 // pred_check
          %p271 = pneg %p57
        $region57: #{transformer_forward.34} parent=54 // pred_check_branch
          %273 = sbr.rel (%p271) target = $region59
        $region58: #{transformer_forward.34} parent=54 // pred_region
          _
        $region59: #{transformer_forward.34} parent=54 // pred_fallthru
          _
        %s274 = sand.u32 %s44, 1
        %s275 = sand.u32 %s44, 1
        %s276 = smul.addr %s275, 64
        %s277 = scalar_lea.vmem [#allocation3], %s276
        %p278 = pneg %p57
        %p279 = pneg %p54
        %s280 = smul.u32 128, %s22
        %p281 = scmp.lt.s32.totalorder %s280, 255
        %s282 = scalar_select %p281, %s280, 255
        %p283 = scmp.lt.s32.totalorder %s21, 0
        %s284 = scalar_select %p283, %s21, 0
        %s285 = sadd.s32 %s284, %s282
        %s286 = smul.addr %s285, 4
        %s287 = scalar_lea.vmem %s1, %s286
        %p288 = pneg %p85
        %p289 = pneg %p82
        %p290 = scmp.lt.s32.totalorder %s21, 0
        %s291 = scalar_select %p290, %s21, 0
        %s292 = scalar_lea.vmem %s2, %s291
        %p293 = pneg %p111
        %p294 = pneg %p108
        %s295 = smul.u32 2, %s20
        %p296 = scmp.lt.s32.totalorder %s295, 1
        %s297 = scalar_select %p296, %s295, 1
        %p298 = scmp.lt.s32.totalorder %s21, 0
        %s299 = scalar_select %p298, %s21, 0
        %s300 = sadd.s32 %s299, %s297
        %s301 = smul.addr %s300, 8
        %s302 = scalar_lea.vmem %s3, %s301
        %p303 = pneg %p139
        %p304 = pneg %p136
        %p305 = pneg %p167
        %p306 = pneg %p164
        %s307 = smul.u32 2, %s20
        %p308 = scmp.lt.s32.totalorder %s307, 1
        %s309 = scalar_select %p308, %s307, 1
        %p310 = scmp.lt.s32.totalorder %s21, 0
        %s311 = scalar_select %p310, %s21, 0
        %s312 = sadd.s32 %s311, %s309
        %s313 = smul.addr %s312, 8
        %s314 = scalar_lea.vmem %s4, %s313
        %s315 = smul.u32 2, %s20
        %s316 = smul.u32 8, %s22
        %s317 = smul.u32 128, %s22
        %p318 = scmp.lt.s32.totalorder %s317, 255
        %s319 = scalar_select %p318, %s317, 255
        %p320 = scmp.lt.s32.totalorder %s21, 0
        %s321 = scalar_select %p320, %s21, 0
        %s322 = sadd.s32 %s321, %s319
        %s323 = smul.addr %s322, 4
        %s324 = scalar_lea.vmem %s1, %s323
        %s325 = smul.u32 128, %s22
        %p326 = scmp.lt.s32.totalorder %s21, 0
        %s327 = scalar_select %p326, %s21, 0
        %s328 = scalar_lea.vmem %s2, %s327
        %s329 = smul.u32 2, %s20
        %p330 = scmp.lt.s32.totalorder %s329, 1
        %s331 = scalar_select %p330, %s329, 1
        %p332 = scmp.lt.s32.totalorder %s21, 0
        %s333 = scalar_select %p332, %s21, 0
        %s334 = sadd.s32 %s333, %s331
        %s335 = smul.addr %s334, 8
        %s336 = scalar_lea.vmem %s3, %s335
        %s337 = smul.u32 2, %s20
        %s338 = smul.u32 2, %s20
        %p339 = scmp.lt.s32.totalorder %s338, 1
        %s340 = scalar_select %p339, %s338, 1
        %p341 = scmp.lt.s32.totalorder %s21, 0
        %s342 = scalar_select %p341, %s21, 0
        %s343 = sadd.s32 %s342, %s340
        %s344 = smul.addr %s343, 8
        %s345 = scalar_lea.vmem %s4, %s344
        %s346 = smul.u32 2, %s20
        %p348 = scmp.eq.s32.totalorder %s22, 0
        // Predicated region
        $region60: #{transformer_forward.34} parent=54 // pred_check
          %p349 = pneg %p348
        $region61: #{transformer_forward.34} parent=54 // pred_check_branch
          %351 = sbr.rel (%p349) target = $region63
        $region62: #{transformer_forward.34} parent=54 // pred_region
          %vm352 = vcmask 261120
          %353 = vst.msk [vmem:[#allocation2] sm:$0xff] %vm352, 0.0
          %354 = vst.msk [vmem:[#allocation2 + $0x8] sm:$0xff] %vm352, 0.0
        $region63: #{transformer_forward.34} parent=54 // pred_fallthru
          _
        %v355 = vld [vmem:[#allocation2] sm:$0xff]
        %v356 = vld [vmem:[#allocation2 + $0x8] sm:$0xff]
        %v357 = vld [vmem:[%s270] sm:$0xff]
        %v358 = vld [vmem:[%s270 + $0x8] sm:$0xff]
        %v359 = vld [vmem:[%s270 + $0x10] sm:$0xff]
        %v360 = vld [vmem:[%s270 + $0x18] sm:$0xff]
        %v361 = vld [vmem:[%s270 + $0x20] sm:$0xff]
        %v362 = vld [vmem:[%s270 + $0x28] sm:$0xff]
        %v363 = vld [vmem:[%s270 + $0x30] sm:$0xff]
        %v364 = vld [vmem:[%s270 + $0x38] sm:$0xff]
        %v365 = vld [vmem:[%s324] sm:$0xf]
        %v366 = vld [vmem:[%s324 + $0x4] sm:$0xf]
        %v367 = vld [vmem:[%s324 + $0x8] sm:$0xf]
        %v368 = vld [vmem:[%s324 + $0xc] sm:$0xf]
        %v369 = vld [vmem:[%s324 + $0x10] sm:$0xf]
        %v370 = vld [vmem:[%s324 + $0x14] sm:$0xf]
        %v371 = vld [vmem:[%s324 + $0x18] sm:$0xf]
        %v372 = vld [vmem:[%s324 + $0x1c] sm:$0xf]
        %v373 = vld [vmem:[%s324 + $0x20] sm:$0xf]
        %v374 = vld [vmem:[%s324 + $0x24] sm:$0xf]
        %v375 = vld [vmem:[%s324 + $0x28] sm:$0xf]
        %v376 = vld [vmem:[%s324 + $0x2c] sm:$0xf]
        %v377 = vld [vmem:[%s324 + $0x30] sm:$0xf]
        %v378 = vld [vmem:[%s324 + $0x34] sm:$0xf]
        %v379 = vld [vmem:[%s324 + $0x38] sm:$0xf]
        %v380 = vld [vmem:[%s324 + $0x3c] sm:$0xf]
        %v381 = vld [vmem:[%s324 + $0x40] sm:$0xf]
        %v382 = vld [vmem:[%s324 + $0x44] sm:$0xf]
        %v383 = vld [vmem:[%s324 + $0x48] sm:$0xf]
        %v384 = vld [vmem:[%s324 + $0x4c] sm:$0xf]
        %v385 = vld [vmem:[%s324 + $0x50] sm:$0xf]
        %v386 = vld [vmem:[%s324 + $0x54] sm:$0xf]
        %v387 = vld [vmem:[%s324 + $0x58] sm:$0xf]
        %v388 = vld [vmem:[%s324 + $0x5c] sm:$0xf]
        %v389 = vld [vmem:[%s324 + $0x60] sm:$0xf]
        %v390 = vld [vmem:[%s324 + $0x64] sm:$0xf]
        %v391 = vld [vmem:[%s324 + $0x68] sm:$0xf]
        %v392 = vld [vmem:[%s324 + $0x6c] sm:$0xf]
        %v393 = vld [vmem:[%s324 + $0x70] sm:$0xf]
        %v394 = vld [vmem:[%s324 + $0x74] sm:$0xf]
        %v395 = vld [vmem:[%s324 + $0x78] sm:$0xf]
        %v396 = vld [vmem:[%s324 + $0x7c] sm:$0xf]
        %v397 = vld [vmem:[%s324 + $0x80] sm:$0xf]
        %v398 = vld [vmem:[%s324 + $0x84] sm:$0xf]
        %v399 = vld [vmem:[%s324 + $0x88] sm:$0xf]
        %v400 = vld [vmem:[%s324 + $0x8c] sm:$0xf]
        %v401 = vld [vmem:[%s324 + $0x90] sm:$0xf]
        %v402 = vld [vmem:[%s324 + $0x94] sm:$0xf]
        %v403 = vld [vmem:[%s324 + $0x98] sm:$0xf]
        %v404 = vld [vmem:[%s324 + $0x9c] sm:$0xf]
        %v405 = vld [vmem:[%s324 + $0xa0] sm:$0xf]
        %v406 = vld [vmem:[%s324 + $0xa4] sm:$0xf]
        %v407 = vld [vmem:[%s324 + $0xa8] sm:$0xf]
        %v408 = vld [vmem:[%s324 + $0xac] sm:$0xf]
        %v409 = vld [vmem:[%s324 + $0xb0] sm:$0xf]
        %v410 = vld [vmem:[%s324 + $0xb4] sm:$0xf]
        %v411 = vld [vmem:[%s324 + $0xb8] sm:$0xf]
        %v412 = vld [vmem:[%s324 + $0xbc] sm:$0xf]
        %v413 = vld [vmem:[%s324 + $0xc0] sm:$0xf]
        %v414 = vld [vmem:[%s324 + $0xc4] sm:$0xf]
        %v415 = vld [vmem:[%s324 + $0xc8] sm:$0xf]
        %v416 = vld [vmem:[%s324 + $0xcc] sm:$0xf]
        %v417 = vld [vmem:[%s324 + $0xd0] sm:$0xf]
        %v418 = vld [vmem:[%s324 + $0xd4] sm:$0xf]
        %v419 = vld [vmem:[%s324 + $0xd8] sm:$0xf]
        %v420 = vld [vmem:[%s324 + $0xdc] sm:$0xf]
        %v421 = vld [vmem:[%s324 + $0xe0] sm:$0xf]
        %v422 = vld [vmem:[%s324 + $0xe4] sm:$0xf]
        %v423 = vld [vmem:[%s324 + $0xe8] sm:$0xf]
        %v424 = vld [vmem:[%s324 + $0xec] sm:$0xf]
        %v425 = vld [vmem:[%s324 + $0xf0] sm:$0xf]
        %v426 = vld [vmem:[%s324 + $0xf4] sm:$0xf]
        %v427 = vld [vmem:[%s324 + $0xf8] sm:$0xf]
        %v428 = vld [vmem:[%s324 + $0xfc] sm:$0xf]
        %v429 = vld [vmem:[%s324 + $0x100] sm:$0xf]
        %v430 = vld [vmem:[%s324 + $0x104] sm:$0xf]
        %v431 = vld [vmem:[%s324 + $0x108] sm:$0xf]
        %v432 = vld [vmem:[%s324 + $0x10c] sm:$0xf]
        %v433 = vld [vmem:[%s324 + $0x110] sm:$0xf]
        %v434 = vld [vmem:[%s324 + $0x114] sm:$0xf]
        %v435 = vld [vmem:[%s324 + $0x118] sm:$0xf]
        %v436 = vld [vmem:[%s324 + $0x11c] sm:$0xf]
        %v437 = vld [vmem:[%s324 + $0x120] sm:$0xf]
        %v438 = vld [vmem:[%s324 + $0x124] sm:$0xf]
        %v439 = vld [vmem:[%s324 + $0x128] sm:$0xf]
        %v440 = vld [vmem:[%s324 + $0x12c] sm:$0xf]
        %v441 = vld [vmem:[%s324 + $0x130] sm:$0xf]
        %v442 = vld [vmem:[%s324 + $0x134] sm:$0xf]
        %v443 = vld [vmem:[%s324 + $0x138] sm:$0xf]
        %v444 = vld [vmem:[%s324 + $0x13c] sm:$0xf]
        %v445 = vld [vmem:[%s324 + $0x140] sm:$0xf]
        %v446 = vld [vmem:[%s324 + $0x144] sm:$0xf]
        %v447 = vld [vmem:[%s324 + $0x148] sm:$0xf]
        %v448 = vld [vmem:[%s324 + $0x14c] sm:$0xf]
        %v449 = vld [vmem:[%s324 + $0x150] sm:$0xf]
        %v450 = vld [vmem:[%s324 + $0x154] sm:$0xf]
        %v451 = vld [vmem:[%s324 + $0x158] sm:$0xf]
        %v452 = vld [vmem:[%s324 + $0x15c] sm:$0xf]
        %v453 = vld [vmem:[%s324 + $0x160] sm:$0xf]
        %v454 = vld [vmem:[%s324 + $0x164] sm:$0xf]
        %v455 = vld [vmem:[%s324 + $0x168] sm:$0xf]
        %v456 = vld [vmem:[%s324 + $0x16c] sm:$0xf]
        %v457 = vld [vmem:[%s324 + $0x170] sm:$0xf]
        %v458 = vld [vmem:[%s324 + $0x174] sm:$0xf]
        %v459 = vld [vmem:[%s324 + $0x178] sm:$0xf]
        %v460 = vld [vmem:[%s324 + $0x17c] sm:$0xf]
        %v461 = vld [vmem:[%s324 + $0x180] sm:$0xf]
        %v462 = vld [vmem:[%s324 + $0x184] sm:$0xf]
        %v463 = vld [vmem:[%s324 + $0x188] sm:$0xf]
        %v464 = vld [vmem:[%s324 + $0x18c] sm:$0xf]
        %v465 = vld [vmem:[%s324 + $0x190] sm:$0xf]
        %v466 = vld [vmem:[%s324 + $0x194] sm:$0xf]
        %v467 = vld [vmem:[%s324 + $0x198] sm:$0xf]
        %v468 = vld [vmem:[%s324 + $0x19c] sm:$0xf]
        %v469 = vld [vmem:[%s324 + $0x1a0] sm:$0xf]
        %v470 = vld [vmem:[%s324 + $0x1a4] sm:$0xf]
        %v471 = vld [vmem:[%s324 + $0x1a8] sm:$0xf]
        %v472 = vld [vmem:[%s324 + $0x1ac] sm:$0xf]
        %v473 = vld [vmem:[%s324 + $0x1b0] sm:$0xf]
        %v474 = vld [vmem:[%s324 + $0x1b4] sm:$0xf]
        %v475 = vld [vmem:[%s324 + $0x1b8] sm:$0xf]
        %v476 = vld [vmem:[%s324 + $0x1bc] sm:$0xf]
        %v477 = vld [vmem:[%s324 + $0x1c0] sm:$0xf]
        %v478 = vld [vmem:[%s324 + $0x1c4] sm:$0xf]
        %v479 = vld [vmem:[%s324 + $0x1c8] sm:$0xf]
        %v480 = vld [vmem:[%s324 + $0x1cc] sm:$0xf]
        %v481 = vld [vmem:[%s324 + $0x1d0] sm:$0xf]
        %v482 = vld [vmem:[%s324 + $0x1d4] sm:$0xf]
        %v483 = vld [vmem:[%s324 + $0x1d8] sm:$0xf]
        %v484 = vld [vmem:[%s324 + $0x1dc] sm:$0xf]
        %v485 = vld [vmem:[%s324 + $0x1e0] sm:$0xf]
        %v486 = vld [vmem:[%s324 + $0x1e4] sm:$0xf]
        %v487 = vld [vmem:[%s324 + $0x1e8] sm:$0xf]
        %v488 = vld [vmem:[%s324 + $0x1ec] sm:$0xf]
        %v489 = vld [vmem:[%s324 + $0x1f0] sm:$0xf]
        %v490 = vld [vmem:[%s324 + $0x1f4] sm:$0xf]
        %v491 = vld [vmem:[%s324 + $0x1f8] sm:$0xf]
        %v492 = vld [vmem:[%s324 + $0x1fc] sm:$0xf]
        %v501 = vunpack.c.l.b16 %v357
        %v502 = vunpack.c.h.b16 %v357
        %v503 = vunpack.c.l.b16 %v358
        %v504 = vunpack.c.h.b16 %v358
        %v505 = vunpack.c.l.b16 %v359
        %v506 = vunpack.c.h.b16 %v359
        %v507 = vunpack.c.l.b16 %v360
        %v508 = vunpack.c.h.b16 %v360
        %v509 = vunpack.c.l.b16 %v361
        %v510 = vunpack.c.h.b16 %v361
        %v511 = vunpack.c.l.b16 %v362
        %v512 = vunpack.c.h.b16 %v362
        %v513 = vunpack.c.l.b16 %v363
        %v514 = vunpack.c.h.b16 %v363
        %v515 = vunpack.c.l.b16 %v364
        %v516 = vunpack.c.h.b16 %v364
        %v517 = vpack.c.b16 %v509, %v501
        %v518 = vpack.c.b16 %v510, %v502
        %v519 = vpack.c.b16 %v511, %v503
        %v520 = vpack.c.b16 %v512, %v504
        %v521 = vpack.c.b16 %v513, %v505
        %v522 = vpack.c.b16 %v514, %v506
        %v523 = vpack.c.b16 %v515, %v507
        %v524 = vpack.c.b16 %v516, %v508
        %v661 = vunpack.c.l.b16 %v365
        %v662 = vunpack.c.l.b16 %v366
        %v663 = vunpack.c.l.b16 %v367
        %v664 = vunpack.c.l.b16 %v368
        %v665 = vunpack.c.l.b16 %v369
        %v666 = vunpack.c.l.b16 %v370
        %v667 = vunpack.c.l.b16 %v371
        %v668 = vunpack.c.l.b16 %v372
        %v669 = vunpack.c.l.b16 %v373
        %v670 = vunpack.c.l.b16 %v374
        %v671 = vunpack.c.l.b16 %v375
        %v672 = vunpack.c.l.b16 %v376
        %v673 = vunpack.c.l.b16 %v377
        %v674 = vunpack.c.l.b16 %v378
        %v675 = vunpack.c.l.b16 %v379
        %v676 = vunpack.c.l.b16 %v380
        %v677 = vunpack.c.l.b16 %v381
        %v678 = vunpack.c.l.b16 %v382
        %v679 = vunpack.c.l.b16 %v383
        %v680 = vunpack.c.l.b16 %v384
        %v681 = vunpack.c.l.b16 %v385
        %v682 = vunpack.c.l.b16 %v386
        %v683 = vunpack.c.l.b16 %v387
        %v684 = vunpack.c.l.b16 %v388
        %v685 = vunpack.c.l.b16 %v389
        %v686 = vunpack.c.l.b16 %v390
        %v687 = vunpack.c.l.b16 %v391
        %v688 = vunpack.c.l.b16 %v392
        %v689 = vunpack.c.l.b16 %v393
        %v690 = vunpack.c.l.b16 %v394
        %v691 = vunpack.c.l.b16 %v395
        %v692 = vunpack.c.l.b16 %v396
        %v693 = vunpack.c.l.b16 %v397
        %v694 = vunpack.c.l.b16 %v398
        %v695 = vunpack.c.l.b16 %v399
        %v696 = vunpack.c.l.b16 %v400
        %v697 = vunpack.c.l.b16 %v401
        %v698 = vunpack.c.l.b16 %v402
        %v699 = vunpack.c.l.b16 %v403
        %v700 = vunpack.c.l.b16 %v404
        %v701 = vunpack.c.l.b16 %v405
        %v702 = vunpack.c.l.b16 %v406
        %v703 = vunpack.c.l.b16 %v407
        %v704 = vunpack.c.l.b16 %v408
        %v705 = vunpack.c.l.b16 %v409
        %v706 = vunpack.c.l.b16 %v410
        %v707 = vunpack.c.l.b16 %v411
        %v708 = vunpack.c.l.b16 %v412
        %v709 = vunpack.c.l.b16 %v413
        %v710 = vunpack.c.l.b16 %v414
        %v711 = vunpack.c.l.b16 %v415
        %v712 = vunpack.c.l.b16 %v416
        %v713 = vunpack.c.l.b16 %v417
        %v714 = vunpack.c.l.b16 %v418
        %v715 = vunpack.c.l.b16 %v419
        %v716 = vunpack.c.l.b16 %v420
        %v717 = vunpack.c.l.b16 %v421
        %v718 = vunpack.c.l.b16 %v422
        %v719 = vunpack.c.l.b16 %v423
        %v720 = vunpack.c.l.b16 %v424
        %v721 = vunpack.c.l.b16 %v425
        %v722 = vunpack.c.l.b16 %v426
        %v723 = vunpack.c.l.b16 %v427
        %v724 = vunpack.c.l.b16 %v428
        %v725 = vunpack.c.l.b16 %v429
        %v726 = vunpack.c.l.b16 %v430
        %v727 = vunpack.c.l.b16 %v431
        %v728 = vunpack.c.l.b16 %v432
        %v729 = vunpack.c.l.b16 %v433
        %v730 = vunpack.c.l.b16 %v434
        %v731 = vunpack.c.l.b16 %v435
        %v732 = vunpack.c.l.b16 %v436
        %v733 = vunpack.c.l.b16 %v437
        %v734 = vunpack.c.l.b16 %v438
        %v735 = vunpack.c.l.b16 %v439
        %v736 = vunpack.c.l.b16 %v440
        %v737 = vunpack.c.l.b16 %v441
        %v738 = vunpack.c.l.b16 %v442
        %v739 = vunpack.c.l.b16 %v443
        %v740 = vunpack.c.l.b16 %v444
        %v741 = vunpack.c.l.b16 %v445
        %v742 = vunpack.c.l.b16 %v446
        %v743 = vunpack.c.l.b16 %v447
        %v744 = vunpack.c.l.b16 %v448
        %v745 = vunpack.c.l.b16 %v449
        %v746 = vunpack.c.l.b16 %v450
        %v747 = vunpack.c.l.b16 %v451
        %v748 = vunpack.c.l.b16 %v452
        %v749 = vunpack.c.l.b16 %v453
        %v750 = vunpack.c.l.b16 %v454
        %v751 = vunpack.c.l.b16 %v455
        %v752 = vunpack.c.l.b16 %v456
        %v753 = vunpack.c.l.b16 %v457
        %v754 = vunpack.c.l.b16 %v458
        %v755 = vunpack.c.l.b16 %v459
        %v756 = vunpack.c.l.b16 %v460
        %v757 = vunpack.c.l.b16 %v461
        %v758 = vunpack.c.l.b16 %v462
        %v759 = vunpack.c.l.b16 %v463
        %v760 = vunpack.c.l.b16 %v464
        %v761 = vunpack.c.l.b16 %v465
        %v762 = vunpack.c.l.b16 %v466
        %v763 = vunpack.c.l.b16 %v467
        %v764 = vunpack.c.l.b16 %v468
        %v765 = vunpack.c.l.b16 %v469
        %v766 = vunpack.c.l.b16 %v470
        %v767 = vunpack.c.l.b16 %v471
        %v768 = vunpack.c.l.b16 %v472
        %v769 = vunpack.c.l.b16 %v473
        %v770 = vunpack.c.l.b16 %v474
        %v771 = vunpack.c.l.b16 %v475
        %v772 = vunpack.c.l.b16 %v476
        %v773 = vunpack.c.l.b16 %v477
        %v774 = vunpack.c.l.b16 %v478
        %v775 = vunpack.c.l.b16 %v479
        %v776 = vunpack.c.l.b16 %v480
        %v777 = vunpack.c.l.b16 %v481
        %v778 = vunpack.c.l.b16 %v482
        %v779 = vunpack.c.l.b16 %v483
        %v780 = vunpack.c.l.b16 %v484
        %v781 = vunpack.c.l.b16 %v485
        %v782 = vunpack.c.l.b16 %v486
        %v783 = vunpack.c.l.b16 %v487
        %v784 = vunpack.c.l.b16 %v488
        %v785 = vunpack.c.l.b16 %v489
        %v786 = vunpack.c.l.b16 %v490
        %v787 = vunpack.c.l.b16 %v491
        %v788 = vunpack.c.l.b16 %v492
        %v789 = vpack.c.b16 %v662, %v661
        %v790 = vpack.c.b16 %v664, %v663
        %v791 = vpack.c.b16 %v666, %v665
        %v792 = vpack.c.b16 %v668, %v667
        %v793 = vpack.c.b16 %v670, %v669
        %v794 = vpack.c.b16 %v672, %v671
        %v795 = vpack.c.b16 %v674, %v673
        %v796 = vpack.c.b16 %v676, %v675
        %v797 = vpack.c.b16 %v678, %v677
        %v798 = vpack.c.b16 %v680, %v679
        %v799 = vpack.c.b16 %v682, %v681
        %v800 = vpack.c.b16 %v684, %v683
        %v801 = vpack.c.b16 %v686, %v685
        %v802 = vpack.c.b16 %v688, %v687
        %v803 = vpack.c.b16 %v690, %v689
        %v804 = vpack.c.b16 %v692, %v691
        %v805 = vpack.c.b16 %v694, %v693
        %v806 = vpack.c.b16 %v696, %v695
        %v807 = vpack.c.b16 %v698, %v697
        %v808 = vpack.c.b16 %v700, %v699
        %v809 = vpack.c.b16 %v702, %v701
        %v810 = vpack.c.b16 %v704, %v703
        %v811 = vpack.c.b16 %v706, %v705
        %v812 = vpack.c.b16 %v708, %v707
        %v813 = vpack.c.b16 %v710, %v709
        %v814 = vpack.c.b16 %v712, %v711
        %v815 = vpack.c.b16 %v714, %v713
        %v816 = vpack.c.b16 %v716, %v715
        %v817 = vpack.c.b16 %v718, %v717
        %v818 = vpack.c.b16 %v720, %v719
        %v819 = vpack.c.b16 %v722, %v721
        %v820 = vpack.c.b16 %v724, %v723
        %v821 = vpack.c.b16 %v726, %v725
        %v822 = vpack.c.b16 %v728, %v727
        %v823 = vpack.c.b16 %v730, %v729
        %v824 = vpack.c.b16 %v732, %v731
        %v825 = vpack.c.b16 %v734, %v733
        %v826 = vpack.c.b16 %v736, %v735
        %v827 = vpack.c.b16 %v738, %v737
        %v828 = vpack.c.b16 %v740, %v739
        %v829 = vpack.c.b16 %v742, %v741
        %v830 = vpack.c.b16 %v744, %v743
        %v831 = vpack.c.b16 %v746, %v745
        %v832 = vpack.c.b16 %v748, %v747
        %v833 = vpack.c.b16 %v750, %v749
        %v834 = vpack.c.b16 %v752, %v751
        %v835 = vpack.c.b16 %v754, %v753
        %v836 = vpack.c.b16 %v756, %v755
        %v837 = vpack.c.b16 %v758, %v757
        %v838 = vpack.c.b16 %v760, %v759
        %v839 = vpack.c.b16 %v762, %v761
        %v840 = vpack.c.b16 %v764, %v763
        %v841 = vpack.c.b16 %v766, %v765
        %v842 = vpack.c.b16 %v768, %v767
        %v843 = vpack.c.b16 %v770, %v769
        %v844 = vpack.c.b16 %v772, %v771
        %v845 = vpack.c.b16 %v774, %v773
        %v846 = vpack.c.b16 %v776, %v775
        %v847 = vpack.c.b16 %v778, %v777
        %v848 = vpack.c.b16 %v780, %v779
        %v849 = vpack.c.b16 %v782, %v781
        %v850 = vpack.c.b16 %v784, %v783
        %v851 = vpack.c.b16 %v786, %v785
        %v852 = vpack.c.b16 %v788, %v787
        %917 = vmatprep.subr.bf16.mxu0 0
        %918 = vmatpush1.bf16.msra.mxu0 %v789
        %919 = vmatprep.subr.bf16.mxu0 0
        %920 = vmatpush1.bf16.msra.mxu0 %v790
        %921 = vmatprep.subr.bf16.mxu0 0
        %922 = vmatpush1.bf16.msra.mxu0 %v791
        %923 = vmatprep.subr.bf16.mxu0 0
        %924 = vmatpush1.bf16.msra.mxu0 %v792
        %925 = vmatprep.subr.bf16.mxu0 0
        %926 = vmatpush1.bf16.msra.mxu0 %v793
        %927 = vmatprep.subr.bf16.mxu0 0
        %928 = vmatpush1.bf16.msra.mxu0 %v794
        %929 = vmatprep.subr.bf16.mxu0 0
        %930 = vmatpush1.bf16.msra.mxu0 %v795
        %931 = vmatprep.subr.bf16.mxu0 0
        %932 = vmatpush1.bf16.msra.mxu0 %v796
        %933 = vmatprep.subr.bf16.mxu0 0
        %934 = vmatpush1.bf16.msra.mxu0 %v797
        %935 = vmatprep.subr.bf16.mxu0 0
        %936 = vmatpush1.bf16.msra.mxu0 %v798
        %937 = vmatprep.subr.bf16.mxu0 0
        %938 = vmatpush1.bf16.msra.mxu0 %v799
        %939 = vmatprep.subr.bf16.mxu0 0
        %940 = vmatpush1.bf16.msra.mxu0 %v800
        %941 = vmatprep.subr.bf16.mxu0 0
        %942 = vmatpush1.bf16.msra.mxu0 %v801
        %943 = vmatprep.subr.bf16.mxu0 0
        %944 = vmatpush1.bf16.msra.mxu0 %v802
        %945 = vmatprep.subr.bf16.mxu0 0
        %946 = vmatpush1.bf16.msra.mxu0 %v803
        %947 = vmatprep.subr.bf16.mxu0 0
        %948 = vmatpush1.bf16.msra.mxu0 %v804
        %949 = vmatprep.mubr.bf16.mxu0 %v518
        %950 = vmatmul.mubr.bf16.gmra.mrb[0].mxu0 %v517
        %v951 = vpop.f32.mrb[0].mxu0
        %v952 = vadd.f32 0.0, %v951
        %v953 = vpop.f32.mrb[0].mxu0
        %v954 = vpop.f32.mrb[0].mxu0
        %v955 = vadd.f32 0.0, %v954
        %v956 = vpop.f32.mrb[0].mxu0
        %957 = vdwg.mxu0
        %958 = vmatprep.subr.bf16.mxu0 0
        %959 = vmatpush1.bf16.msra.mxu0 %v805
        %960 = vmatprep.subr.bf16.mxu0 0
        %961 = vmatpush1.bf16.msra.mxu0 %v806
        %962 = vmatprep.subr.bf16.mxu0 0
        %963 = vmatpush1.bf16.msra.mxu0 %v807
        %964 = vmatprep.subr.bf16.mxu0 0
        %965 = vmatpush1.bf16.msra.mxu0 %v808
        %966 = vmatprep.subr.bf16.mxu0 0
        %967 = vmatpush1.bf16.msra.mxu0 %v809
        %968 = vmatprep.subr.bf16.mxu0 0
        %969 = vmatpush1.bf16.msra.mxu0 %v810
        %970 = vmatprep.subr.bf16.mxu0 0
        %971 = vmatpush1.bf16.msra.mxu0 %v811
        %972 = vmatprep.subr.bf16.mxu0 0
        %973 = vmatpush1.bf16.msra.mxu0 %v812
        %974 = vmatprep.subr.bf16.mxu0 0
        %975 = vmatpush1.bf16.msra.mxu0 %v813
        %976 = vmatprep.subr.bf16.mxu0 0
        %977 = vmatpush1.bf16.msra.mxu0 %v814
        %978 = vmatprep.subr.bf16.mxu0 0
        %979 = vmatpush1.bf16.msra.mxu0 %v815
        %980 = vmatprep.subr.bf16.mxu0 0
        %981 = vmatpush1.bf16.msra.mxu0 %v816
        %982 = vmatprep.subr.bf16.mxu0 0
        %983 = vmatpush1.bf16.msra.mxu0 %v817
        %984 = vmatprep.subr.bf16.mxu0 0
        %985 = vmatpush1.bf16.msra.mxu0 %v818
        %986 = vmatprep.subr.bf16.mxu0 0
        %987 = vmatpush1.bf16.msra.mxu0 %v819
        %988 = vmatprep.subr.bf16.mxu0 0
        %989 = vmatpush1.bf16.msra.mxu0 %v820
        %990 = vmatprep.mubr.bf16.mxu0 %v520
        %991 = vmatmul.mubr.bf16.gmra.mrb[0].mxu0 %v519
        %v992 = vpop.f32.mrb[0].mxu0
        %v993 = vadd.f32 %v952, %v992
        %v994 = vpop.f32.mrb[0].mxu0
        %v995 = vpop.f32.mrb[0].mxu0
        %v996 = vadd.f32 %v955, %v995
        %v997 = vpop.f32.mrb[0].mxu0
        %998 = vdwg.mxu0
        %999 = vmatprep.subr.bf16.mxu0 0
        %1000 = vmatpush1.bf16.msra.mxu0 %v821
        %1001 = vmatprep.subr.bf16.mxu0 0
        %1002 = vmatpush1.bf16.msra.mxu0 %v822
        %1003 = vmatprep.subr.bf16.mxu0 0
        %1004 = vmatpush1.bf16.msra.mxu0 %v823
        %1005 = vmatprep.subr.bf16.mxu0 0
        %1006 = vmatpush1.bf16.msra.mxu0 %v824
        %1007 = vmatprep.subr.bf16.mxu0 0
        %1008 = vmatpush1.bf16.msra.mxu0 %v825
        %1009 = vmatprep.subr.bf16.mxu0 0
        %1010 = vmatpush1.bf16.msra.mxu0 %v826
        %1011 = vmatprep.subr.bf16.mxu0 0
        %1012 = vmatpush1.bf16.msra.mxu0 %v827
        %1013 = vmatprep.subr.bf16.mxu0 0
        %1014 = vmatpush1.bf16.msra.mxu0 %v828
        %1015 = vmatprep.subr.bf16.mxu0 0
        %1016 = vmatpush1.bf16.msra.mxu0 %v829
        %1017 = vmatprep.subr.bf16.mxu0 0
        %1018 = vmatpush1.bf16.msra.mxu0 %v830
        %1019 = vmatprep.subr.bf16.mxu0 0
        %1020 = vmatpush1.bf16.msra.mxu0 %v831
        %1021 = vmatprep.subr.bf16.mxu0 0
        %1022 = vmatpush1.bf16.msra.mxu0 %v832
        %1023 = vmatprep.subr.bf16.mxu0 0
        %1024 = vmatpush1.bf16.msra.mxu0 %v833
        %1025 = vmatprep.subr.bf16.mxu0 0
        %1026 = vmatpush1.bf16.msra.mxu0 %v834
        %1027 = vmatprep.subr.bf16.mxu0 0
        %1028 = vmatpush1.bf16.msra.mxu0 %v835
        %1029 = vmatprep.subr.bf16.mxu0 0
        %1030 = vmatpush1.bf16.msra.mxu0 %v836
        %1031 = vmatprep.mubr.bf16.mxu0 %v522
        %1032 = vmatmul.mubr.bf16.gmra.mrb[0].mxu0 %v521
        %v1033 = vpop.f32.mrb[0].mxu0
        %v1034 = vadd.f32 %v993, %v1033
        %v1035 = vpop.f32.mrb[0].mxu0
        %v1036 = vpop.f32.mrb[0].mxu0
        %v1037 = vadd.f32 %v996, %v1036
        %v1038 = vpop.f32.mrb[0].mxu0
        %1039 = vdwg.mxu0
        %1040 = vmatprep.subr.bf16.mxu0 0
        %1041 = vmatpush1.bf16.msra.mxu0 %v837
        %1042 = vmatprep.subr.bf16.mxu0 0
        %1043 = vmatpush1.bf16.msra.mxu0 %v838
        %1044 = vmatprep.subr.bf16.mxu0 0
        %1045 = vmatpush1.bf16.msra.mxu0 %v839
        %1046 = vmatprep.subr.bf16.mxu0 0
        %1047 = vmatpush1.bf16.msra.mxu0 %v840
        %1048 = vmatprep.subr.bf16.mxu0 0
        %1049 = vmatpush1.bf16.msra.mxu0 %v841
        %1050 = vmatprep.subr.bf16.mxu0 0
        %1051 = vmatpush1.bf16.msra.mxu0 %v842
        %1052 = vmatprep.subr.bf16.mxu0 0
        %1053 = vmatpush1.bf16.msra.mxu0 %v843
        %1054 = vmatprep.subr.bf16.mxu0 0
        %1055 = vmatpush1.bf16.msra.mxu0 %v844
        %1056 = vmatprep.subr.bf16.mxu0 0
        %1057 = vmatpush1.bf16.msra.mxu0 %v845
        %1058 = vmatprep.subr.bf16.mxu0 0
        %1059 = vmatpush1.bf16.msra.mxu0 %v846
        %1060 = vmatprep.subr.bf16.mxu0 0
        %1061 = vmatpush1.bf16.msra.mxu0 %v847
        %1062 = vmatprep.subr.bf16.mxu0 0
        %1063 = vmatpush1.bf16.msra.mxu0 %v848
        %1064 = vmatprep.subr.bf16.mxu0 0
        %1065 = vmatpush1.bf16.msra.mxu0 %v849
        %1066 = vmatprep.subr.bf16.mxu0 0
        %1067 = vmatpush1.bf16.msra.mxu0 %v850
        %1068 = vmatprep.subr.bf16.mxu0 0
        %1069 = vmatpush1.bf16.msra.mxu0 %v851
        %1070 = vmatprep.subr.bf16.mxu0 0
        %1071 = vmatpush1.bf16.msra.mxu0 %v852
        %1072 = vmatprep.mubr.bf16.mxu0 %v524
        %1073 = vmatmul.mubr.bf16.gmra.mrb[0].mxu0 %v523
        %v1074 = vpop.f32.mrb[0].mxu0
        %v1075 = vadd.f32 %v1034, %v1074
        %v1076 = vpop.f32.mrb[0].mxu0
        %v1077 = vpop.f32.mrb[0].mxu0
        %v1078 = vadd.f32 %v1037, %v1077
        %v1079 = vpop.f32.mrb[0].mxu0
        %1080 = vdwg.mxu0
        %v1081 = vadd.f32 %v355, %v1075
        %v1082 = vadd.f32 %v356, %v1078
        %vm1083 = vcmask 261120
        %1084 = vst.msk [vmem:[#allocation2] sm:$0xff] %vm1083, %v1081
        %1085 = vst.msk [vmem:[#allocation2 + $0x8] sm:$0xff] %vm1083, %v1082
        %p1086 = scmp.eq.s32.totalorder %s22, 1
        // Predicated region
        $region64: #{transformer_forward.34} parent=54 // pred_check
          %p1087 = pneg %p1086
        $region65: #{transformer_forward.34} parent=54 // pred_check_branch
          %1089 = sbr.rel (%p1087) target = $region67
        $region66: #{transformer_forward.34} parent=54 // pred_region
          %v1090 = vld [vmem:[#allocation2] sm:$0xff]
          %v1091 = vld [vmem:[#allocation2 + $0x8] sm:$0xff]
          %v1092 = vld [vmem:[%s328] sm:$0x1]
          %v1094 = vlaneseq
          %v1095 = vshrl.u32 %v1094, 7
          %v1096 = vsub.s32 0, %v1095
          %v1097 = vrot.slane %v1092, %v1096
          %v1099 = vadd.f32 %v1090, %v1097
          %v1100 = vadd.f32 %v1091, %v1097
          %v1101 = vld [vmem:[%s336] sm:$0xff]
          %v1102 = vld [vmem:[%s336 + $0x8] sm:$0xff]
          %v1103 = vadd.f32 %v1099, %v1101
          %v1104 = vadd.f32 %v1100, %v1102
          %1105 = vst.msk [vmem:[%s345] sm:$0xff] %vm1083, %v1103
          %1106 = vst.msk [vmem:[%s345 + $0x8] sm:$0xff] %vm1083, %v1104
        $region67: #{transformer_forward.34} parent=54 // pred_fallthru
          _
        %s1107 = smul.u32 2, %s20
        %p1108 = scmp.lt.s32.totalorder %s1107, 1
        %s1109 = scalar_select %p1108, %s1107, 1
        %p1110 = scmp.lt.s32.totalorder %s21, 0
        %s1111 = scalar_select %p1110, %s21, 0
        %s1112 = sadd.s32 %s1111, %s1109
        %s1113 = smul.addr %s1112, 8
        %s1114 = scalar_lea.vmem %s4, %s1113
        // Predicated region
        $region68: #{transformer_forward.34} parent=54 // pred_check
          %p1115 = pneg %p164
        $region69: #{transformer_forward.34} parent=54 // pred_check_branch
          %1117 = sbr.rel (%p1115) target = $region71
        $region70: #{transformer_forward.34} parent=54 // pred_region
          %s1118 = smul.u32 2, %s20
        $region71: #{transformer_forward.34} parent=54 // pred_fallthru
          _
        // Predicated region
        $region72: #{transformer_forward.34} parent=54 // pred_check
          %p1119 = pneg %p164
        $region73: #{transformer_forward.34} parent=54 // pred_check_branch
          %1121 = sbr.rel (%p1119) target = $region75
        $region74: #{transformer_forward.34} parent=54 // pred_region
          %s1122 = smul.u32 2, %s20
          %p1123 = scmp.lt.s32.totalorder %s1122, 1
          %s1124 = scalar_select %p1123, %s1122, 1
          %p1125 = scmp.lt.s32.totalorder %s21, 0
          %s1126 = scalar_select %p1125, %s21, 0
          %s1127 = sadd.s32 %s1126, %s1124
          %s1128 = smul.addr %s1127, 8
          %s1129 = scalar_lea.vmem %s4, %s1128
        $region75: #{transformer_forward.34} parent=54 // pred_fallthru
          _
      $region55: #{transformer_forward.34} parent=5 // pred_fallthru
        _
      %p1130 = scmp.le.s32.totalorder 2, %s10
      // Predicated region
      $region76: #{transformer_forward.34} parent=5 // pred_check
        %p1131 = pneg %p1130
      $region77: #{transformer_forward.34} parent=5 // pred_check_branch
        %1133 = sbr.rel (%p1131) target = $region79
      $region78: #{transformer_forward.34} parent=5 // pred_region
        %s1134 = ssub.s32 %s10, 2
      $region79: #{transformer_forward.34} parent=5 // pred_fallthru
        _
    $region6: #{transformer_forward.34} parent=1 // loop_footer
      %s14 = sadd.s32 1, %s10
    $region7: #{transformer_forward.34} parent=1 // loop_footer_branch
      %9 = sbr.rel target = $region3
    $region8: #{transformer_forward.34} parent=1 // loop_exit
      _

// kernel: transformer_forward.45
$region0: #{transformer_forward.45}
  #allocation0 [shape = 'u32[]', space=smem, size = 0x4, offset = 0x4, fixed_abs, tag = 'smem constant byte address 0x4 - core index']
  #allocation1 [shape = 'u32[144,128]{1,0:T(1,128)}', space=vmem, size = 0x12000, scoped, tag = 'internal scratch']
  #allocation2 [shape = 'f32[16,64]{1,0:T(8,128)}', space=vmem, size = 0x2000, scoped, tag = 'scratch operand']
  %s0 = inlined_call_operand.vmem [shape: bf16[16,32], index: 0, kind: input, shape index: {}]
  %s1 = inlined_call_operand.vmem [shape: bf16[32,64], index: 1, kind: input, shape index: {}]
  %s2 = inlined_call_operand.vmem [shape: f32[1,64], index: 2, kind: input, shape index: {}]
  %s3 = inlined_call_operand.vmem [shape: bf16[16,64], index: 3, kind: output, shape index: {}]
  %s4 = sld [smem:[#allocation0]]
  $region30: #{transformer_forward.45} parent=0
    _
  %s6 = ssub.s32 1, %s4
  %s7 = scalar_select 0, %s6, %s4
  // Predicated region
  $region2: #{transformer_forward.45} parent=0 // pred_check
    _
  $region3: #{transformer_forward.45} parent=0 // pred_check_branch
    %9 = sbr.rel (0) target = $region5
  $region4: #{transformer_forward.45} parent=0 // pred_region
    _
  $region5: #{transformer_forward.45} parent=0 // pred_fallthru
    _
  // Predicated region
  $region6: #{transformer_forward.45} parent=0 // pred_check
    _
  $region7: #{transformer_forward.45} parent=0 // pred_check_branch
    %11 = sbr.rel (0) target = $region9
  $region8: #{transformer_forward.45} parent=0 // pred_region
    _
  $region9: #{transformer_forward.45} parent=0 // pred_fallthru
    _
  // Predicated region
  $region10: #{transformer_forward.45} parent=0 // pred_check
    _
  $region11: #{transformer_forward.45} parent=0 // pred_check_branch
    %13 = sbr.rel (0) target = $region13
  $region12: #{transformer_forward.45} parent=0 // pred_region
    _
  $region13: #{transformer_forward.45} parent=0 // pred_fallthru
    _
  %p15 = scmp.eq.s32.totalorder 0, 0
  // Predicated region
  $region14: #{transformer_forward.45} parent=0 // pred_check
    %p16 = pneg %p15
  $region15: #{transformer_forward.45} parent=0 // pred_check_branch
    %18 = sbr.rel (%p16) target = $region17
  $region16: #{transformer_forward.45} parent=0 // pred_region
    %vm19 = vcmask 523264
    %20 = vst.msk [vmem:[#allocation2] sm:$0xff] %vm19, 0.0
    %21 = vst.msk [vmem:[#allocation2 + $0x8] sm:$0xff] %vm19, 0.0
  $region17: #{transformer_forward.45} parent=0 // pred_fallthru
    _
  %v22 = vld [vmem:[#allocation2] sm:$0xff]
  %v23 = vld [vmem:[#allocation2 + $0x8] sm:$0xff]
  %v24 = vld [vmem:[%s0] sm:$0xf]
  %v25 = vld [vmem:[%s0 + $0x4] sm:$0xf]
  %v26 = vld [vmem:[%s1] sm:$0xf]
  %v27 = vld [vmem:[%s1 + $0x4] sm:$0xf]
  %v28 = vld [vmem:[%s1 + $0x8] sm:$0xf]
  %v29 = vld [vmem:[%s1 + $0xc] sm:$0xf]
  %v32 = vunpack.c.l.b16 %v24
  %v33 = vunpack.c.l.b16 %v25
  %v34 = vpack.c.b16 %v33, %v32
  %v39 = vunpack.c.l.b16 %v26
  %v40 = vunpack.c.l.b16 %v27
  %v41 = vunpack.c.l.b16 %v28
  %v42 = vunpack.c.l.b16 %v29
  %v43 = vpack.c.b16 %v40, %v39
  %v44 = vpack.c.b16 %v42, %v41
  %vm47 = vcmask 261120
  %v49 = vsel %vm47, %v34, 0
  %51 = vmatprep.subr.bf16.mxu0 0
  %52 = vmatpush1.bf16.msra.mxu0 %v43
  %53 = vmatprep.subr.bf16.mxu0 0
  %54 = vmatpush1.bf16.msra.mxu0 %v44
  %55 = vmatprep.subr.bf16.mxu0 0
  %56 = vmatpush1.bf16.msra.mxu0 0
  %57 = vmatprep.subr.bf16.mxu0 0
  %58 = vmatpush1.bf16.msra.mxu0 0
  %59 = vmatprep.subr.bf16.mxu0 0
  %60 = vmatpush1.bf16.msra.mxu0 0
  %61 = vmatprep.subr.bf16.mxu0 0
  %62 = vmatpush1.bf16.msra.mxu0 0
  %63 = vmatprep.subr.bf16.mxu0 0
  %64 = vmatpush1.bf16.msra.mxu0 0
  %65 = vmatprep.subr.bf16.mxu0 0
  %66 = vmatpush1.bf16.msra.mxu0 0
  %67 = vmatprep.subr.bf16.mxu0 0
  %68 = vmatpush1.bf16.msra.mxu0 0
  %69 = vmatprep.subr.bf16.mxu0 0
  %70 = vmatpush1.bf16.msra.mxu0 0
  %71 = vmatprep.subr.bf16.mxu0 0
  %72 = vmatpush1.bf16.msra.mxu0 0
  %73 = vmatprep.subr.bf16.mxu0 0
  %74 = vmatpush1.bf16.msra.mxu0 0
  %75 = vmatprep.subr.bf16.mxu0 0
  %76 = vmatpush1.bf16.msra.mxu0 0
  %77 = vmatprep.subr.bf16.mxu0 0
  %78 = vmatpush1.bf16.msra.mxu0 0
  %79 = vmatprep.subr.bf16.mxu0 0
  %80 = vmatpush1.bf16.msra.mxu0 0
  %81 = vmatprep.subr.bf16.mxu0 0
  %82 = vmatpush1.bf16.msra.mxu0 0
  %83 = vmatprep.mubr.bf16.mxu0 0
  %84 = vmatmul.mubr.bf16.gmra.mrb[0].mxu0 %v49
  %v85 = vpop.f32.mrb[0].mxu0
  %v86 = vadd.f32 0.0, %v85
  %v87 = vpop.f32.mrb[0].mxu0
  %v88 = vpop.f32.mrb[0].mxu0
  %v89 = vadd.f32 0.0, %v88
  %v90 = vpop.f32.mrb[0].mxu0
  %91 = vdwg.mxu0
  %v92 = vadd.f32 %v22, %v86
  %v93 = vadd.f32 %v23, %v89
  %vm94 = vcmask 523264
  %95 = vst.msk [vmem:[#allocation2] sm:$0xff] %vm94, %v92
  %96 = vst.msk [vmem:[#allocation2 + $0x8] sm:$0xff] %vm94, %v93
  // Predicated region
  $region18: #{transformer_forward.45} parent=0 // pred_check
    %p97 = pneg %p15
  $region19: #{transformer_forward.45} parent=0 // pred_check_branch
    %99 = sbr.rel (%p97) target = $region21
  $region20: #{transformer_forward.45} parent=0 // pred_region
    %v100 = vld [vmem:[#allocation2] sm:$0xff]
    %v101 = vld [vmem:[#allocation2 + $0x8] sm:$0xff]
    %v102 = vld [vmem:[%s2] sm:$0x1]
    %v104 = vlaneseq
    %v105 = vshrl.u32 %v104, 7
    %v106 = vsub.s32 0, %v105
    %v107 = vrot.slane %v102, %v106
    %v109 = vadd.f32 %v100, %v107
    %v110 = vadd.f32 %v101, %v107
    %v111 = vpack.c.bf16 %v110, %v109
    %v113 = vunpack.c.l.b16 %v111
    %v114 = vunpack.c.h.b16 %v111
    %v115 = vpack.c.b16 %v113, %v113
    %v116 = vpack.c.b16 %v114, %v114
    %vm119 = vcmask 519168
    %120 = vst.msk [vmem:[%s3] sm:$0xf] %vm119, %v115
    %121 = vst.msk [vmem:[%s3 + $0x4] sm:$0xf] %vm119, %v116
  $region21: #{transformer_forward.45} parent=0 // pred_fallthru
    _
  // Predicated region
  $region22: #{transformer_forward.45} parent=0 // pred_check
    _
  $region23: #{transformer_forward.45} parent=0 // pred_check_branch
    %123 = sbr.rel (0) target = $region25
  $region24: #{transformer_forward.45} parent=0 // pred_region
    _
  $region25: #{transformer_forward.45} parent=0 // pred_fallthru
    _
  // Predicated region
  $region26: #{transformer_forward.45} parent=0 // pred_check
    _
  $region27: #{transformer_forward.45} parent=0 // pred_check_branch
    %125 = sbr.rel (0) target = $region29
  $region28: #{transformer_forward.45} parent=0 // pred_region
    _
  $region29: #{transformer_forward.45} parent=0 // pred_fallthru
    _

// kernel: transformer_forward.40
$region0: #{transformer_forward.40}
  #allocation0 [shape = 'u32[]', space=smem, size = 0x4, offset = 0x4, fixed_abs, tag = 'smem constant byte address 0x4 - core index']
  #allocation1 [shape = 'u32[144,128]{1,0:T(1,128)}', space=vmem, size = 0x12000, scoped, tag = 'internal scratch']
  %s0 = inlined_call_operand.vmem [shape: f32[16,32], index: 0, kind: input, shape index: {}]
  %s1 = inlined_call_operand.vmem [shape: f32[1,32], index: 1, kind: input, shape index: {}]
  %s2 = inlined_call_operand.vmem [shape: f32[1,32], index: 2, kind: input, shape index: {}]
  %s3 = inlined_call_operand.vmem [shape: f32[16,32], index: 3, kind: output, shape index: {}]
  %s4 = sld [smem:[#allocation0]]
  $region22: #{transformer_forward.40} parent=0
    _
  %s6 = ssub.s32 1, %s4
  %s7 = scalar_select 0, %s6, %s4
  // Predicated region
  $region2: #{transformer_forward.40} parent=0 // pred_check
    _
  $region3: #{transformer_forward.40} parent=0 // pred_check_branch
    %9 = sbr.rel (0) target = $region5
  $region4: #{transformer_forward.40} parent=0 // pred_region
    _
  $region5: #{transformer_forward.40} parent=0 // pred_fallthru
    _
  // Predicated region
  $region6: #{transformer_forward.40} parent=0 // pred_check
    _
  $region7: #{transformer_forward.40} parent=0 // pred_check_branch
    %11 = sbr.rel (0) target = $region9
  $region8: #{transformer_forward.40} parent=0 // pred_region
    _
  $region9: #{transformer_forward.40} parent=0 // pred_fallthru
    _
  // Predicated region
  $region10: #{transformer_forward.40} parent=0 // pred_check
    _
  $region11: #{transformer_forward.40} parent=0 // pred_check_branch
    %13 = sbr.rel (0) target = $region13
  $region12: #{transformer_forward.40} parent=0 // pred_region
    _
  $region13: #{transformer_forward.40} parent=0 // pred_fallthru
    _
  %v14 = vld [vmem:[%s0] sm:$0xff]
  %v15 = vld [vmem:[%s0 + $0x8] sm:$0xff]
  %vm16 = vcmask 261120
  %v17 = vsel %vm16, %v14, 0.0
  %18 = vadd.xlane.f32.xlu0 %v17
  %v19 = vpop.xlane.xlu0 %18
  %v20 = vsel %vm16, %v15, 0.0
  %21 = vadd.xlane.f32.xlu0 %v20
  %v22 = vpop.xlane.xlu0 %21
  %v23 = vrcp.pop 32.0
  %v24 = vmul.f32 %v19, %v23
  %v25 = vmul.f32 %v22, %v23
  %v26 = vsub.f32 %v14, %v24
  %v27 = vsub.f32 %v15, %v25
  %v28 = vmul.f32 %v26, %v26
  %v29 = vmul.f32 %v27, %v27
  %v30 = vsel %vm16, %v28, 0.0
  %31 = vadd.xlane.f32.xlu0 %v30
  %v32 = vpop.xlane.xlu0 %31
  %v33 = vsel %vm16, %v29, 0.0
  %34 = vadd.xlane.f32.xlu0 %v33
  %v35 = vpop.xlane.xlu0 %34
  %v36 = vmul.f32 %v32, 0.032258064
  %v37 = vmul.f32 %v35, 0.032258064
  %v38 = vld [vmem:[%s1] sm:$0x1]
  %v40 = vlaneseq
  %v41 = vshrl.u32 %v40, 7
  %v42 = vsub.s32 0, %v41
  %v43 = vrot.slane %v38, %v42
  %v45 = vmul.f32 %v43, %v26
  %v46 = vmul.f32 %v43, %v27
  %v47 = vrsqrt.pop %v36
  %v48 = vmul.f32 %v36, %v47
  %vm49 = vcmp.eq.f32.partialorder %v36, inf
  %v50 = vsel %vm49, %v36, %v48
  %vm51 = vcmp.eq.f32.partialorder %v36, 0.0
  %v52 = vand.u32 %v36, 2147483648
  %v53 = vsel %vm51, %v52, %v50
  %v54 = vrsqrt.pop %v37
  %v55 = vmul.f32 %v37, %v54
  %vm56 = vcmp.eq.f32.partialorder %v37, inf
  %v57 = vsel %vm56, %v37, %v55
  %vm58 = vcmp.eq.f32.partialorder %v37, 0.0
  %v59 = vand.u32 %v37, 2147483648
  %v60 = vsel %vm58, %v59, %v57
  %v61 = vadd.f32 %v53, 1e-06
  %v62 = vadd.f32 %v60, 1e-06
  %v63 = vrcp.pop %v61
  %v64 = vmul.f32 %v45, %v63
  %v65 = vrcp.pop %v62
  %v66 = vmul.f32 %v46, %v65
  %v67 = vld [vmem:[%s2] sm:$0x1]
  %v69 = vlaneseq
  %v70 = vshrl.u32 %v69, 7
  %v71 = vsub.s32 0, %v70
  %v72 = vrot.slane %v67, %v71
  %v74 = vadd.f32 %v64, %v72
  %v75 = vadd.f32 %v66, %v72
  %76 = vst.msk [vmem:[%s3] sm:$0xff] %vm16, %v74
  %77 = vst.msk [vmem:[%s3 + $0x8] sm:$0xff] %vm16, %v75
  // Predicated region
  $region14: #{transformer_forward.40} parent=0 // pred_check
    _
  $region15: #{transformer_forward.40} parent=0 // pred_check_branch
    %79 = sbr.rel (0) target = $region17
  $region16: #{transformer_forward.40} parent=0 // pred_region
    _
  $region17: #{transformer_forward.40} parent=0 // pred_fallthru
    _
  // Predicated region
  $region18: #{transformer_forward.40} parent=0 // pred_check
    _
  $region19: #{transformer_forward.40} parent=0 // pred_check_branch
    %81 = sbr.rel (0) target = $region21
  $region20: #{transformer_forward.40} parent=0 // pred_region
    _
  $region21: #{transformer_forward.40} parent=0 // pred_fallthru
    _

// kernel: transformer_forward.44
$region0: #{transformer_forward.44}
  #allocation0 [shape = 'u32[]', space=smem, size = 0x4, offset = 0x4, fixed_abs, tag = 'smem constant byte address 0x4 - core index']
  #allocation1 [shape = 'u32[144,128]{1,0:T(1,128)}', space=vmem, size = 0x12000, scoped, tag = 'internal scratch']
  #allocation2 [shape = 'bf16[16,32]{1,0:T(16,128)(2,1)}', space=vmem, size = 0x1000, scoped, tag = 'scratch operand']
  %s0 = inlined_call_operand.vmem [shape: f32[16,32], index: 0, kind: input, shape index: {}]
  %s1 = inlined_call_operand.vmem [shape: f32[1,32], index: 1, kind: input, shape index: {}]
  %s2 = inlined_call_operand.vmem [shape: f32[1,32], index: 2, kind: input, shape index: {}]
  %s3 = inlined_call_operand.vmem [shape: bf16[32,32], index: 3, kind: input, shape index: {}]
  %s4 = inlined_call_operand.vmem [shape: f32[1,32], index: 4, kind: input, shape index: {}]
  %s5 = inlined_call_operand.vmem [shape: bf16[16,32], index: 5, kind: output, shape index: {}]
  %s6 = sld [smem:[#allocation0]]
  $region34: #{transformer_forward.44} parent=0
    _
  %s8 = ssub.s32 1, %s6
  %s9 = scalar_select 0, %s8, %s6
  // Predicated region
  $region2: #{transformer_forward.44} parent=0 // pred_check
    _
  $region3: #{transformer_forward.44} parent=0 // pred_check_branch
    %11 = sbr.rel (0) target = $region5
  $region4: #{transformer_forward.44} parent=0 // pred_region
    _
  $region5: #{transformer_forward.44} parent=0 // pred_fallthru
    _
  // Predicated region
  $region6: #{transformer_forward.44} parent=0 // pred_check
    _
  $region7: #{transformer_forward.44} parent=0 // pred_check_branch
    %13 = sbr.rel (0) target = $region9
  $region8: #{transformer_forward.44} parent=0 // pred_region
    _
  $region9: #{transformer_forward.44} parent=0 // pred_fallthru
    _
  // Predicated region
  $region10: #{transformer_forward.44} parent=0 // pred_check
    _
  $region11: #{transformer_forward.44} parent=0 // pred_check_branch
    %15 = sbr.rel (0) target = $region13
  $region12: #{transformer_forward.44} parent=0 // pred_region
    _
  $region13: #{transformer_forward.44} parent=0 // pred_fallthru
    _
  // Predicated region
  $region14: #{transformer_forward.44} parent=0 // pred_check
    _
  $region15: #{transformer_forward.44} parent=0 // pred_check_branch
    %17 = sbr.rel (0) target = $region17
  $region16: #{transformer_forward.44} parent=0 // pred_region
    _
  $region17: #{transformer_forward.44} parent=0 // pred_fallthru
    _
  // Predicated region
  $region18: #{transformer_forward.44} parent=0 // pred_check
    _
  $region19: #{transformer_forward.44} parent=0 // pred_check_branch
    %19 = sbr.rel (0) target = $region21
  $region20: #{transformer_forward.44} parent=0 // pred_region
    _
  $region21: #{transformer_forward.44} parent=0 // pred_fallthru
    _
  %p21 = scmp.eq.s32.totalorder 0, 0
  // Predicated region
  $region22: #{transformer_forward.44} parent=0 // pred_check
    %p22 = pneg %p21
  $region23: #{transformer_forward.44} parent=0 // pred_check_branch
    %24 = sbr.rel (%p22) target = $region25
  $region24: #{transformer_forward.44} parent=0 // pred_region
    %v25 = vld [vmem:[%s0] sm:$0xff]
    %v26 = vld [vmem:[%s0 + $0x8] sm:$0xff]
    %vm27 = vcmask 261120
    %v28 = vsel %vm27, %v25, 0.0
    %29 = vadd.xlane.f32.xlu0 %v28
    %v30 = vpop.xlane.xlu0 %29
    %v31 = vsel %vm27, %v26, 0.0
    %32 = vadd.xlane.f32.xlu0 %v31
    %v33 = vpop.xlane.xlu0 %32
    %v34 = vrcp.pop 32.0
    %v35 = vmul.f32 %v30, %v34
    %v36 = vmul.f32 %v33, %v34
    %v37 = vsub.f32 %v25, %v35
    %v38 = vsub.f32 %v26, %v36
    %v39 = vmul.f32 %v37, %v37
    %v40 = vmul.f32 %v38, %v38
    %v41 = vsel %vm27, %v39, 0.0
    %42 = vadd.xlane.f32.xlu0 %v41
    %v43 = vpop.xlane.xlu0 %42
    %v44 = vsel %vm27, %v40, 0.0
    %45 = vadd.xlane.f32.xlu0 %v44
    %v46 = vpop.xlane.xlu0 %45
    %v47 = vmul.f32 %v43, 0.032258064
    %v48 = vmul.f32 %v46, 0.032258064
    %v49 = vld [vmem:[%s1] sm:$0x1]
    %v51 = vlaneseq
    %v52 = vshrl.u32 %v51, 7
    %v53 = vsub.s32 0, %v52
    %v54 = vrot.slane %v49, %v53
    %v56 = vmul.f32 %v54, %v37
    %v57 = vmul.f32 %v54, %v38
    %v58 = vrsqrt.pop %v47
    %v59 = vmul.f32 %v47, %v58
    %vm60 = vcmp.eq.f32.partialorder %v47, inf
    %v61 = vsel %vm60, %v47, %v59
    %vm62 = vcmp.eq.f32.partialorder %v47, 0.0
    %v63 = vand.u32 %v47, 2147483648
    %v64 = vsel %vm62, %v63, %v61
    %v65 = vrsqrt.pop %v48
    %v66 = vmul.f32 %v48, %v65
    %vm67 = vcmp.eq.f32.partialorder %v48, inf
    %v68 = vsel %vm67, %v48, %v66
    %vm69 = vcmp.eq.f32.partialorder %v48, 0.0
    %v70 = vand.u32 %v48, 2147483648
    %v71 = vsel %vm69, %v70, %v68
    %v72 = vadd.f32 %v64, 1e-06
    %v73 = vadd.f32 %v71, 1e-06
    %v74 = vrcp.pop %v72
    %v75 = vmul.f32 %v56, %v74
    %v76 = vrcp.pop %v73
    %v77 = vmul.f32 %v57, %v76
    %v78 = vld [vmem:[%s2] sm:$0x1]
    %v80 = vlaneseq
    %v81 = vshrl.u32 %v80, 7
    %v82 = vsub.s32 0, %v81
    %v83 = vrot.slane %v78, %v82
    %v85 = vadd.f32 %v75, %v83
    %v86 = vadd.f32 %v77, %v83
    %v87 = vpack.c.bf16 %v86, %v85
    %88 = vst.msk [vmem:[#allocation2] sm:$0xff] %vm27, %v87
  $region25: #{transformer_forward.44} parent=0 // pred_fallthru
    _
  %v89 = vld [vmem:[#allocation2] sm:$0xff]
  %v90 = vld [vmem:[%s3] sm:$0xf]
  %v91 = vld [vmem:[%s3 + $0x4] sm:$0xf]
  %v92 = vld [vmem:[%s3 + $0x8] sm:$0xf]
  %v93 = vld [vmem:[%s3 + $0xc] sm:$0xf]
  %v94 = vld [vmem:[%s4] sm:$0x1]
  %v96 = vlaneseq
  %v97 = vshrl.u32 %v96, 7
  %v98 = vsub.s32 0, %v97
  %v99 = vrot.slane %v94, %v98
  %v105 = vunpack.c.l.b16 %v90
  %v106 = vunpack.c.l.b16 %v91
  %v107 = vunpack.c.l.b16 %v92
  %v108 = vunpack.c.l.b16 %v93
  %v109 = vpack.c.b16 %v106, %v105
  %v110 = vpack.c.b16 %v108, %v107
  %vm113 = vcmask 261120
  %v115 = vsel %vm113, %v89, 0
  %117 = vmatprep.subr.bf16.mxu0 0
  %118 = vmatpush1.bf16.msra.mxu0 %v109
  %119 = vmatprep.subr.bf16.mxu0 0
  %120 = vmatpush1.bf16.msra.mxu0 %v110
  %121 = vmatprep.subr.bf16.mxu0 0
  %122 = vmatpush1.bf16.msra.mxu0 0
  %123 = vmatprep.subr.bf16.mxu0 0
  %124 = vmatpush1.bf16.msra.mxu0 0
  %125 = vmatprep.subr.bf16.mxu0 0
  %126 = vmatpush1.bf16.msra.mxu0 0
  %127 = vmatprep.subr.bf16.mxu0 0
  %128 = vmatpush1.bf16.msra.mxu0 0
  %129 = vmatprep.subr.bf16.mxu0 0
  %130 = vmatpush1.bf16.msra.mxu0 0
  %131 = vmatprep.subr.bf16.mxu0 0
  %132 = vmatpush1.bf16.msra.mxu0 0
  %133 = vmatprep.subr.bf16.mxu0 0
  %134 = vmatpush1.bf16.msra.mxu0 0
  %135 = vmatprep.subr.bf16.mxu0 0
  %136 = vmatpush1.bf16.msra.mxu0 0
  %137 = vmatprep.subr.bf16.mxu0 0
  %138 = vmatpush1.bf16.msra.mxu0 0
  %139 = vmatprep.subr.bf16.mxu0 0
  %140 = vmatpush1.bf16.msra.mxu0 0
  %141 = vmatprep.subr.bf16.mxu0 0
  %142 = vmatpush1.bf16.msra.mxu0 0
  %143 = vmatprep.subr.bf16.mxu0 0
  %144 = vmatpush1.bf16.msra.mxu0 0
  %145 = vmatprep.subr.bf16.mxu0 0
  %146 = vmatpush1.bf16.msra.mxu0 0
  %147 = vmatprep.subr.bf16.mxu0 0
  %148 = vmatpush1.bf16.msra.mxu0 0
  %149 = vmatprep.mubr.bf16.mxu0 0
  %150 = vmatmul.mubr.bf16.gmra.mrb[0].mxu0 %v115
  %v151 = vpop.f32.mrb[0].mxu0
  %v152 = vadd.f32 %v99, %v151
  %v153 = vpop.f32.mrb[0].mxu0
  %v154 = vpop.f32.mrb[0].mxu0
  %v155 = vadd.f32 %v99, %v154
  %v156 = vpop.f32.mrb[0].mxu0
  %157 = vdwg.mxu0
  %v158 = vpack.c.bf16 %v155, %v152
  %v160 = vunpack.c.l.b16 %v158
  %v161 = vunpack.c.h.b16 %v158
  %v162 = vpack.c.b16 %v160, %v160
  %v163 = vpack.c.b16 %v161, %v161
  %vm166 = vcmask 257024
  %167 = vst.msk [vmem:[%s5] sm:$0xf] %vm166, %v162
  %168 = vst.msk [vmem:[%s5 + $0x4] sm:$0xf] %vm166, %v163
  // Predicated region
  $region26: #{transformer_forward.44} parent=0 // pred_check
    _
  $region27: #{transformer_forward.44} parent=0 // pred_check_branch
    %170 = sbr.rel (0) target = $region29
  $region28: #{transformer_forward.44} parent=0 // pred_region
    _
  $region29: #{transformer_forward.44} parent=0 // pred_fallthru
    _
  // Predicated region
  $region30: #{transformer_forward.44} parent=0 // pred_check
    _
  $region31: #{transformer_forward.44} parent=0 // pred_check_branch
    %172 = sbr.rel (0) target = $region33
  $region32: #{transformer_forward.44} parent=0 // pred_region
    _
  $region33: #{transformer_forward.44} parent=0 // pred_fallthru
    _

// kernel: transformer_forward.59
$region0: #{transformer_forward.59}
  #allocation0 [shape = 'u32[]', space=smem, size = 0x4, offset = 0x4, fixed_abs, tag = 'smem constant byte address 0x4 - core index']
  #allocation1 [shape = 'u32[144,128]{1,0:T(1,128)}', space=vmem, size = 0x12000, scoped, tag = 'internal scratch']
  #allocation2 [shape = 'bf16[16,32]{1,0:T(16,128)(2,1)}', space=vmem, size = 0x1000, scoped, tag = 'scratch operand']
  %s0 = inlined_call_operand.vmem [shape: f32[16,32], index: 0, kind: input, shape index: {}]
  %s1 = inlined_call_operand.vmem [shape: f32[1,32], index: 1, kind: input, shape index: {}]
  %s2 = inlined_call_operand.vmem [shape: f32[1,32], index: 2, kind: input, shape index: {}]
  %s3 = inlined_call_operand.vmem [shape: bf16[32,60], index: 3, kind: input, shape index: {}]
  %s4 = inlined_call_operand.vmem [shape: f32[1,60], index: 4, kind: input, shape index: {}]
  %s5 = inlined_call_operand.hbm [shape: f32[16,60], index: 5, kind: output, shape index: {}]
  %s6 = sld [smem:[#allocation0]]
  $region34: #{transformer_forward.59} parent=0
    _
  %s8 = ssub.s32 1, %s6
  %s9 = scalar_select 0, %s8, %s6
  $region1: #{transformer_forward.59} parent=0
    #allocation3 [shape = 'u8[8192]{0}', space=vmem, size = 0x2000, scoped, tag = 'output window, operand 0, single buffered']
    #allocation4 [shape = 's32[1]{0}', space=sflag, size = 0x4, scoped, tag = 'scoped memory for transformer_forward.59']
    %10 = vsyncpa [#allocation4], 0
    // Predicated region
    $region2: #{transformer_forward.59} parent=1 // pred_check
      _
    $region3: #{transformer_forward.59} parent=1 // pred_check_branch
      %12 = sbr.rel (0) target = $region5
    $region4: #{transformer_forward.59} parent=1 // pred_region
      _
    $region5: #{transformer_forward.59} parent=1 // pred_fallthru
      _
    // Predicated region
    $region6: #{transformer_forward.59} parent=1 // pred_check
      _
    $region7: #{transformer_forward.59} parent=1 // pred_check_branch
      %14 = sbr.rel (0) target = $region9
    $region8: #{transformer_forward.59} parent=1 // pred_region
      _
    $region9: #{transformer_forward.59} parent=1 // pred_fallthru
      _
    // Predicated region
    $region10: #{transformer_forward.59} parent=1 // pred_check
      _
    $region11: #{transformer_forward.59} parent=1 // pred_check_branch
      %16 = sbr.rel (0) target = $region13
    $region12: #{transformer_forward.59} parent=1 // pred_region
      _
    $region13: #{transformer_forward.59} parent=1 // pred_fallthru
      _
    // Predicated region
    $region14: #{transformer_forward.59} parent=1 // pred_check
      _
    $region15: #{transformer_forward.59} parent=1 // pred_check_branch
      %18 = sbr.rel (0) target = $region17
    $region16: #{transformer_forward.59} parent=1 // pred_region
      _
    $region17: #{transformer_forward.59} parent=1 // pred_fallthru
      _
    // Predicated region
    $region18: #{transformer_forward.59} parent=1 // pred_check
      _
    $region19: #{transformer_forward.59} parent=1 // pred_check_branch
      %20 = sbr.rel (0) target = $region21
    $region20: #{transformer_forward.59} parent=1 // pred_region
      _
    $region21: #{transformer_forward.59} parent=1 // pred_fallthru
      _
    %p22 = scmp.eq.s32.totalorder 0, 0
    // Predicated region
    $region22: #{transformer_forward.59} parent=1 // pred_check
      %p23 = pneg %p22
    $region23: #{transformer_forward.59} parent=1 // pred_check_branch
      %25 = sbr.rel (%p23) target = $region25
    $region24: #{transformer_forward.59} parent=1 // pred_region
      %v26 = vld [vmem:[%s0] sm:$0xff]
      %v27 = vld [vmem:[%s0 + $0x8] sm:$0xff]
      %vm28 = vcmask 261120
      %v29 = vsel %vm28, %v26, 0.0
      %30 = vadd.xlane.f32.xlu0 %v29
      %v31 = vpop.xlane.xlu0 %30
      %v32 = vsel %vm28, %v27, 0.0
      %33 = vadd.xlane.f32.xlu0 %v32
      %v34 = vpop.xlane.xlu0 %33
      %v35 = vrcp.pop 32.0
      %v36 = vmul.f32 %v31, %v35
      %v37 = vmul.f32 %v34, %v35
      %v38 = vsub.f32 %v26, %v36
      %v39 = vsub.f32 %v27, %v37
      %v40 = vmul.f32 %v38, %v38
      %v41 = vmul.f32 %v39, %v39
      %v42 = vsel %vm28, %v40, 0.0
      %43 = vadd.xlane.f32.xlu0 %v42
      %v44 = vpop.xlane.xlu0 %43
      %v45 = vsel %vm28, %v41, 0.0
      %46 = vadd.xlane.f32.xlu0 %v45
      %v47 = vpop.xlane.xlu0 %46
      %v48 = vmul.f32 %v44, 0.032258064
      %v49 = vmul.f32 %v47, 0.032258064
      %v50 = vld [vmem:[%s1] sm:$0x1]
      %v52 = vlaneseq
      %v53 = vshrl.u32 %v52, 7
      %v54 = vsub.s32 0, %v53
      %v55 = vrot.slane %v50, %v54
      %v57 = vmul.f32 %v55, %v38
      %v58 = vmul.f32 %v55, %v39
      %v59 = vrsqrt.pop %v48
      %v60 = vmul.f32 %v48, %v59
      %vm61 = vcmp.eq.f32.partialorder %v48, inf
      %v62 = vsel %vm61, %v48, %v60
      %vm63 = vcmp.eq.f32.partialorder %v48, 0.0
      %v64 = vand.u32 %v48, 2147483648
      %v65 = vsel %vm63, %v64, %v62
      %v66 = vrsqrt.pop %v49
      %v67 = vmul.f32 %v49, %v66
      %vm68 = vcmp.eq.f32.partialorder %v49, inf
      %v69 = vsel %vm68, %v49, %v67
      %vm70 = vcmp.eq.f32.partialorder %v49, 0.0
      %v71 = vand.u32 %v49, 2147483648
      %v72 = vsel %vm70, %v71, %v69
      %v73 = vadd.f32 %v65, 1e-06
      %v74 = vadd.f32 %v72, 1e-06
      %v75 = vrcp.pop %v73
      %v76 = vmul.f32 %v57, %v75
      %v77 = vrcp.pop %v74
      %v78 = vmul.f32 %v58, %v77
      %v79 = vld [vmem:[%s2] sm:$0x1]
      %v81 = vlaneseq
      %v82 = vshrl.u32 %v81, 7
      %v83 = vsub.s32 0, %v82
      %v84 = vrot.slane %v79, %v83
      %v86 = vadd.f32 %v76, %v84
      %v87 = vadd.f32 %v78, %v84
      %v88 = vpack.c.bf16 %v87, %v86
      %89 = vst.msk [vmem:[#allocation2] sm:$0xff] %vm28, %v88
    $region25: #{transformer_forward.59} parent=1 // pred_fallthru
      _
    %v90 = vld [vmem:[#allocation2] sm:$0xff]
    %v91 = vld [vmem:[%s3] sm:$0xf]
    %v92 = vld [vmem:[%s3 + $0x4] sm:$0xf]
    %v93 = vld [vmem:[%s3 + $0x8] sm:$0xf]
    %v94 = vld [vmem:[%s3 + $0xc] sm:$0xf]
    %v95 = vld [vmem:[%s4] sm:$0x1]
    %v97 = vlaneseq
    %v98 = vshrl.u32 %v97, 7
    %v99 = vsub.s32 0, %v98
    %v100 = vrot.slane %v95, %v99
    %v106 = vunpack.c.l.b16 %v91
    %v107 = vunpack.c.l.b16 %v92
    %v108 = vunpack.c.l.b16 %v93
    %v109 = vunpack.c.l.b16 %v94
    %v110 = vpack.c.b16 %v107, %v106
    %v111 = vpack.c.b16 %v109, %v108
    %vm114 = vcmask 261120
    %v116 = vsel %vm114, %v90, 0
    %118 = vmatprep.subr.bf16.mxu0 0
    %119 = vmatpush1.bf16.msra.mxu0 %v110
    %120 = vmatprep.subr.bf16.mxu0 0
    %121 = vmatpush1.bf16.msra.mxu0 %v111
    %122 = vmatprep.subr.bf16.mxu0 0
    %123 = vmatpush1.bf16.msra.mxu0 0
    %124 = vmatprep.subr.bf16.mxu0 0
    %125 = vmatpush1.bf16.msra.mxu0 0
    %126 = vmatprep.subr.bf16.mxu0 0
    %127 = vmatpush1.bf16.msra.mxu0 0
    %128 = vmatprep.subr.bf16.mxu0 0
    %129 = vmatpush1.bf16.msra.mxu0 0
    %130 = vmatprep.subr.bf16.mxu0 0
    %131 = vmatpush1.bf16.msra.mxu0 0
    %132 = vmatprep.subr.bf16.mxu0 0
    %133 = vmatpush1.bf16.msra.mxu0 0
    %134 = vmatprep.subr.bf16.mxu0 0
    %135 = vmatpush1.bf16.msra.mxu0 0
    %136 = vmatprep.subr.bf16.mxu0 0
    %137 = vmatpush1.bf16.msra.mxu0 0
    %138 = vmatprep.subr.bf16.mxu0 0
    %139 = vmatpush1.bf16.msra.mxu0 0
    %140 = vmatprep.subr.bf16.mxu0 0
    %141 = vmatpush1.bf16.msra.mxu0 0
    %142 = vmatprep.subr.bf16.mxu0 0
    %143 = vmatpush1.bf16.msra.mxu0 0
    %144 = vmatprep.subr.bf16.mxu0 0
    %145 = vmatpush1.bf16.msra.mxu0 0
    %146 = vmatprep.subr.bf16.mxu0 0
    %147 = vmatpush1.bf16.msra.mxu0 0
    %148 = vmatprep.subr.bf16.mxu0 0
    %149 = vmatpush1.bf16.msra.mxu0 0
    %150 = vmatprep.mubr.bf16.mxu0 0
    %151 = vmatmul.mubr.bf16.gmra.mrb[0].mxu0 %v116
    %v152 = vpop.f32.mrb[0].mxu0
    %v153 = vadd.f32 %v100, %v152
    %v154 = vpop.f32.mrb[0].mxu0
    %v155 = vpop.f32.mrb[0].mxu0
    %v156 = vadd.f32 %v100, %v155
    %v157 = vpop.f32.mrb[0].mxu0
    %158 = vdwg.mxu0
    %vm159 = vcmask 490496
    %160 = vst.msk [vmem:[#allocation3] sm:$0xff] %vm159, %v153
    %161 = vst.msk [vmem:[#allocation3 + $0x8] sm:$0xff] %vm159, %v156
    // Predicated region
    $region26: #{transformer_forward.59} parent=1 // pred_check
      _
    $region27: #{transformer_forward.59} parent=1 // pred_check_branch
      %163 = sbr.rel (0) target = $region29
    $region28: #{transformer_forward.59} parent=1 // pred_region
      %s165 = ssub.s32 256, 256
      %166 = vsyncadd [#allocation4], %s165
      %s167 = sshll.u32 [#allocation3], 4
      %s168 = int_to_ptr.vmem [resolvable:$true] %s167
      %173 = dma.vmem_to_hbm [thread:$0]  %s168, 256, %s5, [#allocation4], 128, 128, 8
    $region29: #{transformer_forward.59} parent=1 // pred_fallthru
      _
    // Predicated region
    $region30: #{transformer_forward.59} parent=1 // pred_check
      _
    $region31: #{transformer_forward.59} parent=1 // pred_check_branch
      %175 = sbr.rel (0) target = $region33
    $region32: #{transformer_forward.59} parent=1 // pred_region
      %176 = dma.done [#allocation4], 256
    $region33: #{transformer_forward.59} parent=1 // pred_fallthru
      _
    %177 = vsyncpa [#allocation4], 1

// kernel: transformer_forward.42
$region0: #{transformer_forward.42}
  #allocation0 [shape = 'u32[]', space=smem, size = 0x4, offset = 0x4, fixed_abs, tag = 'smem constant byte address 0x4 - core index']
  #allocation1 [shape = 'u32[144,128]{1,0:T(1,128)}', space=vmem, size = 0x12000, scoped, tag = 'internal scratch']
  %s0 = inlined_call_operand.vmem [shape: bf16[16,96], index: 0, kind: input, shape index: {}]
  %s1 = inlined_call_operand.vmem [shape: f32[2,8,8], index: 1, kind: input, shape index: {}]
  %s2 = inlined_call_operand.vmem [shape: bf16[16,32], index: 2, kind: output, shape index: {}]
  %s3 = sld [smem:[#allocation0]]
  $region41: #{transformer_forward.42} parent=0
    _
  %s5 = ssub.s32 1, %s3
  %s6 = scalar_select 0, %s5, %s3
  loop: start=0, step=1, limit=4
  $region2: #{transformer_forward.42} parent=0 // loop_pre_header
    _
  $region3: #{transformer_forward.42} parent=0 // loop_header
    %s8 = sphi 0, %s12
    %p9 = scmp.ge.s32.totalorder %s8, 4
    %s18 = sphi 0, %s20
    %s21 = sphi 0, %s18
    %s22 = sphi 0, %s21
    %s38 = sphi 0, %s22
    %s44 = sphi 0, %s46
    %s47 = sphi 0, %s44
    %s48 = sphi 0, %s47
    %s64 = sphi 0, %s48
    %s70 = sphi 0, %s72
    %s73 = sphi 0, %s70
    %s74 = sphi 0, %s73
    %s90 = sphi 0, %s74
  $region4: #{transformer_forward.42} parent=0 // loop_header_branch
    %11 = sbr.rel (%p9) target = $region8
  $region5: #{transformer_forward.42} parent=0 // loop_body
    %s13 = ssub.s32 %s8, 1
    %s14 = ssub.s32 %s8, 2
    %s15 = sadd.s32 %s8, 1
    %s16 = ssub.s32 %s8, %s15
    %p17 = scmp.eq.s32.totalorder %s16, 0
    %s19 = sadd.s32 %s18, 1
    %s20 = scalar_select %p17, %s18, %s19
    %p23 = pneg %p17
    %p24 = scmp.eq.s32.totalorder %s8, 1
    %p25 = por %p23, %p24
    %p26 = scmp.ne.s32.totalorder %s18, %s21
    %p27 = scmp.eq.s32.totalorder %s8, 0
    %p28 = por %p26, %p27
    %p29 = scmp.ne.s32.totalorder %s18, %s21
    %p30 = scmp.eq.s32.totalorder %s13, 1
    %p31 = por %p29, %p30
    %p32 = scmp.ne.s32.totalorder %s21, %s22
    %p33 = scmp.eq.s32.totalorder %s13, 0
    %p34 = por %p32, %p33
    %p35 = scmp.ne.s32.totalorder %s21, %s22
    %p36 = scmp.eq.s32.totalorder %s14, 1
    %p37 = por %p35, %p36
    %p39 = scmp.ne.s32.totalorder %s22, %s38
    %p40 = scmp.eq.s32.totalorder %s14, 0
    %p41 = por %p39, %p40
    %s42 = ssub.s32 %s8, %s15
    %p43 = scmp.eq.s32.totalorder %s42, 0
    %s45 = sadd.s32 %s44, 1
    %s46 = scalar_select %p43, %s44, %s45
    %p49 = pneg %p43
    %p50 = scmp.eq.s32.totalorder %s8, 1
    %p51 = por %p49, %p50
    %p52 = scmp.ne.s32.totalorder %s44, %s47
    %p53 = scmp.eq.s32.totalorder %s8, 0
    %p54 = por %p52, %p53
    %p55 = scmp.ne.s32.totalorder %s44, %s47
    %p56 = scmp.eq.s32.totalorder %s13, 1
    %p57 = por %p55, %p56
    %p58 = scmp.ne.s32.totalorder %s47, %s48
    %p59 = scmp.eq.s32.totalorder %s13, 0
    %p60 = por %p58, %p59
    %p61 = scmp.ne.s32.totalorder %s47, %s48
    %p62 = scmp.eq.s32.totalorder %s14, 1
    %p63 = por %p61, %p62
    %p65 = scmp.ne.s32.totalorder %s48, %s64
    %p66 = scmp.eq.s32.totalorder %s14, 0
    %p67 = por %p65, %p66
    %s68 = ssub.s32 %s8, %s15
    %p69 = scmp.eq.s32.totalorder %s68, 0
    %s71 = sadd.s32 %s70, 1
    %s72 = scalar_select %p69, %s70, %s71
    %p75 = pneg %p69
    %p76 = scmp.eq.s32.totalorder %s8, 1
    %p77 = por %p75, %p76
    %p78 = scmp.ne.s32.totalorder %s70, %s73
    %p79 = scmp.eq.s32.totalorder %s8, 0
    %p80 = por %p78, %p79
    %p81 = scmp.ne.s32.totalorder %s70, %s73
    %p82 = scmp.eq.s32.totalorder %s13, 1
    %p83 = por %p81, %p82
    %p84 = scmp.ne.s32.totalorder %s73, %s74
    %p85 = scmp.eq.s32.totalorder %s13, 0
    %p86 = por %p84, %p85
    %p87 = scmp.ne.s32.totalorder %s73, %s74
    %p88 = scmp.eq.s32.totalorder %s14, 1
    %p89 = por %p87, %p88
    %p91 = scmp.ne.s32.totalorder %s74, %s90
    %p92 = scmp.eq.s32.totalorder %s14, 0
    %p93 = por %p91, %p92
    %p94 = scmp.le.s32.totalorder 1, %s8
    %p95 = scmp.lt.s32.totalorder %s8, 3
    %p96 = pnand %p94, %p95
    %p97 = pneg %p96
    // Predicated region
    $region9: #{transformer_forward.42} parent=5 // pred_check
      _
    $region10: #{transformer_forward.42} parent=5 // pred_check_branch
      %99 = sbr.rel (%p96) target = $region12
    $region11: #{transformer_forward.42} parent=5 // pred_region
      %s100 = ssub.s32 %s8, 1
    $region12: #{transformer_forward.42} parent=5 // pred_fallthru
      _
    %p101 = scmp.lt.s32.totalorder %s8, 2
    // Predicated region
    $region13: #{transformer_forward.42} parent=5 // pred_check
      %p102 = pneg %p101
    $region14: #{transformer_forward.42} parent=5 // pred_check_branch
      %104 = sbr.rel (%p102) target = $region16
    $region15: #{transformer_forward.42} parent=5 // pred_region
      // Predicated region
      $region17: #{transformer_forward.42} parent=15 // pred_check
        %p105 = pneg %p28
      $region18: #{transformer_forward.42} parent=15 // pred_check_branch
        %107 = sbr.rel (%p105) target = $region20
      $region19: #{transformer_forward.42} parent=15 // pred_region
        %p108 = scmp.lt.s32.totalorder %s8, 1
        %s109 = scalar_select %p108, %s8, 1
        %s110 = smul.addr %s109, 4
        %s111 = scalar_lea.vmem %s0, %s110
      $region20: #{transformer_forward.42} parent=15 // pred_fallthru
        _
      // Predicated region
      $region21: #{transformer_forward.42} parent=15 // pred_check
        %p112 = pneg %p54
      $region22: #{transformer_forward.42} parent=15 // pred_check_branch
        %114 = sbr.rel (%p112) target = $region24
      $region23: #{transformer_forward.42} parent=15 // pred_region
        %p115 = scmp.lt.s32.totalorder %s8, 1
        %s116 = scalar_select %p115, %s8, 1
        %s117 = smul.addr %s116, 8
        %s118 = scalar_lea.vmem %s1, %s117
      $region24: #{transformer_forward.42} parent=15 // pred_fallthru
        _
    $region16: #{transformer_forward.42} parent=5 // pred_fallthru
      _
    %p119 = scmp.le.s32.totalorder 1, %s8
    %p120 = scmp.lt.s32.totalorder %s8, 3
    %p121 = pnand %p119, %p120
    %p122 = pneg %p121
    // Predicated region
    $region25: #{transformer_forward.42} parent=5 // pred_check
      _
    $region26: #{transformer_forward.42} parent=5 // pred_check_branch
      %124 = sbr.rel (%p121) target = $region28
    $region27: #{transformer_forward.42} parent=5 // pred_region
      %s125 = ssub.s32 %s8, 1
      %p126 = scmp.lt.s32.totalorder %s13, 1
      %s127 = scalar_select %p126, %s13, 1
      %s128 = smul.addr %s127, 4
      %s129 = scalar_lea.vmem %s0, %s128
      %p130 = pneg %p34
      %p131 = pneg %p31
      %p132 = scmp.lt.s32.totalorder %s13, 1
      %s133 = scalar_select %p132, %s13, 1
      %s134 = smul.addr %s133, 8
      %s135 = scalar_lea.vmem %s1, %s134
      %p136 = pneg %p60
      %p137 = pneg %p57
      %p138 = pneg %p86
      %p139 = pneg %p83
      %p140 = scmp.lt.s32.totalorder %s13, 1
      %s141 = scalar_select %p140, %s13, 1
      %s142 = smul.addr %s141, 4
      %s143 = scalar_lea.vmem %s2, %s142
      %p144 = scmp.lt.s32.totalorder %s13, 1
      %s145 = scalar_select %p144, %s13, 1
      %s146 = smul.addr %s145, 4
      %s147 = scalar_lea.vmem %s0, %s146
      %p148 = scmp.lt.s32.totalorder %s13, 1
      %s149 = scalar_select %p148, %s13, 1
      %s150 = smul.addr %s149, 8
      %s151 = scalar_lea.vmem %s1, %s150
      %p152 = scmp.lt.s32.totalorder %s13, 1
      %s153 = scalar_select %p152, %s13, 1
      %s154 = smul.addr %s153, 4
      %s155 = scalar_lea.vmem %s2, %s154
      %v157 = vld [vmem:[%s151] sm:$0xff]
      %v158 = vld [vmem:[%s147] sm:$0xf]
      %v160 = vunpack.c.l.b16 %v158
      %v161 = vpack.c.b16 %v160, %v160
      %162 = vrot.lane.b32.xlu0 %v161, 96
      %v163 = vpop.permute.xlu0 %162
      %vm164 = vcmask 64512
      %v166 = vsel %vm164, %v158, 0
      %v169 = vsel %vm164, %v163, 0
      %171 = vmatprep.subr.bf16.mxu0 0
      %172 = vmatpush1.bf16.xpose.msra.mxu0 %v169
      %173 = vmatprep.subr.bf16.mxu0 0
      %174 = vmatpush1.bf16.xpose.msra.mxu0 0
      %175 = vmatprep.subr.bf16.mxu0 0
      %176 = vmatpush1.bf16.xpose.msra.mxu0 0
      %177 = vmatprep.subr.bf16.mxu0 0
      %178 = vmatpush1.bf16.xpose.msra.mxu0 0
      %179 = vmatprep.subr.bf16.mxu0 0
      %180 = vmatpush1.bf16.xpose.msra.mxu0 0
      %181 = vmatprep.subr.bf16.mxu0 0
      %182 = vmatpush1.bf16.xpose.msra.mxu0 0
      %183 = vmatprep.subr.bf16.mxu0 0
      %184 = vmatpush1.bf16.xpose.msra.mxu0 0
      %185 = vmatprep.subr.bf16.mxu0 0
      %186 = vmatpush1.bf16.xpose.msra.mxu0 0
      %187 = vmatprep.subr.bf16.mxu0 0
      %188 = vmatpush1.bf16.xpose.msra.mxu0 0
      %189 = vmatprep.subr.bf16.mxu0 0
      %190 = vmatpush1.bf16.xpose.msra.mxu0 0
      %191 = vmatprep.subr.bf16.mxu0 0
      %192 = vmatpush1.bf16.xpose.msra.mxu0 0
      %193 = vmatprep.subr.bf16.mxu0 0
      %194 = vmatpush1.bf16.xpose.msra.mxu0 0
      %195 = vmatprep.subr.bf16.mxu0 0
      %196 = vmatpush1.bf16.xpose.msra.mxu0 0
      %197 = vmatprep.subr.bf16.mxu0 0
      %198 = vmatpush1.bf16.xpose.msra.mxu0 0
      %199 = vmatprep.subr.bf16.mxu0 0
      %200 = vmatpush1.bf16.xpose.msra.mxu0 0
      %201 = vmatprep.subr.bf16.mxu0 0
      %202 = vmatpush1.bf16.xpose.msra.mxu0 0
      %203 = vmatprep.mubr.bf16.mxu0 0
      %204 = vmatmul.mubr.bf16.gmra.mrb[0].mxu0 %v166
      %v205 = vpop.f32.mrb[0].mxu0
      %v206 = vadd.f32 0.0, %v205
      %v207 = vpop.f32.mrb[0].mxu0
      %v208 = vpop.f32.mrb[0].mxu0
      %v209 = vpop.f32.mrb[0].mxu0
      %210 = vdwg.mxu0
      %v211 = vmul.f32 %v206, 0.35355338
      %vm212 = vcmp.eq.f32.partialorder %v157, 0.0
      %v213 = vsel %vm212, -1e+09, %v211
      %v214 = vsel %vm164, %v213, -inf
      %215 = vmax.xlane.f32.xlu0 %v214
      %v216 = vpop.xlane.xlu0 %215
      %v217 = vsub.f32 %v213, %v216
      %v218 = vmul.f32 %v217, 1.442695
      %v219 = vpow.pop %v218
      %v220 = vsel %vm164, %v219, 0.0
      %221 = vadd.xlane.f32.xlu0 %v220
      %v222 = vpop.xlane.xlu0 %221
      %v223 = vrcp.pop %v222
      %v224 = vmul.f32 %v219, %v223
      %v225 = vpack.c.bf16 %v224, %v224
      %226 = vrot.lane.b32.xlu0 %v161, 64
      %v227 = vpop.permute.xlu0 %226
      %v229 = vsel %vm164, %v225, 0
      %vm231 = vcmask 1043456
      %v233 = vsel %vm231, %v227, 0
      %235 = vmatprep.subr.bf16.mxu0 0
      %236 = vmatpush1.bf16.msra.mxu0 %v233
      %237 = vmatprep.subr.bf16.mxu0 0
      %238 = vmatpush1.bf16.msra.mxu0 0
      %239 = vmatprep.subr.bf16.mxu0 0
      %240 = vmatpush1.bf16.msra.mxu0 0
      %241 = vmatprep.subr.bf16.mxu0 0
      %242 = vmatpush1.bf16.msra.mxu0 0
      %243 = vmatprep.subr.bf16.mxu0 0
      %244 = vmatpush1.bf16.msra.mxu0 0
      %245 = vmatprep.subr.bf16.mxu0 0
      %246 = vmatpush1.bf16.msra.mxu0 0
      %247 = vmatprep.subr.bf16.mxu0 0
      %248 = vmatpush1.bf16.msra.mxu0 0
      %249 = vmatprep.subr.bf16.mxu0 0
      %250 = vmatpush1.bf16.msra.mxu0 0
      %251 = vmatprep.subr.bf16.mxu0 0
      %252 = vmatpush1.bf16.msra.mxu0 0
      %253 = vmatprep.subr.bf16.mxu0 0
      %254 = vmatpush1.bf16.msra.mxu0 0
      %255 = vmatprep.subr.bf16.mxu0 0
      %256 = vmatpush1.bf16.msra.mxu0 0
      %257 = vmatprep.subr.bf16.mxu0 0
      %258 = vmatpush1.bf16.msra.mxu0 0
      %259 = vmatprep.subr.bf16.mxu0 0
      %260 = vmatpush1.bf16.msra.mxu0 0
      %261 = vmatprep.subr.bf16.mxu0 0
      %262 = vmatpush1.bf16.msra.mxu0 0
      %263 = vmatprep.subr.bf16.mxu0 0
      %264 = vmatpush1.bf16.msra.mxu0 0
      %265 = vmatprep.subr.bf16.mxu0 0
      %266 = vmatpush1.bf16.msra.mxu0 0
      %267 = vmatprep.mubr.bf16.mxu0 0
      %268 = vmatmul.mubr.bf16.gmra.mrb[0].mxu0 %v229
      %v269 = vpop.f32.mrb[0].mxu0
      %v270 = vadd.f32 0.0, %v269
      %v271 = vpop.f32.mrb[0].mxu0
      %v272 = vpop.f32.mrb[0].mxu0
      %v273 = vpop.f32.mrb[0].mxu0
      %274 = vdwg.mxu0
      %275 = vrot.lane.b32.xlu0 %v161, 120
      %v276 = vpop.permute.xlu0 %275
      %277 = vrot.lane.b32.xlu0 %v161, 88
      %v278 = vpop.permute.xlu0 %277
      %v280 = vsel %vm164, %v276, 0
      %v283 = vsel %vm164, %v278, 0
      %285 = vmatprep.subr.bf16.mxu0 0
      %286 = vmatpush1.bf16.xpose.msra.mxu0 %v283
      %287 = vmatprep.subr.bf16.mxu0 0
      %288 = vmatpush1.bf16.xpose.msra.mxu0 0
      %289 = vmatprep.subr.bf16.mxu0 0
      %290 = vmatpush1.bf16.xpose.msra.mxu0 0
      %291 = vmatprep.subr.bf16.mxu0 0
      %292 = vmatpush1.bf16.xpose.msra.mxu0 0
      %293 = vmatprep.subr.bf16.mxu0 0
      %294 = vmatpush1.bf16.xpose.msra.mxu0 0
      %295 = vmatprep.subr.bf16.mxu0 0
      %296 = vmatpush1.bf16.xpose.msra.mxu0 0
      %297 = vmatprep.subr.bf16.mxu0 0
      %298 = vmatpush1.bf16.xpose.msra.mxu0 0
      %299 = vmatprep.subr.bf16.mxu0 0
      %300 = vmatpush1.bf16.xpose.msra.mxu0 0
      %301 = vmatprep.subr.bf16.mxu0 0
      %302 = vmatpush1.bf16.xpose.msra.mxu0 0
      %303 = vmatprep.subr.bf16.mxu0 0
      %304 = vmatpush1.bf16.xpose.msra.mxu0 0
      %305 = vmatprep.subr.bf16.mxu0 0
      %306 = vmatpush1.bf16.xpose.msra.mxu0 0
      %307 = vmatprep.subr.bf16.mxu0 0
      %308 = vmatpush1.bf16.xpose.msra.mxu0 0
      %309 = vmatprep.subr.bf16.mxu0 0
      %310 = vmatpush1.bf16.xpose.msra.mxu0 0
      %311 = vmatprep.subr.bf16.mxu0 0
      %312 = vmatpush1.bf16.xpose.msra.mxu0 0
      %313 = vmatprep.subr.bf16.mxu0 0
      %314 = vmatpush1.bf16.xpose.msra.mxu0 0
      %315 = vmatprep.subr.bf16.mxu0 0
      %316 = vmatpush1.bf16.xpose.msra.mxu0 0
      %317 = vmatprep.mubr.bf16.mxu0 0
      %318 = vmatmul.mubr.bf16.gmra.mrb[0].mxu0 %v280
      %v319 = vpop.f32.mrb[0].mxu0
      %v320 = vadd.f32 0.0, %v319
      %v321 = vpop.f32.mrb[0].mxu0
      %v322 = vpop.f32.mrb[0].mxu0
      %v323 = vpop.f32.mrb[0].mxu0
      %324 = vdwg.mxu0
      %v325 = vmul.f32 %v320, 0.35355338
      %v326 = vsel %vm212, -1e+09, %v325
      %v327 = vsel %vm164, %v326, -inf
      %328 = vmax.xlane.f32.xlu0 %v327
      %v329 = vpop.xlane.xlu0 %328
      %v330 = vsub.f32 %v326, %v329
      %v331 = vmul.f32 %v330, 1.442695
      %v332 = vpow.pop %v331
      %v333 = vsel %vm164, %v332, 0.0
      %334 = vadd.xlane.f32.xlu0 %v333
      %v335 = vpop.xlane.xlu0 %334
      %v336 = vrcp.pop %v335
      %v337 = vmul.f32 %v332, %v336
      %v338 = vpack.c.bf16 %v337, %v337
      %339 = vrot.lane.b32.xlu0 %v161, 56
      %v340 = vpop.permute.xlu0 %339
      %v342 = vsel %vm164, %v338, 0
      %v345 = vsel %vm231, %v340, 0
      %347 = vmatprep.subr.bf16.mxu0 0
      %348 = vmatpush1.bf16.msra.mxu0 %v345
      %349 = vmatprep.subr.bf16.mxu0 0
      %350 = vmatpush1.bf16.msra.mxu0 0
      %351 = vmatprep.subr.bf16.mxu0 0
      %352 = vmatpush1.bf16.msra.mxu0 0
      %353 = vmatprep.subr.bf16.mxu0 0
      %354 = vmatpush1.bf16.msra.mxu0 0
      %355 = vmatprep.subr.bf16.mxu0 0
      %356 = vmatpush1.bf16.msra.mxu0 0
      %357 = vmatprep.subr.bf16.mxu0 0
      %358 = vmatpush1.bf16.msra.mxu0 0
      %359 = vmatprep.subr.bf16.mxu0 0
      %360 = vmatpush1.bf16.msra.mxu0 0
      %361 = vmatprep.subr.bf16.mxu0 0
      %362 = vmatpush1.bf16.msra.mxu0 0
      %363 = vmatprep.subr.bf16.mxu0 0
      %364 = vmatpush1.bf16.msra.mxu0 0
      %365 = vmatprep.subr.bf16.mxu0 0
      %366 = vmatpush1.bf16.msra.mxu0 0
      %367 = vmatprep.subr.bf16.mxu0 0
      %368 = vmatpush1.bf16.msra.mxu0 0
      %369 = vmatprep.subr.bf16.mxu0 0
      %370 = vmatpush1.bf16.msra.mxu0 0
      %371 = vmatprep.subr.bf16.mxu0 0
      %372 = vmatpush1.bf16.msra.mxu0 0
      %373 = vmatprep.subr.bf16.mxu0 0
      %374 = vmatpush1.bf16.msra.mxu0 0
      %375 = vmatprep.subr.bf16.mxu0 0
      %376 = vmatpush1.bf16.msra.mxu0 0
      %377 = vmatprep.subr.bf16.mxu0 0
      %378 = vmatpush1.bf16.msra.mxu0 0
      %379 = vmatprep.mubr.bf16.mxu0 0
      %380 = vmatmul.mubr.bf16.gmra.mrb[0].mxu0 %v342
      %v381 = vpop.f32.mrb[0].mxu0
      %v382 = vadd.f32 0.0, %v381
      %v383 = vpop.f32.mrb[0].mxu0
      %v384 = vpop.f32.mrb[0].mxu0
      %v385 = vpop.f32.mrb[0].mxu0
      %386 = vdwg.mxu0
      %387 = vrot.lane.b32.xlu0 %v161, 112
      %v388 = vpop.permute.xlu0 %387
      %389 = vrot.lane.b32.xlu0 %v161, 80
      %v390 = vpop.permute.xlu0 %389
      %v392 = vsel %vm164, %v388, 0
      %v395 = vsel %vm164, %v390, 0
      %397 = vmatprep.subr.bf16.mxu0 0
      %398 = vmatpush1.bf16.xpose.msra.mxu0 %v395
      %399 = vmatprep.subr.bf16.mxu0 0
      %400 = vmatpush1.bf16.xpose.msra.mxu0 0
      %401 = vmatprep.subr.bf16.mxu0 0
      %402 = vmatpush1.bf16.xpose.msra.mxu0 0
      %403 = vmatprep.subr.bf16.mxu0 0
      %404 = vmatpush1.bf16.xpose.msra.mxu0 0
      %405 = vmatprep.subr.bf16.mxu0 0
      %406 = vmatpush1.bf16.xpose.msra.mxu0 0
      %407 = vmatprep.subr.bf16.mxu0 0
      %408 = vmatpush1.bf16.xpose.msra.mxu0 0
      %409 = vmatprep.subr.bf16.mxu0 0
      %410 = vmatpush1.bf16.xpose.msra.mxu0 0
      %411 = vmatprep.subr.bf16.mxu0 0
      %412 = vmatpush1.bf16.xpose.msra.mxu0 0
      %413 = vmatprep.subr.bf16.mxu0 0
      %414 = vmatpush1.bf16.xpose.msra.mxu0 0
      %415 = vmatprep.subr.bf16.mxu0 0
      %416 = vmatpush1.bf16.xpose.msra.mxu0 0
      %417 = vmatprep.subr.bf16.mxu0 0
      %418 = vmatpush1.bf16.xpose.msra.mxu0 0
      %419 = vmatprep.subr.bf16.mxu0 0
      %420 = vmatpush1.bf16.xpose.msra.mxu0 0
      %421 = vmatprep.subr.bf16.mxu0 0
      %422 = vmatpush1.bf16.xpose.msra.mxu0 0
      %423 = vmatprep.subr.bf16.mxu0 0
      %424 = vmatpush1.bf16.xpose.msra.mxu0 0
      %425 = vmatprep.subr.bf16.mxu0 0
      %426 = vmatpush1.bf16.xpose.msra.mxu0 0
      %427 = vmatprep.subr.bf16.mxu0 0
      %428 = vmatpush1.bf16.xpose.msra.mxu0 0
      %429 = vmatprep.mubr.bf16.mxu0 0
      %430 = vmatmul.mubr.bf16.gmra.mrb[0].mxu0 %v392
      %v431 = vpop.f32.mrb[0].mxu0
      %v432 = vadd.f32 0.0, %v431
      %v433 = vpop.f32.mrb[0].mxu0
      %v434 = vpop.f32.mrb[0].mxu0
      %v435 = vpop.f32.mrb[0].mxu0
      %436 = vdwg.mxu0
      %v437 = vmul.f32 %v432, 0.35355338
      %v438 = vsel %vm212, -1e+09, %v437
      %v439 = vsel %vm164, %v438, -inf
      %440 = vmax.xlane.f32.xlu0 %v439
      %v441 = vpop.xlane.xlu0 %440
      %v442 = vsub.f32 %v438, %v441
      %v443 = vmul.f32 %v442, 1.442695
      %v444 = vpow.pop %v443
      %v445 = vsel %vm164, %v444, 0.0
      %446 = vadd.xlane.f32.xlu0 %v445
      %v447 = vpop.xlane.xlu0 %446
      %v448 = vrcp.pop %v447
      %v449 = vmul.f32 %v444, %v448
      %v450 = vpack.c.bf16 %v449, %v449
      %451 = vrot.lane.b32.xlu0 %v161, 48
      %v452 = vpop.permute.xlu0 %451
      %v454 = vsel %vm164, %v450, 0
      %v457 = vsel %vm231, %v452, 0
      %459 = vmatprep.subr.bf16.mxu0 0
      %460 = vmatpush1.bf16.msra.mxu0 %v457
      %461 = vmatprep.subr.bf16.mxu0 0
      %462 = vmatpush1.bf16.msra.mxu0 0
      %463 = vmatprep.subr.bf16.mxu0 0
      %464 = vmatpush1.bf16.msra.mxu0 0
      %465 = vmatprep.subr.bf16.mxu0 0
      %466 = vmatpush1.bf16.msra.mxu0 0
      %467 = vmatprep.subr.bf16.mxu0 0
      %468 = vmatpush1.bf16.msra.mxu0 0
      %469 = vmatprep.subr.bf16.mxu0 0
      %470 = vmatpush1.bf16.msra.mxu0 0
      %471 = vmatprep.subr.bf16.mxu0 0
      %472 = vmatpush1.bf16.msra.mxu0 0
      %473 = vmatprep.subr.bf16.mxu0 0
      %474 = vmatpush1.bf16.msra.mxu0 0
      %475 = vmatprep.subr.bf16.mxu0 0
      %476 = vmatpush1.bf16.msra.mxu0 0
      %477 = vmatprep.subr.bf16.mxu0 0
      %478 = vmatpush1.bf16.msra.mxu0 0
      %479 = vmatprep.subr.bf16.mxu0 0
      %480 = vmatpush1.bf16.msra.mxu0 0
      %481 = vmatprep.subr.bf16.mxu0 0
      %482 = vmatpush1.bf16.msra.mxu0 0
      %483 = vmatprep.subr.bf16.mxu0 0
      %484 = vmatpush1.bf16.msra.mxu0 0
      %485 = vmatprep.subr.bf16.mxu0 0
      %486 = vmatpush1.bf16.msra.mxu0 0
      %487 = vmatprep.subr.bf16.mxu0 0
      %488 = vmatpush1.bf16.msra.mxu0 0
      %489 = vmatprep.subr.bf16.mxu0 0
      %490 = vmatpush1.bf16.msra.mxu0 0
      %491 = vmatprep.mubr.bf16.mxu0 0
      %492 = vmatmul.mubr.bf16.gmra.mrb[0].mxu0 %v454
      %v493 = vpop.f32.mrb[0].mxu0
      %v494 = vadd.f32 0.0, %v493
      %v495 = vpop.f32.mrb[0].mxu0
      %v496 = vpop.f32.mrb[0].mxu0
      %v497 = vpop.f32.mrb[0].mxu0
      %498 = vdwg.mxu0
      %499 = vrot.lane.b32.xlu0 %v161, 104
      %v500 = vpop.permute.xlu0 %499
      %501 = vrot.lane.b32.xlu0 %v161, 72
      %v502 = vpop.permute.xlu0 %501
      %v504 = vsel %vm164, %v500, 0
      %v507 = vsel %vm164, %v502, 0
      %509 = vmatprep.subr.bf16.mxu0 0
      %510 = vmatpush1.bf16.xpose.msra.mxu0 %v507
      %511 = vmatprep.subr.bf16.mxu0 0
      %512 = vmatpush1.bf16.xpose.msra.mxu0 0
      %513 = vmatprep.subr.bf16.mxu0 0
      %514 = vmatpush1.bf16.xpose.msra.mxu0 0
      %515 = vmatprep.subr.bf16.mxu0 0
      %516 = vmatpush1.bf16.xpose.msra.mxu0 0
      %517 = vmatprep.subr.bf16.mxu0 0
      %518 = vmatpush1.bf16.xpose.msra.mxu0 0
      %519 = vmatprep.subr.bf16.mxu0 0
      %520 = vmatpush1.bf16.xpose.msra.mxu0 0
      %521 = vmatprep.subr.bf16.mxu0 0
      %522 = vmatpush1.bf16.xpose.msra.mxu0 0
      %523 = vmatprep.subr.bf16.mxu0 0
      %524 = vmatpush1.bf16.xpose.msra.mxu0 0
      %525 = vmatprep.subr.bf16.mxu0 0
      %526 = vmatpush1.bf16.xpose.msra.mxu0 0
      %527 = vmatprep.subr.bf16.mxu0 0
      %528 = vmatpush1.bf16.xpose.msra.mxu0 0
      %529 = vmatprep.subr.bf16.mxu0 0
      %530 = vmatpush1.bf16.xpose.msra.mxu0 0
      %531 = vmatprep.subr.bf16.mxu0 0
      %532 = vmatpush1.bf16.xpose.msra.mxu0 0
      %533 = vmatprep.subr.bf16.mxu0 0
      %534 = vmatpush1.bf16.xpose.msra.mxu0 0
      %535 = vmatprep.subr.bf16.mxu0 0
      %536 = vmatpush1.bf16.xpose.msra.mxu0 0
      %537 = vmatprep.subr.bf16.mxu0 0
      %538 = vmatpush1.bf16.xpose.msra.mxu0 0
      %539 = vmatprep.subr.bf16.mxu0 0
      %540 = vmatpush1.bf16.xpose.msra.mxu0 0
      %541 = vmatprep.mubr.bf16.mxu0 0
      %542 = vmatmul.mubr.bf16.gmra.mrb[0].mxu0 %v504
      %v543 = vpop.f32.mrb[0].mxu0
      %v544 = vadd.f32 0.0, %v543
      %v545 = vpop.f32.mrb[0].mxu0
      %v546 = vpop.f32.mrb[0].mxu0
      %v547 = vpop.f32.mrb[0].mxu0
      %548 = vdwg.mxu0
      %v549 = vmul.f32 %v544, 0.35355338
      %v550 = vsel %vm212, -1e+09, %v549
      %v551 = vsel %vm164, %v550, -inf
      %552 = vmax.xlane.f32.xlu0 %v551
      %v553 = vpop.xlane.xlu0 %552
      %v554 = vsub.f32 %v550, %v553
      %v555 = vmul.f32 %v554, 1.442695
      %v556 = vpow.pop %v555
      %v557 = vsel %vm164, %v556, 0.0
      %558 = vadd.xlane.f32.xlu0 %v557
      %v559 = vpop.xlane.xlu0 %558
      %v560 = vrcp.pop %v559
      %v561 = vmul.f32 %v556, %v560
      %v562 = vpack.c.bf16 %v561, %v561
      %563 = vrot.lane.b32.xlu0 %v161, 40
      %v564 = vpop.permute.xlu0 %563
      %v566 = vsel %vm164, %v562, 0
      %v569 = vsel %vm231, %v564, 0
      %571 = vmatprep.subr.bf16.mxu0 0
      %572 = vmatpush1.bf16.msra.mxu0 %v569
      %573 = vmatprep.subr.bf16.mxu0 0
      %574 = vmatpush1.bf16.msra.mxu0 0
      %575 = vmatprep.subr.bf16.mxu0 0
      %576 = vmatpush1.bf16.msra.mxu0 0
      %577 = vmatprep.subr.bf16.mxu0 0
      %578 = vmatpush1.bf16.msra.mxu0 0
      %579 = vmatprep.subr.bf16.mxu0 0
      %580 = vmatpush1.bf16.msra.mxu0 0
      %581 = vmatprep.subr.bf16.mxu0 0
      %582 = vmatpush1.bf16.msra.mxu0 0
      %583 = vmatprep.subr.bf16.mxu0 0
      %584 = vmatpush1.bf16.msra.mxu0 0
      %585 = vmatprep.subr.bf16.mxu0 0
      %586 = vmatpush1.bf16.msra.mxu0 0
      %587 = vmatprep.subr.bf16.mxu0 0
      %588 = vmatpush1.bf16.msra.mxu0 0
      %589 = vmatprep.subr.bf16.mxu0 0
      %590 = vmatpush1.bf16.msra.mxu0 0
      %591 = vmatprep.subr.bf16.mxu0 0
      %592 = vmatpush1.bf16.msra.mxu0 0
      %593 = vmatprep.subr.bf16.mxu0 0
      %594 = vmatpush1.bf16.msra.mxu0 0
      %595 = vmatprep.subr.bf16.mxu0 0
      %596 = vmatpush1.bf16.msra.mxu0 0
      %597 = vmatprep.subr.bf16.mxu0 0
      %598 = vmatpush1.bf16.msra.mxu0 0
      %599 = vmatprep.subr.bf16.mxu0 0
      %600 = vmatpush1.bf16.msra.mxu0 0
      %601 = vmatprep.subr.bf16.mxu0 0
      %602 = vmatpush1.bf16.msra.mxu0 0
      %603 = vmatprep.mubr.bf16.mxu0 0
      %604 = vmatmul.mubr.bf16.gmra.mrb[0].mxu0 %v566
      %v605 = vpop.f32.mrb[0].mxu0
      %v606 = vadd.f32 0.0, %v605
      %v607 = vpop.f32.mrb[0].mxu0
      %v608 = vpop.f32.mrb[0].mxu0
      %v609 = vpop.f32.mrb[0].mxu0
      %610 = vdwg.mxu0
      %612 = vrot.lane.b32.xlu0 %v382, 8
      %v613 = vpop.permute.xlu0 %612
      %616 = vrot.lane.b32.xlu0 %v494, 16
      %v617 = vpop.permute.xlu0 %616
      %620 = vrot.lane.b32.xlu0 %v606, 24
      %v621 = vpop.permute.xlu0 %620
      %v623 = vsel %vm164, %v270, %v613
      %vm624 = vcmask 130048
      %v625 = vsel %vm624, %v623, %v617
      %vm626 = vcmask 195584
      %v627 = vsel %vm626, %v625, %v621
      %v628 = vpack.c.bf16 %v627, %v627
      %vm629 = vcmask 257024
      %630 = vst.msk [vmem:[%s155] sm:$0xf] %vm629, %v628
      %p631 = scmp.lt.s32.totalorder %s13, 1
      %s632 = scalar_select %p631, %s13, 1
      %s633 = smul.addr %s632, 4
      %s634 = scalar_lea.vmem %s2, %s633
      // Predicated region
      $region29: #{transformer_forward.42} parent=27 // pred_check
        %p635 = pneg %p83
      $region30: #{transformer_forward.42} parent=27 // pred_check_branch
        %637 = sbr.rel (%p635) target = $region32
      $region31: #{transformer_forward.42} parent=27 // pred_region
        _
      $region32: #{transformer_forward.42} parent=27 // pred_fallthru
        _
    $region28: #{transformer_forward.42} parent=5 // pred_fallthru
      _
    %p638 = scmp.le.s32.totalorder 2, %s8
    // Predicated region
    $region33: #{transformer_forward.42} parent=5 // pred_check
      %p639 = pneg %p638
    $region34: #{transformer_forward.42} parent=5 // pred_check_branch
      %641 = sbr.rel (%p639) target = $region36
    $region35: #{transformer_forward.42} parent=5 // pred_region
      %s642 = ssub.s32 %s8, 2
      // Predicated region
      $region37: #{transformer_forward.42} parent=35 // pred_check
        %p643 = pneg %p89
      $region38: #{transformer_forward.42} parent=35 // pred_check_branch
        %645 = sbr.rel (%p643) target = $region40
      $region39: #{transformer_forward.42} parent=35 // pred_region
        %p646 = scmp.lt.s32.totalorder %s14, 1
        %s647 = scalar_select %p646, %s14, 1
        %s648 = smul.addr %s647, 4
        %s649 = scalar_lea.vmem %s2, %s648
      $region40: #{transformer_forward.42} parent=35 // pred_fallthru
        _
    $region36: #{transformer_forward.42} parent=5 // pred_fallthru
      _
  $region6: #{transformer_forward.42} parent=0 // loop_footer
    %s12 = sadd.s32 1, %s8
  $region7: #{transformer_forward.42} parent=0 // loop_footer_branch
    %7 = sbr.rel target = $region3
  $region8: #{transformer_forward.42} parent=0 // loop_exit
    _

// kernel: transformer_forward.46
$region0: #{transformer_forward.46}
  #allocation0 [shape = 'u32[]', space=smem, size = 0x4, offset = 0x4, fixed_abs, tag = 'smem constant byte address 0x4 - core index']
  #allocation1 [shape = 'u32[144,128]{1,0:T(1,128)}', space=vmem, size = 0x12000, scoped, tag = 'internal scratch']
  %s0 = inlined_call_operand.vmem [shape: bf16[16,32], index: 0, kind: input, shape index: {}]
  %s1 = inlined_call_operand.vmem [shape: bf16[16,64], index: 1, kind: input, shape index: {}]
  %s2 = inlined_call_operand.vmem [shape: f32[2,1,8], index: 2, kind: input, shape index: {}]
  %s3 = inlined_call_operand.vmem [shape: bf16[16,32], index: 3, kind: output, shape index: {}]
  %s4 = sld [smem:[#allocation0]]
  $region45: #{transformer_forward.46} parent=0
    _
  %s6 = ssub.s32 1, %s4
  %s7 = scalar_select 0, %s6, %s4
  loop: start=0, step=1, limit=4
  $region2: #{transformer_forward.46} parent=0 // loop_pre_header
    _
  $region3: #{transformer_forward.46} parent=0 // loop_header
    %s9 = sphi 0, %s13
    %p10 = scmp.ge.s32.totalorder %s9, 4
    %s19 = sphi 0, %s21
    %s22 = sphi 0, %s19
    %s23 = sphi 0, %s22
    %s39 = sphi 0, %s23
    %s45 = sphi 0, %s47
    %s48 = sphi 0, %s45
    %s49 = sphi 0, %s48
    %s65 = sphi 0, %s49
    %s71 = sphi 0, %s73
    %s74 = sphi 0, %s71
    %s75 = sphi 0, %s74
    %s91 = sphi 0, %s75
    %s97 = sphi 0, %s99
    %s100 = sphi 0, %s97
    %s101 = sphi 0, %s100
    %s117 = sphi 0, %s101
  $region4: #{transformer_forward.46} parent=0 // loop_header_branch
    %12 = sbr.rel (%p10) target = $region8
  $region5: #{transformer_forward.46} parent=0 // loop_body
    %s14 = ssub.s32 %s9, 1
    %s15 = ssub.s32 %s9, 2
    %s16 = sadd.s32 %s9, 1
    %s17 = ssub.s32 %s9, %s16
    %p18 = scmp.eq.s32.totalorder %s17, 0
    %s20 = sadd.s32 %s19, 1
    %s21 = scalar_select %p18, %s19, %s20
    %p24 = pneg %p18
    %p25 = scmp.eq.s32.totalorder %s9, 1
    %p26 = por %p24, %p25
    %p27 = scmp.ne.s32.totalorder %s19, %s22
    %p28 = scmp.eq.s32.totalorder %s9, 0
    %p29 = por %p27, %p28
    %p30 = scmp.ne.s32.totalorder %s19, %s22
    %p31 = scmp.eq.s32.totalorder %s14, 1
    %p32 = por %p30, %p31
    %p33 = scmp.ne.s32.totalorder %s22, %s23
    %p34 = scmp.eq.s32.totalorder %s14, 0
    %p35 = por %p33, %p34
    %p36 = scmp.ne.s32.totalorder %s22, %s23
    %p37 = scmp.eq.s32.totalorder %s15, 1
    %p38 = por %p36, %p37
    %p40 = scmp.ne.s32.totalorder %s23, %s39
    %p41 = scmp.eq.s32.totalorder %s15, 0
    %p42 = por %p40, %p41
    %s43 = ssub.s32 %s9, %s16
    %p44 = scmp.eq.s32.totalorder %s43, 0
    %s46 = sadd.s32 %s45, 1
    %s47 = scalar_select %p44, %s45, %s46
    %p50 = pneg %p44
    %p51 = scmp.eq.s32.totalorder %s9, 1
    %p52 = por %p50, %p51
    %p53 = scmp.ne.s32.totalorder %s45, %s48
    %p54 = scmp.eq.s32.totalorder %s9, 0
    %p55 = por %p53, %p54
    %p56 = scmp.ne.s32.totalorder %s45, %s48
    %p57 = scmp.eq.s32.totalorder %s14, 1
    %p58 = por %p56, %p57
    %p59 = scmp.ne.s32.totalorder %s48, %s49
    %p60 = scmp.eq.s32.totalorder %s14, 0
    %p61 = por %p59, %p60
    %p62 = scmp.ne.s32.totalorder %s48, %s49
    %p63 = scmp.eq.s32.totalorder %s15, 1
    %p64 = por %p62, %p63
    %p66 = scmp.ne.s32.totalorder %s49, %s65
    %p67 = scmp.eq.s32.totalorder %s15, 0
    %p68 = por %p66, %p67
    %s69 = ssub.s32 %s9, %s16
    %p70 = scmp.eq.s32.totalorder %s69, 0
    %s72 = sadd.s32 %s71, 1
    %s73 = scalar_select %p70, %s71, %s72
    %p76 = pneg %p70
    %p77 = scmp.eq.s32.totalorder %s9, 1
    %p78 = por %p76, %p77
    %p79 = scmp.ne.s32.totalorder %s71, %s74
    %p80 = scmp.eq.s32.totalorder %s9, 0
    %p81 = por %p79, %p80
    %p82 = scmp.ne.s32.totalorder %s71, %s74
    %p83 = scmp.eq.s32.totalorder %s14, 1
    %p84 = por %p82, %p83
    %p85 = scmp.ne.s32.totalorder %s74, %s75
    %p86 = scmp.eq.s32.totalorder %s14, 0
    %p87 = por %p85, %p86
    %p88 = scmp.ne.s32.totalorder %s74, %s75
    %p89 = scmp.eq.s32.totalorder %s15, 1
    %p90 = por %p88, %p89
    %p92 = scmp.ne.s32.totalorder %s75, %s91
    %p93 = scmp.eq.s32.totalorder %s15, 0
    %p94 = por %p92, %p93
    %s95 = ssub.s32 %s9, %s16
    %p96 = scmp.eq.s32.totalorder %s95, 0
    %s98 = sadd.s32 %s97, 1
    %s99 = scalar_select %p96, %s97, %s98
    %p102 = pneg %p96
    %p103 = scmp.eq.s32.totalorder %s9, 1
    %p104 = por %p102, %p103
    %p105 = scmp.ne.s32.totalorder %s97, %s100
    %p106 = scmp.eq.s32.totalorder %s9, 0
    %p107 = por %p105, %p106
    %p108 = scmp.ne.s32.totalorder %s97, %s100
    %p109 = scmp.eq.s32.totalorder %s14, 1
    %p110 = por %p108, %p109
    %p111 = scmp.ne.s32.totalorder %s100, %s101
    %p112 = scmp.eq.s32.totalorder %s14, 0
    %p113 = por %p111, %p112
    %p114 = scmp.ne.s32.totalorder %s100, %s101
    %p115 = scmp.eq.s32.totalorder %s15, 1
    %p116 = por %p114, %p115
    %p118 = scmp.ne.s32.totalorder %s101, %s117
    %p119 = scmp.eq.s32.totalorder %s15, 0
    %p120 = por %p118, %p119
    %p121 = scmp.le.s32.totalorder 1, %s9
    %p122 = scmp.lt.s32.totalorder %s9, 3
    %p123 = pnand %p121, %p122
    %p124 = pneg %p123
    // Predicated region
    $region9: #{transformer_forward.46} parent=5 // pred_check
      _
    $region10: #{transformer_forward.46} parent=5 // pred_check_branch
      %126 = sbr.rel (%p123) target = $region12
    $region11: #{transformer_forward.46} parent=5 // pred_region
      %s127 = ssub.s32 %s9, 1
    $region12: #{transformer_forward.46} parent=5 // pred_fallthru
      _
    %p128 = scmp.lt.s32.totalorder %s9, 2
    // Predicated region
    $region13: #{transformer_forward.46} parent=5 // pred_check
      %p129 = pneg %p128
    $region14: #{transformer_forward.46} parent=5 // pred_check_branch
      %131 = sbr.rel (%p129) target = $region16
    $region15: #{transformer_forward.46} parent=5 // pred_region
      // Predicated region
      $region17: #{transformer_forward.46} parent=15 // pred_check
        %p132 = pneg %p29
      $region18: #{transformer_forward.46} parent=15 // pred_check_branch
        %134 = sbr.rel (%p132) target = $region20
      $region19: #{transformer_forward.46} parent=15 // pred_region
        %p135 = scmp.lt.s32.totalorder %s9, 1
        %s136 = scalar_select %p135, %s9, 1
        %s137 = smul.addr %s136, 4
        %s138 = scalar_lea.vmem %s0, %s137
      $region20: #{transformer_forward.46} parent=15 // pred_fallthru
        _
      // Predicated region
      $region21: #{transformer_forward.46} parent=15 // pred_check
        %p139 = pneg %p55
      $region22: #{transformer_forward.46} parent=15 // pred_check_branch
        %141 = sbr.rel (%p139) target = $region24
      $region23: #{transformer_forward.46} parent=15 // pred_region
        %p142 = scmp.lt.s32.totalorder %s9, 1
        %s143 = scalar_select %p142, %s9, 1
        %s144 = smul.addr %s143, 4
        %s145 = scalar_lea.vmem %s1, %s144
      $region24: #{transformer_forward.46} parent=15 // pred_fallthru
        _
      // Predicated region
      $region25: #{transformer_forward.46} parent=15 // pred_check
        %p146 = pneg %p81
      $region26: #{transformer_forward.46} parent=15 // pred_check_branch
        %148 = sbr.rel (%p146) target = $region28
      $region27: #{transformer_forward.46} parent=15 // pred_region
        %p149 = scmp.lt.s32.totalorder %s9, 1
        %s150 = scalar_select %p149, %s9, 1
        %s151 = scalar_lea.vmem %s2, %s150
      $region28: #{transformer_forward.46} parent=15 // pred_fallthru
        _
    $region16: #{transformer_forward.46} parent=5 // pred_fallthru
      _
    %p152 = scmp.le.s32.totalorder 1, %s9
    %p153 = scmp.lt.s32.totalorder %s9, 3
    %p154 = pnand %p152, %p153
    %p155 = pneg %p154
    // Predicated region
    $region29: #{transformer_forward.46} parent=5 // pred_check
      _
    $region30: #{transformer_forward.46} parent=5 // pred_check_branch
      %157 = sbr.rel (%p154) target = $region32
    $region31: #{transformer_forward.46} parent=5 // pred_region
      %s158 = ssub.s32 %s9, 1
      %p159 = scmp.lt.s32.totalorder %s14, 1
      %s160 = scalar_select %p159, %s14, 1
      %s161 = smul.addr %s160, 4
      %s162 = scalar_lea.vmem %s0, %s161
      %p163 = pneg %p35
      %p164 = pneg %p32
      %p165 = scmp.lt.s32.totalorder %s14, 1
      %s166 = scalar_select %p165, %s14, 1
      %s167 = smul.addr %s166, 4
      %s168 = scalar_lea.vmem %s1, %s167
      %p169 = pneg %p61
      %p170 = pneg %p58
      %p171 = scmp.lt.s32.totalorder %s14, 1
      %s172 = scalar_select %p171, %s14, 1
      %s173 = scalar_lea.vmem %s2, %s172
      %p174 = pneg %p87
      %p175 = pneg %p84
      %p176 = pneg %p113
      %p177 = pneg %p110
      %p178 = scmp.lt.s32.totalorder %s14, 1
      %s179 = scalar_select %p178, %s14, 1
      %s180 = smul.addr %s179, 4
      %s181 = scalar_lea.vmem %s3, %s180
      %p182 = scmp.lt.s32.totalorder %s14, 1
      %s183 = scalar_select %p182, %s14, 1
      %s184 = smul.addr %s183, 4
      %s185 = scalar_lea.vmem %s0, %s184
      %p186 = scmp.lt.s32.totalorder %s14, 1
      %s187 = scalar_select %p186, %s14, 1
      %s188 = smul.addr %s187, 4
      %s189 = scalar_lea.vmem %s1, %s188
      %p190 = scmp.lt.s32.totalorder %s14, 1
      %s191 = scalar_select %p190, %s14, 1
      %s192 = scalar_lea.vmem %s2, %s191
      %p193 = scmp.lt.s32.totalorder %s14, 1
      %s194 = scalar_select %p193, %s14, 1
      %s195 = smul.addr %s194, 4
      %s196 = scalar_lea.vmem %s3, %s195
      %v198 = vld [vmem:[%s192] sm:$0x1]
      %v199 = vld [vmem:[%s185] sm:$0xf]
      %v200 = vld [vmem:[%s189] sm:$0xf]
      %vm201 = vcmask 64512
      %v203 = vsel %vm201, %v199, 0
      %v206 = vsel %vm201, %v200, 0
      %208 = vmatprep.subr.bf16.mxu0 0
      %209 = vmatpush1.bf16.xpose.msra.mxu0 %v206
      %210 = vmatprep.subr.bf16.mxu0 0
      %211 = vmatpush1.bf16.xpose.msra.mxu0 0
      %212 = vmatprep.subr.bf16.mxu0 0
      %213 = vmatpush1.bf16.xpose.msra.mxu0 0
      %214 = vmatprep.subr.bf16.mxu0 0
      %215 = vmatpush1.bf16.xpose.msra.mxu0 0
      %216 = vmatprep.subr.bf16.mxu0 0
      %217 = vmatpush1.bf16.xpose.msra.mxu0 0
      %218 = vmatprep.subr.bf16.mxu0 0
      %219 = vmatpush1.bf16.xpose.msra.mxu0 0
      %220 = vmatprep.subr.bf16.mxu0 0
      %221 = vmatpush1.bf16.xpose.msra.mxu0 0
      %222 = vmatprep.subr.bf16.mxu0 0
      %223 = vmatpush1.bf16.xpose.msra.mxu0 0
      %224 = vmatprep.subr.bf16.mxu0 0
      %225 = vmatpush1.bf16.xpose.msra.mxu0 0
      %226 = vmatprep.subr.bf16.mxu0 0
      %227 = vmatpush1.bf16.xpose.msra.mxu0 0
      %228 = vmatprep.subr.bf16.mxu0 0
      %229 = vmatpush1.bf16.xpose.msra.mxu0 0
      %230 = vmatprep.subr.bf16.mxu0 0
      %231 = vmatpush1.bf16.xpose.msra.mxu0 0
      %232 = vmatprep.subr.bf16.mxu0 0
      %233 = vmatpush1.bf16.xpose.msra.mxu0 0
      %234 = vmatprep.subr.bf16.mxu0 0
      %235 = vmatpush1.bf16.xpose.msra.mxu0 0
      %236 = vmatprep.subr.bf16.mxu0 0
      %237 = vmatpush1.bf16.xpose.msra.mxu0 0
      %238 = vmatprep.subr.bf16.mxu0 0
      %239 = vmatpush1.bf16.xpose.msra.mxu0 0
      %240 = vmatprep.mubr.bf16.mxu0 0
      %241 = vmatmul.mubr.bf16.gmra.mrb[0].mxu0 %v203
      %v242 = vpop.f32.mrb[0].mxu0
      %v243 = vadd.f32 0.0, %v242
      %v244 = vpop.f32.mrb[0].mxu0
      %v245 = vpop.f32.mrb[0].mxu0
      %v246 = vpop.f32.mrb[0].mxu0
      %247 = vdwg.mxu0
      %v248 = vmul.f32 %v243, 0.35355338
      %vm249 = vcmp.eq.f32.partialorder %v198, 0.0
      %v250 = vsel %vm249, 1, 0
      %v251 = vlaneseq
      %v252 = vshrl.u32 %v251, 7
      %v253 = vsub.s32 0, %v252
      %v254 = vrot.slane %v250, %v253
      %vm255 = vcmp.eq.s32.totalorder %v254, 1
      %v256 = vsel %vm255, -1e+09, %v248
      %v257 = vsel %vm201, %v256, -inf
      %258 = vmax.xlane.f32.xlu0 %v257
      %v259 = vpop.xlane.xlu0 %258
      %v260 = vsub.f32 %v256, %v259
      %v261 = vmul.f32 %v260, 1.442695
      %v262 = vpow.pop %v261
      %v263 = vsel %vm201, %v262, 0.0
      %264 = vadd.xlane.f32.xlu0 %v263
      %v265 = vpop.xlane.xlu0 %264
      %v266 = vrcp.pop %v265
      %v267 = vmul.f32 %v262, %v266
      %v268 = vpack.c.bf16 %v267, %v267
      %v270 = vunpack.c.l.b16 %v200
      %v271 = vpack.c.b16 %v270, %v270
      %272 = vrot.lane.b32.xlu0 %v271, 96
      %v273 = vpop.permute.xlu0 %272
      %v275 = vsel %vm201, %v268, 0
      %vm277 = vcmask 1043456
      %v279 = vsel %vm277, %v273, 0
      %281 = vmatprep.subr.bf16.mxu0 0
      %282 = vmatpush1.bf16.msra.mxu0 %v279
      %283 = vmatprep.subr.bf16.mxu0 0
      %284 = vmatpush1.bf16.msra.mxu0 0
      %285 = vmatprep.subr.bf16.mxu0 0
      %286 = vmatpush1.bf16.msra.mxu0 0
      %287 = vmatprep.subr.bf16.mxu0 0
      %288 = vmatpush1.bf16.msra.mxu0 0
      %289 = vmatprep.subr.bf16.mxu0 0
      %290 = vmatpush1.bf16.msra.mxu0 0
      %291 = vmatprep.subr.bf16.mxu0 0
      %292 = vmatpush1.bf16.msra.mxu0 0
      %293 = vmatprep.subr.bf16.mxu0 0
      %294 = vmatpush1.bf16.msra.mxu0 0
      %295 = vmatprep.subr.bf16.mxu0 0
      %296 = vmatpush1.bf16.msra.mxu0 0
      %297 = vmatprep.subr.bf16.mxu0 0
      %298 = vmatpush1.bf16.msra.mxu0 0
      %299 = vmatprep.subr.bf16.mxu0 0
      %300 = vmatpush1.bf16.msra.mxu0 0
      %301 = vmatprep.subr.bf16.mxu0 0
      %302 = vmatpush1.bf16.msra.mxu0 0
      %303 = vmatprep.subr.bf16.mxu0 0
      %304 = vmatpush1.bf16.msra.mxu0 0
      %305 = vmatprep.subr.bf16.mxu0 0
      %306 = vmatpush1.bf16.msra.mxu0 0
      %307 = vmatprep.subr.bf16.mxu0 0
      %308 = vmatpush1.bf16.msra.mxu0 0
      %309 = vmatprep.subr.bf16.mxu0 0
      %310 = vmatpush1.bf16.msra.mxu0 0
      %311 = vmatprep.subr.bf16.mxu0 0
      %312 = vmatpush1.bf16.msra.mxu0 0
      %313 = vmatprep.mubr.bf16.mxu0 0
      %314 = vmatmul.mubr.bf16.gmra.mrb[0].mxu0 %v275
      %v315 = vpop.f32.mrb[0].mxu0
      %v316 = vadd.f32 0.0, %v315
      %v317 = vpop.f32.mrb[0].mxu0
      %v318 = vpop.f32.mrb[0].mxu0
      %v319 = vpop.f32.mrb[0].mxu0
      %320 = vdwg.mxu0
      %v322 = vunpack.c.l.b16 %v199
      %v323 = vpack.c.b16 %v322, %v322
      %324 = vrot.lane.b32.xlu0 %v323, 120
      %v325 = vpop.permute.xlu0 %324
      %326 = vrot.lane.b32.xlu0 %v271, 120
      %v327 = vpop.permute.xlu0 %326
      %v329 = vsel %vm201, %v325, 0
      %v332 = vsel %vm201, %v327, 0
      %334 = vmatprep.subr.bf16.mxu0 0
      %335 = vmatpush1.bf16.xpose.msra.mxu0 %v332
      %336 = vmatprep.subr.bf16.mxu0 0
      %337 = vmatpush1.bf16.xpose.msra.mxu0 0
      %338 = vmatprep.subr.bf16.mxu0 0
      %339 = vmatpush1.bf16.xpose.msra.mxu0 0
      %340 = vmatprep.subr.bf16.mxu0 0
      %341 = vmatpush1.bf16.xpose.msra.mxu0 0
      %342 = vmatprep.subr.bf16.mxu0 0
      %343 = vmatpush1.bf16.xpose.msra.mxu0 0
      %344 = vmatprep.subr.bf16.mxu0 0
      %345 = vmatpush1.bf16.xpose.msra.mxu0 0
      %346 = vmatprep.subr.bf16.mxu0 0
      %347 = vmatpush1.bf16.xpose.msra.mxu0 0
      %348 = vmatprep.subr.bf16.mxu0 0
      %349 = vmatpush1.bf16.xpose.msra.mxu0 0
      %350 = vmatprep.subr.bf16.mxu0 0
      %351 = vmatpush1.bf16.xpose.msra.mxu0 0
      %352 = vmatprep.subr.bf16.mxu0 0
      %353 = vmatpush1.bf16.xpose.msra.mxu0 0
      %354 = vmatprep.subr.bf16.mxu0 0
      %355 = vmatpush1.bf16.xpose.msra.mxu0 0
      %356 = vmatprep.subr.bf16.mxu0 0
      %357 = vmatpush1.bf16.xpose.msra.mxu0 0
      %358 = vmatprep.subr.bf16.mxu0 0
      %359 = vmatpush1.bf16.xpose.msra.mxu0 0
      %360 = vmatprep.subr.bf16.mxu0 0
      %361 = vmatpush1.bf16.xpose.msra.mxu0 0
      %362 = vmatprep.subr.bf16.mxu0 0
      %363 = vmatpush1.bf16.xpose.msra.mxu0 0
      %364 = vmatprep.subr.bf16.mxu0 0
      %365 = vmatpush1.bf16.xpose.msra.mxu0 0
      %366 = vmatprep.mubr.bf16.mxu0 0
      %367 = vmatmul.mubr.bf16.gmra.mrb[0].mxu0 %v329
      %v368 = vpop.f32.mrb[0].mxu0
      %v369 = vadd.f32 0.0, %v368
      %v370 = vpop.f32.mrb[0].mxu0
      %v371 = vpop.f32.mrb[0].mxu0
      %v372 = vpop.f32.mrb[0].mxu0
      %373 = vdwg.mxu0
      %v374 = vmul.f32 %v369, 0.35355338
      %v375 = vsel %vm255, -1e+09, %v374
      %v376 = vsel %vm201, %v375, -inf
      %377 = vmax.xlane.f32.xlu0 %v376
      %v378 = vpop.xlane.xlu0 %377
      %v379 = vsub.f32 %v375, %v378
      %v380 = vmul.f32 %v379, 1.442695
      %v381 = vpow.pop %v380
      %v382 = vsel %vm201, %v381, 0.0
      %383 = vadd.xlane.f32.xlu0 %v382
      %v384 = vpop.xlane.xlu0 %383
      %v385 = vrcp.pop %v384
      %v386 = vmul.f32 %v381, %v385
      %v387 = vpack.c.bf16 %v386, %v386
      %388 = vrot.lane.b32.xlu0 %v271, 88
      %v389 = vpop.permute.xlu0 %388
      %v391 = vsel %vm201, %v387, 0
      %v394 = vsel %vm277, %v389, 0
      %396 = vmatprep.subr.bf16.mxu0 0
      %397 = vmatpush1.bf16.msra.mxu0 %v394
      %398 = vmatprep.subr.bf16.mxu0 0
      %399 = vmatpush1.bf16.msra.mxu0 0
      %400 = vmatprep.subr.bf16.mxu0 0
      %401 = vmatpush1.bf16.msra.mxu0 0
      %402 = vmatprep.subr.bf16.mxu0 0
      %403 = vmatpush1.bf16.msra.mxu0 0
      %404 = vmatprep.subr.bf16.mxu0 0
      %405 = vmatpush1.bf16.msra.mxu0 0
      %406 = vmatprep.subr.bf16.mxu0 0
      %407 = vmatpush1.bf16.msra.mxu0 0
      %408 = vmatprep.subr.bf16.mxu0 0
      %409 = vmatpush1.bf16.msra.mxu0 0
      %410 = vmatprep.subr.bf16.mxu0 0
      %411 = vmatpush1.bf16.msra.mxu0 0
      %412 = vmatprep.subr.bf16.mxu0 0
      %413 = vmatpush1.bf16.msra.mxu0 0
      %414 = vmatprep.subr.bf16.mxu0 0
      %415 = vmatpush1.bf16.msra.mxu0 0
      %416 = vmatprep.subr.bf16.mxu0 0
      %417 = vmatpush1.bf16.msra.mxu0 0
      %418 = vmatprep.subr.bf16.mxu0 0
      %419 = vmatpush1.bf16.msra.mxu0 0
      %420 = vmatprep.subr.bf16.mxu0 0
      %421 = vmatpush1.bf16.msra.mxu0 0
      %422 = vmatprep.subr.bf16.mxu0 0
      %423 = vmatpush1.bf16.msra.mxu0 0
      %424 = vmatprep.subr.bf16.mxu0 0
      %425 = vmatpush1.bf16.msra.mxu0 0
      %426 = vmatprep.subr.bf16.mxu0 0
      %427 = vmatpush1.bf16.msra.mxu0 0
      %428 = vmatprep.mubr.bf16.mxu0 0
      %429 = vmatmul.mubr.bf16.gmra.mrb[0].mxu0 %v391
      %v430 = vpop.f32.mrb[0].mxu0
      %v431 = vadd.f32 0.0, %v430
      %v432 = vpop.f32.mrb[0].mxu0
      %v433 = vpop.f32.mrb[0].mxu0
      %v434 = vpop.f32.mrb[0].mxu0
      %435 = vdwg.mxu0
      %436 = vrot.lane.b32.xlu0 %v323, 112
      %v437 = vpop.permute.xlu0 %436
      %438 = vrot.lane.b32.xlu0 %v271, 112
      %v439 = vpop.permute.xlu0 %438
      %v441 = vsel %vm201, %v437, 0
      %v444 = vsel %vm201, %v439, 0
      %446 = vmatprep.subr.bf16.mxu0 0
      %447 = vmatpush1.bf16.xpose.msra.mxu0 %v444
      %448 = vmatprep.subr.bf16.mxu0 0
      %449 = vmatpush1.bf16.xpose.msra.mxu0 0
      %450 = vmatprep.subr.bf16.mxu0 0
      %451 = vmatpush1.bf16.xpose.msra.mxu0 0
      %452 = vmatprep.subr.bf16.mxu0 0
      %453 = vmatpush1.bf16.xpose.msra.mxu0 0
      %454 = vmatprep.subr.bf16.mxu0 0
      %455 = vmatpush1.bf16.xpose.msra.mxu0 0
      %456 = vmatprep.subr.bf16.mxu0 0
      %457 = vmatpush1.bf16.xpose.msra.mxu0 0
      %458 = vmatprep.subr.bf16.mxu0 0
      %459 = vmatpush1.bf16.xpose.msra.mxu0 0
      %460 = vmatprep.subr.bf16.mxu0 0
      %461 = vmatpush1.bf16.xpose.msra.mxu0 0
      %462 = vmatprep.subr.bf16.mxu0 0
      %463 = vmatpush1.bf16.xpose.msra.mxu0 0
      %464 = vmatprep.subr.bf16.mxu0 0
      %465 = vmatpush1.bf16.xpose.msra.mxu0 0
      %466 = vmatprep.subr.bf16.mxu0 0
      %467 = vmatpush1.bf16.xpose.msra.mxu0 0
      %468 = vmatprep.subr.bf16.mxu0 0
      %469 = vmatpush1.bf16.xpose.msra.mxu0 0
      %470 = vmatprep.subr.bf16.mxu0 0
      %471 = vmatpush1.bf16.xpose.msra.mxu0 0
      %472 = vmatprep.subr.bf16.mxu0 0
      %473 = vmatpush1.bf16.xpose.msra.mxu0 0
      %474 = vmatprep.subr.bf16.mxu0 0
      %475 = vmatpush1.bf16.xpose.msra.mxu0 0
      %476 = vmatprep.subr.bf16.mxu0 0
      %477 = vmatpush1.bf16.xpose.msra.mxu0 0
      %478 = vmatprep.mubr.bf16.mxu0 0
      %479 = vmatmul.mubr.bf16.gmra.mrb[0].mxu0 %v441
      %v480 = vpop.f32.mrb[0].mxu0
      %v481 = vadd.f32 0.0, %v480
      %v482 = vpop.f32.mrb[0].mxu0
      %v483 = vpop.f32.mrb[0].mxu0
      %v484 = vpop.f32.mrb[0].mxu0
      %485 = vdwg.mxu0
      %v486 = vmul.f32 %v481, 0.35355338
      %v487 = vsel %vm255, -1e+09, %v486
      %v488 = vsel %vm201, %v487, -inf
      %489 = vmax.xlane.f32.xlu0 %v488
      %v490 = vpop.xlane.xlu0 %489
      %v491 = vsub.f32 %v487, %v490
      %v492 = vmul.f32 %v491, 1.442695
      %v493 = vpow.pop %v492
      %v494 = vsel %vm201, %v493, 0.0
      %495 = vadd.xlane.f32.xlu0 %v494
      %v496 = vpop.xlane.xlu0 %495
      %v497 = vrcp.pop %v496
      %v498 = vmul.f32 %v493, %v497
      %v499 = vpack.c.bf16 %v498, %v498
      %500 = vrot.lane.b32.xlu0 %v271, 80
      %v501 = vpop.permute.xlu0 %500
      %v503 = vsel %vm201, %v499, 0
      %v506 = vsel %vm277, %v501, 0
      %508 = vmatprep.subr.bf16.mxu0 0
      %509 = vmatpush1.bf16.msra.mxu0 %v506
      %510 = vmatprep.subr.bf16.mxu0 0
      %511 = vmatpush1.bf16.msra.mxu0 0
      %512 = vmatprep.subr.bf16.mxu0 0
      %513 = vmatpush1.bf16.msra.mxu0 0
      %514 = vmatprep.subr.bf16.mxu0 0
      %515 = vmatpush1.bf16.msra.mxu0 0
      %516 = vmatprep.subr.bf16.mxu0 0
      %517 = vmatpush1.bf16.msra.mxu0 0
      %518 = vmatprep.subr.bf16.mxu0 0
      %519 = vmatpush1.bf16.msra.mxu0 0
      %520 = vmatprep.subr.bf16.mxu0 0
      %521 = vmatpush1.bf16.msra.mxu0 0
      %522 = vmatprep.subr.bf16.mxu0 0
      %523 = vmatpush1.bf16.msra.mxu0 0
      %524 = vmatprep.subr.bf16.mxu0 0
      %525 = vmatpush1.bf16.msra.mxu0 0
      %526 = vmatprep.subr.bf16.mxu0 0
      %527 = vmatpush1.bf16.msra.mxu0 0
      %528 = vmatprep.subr.bf16.mxu0 0
      %529 = vmatpush1.bf16.msra.mxu0 0
      %530 = vmatprep.subr.bf16.mxu0 0
      %531 = vmatpush1.bf16.msra.mxu0 0
      %532 = vmatprep.subr.bf16.mxu0 0
      %533 = vmatpush1.bf16.msra.mxu0 0
      %534 = vmatprep.subr.bf16.mxu0 0
      %535 = vmatpush1.bf16.msra.mxu0 0
      %536 = vmatprep.subr.bf16.mxu0 0
      %537 = vmatpush1.bf16.msra.mxu0 0
      %538 = vmatprep.subr.bf16.mxu0 0
      %539 = vmatpush1.bf16.msra.mxu0 0
      %540 = vmatprep.mubr.bf16.mxu0 0
      %541 = vmatmul.mubr.bf16.gmra.mrb[0].mxu0 %v503
      %v542 = vpop.f32.mrb[0].mxu0
      %v543 = vadd.f32 0.0, %v542
      %v544 = vpop.f32.mrb[0].mxu0
      %v545 = vpop.f32.mrb[0].mxu0
      %v546 = vpop.f32.mrb[0].mxu0
      %547 = vdwg.mxu0
      %548 = vrot.lane.b32.xlu0 %v323, 104
      %v549 = vpop.permute.xlu0 %548
      %550 = vrot.lane.b32.xlu0 %v271, 104
      %v551 = vpop.permute.xlu0 %550
      %v553 = vsel %vm201, %v549, 0
      %v556 = vsel %vm201, %v551, 0
      %558 = vmatprep.subr.bf16.mxu0 0
      %559 = vmatpush1.bf16.xpose.msra.mxu0 %v556
      %560 = vmatprep.subr.bf16.mxu0 0
      %561 = vmatpush1.bf16.xpose.msra.mxu0 0
      %562 = vmatprep.subr.bf16.mxu0 0
      %563 = vmatpush1.bf16.xpose.msra.mxu0 0
      %564 = vmatprep.subr.bf16.mxu0 0
      %565 = vmatpush1.bf16.xpose.msra.mxu0 0
      %566 = vmatprep.subr.bf16.mxu0 0
      %567 = vmatpush1.bf16.xpose.msra.mxu0 0
      %568 = vmatprep.subr.bf16.mxu0 0
      %569 = vmatpush1.bf16.xpose.msra.mxu0 0
      %570 = vmatprep.subr.bf16.mxu0 0
      %571 = vmatpush1.bf16.xpose.msra.mxu0 0
      %572 = vmatprep.subr.bf16.mxu0 0
      %573 = vmatpush1.bf16.xpose.msra.mxu0 0
      %574 = vmatprep.subr.bf16.mxu0 0
      %575 = vmatpush1.bf16.xpose.msra.mxu0 0
      %576 = vmatprep.subr.bf16.mxu0 0
      %577 = vmatpush1.bf16.xpose.msra.mxu0 0
      %578 = vmatprep.subr.bf16.mxu0 0
      %579 = vmatpush1.bf16.xpose.msra.mxu0 0
      %580 = vmatprep.subr.bf16.mxu0 0
      %581 = vmatpush1.bf16.xpose.msra.mxu0 0
      %582 = vmatprep.subr.bf16.mxu0 0
      %583 = vmatpush1.bf16.xpose.msra.mxu0 0
      %584 = vmatprep.subr.bf16.mxu0 0
      %585 = vmatpush1.bf16.xpose.msra.mxu0 0
      %586 = vmatprep.subr.bf16.mxu0 0
      %587 = vmatpush1.bf16.xpose.msra.mxu0 0
      %588 = vmatprep.subr.bf16.mxu0 0
      %589 = vmatpush1.bf16.xpose.msra.mxu0 0
      %590 = vmatprep.mubr.bf16.mxu0 0
      %591 = vmatmul.mubr.bf16.gmra.mrb[0].mxu0 %v553
      %v592 = vpop.f32.mrb[0].mxu0
      %v593 = vadd.f32 0.0, %v592
      %v594 = vpop.f32.mrb[0].mxu0
      %v595 = vpop.f32.mrb[0].mxu0
      %v596 = vpop.f32.mrb[0].mxu0
      %597 = vdwg.mxu0
      %v598 = vmul.f32 %v593, 0.35355338
      %v599 = vsel %vm255, -1e+09, %v598
      %v600 = vsel %vm201, %v599, -inf
      %601 = vmax.xlane.f32.xlu0 %v600
      %v602 = vpop.xlane.xlu0 %601
      %v603 = vsub.f32 %v599, %v602
      %v604 = vmul.f32 %v603, 1.442695
      %v605 = vpow.pop %v604
      %v606 = vsel %vm201, %v605, 0.0
      %607 = vadd.xlane.f32.xlu0 %v606
      %v608 = vpop.xlane.xlu0 %607
      %v609 = vrcp.pop %v608
      %v610 = vmul.f32 %v605, %v609
      %v611 = vpack.c.bf16 %v610, %v610
      %612 = vrot.lane.b32.xlu0 %v271, 72
      %v613 = vpop.permute.xlu0 %612
      %v615 = vsel %vm201, %v611, 0
      %v618 = vsel %vm277, %v613, 0
      %620 = vmatprep.subr.bf16.mxu0 0
      %621 = vmatpush1.bf16.msra.mxu0 %v618
      %622 = vmatprep.subr.bf16.mxu0 0
      %623 = vmatpush1.bf16.msra.mxu0 0
      %624 = vmatprep.subr.bf16.mxu0 0
      %625 = vmatpush1.bf16.msra.mxu0 0
      %626 = vmatprep.subr.bf16.mxu0 0
      %627 = vmatpush1.bf16.msra.mxu0 0
      %628 = vmatprep.subr.bf16.mxu0 0
      %629 = vmatpush1.bf16.msra.mxu0 0
      %630 = vmatprep.subr.bf16.mxu0 0
      %631 = vmatpush1.bf16.msra.mxu0 0
      %632 = vmatprep.subr.bf16.mxu0 0
      %633 = vmatpush1.bf16.msra.mxu0 0
      %634 = vmatprep.subr.bf16.mxu0 0
      %635 = vmatpush1.bf16.msra.mxu0 0
      %636 = vmatprep.subr.bf16.mxu0 0
      %637 = vmatpush1.bf16.msra.mxu0 0
      %638 = vmatprep.subr.bf16.mxu0 0
      %639 = vmatpush1.bf16.msra.mxu0 0
      %640 = vmatprep.subr.bf16.mxu0 0
      %641 = vmatpush1.bf16.msra.mxu0 0
      %642 = vmatprep.subr.bf16.mxu0 0
      %643 = vmatpush1.bf16.msra.mxu0 0
      %644 = vmatprep.subr.bf16.mxu0 0
      %645 = vmatpush1.bf16.msra.mxu0 0
      %646 = vmatprep.subr.bf16.mxu0 0
      %647 = vmatpush1.bf16.msra.mxu0 0
      %648 = vmatprep.subr.bf16.mxu0 0
      %649 = vmatpush1.bf16.msra.mxu0 0
      %650 = vmatprep.subr.bf16.mxu0 0
      %651 = vmatpush1.bf16.msra.mxu0 0
      %652 = vmatprep.mubr.bf16.mxu0 0
      %653 = vmatmul.mubr.bf16.gmra.mrb[0].mxu0 %v615
      %v654 = vpop.f32.mrb[0].mxu0
      %v655 = vadd.f32 0.0, %v654
      %v656 = vpop.f32.mrb[0].mxu0
      %v657 = vpop.f32.mrb[0].mxu0
      %v658 = vpop.f32.mrb[0].mxu0
      %659 = vdwg.mxu0
      %661 = vrot.lane.b32.xlu0 %v431, 8
      %v662 = vpop.permute.xlu0 %661
      %665 = vrot.lane.b32.xlu0 %v543, 16
      %v666 = vpop.permute.xlu0 %665
      %669 = vrot.lane.b32.xlu0 %v655, 24
      %v670 = vpop.permute.xlu0 %669
      %v672 = vsel %vm201, %v316, %v662
      %vm673 = vcmask 130048
      %v674 = vsel %vm673, %v672, %v666
      %vm675 = vcmask 195584
      %v676 = vsel %vm675, %v674, %v670
      %v677 = vpack.c.bf16 %v676, %v676
      %vm678 = vcmask 257024
      %679 = vst.msk [vmem:[%s196] sm:$0xf] %vm678, %v677
      %p680 = scmp.lt.s32.totalorder %s14, 1
      %s681 = scalar_select %p680, %s14, 1
      %s682 = smul.addr %s681, 4
      %s683 = scalar_lea.vmem %s3, %s682
      // Predicated region
      $region33: #{transformer_forward.46} parent=31 // pred_check
        %p684 = pneg %p110
      $region34: #{transformer_forward.46} parent=31 // pred_check_branch
        %686 = sbr.rel (%p684) target = $region36
      $region35: #{transformer_forward.46} parent=31 // pred_region
        _
      $region36: #{transformer_forward.46} parent=31 // pred_fallthru
        _
    $region32: #{transformer_forward.46} parent=5 // pred_fallthru
      _
    %p687 = scmp.le.s32.totalorder 2, %s9
    // Predicated region
    $region37: #{transformer_forward.46} parent=5 // pred_check
      %p688 = pneg %p687
    $region38: #{transformer_forward.46} parent=5 // pred_check_branch
      %690 = sbr.rel (%p688) target = $region40
    $region39: #{transformer_forward.46} parent=5 // pred_region
      %s691 = ssub.s32 %s9, 2
      // Predicated region
      $region41: #{transformer_forward.46} parent=39 // pred_check
        %p692 = pneg %p116
      $region42: #{transformer_forward.46} parent=39 // pred_check_branch
        %694 = sbr.rel (%p692) target = $region44
      $region43: #{transformer_forward.46} parent=39 // pred_region
        %p695 = scmp.lt.s32.totalorder %s15, 1
        %s696 = scalar_select %p695, %s15, 1
        %s697 = smul.addr %s696, 4
        %s698 = scalar_lea.vmem %s3, %s697
      $region44: #{transformer_forward.46} parent=39 // pred_fallthru
        _
    $region40: #{transformer_forward.46} parent=5 // pred_fallthru
      _
  $region6: #{transformer_forward.46} parent=0 // loop_footer
    %s13 = sadd.s32 1, %s9
  $region7: #{transformer_forward.46} parent=0 // loop_footer_branch
    %8 = sbr.rel target = $region3
  $region8: #{transformer_forward.46} parent=0 // loop_exit
    _

</llo_original>
